<compile_context>
chip_gen: v6e
topology: v6e:2x2x1
jax: 0.10.0
libtpu: 0.0.40
codegen_flags: <defaults>
</compile_context>

<pallas_src>
import jax
import jax.numpy as jnp
from jax.experimental import pallas as pl
from jax.experimental.pallas import tpu as pltpu


# ------------------------------ helpers --------------------------------------

def _pick_chunk(n, max_chunk):
    """Largest divisor of n that is <= max_chunk, preferring >= 2 grid steps
    (so v7x's two TensorCores both get 'parallel' blocks)."""
    divs = [c for c in range(1, n + 1) if n % c == 0 and c <= max_chunk]
    multi = [c for c in divs if n // c >= 2]
    return max(multi) if multi else max(divs)


def _head_batch_block(B):
    if B <= 256:
        return B
    for c in (256, 128, 64, 32, 16, 8):
        if B % c == 0:
            return c
    return B


def _pool_w(wp_ref, Wc, Wo):
    """MaxPool1d(kernel=3, stride=2, padding=1) across the rows of wp_ref.

    wp_ref holds one H-pooled band: row w = channel vector at width position w
    (rows >= Wc are garbage and are never read).  Uses strided sublane loads
    (pl.ds stride=2) instead of a per-output-column gather.
    """
    mid = wp_ref[pl.ds(0, Wo, stride=2), :]          # w = 2j
    n_hi = Wc // 2                                   # number of valid w = 2j+1
    odd = wp_ref[pl.ds(1, n_hi, stride=2), :]        # w = 2j+1 (j < n_hi)
    if n_hi == Wo:
        upper = jnp.maximum(mid, odd)
    else:                                            # odd Wc: last window has no 2j+1
        upper = jnp.concatenate(
            [jnp.maximum(mid[:n_hi], odd), mid[n_hi:]], axis=0)
    lower = jnp.maximum(upper[1:Wo], odd[:Wo - 1])   # adds w = 2j-1 for j >= 1
    return jnp.concatenate([upper[0:1], lower], axis=0)     # (Wo, C)


# --------------------------- Pallas kernels -----------------------------------

# Stage 1: conv1 (im2col matmul) + bias + ReLU + maxpool(3,2,1), pair-packed.
#   input  cols : (pb*26*32, 18)   row = pair*832 + h*32 + w   (w>=26 garbage)
#   output      : (pb*224, 128)    row = pair*224 + ih*16 + iw (iw>=13 / tail 0)

def _make_stage1_kernel(pb, C2):
    WP1, HP1 = 32, 26           # padded conv1 row stride / conv1 rows
    ROWS_IN = HP1 * WP1         # 832 rows per pair in the conv scratch
    HO1, WO1 = 13, 13
    WS_OUT = 16
    ROWS_OUT = 14 * WS_OUT      # 224 rows per pair (13 bands + 1 zero band)

    def kernel(cols_ref, w_ref, b_ref, o_ref, y_ref, wp_ref):
        # One deep-M matmul for the whole chunk (MXU, f32 accumulation).
        y_ref[...] = jnp.dot(cols_ref[...], w_ref[...],
                             preferred_element_type=jnp.float32)
        y_ref[...] = jnp.maximum(y_ref[...] + b_ref[...], 0.0)

        def pair_body(i, carry):
            ybase = pl.multiple_of(i * ROWS_IN, 32)
            obase = pl.multiple_of(i * ROWS_OUT, 32)
            for ih in range(HO1):
                lo = max(2 * ih - 1, 0)
                hi = min(2 * ih + 2, HP1)
                band = y_ref[pl.ds(ybase + lo * WP1, WP1), :]      # aligned slab
                for h in range(lo + 1, hi):
                    band = jnp.maximum(
                        band, y_ref[pl.ds(ybase + h * WP1, WP1), :])
                wp_ref[...] = band
                pooled = _pool_w(wp_ref, 26, WO1)                  # (13, C2)
                blk = jnp.concatenate(
                    [pooled, jnp.zeros((WS_OUT - WO1, C2), jnp.float32)], axis=0)
                o_ref[pl.ds(obase + ih * WS_OUT, WS_OUT), :] = blk.astype(
                    o_ref.dtype)
            # spare zero band so conv2's shift-matmul overreach stays in-pair
            o_ref[pl.ds(obase + HO1 * WS_OUT, WS_OUT), :] = jnp.zeros(
                (WS_OUT, C2), o_ref.dtype)
            return carry

        jax.lax.fori_loop(0, pb, pair_body, 0)

    return kernel


def conv1_relu_pool(cols2d, w1p, b1p, n_pairs, C2):
    rows_in, rows_out = 832, 224
    pb = _pick_chunk(n_pairs, 8)          # 8 pairs = 16 images per grid step
    kernel = _make_stage1_kernel(pb, C2)
    return pl.pallas_call(
        kernel,
        out_shape=jax.ShapeDtypeStruct((n_pairs * rows_out, C2), jnp.bfloat16),
        grid=(n_pairs // pb,),
        in_specs=[
            pl.BlockSpec((pb * rows_in, cols2d.shape[1]), lambda i: (i, 0)),
            pl.BlockSpec(w1p.shape, lambda i: (0, 0)),
            pl.BlockSpec(b1p.shape, lambda i: (0, 0)),
        ],
        out_specs=pl.BlockSpec((pb * rows_out, C2), lambda i: (i, 0)),
        scratch_shapes=[
            pltpu.VMEM((pb * rows_in, C2), jnp.float32),   # conv1 output
            pltpu.VMEM((32, C2), jnp.float32),             # one H-pooled band
        ],
        compiler_params=pltpu.CompilerParams(
            dimension_semantics=("parallel",),
            vmem_limit_bytes=48 * 1024 * 1024),
    )(cols2d, w1p, b1p)


# Stage 2: conv2 as 9 shifted tap matmuls + bias + ReLU + maxpool(3,2,1).
#   input  : (pb*224, 128)   row = pair*224 + h*16 + w  (13x13 valid)
#   output : (pb*96, 128)    row = pair*96  + ih*16 + iw (6x6 valid)

def _make_stage2_kernel(pb, C2):
    WS_IN = 16
    ROWS_IN = 14 * WS_IN        # 224 rows per pair
    HC2, WC2 = 11, 11
    HO2, WO2 = 6, 6
    WS_OUT = 16
    ROWS_OUT = HO2 * WS_OUT     # 96 rows per pair
    M = (pb - 1) * ROWS_IN + HC2 * WS_IN   # deep-M covering all valid pixels

    def kernel(x_ref, w_ref, b_ref, o_ref, y_ref, wp_ref):
        # Tap-accumulating conv: no im2col, no lane concats.  Each tap is one
        # chunk-wide matmul against a block-diagonal (128,128) weight.
        for t in range(9):
            kh, kw = t // 3, t % 3
            off = kh * WS_IN + kw
            contrib = jnp.dot(x_ref[off:off + M, :], w_ref[t],
                              preferred_element_type=jnp.float32)
            if t == 0:
                y_ref[0:M, :] = contrib
            else:
                y_ref[0:M, :] = y_ref[0:M, :] + contrib
        y_ref[0:M, :] = jnp.maximum(y_ref[0:M, :] + b_ref[...], 0.0)

        def pair_body(i, carry):
            ybase = pl.multiple_of(i * ROWS_IN, 32)
            obase = pl.multiple_of(i * ROWS_OUT, 32)
            for ih in range(HO2):
                lo = max(2 * ih - 1, 0)
                hi = min(2 * ih + 2, HC2)
                band = y_ref[pl.ds(ybase + lo * WS_IN, WS_IN), :]
                for h in range(lo + 1, hi):
                    band = jnp.maximum(
                        band, y_ref[pl.ds(ybase + h * WS_IN, WS_IN), :])
                wp_ref[...] = band
                pooled = _pool_w(wp_ref, WC2, WO2)                 # (6, C2)
                blk = jnp.concatenate(
                    [pooled, jnp.zeros((WS_OUT - WO2, C2), jnp.float32)], axis=0)
                o_ref[pl.ds(obase + ih * WS_OUT, WS_OUT), :] = blk.astype(
                    o_ref.dtype)
            return carry

        jax.lax.fori_loop(0, pb, pair_body, 0)

    return kernel


def conv2_relu_pool(x2, w2p, b2p, n_pairs, C2):
    rows_in, rows_out = 224, 96
    pb = _pick_chunk(n_pairs, 16)         # 16 pairs = 32 images per grid step
    kernel = _make_stage2_kernel(pb, C2)
    return pl.pallas_call(
        kernel,
        out_shape=jax.ShapeDtypeStruct((n_pairs * rows_out, C2), jnp.bfloat16),
        grid=(n_pairs // pb,),
        in_specs=[
            pl.BlockSpec((pb * rows_in, C2), lambda i: (i, 0)),
            pl.BlockSpec(w2p.shape, lambda i: (0, 0, 0)),
            pl.BlockSpec(b2p.shape, lambda i: (0, 0)),
        ],
        out_specs=pl.BlockSpec((pb * rows_out, C2), lambda i: (i, 0)),
        scratch_shapes=[
            pltpu.VMEM((pb * rows_in, C2), jnp.float32),   # conv2 output
            pltpu.VMEM((16, C2), jnp.float32),             # one H-pooled band
        ],
        compiler_params=pltpu.CompilerParams(
            dimension_semantics=("parallel",),
            vmem_limit_bytes=32 * 1024 * 1024),
    )(x2, w2p, b2p)


# Stage 3: MLP head + softmax (weights resident per batch tile).

def _head_kernel(x_ref, w1_ref, b1_ref, w2_ref, b2_ref, o_ref):
    h = jnp.dot(x_ref[...], w1_ref[...], preferred_element_type=jnp.float32)
    h = jnp.maximum(h + b1_ref[...], 0.0)
    logits = jnp.dot(h.astype(w2_ref.dtype), w2_ref[...],
                     preferred_element_type=jnp.float32) + b2_ref[...]
    m = jnp.max(logits, axis=-1, keepdims=True)
    e = jnp.exp(logits - m)
    denom = jnp.sum(e, axis=-1, keepdims=True)
    # approx reciprocal: rows sum to 1 within ~1e-3 (EUP, off the VALU path)
    o_ref[...] = (e * pl.reciprocal(denom, approx=True)).astype(o_ref.dtype)


def mlp_head_softmax(x, w1, b1, w2, b2):
    B, K = x.shape
    H = w1.shape[1]
    N = w2.shape[1]
    bt = _head_batch_block(B)
    return pl.pallas_call(
        _head_kernel,
        out_shape=jax.ShapeDtypeStruct((B, N), jnp.float32),
        grid=(B // bt,),
        in_specs=[
            pl.BlockSpec((bt, K), lambda i: (i, 0)),
            pl.BlockSpec((K, H), lambda i: (0, 0)),
            pl.BlockSpec((1, H), lambda i: (0, 0)),
            pl.BlockSpec((H, N), lambda i: (0, 0)),
            pl.BlockSpec((1, N), lambda i: (0, 0)),
        ],
        out_specs=pl.BlockSpec((bt, N), lambda i: (i, 0)),
        compiler_params=pltpu.CompilerParams(
            dimension_semantics=("parallel",)),
    )(x, w1, b1, w2, b2)


# ------------------------------ JAX glue --------------------------------------

def init_params(key, hidden_size=64):
    """Deterministic synthetic weights in the PyTorch layouts."""
    ks = jax.random.split(key, 8)
    s = 0.05
    return dict(
        w1=jax.random.normal(ks[0], (hidden_size, 1, 3, 3), jnp.float32) * s,
        b1=jax.random.normal(ks[1], (hidden_size,), jnp.float32) * s,
        w2=jax.random.normal(ks[2], (hidden_size, hidden_size, 3, 3),
                             jnp.float32) * s,
        b2=jax.random.normal(ks[3], (hidden_size,), jnp.float32) * s,
        wf=jax.random.normal(ks[4], (64, 6 * 6 * hidden_size), jnp.float32) * s,
        bf=jax.random.normal(ks[5], (64,), jnp.float32) * s,
        wo=jax.random.normal(ks[6], (10, 64), jnp.float32) * s,
        bo=jax.random.normal(ks[7], (10,), jnp.float32) * s,
    )


def prepare_params(p):
    """One-time conversion of PyTorch-layout weights to pair-packed kernel
    layouts (image pair -> channel groups [0:hs] and [hs:2hs])."""
    hs = p["w1"].shape[0]
    C2 = 2 * hs
    # conv1: (hs,1,3,3) -> (9, hs) tap-major, interleaved per pair member.
    w1c = jnp.transpose(p["w1"], (2, 3, 1, 0)).reshape(9, hs)
    w1p = jnp.zeros((18, C2), jnp.float32)
    w1p = w1p.at[0::2, :hs].set(w1c)
    w1p = w1p.at[1::2, hs:].set(w1c)
    # conv2: per-tap (cin, cout), block-diagonal for the image pair.
    w2t = jnp.transpose(p["w2"], (2, 3, 1, 0)).reshape(9, hs, hs)
    w2p = jnp.zeros((9, C2, C2), jnp.float32)
    w2p = w2p.at[:, :hs, :hs].set(w2t)
    w2p = w2p.at[:, hs:, hs:].set(w2t)
    # fc: fold the NCHW-flatten -> NHWC-flatten permutation into the weight.
    wf_r = p["wf"].reshape(64, hs, 6, 6)
    wfk = jnp.transpose(wf_r, (2, 3, 1, 0)).reshape(6 * 6 * hs, 64)
    return dict(
        w1p=w1p.astype(jnp.bfloat16),
        b1p=jnp.tile(p["b1"], 2).reshape(1, C2).astype(jnp.float32),
        w2p=w2p.astype(jnp.bfloat16),
        b2p=jnp.tile(p["b2"], 2).reshape(1, C2).astype(jnp.float32),
        wfk=wfk.astype(jnp.bfloat16),
        bf=p["bf"].reshape(1, 64).astype(jnp.float32),
        wot=p["wo"].T.astype(jnp.bfloat16),
        bo=p["bo"].reshape(1, 10).astype(jnp.float32),
    )


@jax.jit
def conv_net_forward(x, kp):
    """x: (B, 28, 28) float32 -> (B, 10) softmax probabilities."""
    B = x.shape[0]
    hs = kp["b1p"].shape[1] // 2
    C2 = 2 * hs
    # Pair-pack: two images per 128-lane channel group.
    Bp = B + (B % 2)
    if Bp != B:
        x = jnp.concatenate([x, jnp.zeros((1, 28, 28), x.dtype)], axis=0)
    NP = Bp // 2
    xp = x.reshape(NP, 2, 28, 28).transpose(0, 2, 3, 1).astype(jnp.bfloat16)
    xp = jnp.pad(xp, ((0, 0), (0, 0), (0, 6), (0, 0)))        # W: 28 -> 34
    # conv1 im2col in glue (Cin=2 after pairing -> K=18), W padded 26 -> 32 so
    # every in-kernel row band is sublane-aligned; padded columns are garbage
    # the pooling never reads.
    cols = jnp.concatenate(
        [xp[:, kh:kh + 26, kw:kw + 32, :] for kh in range(3) for kw in range(3)],
        axis=-1)                                               # (NP, 26, 32, 18)
    cols2d = cols.reshape(NP * 26 * 32, 18)
    p1 = conv1_relu_pool(cols2d, kp["w1p"], kp["b1p"], NP, C2)  # (NP*224, C2)
    p2 = conv2_relu_pool(p1, kp["w2p"], kp["b2p"], NP, C2)      # (NP*96,  C2)
    # Unpack the pair packing + NHWC flatten for the fc head (tiny XLA glue).
    feats = p2.reshape(NP, 6, 16, 2, hs)[:, :, :6, :, :]
    feats = feats.transpose(0, 3, 1, 2, 4).reshape(Bp, 6 * 6 * hs)
    probs = mlp_head_softmax(feats, kp["wfk"], kp["bf"], kp["wot"], kp["bo"])
    return probs[:B]


def conv_net_reference(x, p):
    """Pure-XLA f32 reference with exact PyTorch (NCHW) semantics."""
    B = x.shape[0]
    xi = x.reshape(B, 1, 28, 28)
    dn = ("NCHW", "OIHW", "NCHW")
    c1 = jax.lax.conv_general_dilated(xi, p["w1"], (1, 1), "VALID",
                                      dimension_numbers=dn)
    r1 = jnp.maximum(c1 + p["b1"][None, :, None, None], 0.0)
    p1 = jax.lax.reduce_window(r1, -jnp.inf, jax.lax.max, (1, 1, 3, 3),
                               (1, 1, 2, 2), [(0, 0), (0, 0), (1, 1), (1, 1)])
    c2 = jax.lax.conv_general_dilated(p1, p["w2"], (1, 1), "VALID",
                                      dimension_numbers=dn)
    r2 = jnp.maximum(c2 + p["b2"][None, :, None, None], 0.0)
    p2 = jax.lax.reduce_window(r2, -jnp.inf, jax.lax.max, (1, 1, 3, 3),
                               (1, 1, 2, 2), [(0, 0), (0, 0), (1, 1), (1, 1)])
    l1 = p2.reshape(B, -1)
    r3 = jnp.maximum(l1 @ p["wf"].T + p["bf"], 0.0)
    logits = r3 @ p["wo"].T + p["bo"]
    return jax.nn.softmax(logits, axis=1)


if __name__ == "__main__":
    key = jax.random.PRNGKey(0)
    pkey, xkey = jax.random.split(key)
    params = init_params(pkey, hidden_size=64)
    kp = prepare_params(params)

    # Module reshapes the input to (B, 1, 28, 28); docstring says (B, H, W).
    x = jax.random.normal(xkey, (2, 28, 28), jnp.float32)
    out = jax.block_until_ready(conv_net_forward(x, kp))
    assert out.shape == (2, 10), out.shape
    assert bool(jnp.allclose(jnp.sum(out, axis=1), 1.0, atol=2e-3))
    ref = jax.block_until_ready(conv_net_reference(x, params))
    max_err = float(jnp.max(jnp.abs(out - ref)))
    assert max_err < 5e-2, f"max |pallas - reference| = {max_err}"

    # Second shape: exercises multi-pair chunks and >=2 grid steps.
    x8 = jax.random.normal(jax.random.PRNGKey(1), (8, 28, 28), jnp.float32)
    out8 = jax.block_until_ready(conv_net_forward(x8, kp))
    ref8 = jax.block_until_ready(conv_net_reference(x8, params))
    assert out8.shape == (8, 10), out8.shape
    max_err8 = float(jnp.max(jnp.abs(out8 - ref8)))
    assert max_err8 < 5e-2, f"max |pallas - reference| = {max_err8}"

    print("KERNEL_OK")
</pallas_src>

<mosaic_0001>
module attributes {stable_mosaic.version = 11 : i64} {
  func.func @kernel(%arg0: i32, %arg1: memref<832x18xbf16, #tpu.memory_space<vmem>>, %arg2: memref<18x128xbf16, #tpu.memory_space<vmem>>, %arg3: memref<1x128xf32, #tpu.memory_space<vmem>>, %arg4: memref<224x128xbf16, #tpu.memory_space<vmem>>, %arg5: memref<832x128xf32, #tpu.memory_space<vmem>>, %arg6: memref<32x128xf32, #tpu.memory_space<vmem>>) attributes {dimension_semantics = [#tpu.dimension_semantics<parallel>], iteration_bounds = array<i64: 1>, scalar_prefetch = 0 : i64, scratch_operands = 2 : i64, tpu.core_type = #tpu.core_type<tc>, window_params = [{transform_indices = @transform_0, window_bounds = array<i64: 832, 18>}, {pipeline_mode = #tpu.pipeline_mode<synchronous>, transform_indices = @transform_1, window_bounds = array<i64: 18, 128>}, {pipeline_mode = #tpu.pipeline_mode<synchronous>, transform_indices = @transform_2, window_bounds = array<i64: 1, 128>}, {transform_indices = @transform_3, window_bounds = array<i64: 224, 128>}]} {
    %c0 = arith.constant 0 : index
    %c0_0 = arith.constant 0 : index
    %0 = vector.load %arg1[%c0, %c0_0] : memref<832x18xbf16, #tpu.memory_space<vmem>>, vector<832x18xbf16>
    %c0_1 = arith.constant 0 : index
    %c0_2 = arith.constant 0 : index
    %1 = vector.load %arg2[%c0_1, %c0_2] : memref<18x128xbf16, #tpu.memory_space<vmem>>, vector<18x128xbf16>
    %cst = arith.constant dense<0.000000e+00> : vector<832x128xf32>
    %2 = tpu.matmul %0, %1, %cst {dimension_numbers = #tpu.dot_dimension_numbers<[1], [0], [0], [1], [0, 0, 1, 1], [], []>} : vector<832x18xbf16>, vector<18x128xbf16>, vector<832x128xf32> -> vector<832x128xf32>
    %c0_3 = arith.constant 0 : index
    %c0_4 = arith.constant 0 : index
    %3 = vector.load %arg5[%c0_3, %c0_4] : memref<832x128xf32, #tpu.memory_space<vmem>>, vector<832x128xf32>
    tpu.vector_store %arg5[%c0_3, %c0_4], %2 {strides = array<i32>} : memref<832x128xf32, #tpu.memory_space<vmem>>, vector<832x128xf32>,
    %c0_5 = arith.constant 0 : index
    %c0_6 = arith.constant 0 : index
    %4 = vector.load %arg5[%c0_5, %c0_6] : memref<832x128xf32, #tpu.memory_space<vmem>>, vector<832x128xf32>
    %c0_7 = arith.constant 0 : index
    %c0_8 = arith.constant 0 : index
    %5 = vector.load %arg3[%c0_7, %c0_8] : memref<1x128xf32, #tpu.memory_space<vmem>>, vector<1x128xf32>
    %6 = vector.broadcast %5 : vector<1x128xf32> to vector<832x128xf32>
    %7 = arith.addf %4, %6 : vector<832x128xf32>
    %cst_9 = arith.constant 0.000000e+00 : f32
    %8 = vector.broadcast %cst_9 : f32 to vector<832x128xf32>
    %9 = arith.maximumf %7, %8 : vector<832x128xf32>
    %c0_10 = arith.constant 0 : index
    %c0_11 = arith.constant 0 : index
    %10 = vector.load %arg5[%c0_10, %c0_11] : memref<832x128xf32, #tpu.memory_space<vmem>>, vector<832x128xf32>
    tpu.vector_store %arg5[%c0_10, %c0_11], %9 {strides = array<i32>} : memref<832x128xf32, #tpu.memory_space<vmem>>, vector<832x128xf32>,
    %c0_i32 = arith.constant 0 : i32
    %c832_i32 = arith.constant 832 : i32
    %11 = arith.muli %c0_i32, %c832_i32 : i32
    %12 = tpu.assume_multiple %11, 32 : i32
    %c224_i32 = arith.constant 224 : i32
    %13 = arith.muli %c0_i32, %c224_i32 : i32
    %14 = tpu.assume_multiple %13, 32 : i32
    %c0_i32_12 = arith.constant 0 : i32
    %15 = arith.addi %12, %c0_i32_12 : i32
    %16 = arith.index_cast %15 : i32 to index
    %c0_13 = arith.constant 0 : index
    %17 = vector.load %arg5[%16, %c0_13] : memref<832x128xf32, #tpu.memory_space<vmem>>, vector<32x128xf32>
    %c32_i32 = arith.constant 32 : i32
    %18 = arith.addi %12, %c32_i32 : i32
    %19 = arith.index_cast %18 : i32 to index
    %c0_14 = arith.constant 0 : index
    %20 = vector.load %arg5[%19, %c0_14] : memref<832x128xf32, #tpu.memory_space<vmem>>, vector<32x128xf32>
    %21 = arith.maximumf %17, %20 : vector<32x128xf32>
    %c0_15 = arith.constant 0 : index
    %c0_16 = arith.constant 0 : index
    %22 = vector.load %arg6[%c0_15, %c0_16] : memref<32x128xf32, #tpu.memory_space<vmem>>, vector<32x128xf32>
    tpu.vector_store %arg6[%c0_15, %c0_16], %21 {strides = array<i32>} : memref<32x128xf32, #tpu.memory_space<vmem>>, vector<32x128xf32>,
    %c0_17 = arith.constant 0 : index
    %c0_18 = arith.constant 0 : index
    %23 = tpu.strided_load %arg6[%c0_17, %c0_18] {strides = array<i32: 2, 1>} : memref<32x128xf32, #tpu.memory_space<vmem>>, vector<13x128xf32>
    %c1 = arith.constant 1 : index
    %c0_19 = arith.constant 0 : index
    %24 = tpu.strided_load %arg6[%c1, %c0_19] {strides = array<i32: 2, 1>} : memref<32x128xf32, #tpu.memory_space<vmem>>, vector<13x128xf32>
    %25 = arith.maximumf %23, %24 : vector<13x128xf32>
    %26 = vector.extract_strided_slice %25 {offsets = [1, 0], sizes = [12, 128], strides = [1, 1]} : vector<13x128xf32> to vector<12x128xf32>
    %27 = vector.extract_strided_slice %24 {offsets = [0, 0], sizes = [12, 128], strides = [1, 1]} : vector<13x128xf32> to vector<12x128xf32>
    %28 = arith.maximumf %26, %27 : vector<12x128xf32>
    %29 = vector.extract_strided_slice %25 {offsets = [0, 0], sizes = [1, 128], strides = [1, 1]} : vector<13x128xf32> to vector<1x128xf32>
    %30 = tpu.concatenate %29, %28 in 0 : vector<1x128xf32>, vector<12x128xf32> -> vector<13x128xf32>
    %cst_20 = arith.constant 0.000000e+00 : f32
    %31 = vector.broadcast %cst_20 : f32 to vector<3x128xf32>
    %32 = tpu.concatenate %30, %31 in 0 : vector<13x128xf32>, vector<3x128xf32> -> vector<16x128xf32>
    %33 = arith.truncf %32 : vector<16x128xf32> to vector<16x128xbf16>
    %c0_i32_21 = arith.constant 0 : i32
    %34 = arith.addi %14, %c0_i32_21 : i32
    %35 = arith.index_cast %34 : i32 to index
    %c0_22 = arith.constant 0 : index
    %36 = vector.load %arg4[%35, %c0_22] : memref<224x128xbf16, #tpu.memory_space<vmem>>, vector<16x128xbf16>
    tpu.vector_store %arg4[%35, %c0_22], %33 {strides = array<i32>} : memref<224x128xbf16, #tpu.memory_space<vmem>>, vector<16x128xbf16>,
    %c32_i32_23 = arith.constant 32 : i32
    %37 = arith.addi %12, %c32_i32_23 : i32
    %38 = arith.index_cast %37 : i32 to index
    %c0_24 = arith.constant 0 : index
    %39 = vector.load %arg5[%38, %c0_24] : memref<832x128xf32, #tpu.memory_space<vmem>>, vector<32x128xf32>
    %c64_i32 = arith.constant 64 : i32
    %40 = arith.addi %12, %c64_i32 : i32
    %41 = arith.index_cast %40 : i32 to index
    %c0_25 = arith.constant 0 : index
    %42 = vector.load %arg5[%41, %c0_25] : memref<832x128xf32, #tpu.memory_space<vmem>>, vector<32x128xf32>
    %43 = arith.maximumf %39, %42 : vector<32x128xf32>
    %c96_i32 = arith.constant 96 : i32
    %44 = arith.addi %12, %c96_i32 : i32
    %45 = arith.index_cast %44 : i32 to index
    %c0_26 = arith.constant 0 : index
    %46 = vector.load %arg5[%45, %c0_26] : memref<832x128xf32, #tpu.memory_space<vmem>>, vector<32x128xf32>
    %47 = arith.maximumf %43, %46 : vector<32x128xf32>
    %c0_27 = arith.constant 0 : index
    %c0_28 = arith.constant 0 : index
    %48 = vector.load %arg6[%c0_27, %c0_28] : memref<32x128xf32, #tpu.memory_space<vmem>>, vector<32x128xf32>
    tpu.vector_store %arg6[%c0_27, %c0_28], %47 {strides = array<i32>} : memref<32x128xf32, #tpu.memory_space<vmem>>, vector<32x128xf32>,
    %c0_29 = arith.constant 0 : index
    %c0_30 = arith.constant 0 : index
    %49 = tpu.strided_load %arg6[%c0_29, %c0_30] {strides = array<i32: 2, 1>} : memref<32x128xf32, #tpu.memory_space<vmem>>, vector<13x128xf32>
    %c1_31 = arith.constant 1 : index
    %c0_32 = arith.constant 0 : index
    %50 = tpu.strided_load %arg6[%c1_31, %c0_32] {strides = array<i32: 2, 1>} : memref<32x128xf32, #tpu.memory_space<vmem>>, vector<13x128xf32>
    %51 = arith.maximumf %49, %50 : vector<13x128xf32>
    %52 = vector.extract_strided_slice %51 {offsets = [1, 0], sizes = [12, 128], strides = [1, 1]} : vector<13x128xf32> to vector<12x128xf32>
    %53 = vector.extract_strided_slice %50 {offsets = [0, 0], sizes = [12, 128], strides = [1, 1]} : vector<13x128xf32> to vector<12x128xf32>
    %54 = arith.maximumf %52, %53 : vector<12x128xf32>
    %55 = vector.extract_strided_slice %51 {offsets = [0, 0], sizes = [1, 128], strides = [1, 1]} : vector<13x128xf32> to vector<1x128xf32>
    %56 = tpu.concatenate %55, %54 in 0 : vector<1x128xf32>, vector<12x128xf32> -> vector<13x128xf32>
    %cst_33 = arith.constant 0.000000e+00 : f32
    %57 = vector.broadcast %cst_33 : f32 to vector<3x128xf32>
    %58 = tpu.concatenate %56, %57 in 0 : vector<13x128xf32>, vector<3x128xf32> -> vector<16x128xf32>
    %59 = arith.truncf %58 : vector<16x128xf32> to vector<16x128xbf16>
    %c16_i32 = arith.constant 16 : i32
    %60 = arith.addi %14, %c16_i32 : i32
    %61 = arith.index_cast %60 : i32 to index
    %c0_34 = arith.constant 0 : index
    %62 = vector.load %arg4[%61, %c0_34] : memref<224x128xbf16, #tpu.memory_space<vmem>>, vector<16x128xbf16>
    tpu.vector_store %arg4[%61, %c0_34], %59 {strides = array<i32>} : memref<224x128xbf16, #tpu.memory_space<vmem>>, vector<16x128xbf16>,
    %c96_i32_35 = arith.constant 96 : i32
    %63 = arith.addi %12, %c96_i32_35 : i32
    %64 = arith.index_cast %63 : i32 to index
    %c0_36 = arith.constant 0 : index
    %65 = vector.load %arg5[%64, %c0_36] : memref<832x128xf32, #tpu.memory_space<vmem>>, vector<32x128xf32>
    %c128_i32 = arith.constant 128 : i32
    %66 = arith.addi %12, %c128_i32 : i32
    %67 = arith.index_cast %66 : i32 to index
    %c0_37 = arith.constant 0 : index
    %68 = vector.load %arg5[%67, %c0_37] : memref<832x128xf32, #tpu.memory_space<vmem>>, vector<32x128xf32>
    %69 = arith.maximumf %65, %68 : vector<32x128xf32>
    %c160_i32 = arith.constant 160 : i32
    %70 = arith.addi %12, %c160_i32 : i32
    %71 = arith.index_cast %70 : i32 to index
    %c0_38 = arith.constant 0 : index
    %72 = vector.load %arg5[%71, %c0_38] : memref<832x128xf32, #tpu.memory_space<vmem>>, vector<32x128xf32>
    %73 = arith.maximumf %69, %72 : vector<32x128xf32>
    %c0_39 = arith.constant 0 : index
    %c0_40 = arith.constant 0 : index
    %74 = vector.load %arg6[%c0_39, %c0_40] : memref<32x128xf32, #tpu.memory_space<vmem>>, vector<32x128xf32>
    tpu.vector_store %arg6[%c0_39, %c0_40], %73 {strides = array<i32>} : memref<32x128xf32, #tpu.memory_space<vmem>>, vector<32x128xf32>,
    %c0_41 = arith.constant 0 : index
    %c0_42 = arith.constant 0 : index
    %75 = tpu.strided_load %arg6[%c0_41, %c0_42] {strides = array<i32: 2, 1>} : memref<32x128xf32, #tpu.memory_space<vmem>>, vector<13x128xf32>
    %c1_43 = arith.constant 1 : index
    %c0_44 = arith.constant 0 : index
    %76 = tpu.strided_load %arg6[%c1_43, %c0_44] {strides = array<i32: 2, 1>} : memref<32x128xf32, #tpu.memory_space<vmem>>, vector<13x128xf32>
    %77 = arith.maximumf %75, %76 : vector<13x128xf32>
    %78 = vector.extract_strided_slice %77 {offsets = [1, 0], sizes = [12, 128], strides = [1, 1]} : vector<13x128xf32> to vector<12x128xf32>
    %79 = vector.extract_strided_slice %76 {offsets = [0, 0], sizes = [12, 128], strides = [1, 1]} : vector<13x128xf32> to vector<12x128xf32>
    %80 = arith.maximumf %78, %79 : vector<12x128xf32>
    %81 = vector.extract_strided_slice %77 {offsets = [0, 0], sizes = [1, 128], strides = [1, 1]} : vector<13x128xf32> to vector<1x128xf32>
    %82 = tpu.concatenate %81, %80 in 0 : vector<1x128xf32>, vector<12x128xf32> -> vector<13x128xf32>
    %cst_45 = arith.constant 0.000000e+00 : f32
    %83 = vector.broadcast %cst_45 : f32 to vector<3x128xf32>
    %84 = tpu.concatenate %82, %83 in 0 : vector<13x128xf32>, vector<3x128xf32> -> vector<16x128xf32>
    %85 = arith.truncf %84 : vector<16x128xf32> to vector<16x128xbf16>
    %c32_i32_46 = arith.constant 32 : i32
    %86 = arith.addi %14, %c32_i32_46 : i32
    %87 = arith.index_cast %86 : i32 to index
    %c0_47 = arith.constant 0 : index
    %88 = vector.load %arg4[%87, %c0_47] : memref<224x128xbf16, #tpu.memory_space<vmem>>, vector<16x128xbf16>
    tpu.vector_store %arg4[%87, %c0_47], %85 {strides = array<i32>} : memref<224x128xbf16, #tpu.memory_space<vmem>>, vector<16x128xbf16>,
    %c160_i32_48 = arith.constant 160 : i32
    %89 = arith.addi %12, %c160_i32_48 : i32
    %90 = arith.index_cast %89 : i32 to index
    %c0_49 = arith.constant 0 : index
    %91 = vector.load %arg5[%90, %c0_49] : memref<832x128xf32, #tpu.memory_space<vmem>>, vector<32x128xf32>
    %c192_i32 = arith.constant 192 : i32
    %92 = arith.addi %12, %c192_i32 : i32
    %93 = arith.index_cast %92 : i32 to index
    %c0_50 = arith.constant 0 : index
    %94 = vector.load %arg5[%93, %c0_50] : memref<832x128xf32, #tpu.memory_space<vmem>>, vector<32x128xf32>
    %95 = arith.maximumf %91, %94 : vector<32x128xf32>
    %c224_i32_51 = arith.constant 224 : i32
    %96 = arith.addi %12, %c224_i32_51 : i32
    %97 = arith.index_cast %96 : i32 to index
    %c0_52 = arith.constant 0 : index
    %98 = vector.load %arg5[%97, %c0_52] : memref<832x128xf32, #tpu.memory_space<vmem>>, vector<32x128xf32>
    %99 = arith.maximumf %95, %98 : vector<32x128xf32>
    %c0_53 = arith.constant 0 : index
    %c0_54 = arith.constant 0 : index
    %100 = vector.load %arg6[%c0_53, %c0_54] : memref<32x128xf32, #tpu.memory_space<vmem>>, vector<32x128xf32>
    tpu.vector_store %arg6[%c0_53, %c0_54], %99 {strides = array<i32>} : memref<32x128xf32, #tpu.memory_space<vmem>>, vector<32x128xf32>,
    %c0_55 = arith.constant 0 : index
    %c0_56 = arith.constant 0 : index
    %101 = tpu.strided_load %arg6[%c0_55, %c0_56] {strides = array<i32: 2, 1>} : memref<32x128xf32, #tpu.memory_space<vmem>>, vector<13x128xf32>
    %c1_57 = arith.constant 1 : index
    %c0_58 = arith.constant 0 : index
    %102 = tpu.strided_load %arg6[%c1_57, %c0_58] {strides = array<i32: 2, 1>} : memref<32x128xf32, #tpu.memory_space<vmem>>, vector<13x128xf32>
    %103 = arith.maximumf %101, %102 : vector<13x128xf32>
    %104 = vector.extract_strided_slice %103 {offsets = [1, 0], sizes = [12, 128], strides = [1, 1]} : vector<13x128xf32> to vector<12x128xf32>
    %105 = vector.extract_strided_slice %102 {offsets = [0, 0], sizes = [12, 128], strides = [1, 1]} : vector<13x128xf32> to vector<12x128xf32>
    %106 = arith.maximumf %104, %105 : vector<12x128xf32>
    %107 = vector.extract_strided_slice %103 {offsets = [0, 0], sizes = [1, 128], strides = [1, 1]} : vector<13x128xf32> to vector<1x128xf32>
    %108 = tpu.concatenate %107, %106 in 0 : vector<1x128xf32>, vector<12x128xf32> -> vector<13x128xf32>
    %cst_59 = arith.constant 0.000000e+00 : f32
    %109 = vector.broadcast %cst_59 : f32 to vector<3x128xf32>
    %110 = tpu.concatenate %108, %109 in 0 : vector<13x128xf32>, vector<3x128xf32> -> vector<16x128xf32>
    %111 = arith.truncf %110 : vector<16x128xf32> to vector<16x128xbf16>
    %c48_i32 = arith.constant 48 : i32
    %112 = arith.addi %14, %c48_i32 : i32
    %113 = arith.index_cast %112 : i32 to index
    %c0_60 = arith.constant 0 : index
    %114 = vector.load %arg4[%113, %c0_60] : memref<224x128xbf16, #tpu.memory_space<vmem>>, vector<16x128xbf16>
    tpu.vector_store %arg4[%113, %c0_60], %111 {strides = array<i32>} : memref<224x128xbf16, #tpu.memory_space<vmem>>, vector<16x128xbf16>,
    %c224_i32_61 = arith.constant 224 : i32
    %115 = arith.addi %12, %c224_i32_61 : i32
    %116 = arith.index_cast %115 : i32 to index
    %c0_62 = arith.constant 0 : index
    %117 = vector.load %arg5[%116, %c0_62] : memref<832x128xf32, #tpu.memory_space<vmem>>, vector<32x128xf32>
    %c256_i32 = arith.constant 256 : i32
    %118 = arith.addi %12, %c256_i32 : i32
    %119 = arith.index_cast %118 : i32 to index
    %c0_63 = arith.constant 0 : index
    %120 = vector.load %arg5[%119, %c0_63] : memref<832x128xf32, #tpu.memory_space<vmem>>, vector<32x128xf32>
    %121 = arith.maximumf %117, %120 : vector<32x128xf32>
    %c288_i32 = arith.constant 288 : i32
    %122 = arith.addi %12, %c288_i32 : i32
    %123 = arith.index_cast %122 : i32 to index
    %c0_64 = arith.constant 0 : index
    %124 = vector.load %arg5[%123, %c0_64] : memref<832x128xf32, #tpu.memory_space<vmem>>, vector<32x128xf32>
    %125 = arith.maximumf %121, %124 : vector<32x128xf32>
    %c0_65 = arith.constant 0 : index
    %c0_66 = arith.constant 0 : index
    %126 = vector.load %arg6[%c0_65, %c0_66] : memref<32x128xf32, #tpu.memory_space<vmem>>, vector<32x128xf32>
    tpu.vector_store %arg6[%c0_65, %c0_66], %125 {strides = array<i32>} : memref<32x128xf32, #tpu.memory_space<vmem>>, vector<32x128xf32>,
    %c0_67 = arith.constant 0 : index
    %c0_68 = arith.constant 0 : index
    %127 = tpu.strided_load %arg6[%c0_67, %c0_68] {strides = array<i32: 2, 1>} : memref<32x128xf32, #tpu.memory_space<vmem>>, vector<13x128xf32>
    %c1_69 = arith.constant 1 : index
    %c0_70 = arith.constant 0 : index
    %128 = tpu.strided_load %arg6[%c1_69, %c0_70] {strides = array<i32: 2, 1>} : memref<32x128xf32, #tpu.memory_space<vmem>>, vector<13x128xf32>
    %129 = arith.maximumf %127, %128 : vector<13x128xf32>
    %130 = vector.extract_strided_slice %129 {offsets = [1, 0], sizes = [12, 128], strides = [1, 1]} : vector<13x128xf32> to vector<12x128xf32>
    %131 = vector.extract_strided_slice %128 {offsets = [0, 0], sizes = [12, 128], strides = [1, 1]} : vector<13x128xf32> to vector<12x128xf32>
    %132 = arith.maximumf %130, %131 : vector<12x128xf32>
    %133 = vector.extract_strided_slice %129 {offsets = [0, 0], sizes = [1, 128], strides = [1, 1]} : vector<13x128xf32> to vector<1x128xf32>
    %134 = tpu.concatenate %133, %132 in 0 : vector<1x128xf32>, vector<12x128xf32> -> vector<13x128xf32>
    %cst_71 = arith.constant 0.000000e+00 : f32
    %135 = vector.broadcast %cst_71 : f32 to vector<3x128xf32>
    %136 = tpu.concatenate %134, %135 in 0 : vector<13x128xf32>, vector<3x128xf32> -> vector<16x128xf32>
    %137 = arith.truncf %136 : vector<16x128xf32> to vector<16x128xbf16>
    %c64_i32_72 = arith.constant 64 : i32
    %138 = arith.addi %14, %c64_i32_72 : i32
    %139 = arith.index_cast %138 : i32 to index
    %c0_73 = arith.constant 0 : index
    %140 = vector.load %arg4[%139, %c0_73] : memref<224x128xbf16, #tpu.memory_space<vmem>>, vector<16x128xbf16>
    tpu.vector_store %arg4[%139, %c0_73], %137 {strides = array<i32>} : memref<224x128xbf16, #tpu.memory_space<vmem>>, vector<16x128xbf16>,
    %c288_i32_74 = arith.constant 288 : i32
    %141 = arith.addi %12, %c288_i32_74 : i32
    %142 = arith.index_cast %141 : i32 to index
    %c0_75 = arith.constant 0 : index
    %143 = vector.load %arg5[%142, %c0_75] : memref<832x128xf32, #tpu.memory_space<vmem>>, vector<32x128xf32>
    %c320_i32 = arith.constant 320 : i32
    %144 = arith.addi %12, %c320_i32 : i32
    %145 = arith.index_cast %144 : i32 to index
    %c0_76 = arith.constant 0 : index
    %146 = vector.load %arg5[%145, %c0_76] : memref<832x128xf32, #tpu.memory_space<vmem>>, vector<32x128xf32>
    %147 = arith.maximumf %143, %146 : vector<32x128xf32>
    %c352_i32 = arith.constant 352 : i32
    %148 = arith.addi %12, %c352_i32 : i32
    %149 = arith.index_cast %148 : i32 to index
    %c0_77 = arith.constant 0 : index
    %150 = vector.load %arg5[%149, %c0_77] : memref<832x128xf32, #tpu.memory_space<vmem>>, vector<32x128xf32>
    %151 = arith.maximumf %147, %150 : vector<32x128xf32>
    %c0_78 = arith.constant 0 : index
    %c0_79 = arith.constant 0 : index
    %152 = vector.load %arg6[%c0_78, %c0_79] : memref<32x128xf32, #tpu.memory_space<vmem>>, vector<32x128xf32>
    tpu.vector_store %arg6[%c0_78, %c0_79], %151 {strides = array<i32>} : memref<32x128xf32, #tpu.memory_space<vmem>>, vector<32x128xf32>,
    %c0_80 = arith.constant 0 : index
    %c0_81 = arith.constant 0 : index
    %153 = tpu.strided_load %arg6[%c0_80, %c0_81] {strides = array<i32: 2, 1>} : memref<32x128xf32, #tpu.memory_space<vmem>>, vector<13x128xf32>
    %c1_82 = arith.constant 1 : index
    %c0_83 = arith.constant 0 : index
    %154 = tpu.strided_load %arg6[%c1_82, %c0_83] {strides = array<i32: 2, 1>} : memref<32x128xf32, #tpu.memory_space<vmem>>, vector<13x128xf32>
    %155 = arith.maximumf %153, %154 : vector<13x128xf32>
    %156 = vector.extract_strided_slice %155 {offsets = [1, 0], sizes = [12, 128], strides = [1, 1]} : vector<13x128xf32> to vector<12x128xf32>
    %157 = vector.extract_strided_slice %154 {offsets = [0, 0], sizes = [12, 128], strides = [1, 1]} : vector<13x128xf32> to vector<12x128xf32>
    %158 = arith.maximumf %156, %157 : vector<12x128xf32>
    %159 = vector.extract_strided_slice %155 {offsets = [0, 0], sizes = [1, 128], strides = [1, 1]} : vector<13x128xf32> to vector<1x128xf32>
    %160 = tpu.concatenate %159, %158 in 0 : vector<1x128xf32>, vector<12x128xf32> -> vector<13x128xf32>
    %cst_84 = arith.constant 0.000000e+00 : f32
    %161 = vector.broadcast %cst_84 : f32 to vector<3x128xf32>
    %162 = tpu.concatenate %160, %161 in 0 : vector<13x128xf32>, vector<3x128xf32> -> vector<16x128xf32>
    %163 = arith.truncf %162 : vector<16x128xf32> to vector<16x128xbf16>
    %c80_i32 = arith.constant 80 : i32
    %164 = arith.addi %14, %c80_i32 : i32
    %165 = arith.index_cast %164 : i32 to index
    %c0_85 = arith.constant 0 : index
    %166 = vector.load %arg4[%165, %c0_85] : memref<224x128xbf16, #tpu.memory_space<vmem>>, vector<16x128xbf16>
    tpu.vector_store %arg4[%165, %c0_85], %163 {strides = array<i32>} : memref<224x128xbf16, #tpu.memory_space<vmem>>, vector<16x128xbf16>,
    %c352_i32_86 = arith.constant 352 : i32
    %167 = arith.addi %12, %c352_i32_86 : i32
    %168 = arith.index_cast %167 : i32 to index
    %c0_87 = arith.constant 0 : index
    %169 = vector.load %arg5[%168, %c0_87] : memref<832x128xf32, #tpu.memory_space<vmem>>, vector<32x128xf32>
    %c384_i32 = arith.constant 384 : i32
    %170 = arith.addi %12, %c384_i32 : i32
    %171 = arith.index_cast %170 : i32 to index
    %c0_88 = arith.constant 0 : index
    %172 = vector.load %arg5[%171, %c0_88] : memref<832x128xf32, #tpu.memory_space<vmem>>, vector<32x128xf32>
    %173 = arith.maximumf %169, %172 : vector<32x128xf32>
    %c416_i32 = arith.constant 416 : i32
    %174 = arith.addi %12, %c416_i32 : i32
    %175 = arith.index_cast %174 : i32 to index
    %c0_89 = arith.constant 0 : index
    %176 = vector.load %arg5[%175, %c0_89] : memref<832x128xf32, #tpu.memory_space<vmem>>, vector<32x128xf32>
    %177 = arith.maximumf %173, %176 : vector<32x128xf32>
    %c0_90 = arith.constant 0 : index
    %c0_91 = arith.constant 0 : index
    %178 = vector.load %arg6[%c0_90, %c0_91] : memref<32x128xf32, #tpu.memory_space<vmem>>, vector<32x128xf32>
    tpu.vector_store %arg6[%c0_90, %c0_91], %177 {strides = array<i32>} : memref<32x128xf32, #tpu.memory_space<vmem>>, vector<32x128xf32>,
    %c0_92 = arith.constant 0 : index
    %c0_93 = arith.constant 0 : index
    %179 = tpu.strided_load %arg6[%c0_92, %c0_93] {strides = array<i32: 2, 1>} : memref<32x128xf32, #tpu.memory_space<vmem>>, vector<13x128xf32>
    %c1_94 = arith.constant 1 : index
    %c0_95 = arith.constant 0 : index
    %180 = tpu.strided_load %arg6[%c1_94, %c0_95] {strides = array<i32: 2, 1>} : memref<32x128xf32, #tpu.memory_space<vmem>>, vector<13x128xf32>
    %181 = arith.maximumf %179, %180 : vector<13x128xf32>
    %182 = vector.extract_strided_slice %181 {offsets = [1, 0], sizes = [12, 128], strides = [1, 1]} : vector<13x128xf32> to vector<12x128xf32>
    %183 = vector.extract_strided_slice %180 {offsets = [0, 0], sizes = [12, 128], strides = [1, 1]} : vector<13x128xf32> to vector<12x128xf32>
    %184 = arith.maximumf %182, %183 : vector<12x128xf32>
    %185 = vector.extract_strided_slice %181 {offsets = [0, 0], sizes = [1, 128], strides = [1, 1]} : vector<13x128xf32> to vector<1x128xf32>
    %186 = tpu.concatenate %185, %184 in 0 : vector<1x128xf32>, vector<12x128xf32> -> vector<13x128xf32>
    %cst_96 = arith.constant 0.000000e+00 : f32
    %187 = vector.broadcast %cst_96 : f32 to vector<3x128xf32>
    %188 = tpu.concatenate %186, %187 in 0 : vector<13x128xf32>, vector<3x128xf32> -> vector<16x128xf32>
    %189 = arith.truncf %188 : vector<16x128xf32> to vector<16x128xbf16>
    %c96_i32_97 = arith.constant 96 : i32
    %190 = arith.addi %14, %c96_i32_97 : i32
    %191 = arith.index_cast %190 : i32 to index
    %c0_98 = arith.constant 0 : index
    %192 = vector.load %arg4[%191, %c0_98] : memref<224x128xbf16, #tpu.memory_space<vmem>>, vector<16x128xbf16>
    tpu.vector_store %arg4[%191, %c0_98], %189 {strides = array<i32>} : memref<224x128xbf16, #tpu.memory_space<vmem>>, vector<16x128xbf16>,
    %c416_i32_99 = arith.constant 416 : i32
    %193 = arith.addi %12, %c416_i32_99 : i32
    %194 = arith.index_cast %193 : i32 to index
    %c0_100 = arith.constant 0 : index
    %195 = vector.load %arg5[%194, %c0_100] : memref<832x128xf32, #tpu.memory_space<vmem>>, vector<32x128xf32>
    %c448_i32 = arith.constant 448 : i32
    %196 = arith.addi %12, %c448_i32 : i32
    %197 = arith.index_cast %196 : i32 to index
    %c0_101 = arith.constant 0 : index
    %198 = vector.load %arg5[%197, %c0_101] : memref<832x128xf32, #tpu.memory_space<vmem>>, vector<32x128xf32>
    %199 = arith.maximumf %195, %198 : vector<32x128xf32>
    %c480_i32 = arith.constant 480 : i32
    %200 = arith.addi %12, %c480_i32 : i32
    %201 = arith.index_cast %200 : i32 to index
    %c0_102 = arith.constant 0 : index
    %202 = vector.load %arg5[%201, %c0_102] : memref<832x128xf32, #tpu.memory_space<vmem>>, vector<32x128xf32>
    %203 = arith.maximumf %199, %202 : vector<32x128xf32>
    %c0_103 = arith.constant 0 : index
    %c0_104 = arith.constant 0 : index
    %204 = vector.load %arg6[%c0_103, %c0_104] : memref<32x128xf32, #tpu.memory_space<vmem>>, vector<32x128xf32>
    tpu.vector_store %arg6[%c0_103, %c0_104], %203 {strides = array<i32>} : memref<32x128xf32, #tpu.memory_space<vmem>>, vector<32x128xf32>,
    %c0_105 = arith.constant 0 : index
    %c0_106 = arith.constant 0 : index
    %205 = tpu.strided_load %arg6[%c0_105, %c0_106] {strides = array<i32: 2, 1>} : memref<32x128xf32, #tpu.memory_space<vmem>>, vector<13x128xf32>
    %c1_107 = arith.constant 1 : index
    %c0_108 = arith.constant 0 : index
    %206 = tpu.strided_load %arg6[%c1_107, %c0_108] {strides = array<i32: 2, 1>} : memref<32x128xf32, #tpu.memory_space<vmem>>, vector<13x128xf32>
    %207 = arith.maximumf %205, %206 : vector<13x128xf32>
    %208 = vector.extract_strided_slice %207 {offsets = [1, 0], sizes = [12, 128], strides = [1, 1]} : vector<13x128xf32> to vector<12x128xf32>
    %209 = vector.extract_strided_slice %206 {offsets = [0, 0], sizes = [12, 128], strides = [1, 1]} : vector<13x128xf32> to vector<12x128xf32>
    %210 = arith.maximumf %208, %209 : vector<12x128xf32>
    %211 = vector.extract_strided_slice %207 {offsets = [0, 0], sizes = [1, 128], strides = [1, 1]} : vector<13x128xf32> to vector<1x128xf32>
    %212 = tpu.concatenate %211, %210 in 0 : vector<1x128xf32>, vector<12x128xf32> -> vector<13x128xf32>
    %cst_109 = arith.constant 0.000000e+00 : f32
    %213 = vector.broadcast %cst_109 : f32 to vector<3x128xf32>
    %214 = tpu.concatenate %212, %213 in 0 : vector<13x128xf32>, vector<3x128xf32> -> vector<16x128xf32>
    %215 = arith.truncf %214 : vector<16x128xf32> to vector<16x128xbf16>
    %c112_i32 = arith.constant 112 : i32
    %216 = arith.addi %14, %c112_i32 : i32
    %217 = arith.index_cast %216 : i32 to index
    %c0_110 = arith.constant 0 : index
    %218 = vector.load %arg4[%217, %c0_110] : memref<224x128xbf16, #tpu.memory_space<vmem>>, vector<16x128xbf16>
    tpu.vector_store %arg4[%217, %c0_110], %215 {strides = array<i32>} : memref<224x128xbf16, #tpu.memory_space<vmem>>, vector<16x128xbf16>,
    %c480_i32_111 = arith.constant 480 : i32
    %219 = arith.addi %12, %c480_i32_111 : i32
    %220 = arith.index_cast %219 : i32 to index
    %c0_112 = arith.constant 0 : index
    %221 = vector.load %arg5[%220, %c0_112] : memref<832x128xf32, #tpu.memory_space<vmem>>, vector<32x128xf32>
    %c512_i32 = arith.constant 512 : i32
    %222 = arith.addi %12, %c512_i32 : i32
    %223 = arith.index_cast %222 : i32 to index
    %c0_113 = arith.constant 0 : index
    %224 = vector.load %arg5[%223, %c0_113] : memref<832x128xf32, #tpu.memory_space<vmem>>, vector<32x128xf32>
    %225 = arith.maximumf %221, %224 : vector<32x128xf32>
    %c544_i32 = arith.constant 544 : i32
    %226 = arith.addi %12, %c544_i32 : i32
    %227 = arith.index_cast %226 : i32 to index
    %c0_114 = arith.constant 0 : index
    %228 = vector.load %arg5[%227, %c0_114] : memref<832x128xf32, #tpu.memory_space<vmem>>, vector<32x128xf32>
    %229 = arith.maximumf %225, %228 : vector<32x128xf32>
    %c0_115 = arith.constant 0 : index
    %c0_116 = arith.constant 0 : index
    %230 = vector.load %arg6[%c0_115, %c0_116] : memref<32x128xf32, #tpu.memory_space<vmem>>, vector<32x128xf32>
    tpu.vector_store %arg6[%c0_115, %c0_116], %229 {strides = array<i32>} : memref<32x128xf32, #tpu.memory_space<vmem>>, vector<32x128xf32>,
    %c0_117 = arith.constant 0 : index
    %c0_118 = arith.constant 0 : index
    %231 = tpu.strided_load %arg6[%c0_117, %c0_118] {strides = array<i32: 2, 1>} : memref<32x128xf32, #tpu.memory_space<vmem>>, vector<13x128xf32>
    %c1_119 = arith.constant 1 : index
    %c0_120 = arith.constant 0 : index
    %232 = tpu.strided_load %arg6[%c1_119, %c0_120] {strides = array<i32: 2, 1>} : memref<32x128xf32, #tpu.memory_space<vmem>>, vector<13x128xf32>
    %233 = arith.maximumf %231, %232 : vector<13x128xf32>
    %234 = vector.extract_strided_slice %233 {offsets = [1, 0], sizes = [12, 128], strides = [1, 1]} : vector<13x128xf32> to vector<12x128xf32>
    %235 = vector.extract_strided_slice %232 {offsets = [0, 0], sizes = [12, 128], strides = [1, 1]} : vector<13x128xf32> to vector<12x128xf32>
    %236 = arith.maximumf %234, %235 : vector<12x128xf32>
    %237 = vector.extract_strided_slice %233 {offsets = [0, 0], sizes = [1, 128], strides = [1, 1]} : vector<13x128xf32> to vector<1x128xf32>
    %238 = tpu.concatenate %237, %236 in 0 : vector<1x128xf32>, vector<12x128xf32> -> vector<13x128xf32>
    %cst_121 = arith.constant 0.000000e+00 : f32
    %239 = vector.broadcast %cst_121 : f32 to vector<3x128xf32>
    %240 = tpu.concatenate %238, %239 in 0 : vector<13x128xf32>, vector<3x128xf32> -> vector<16x128xf32>
    %241 = arith.truncf %240 : vector<16x128xf32> to vector<16x128xbf16>
    %c128_i32_122 = arith.constant 128 : i32
    %242 = arith.addi %14, %c128_i32_122 : i32
    %243 = arith.index_cast %242 : i32 to index
    %c0_123 = arith.constant 0 : index
    %244 = vector.load %arg4[%243, %c0_123] : memref<224x128xbf16, #tpu.memory_space<vmem>>, vector<16x128xbf16>
    tpu.vector_store %arg4[%243, %c0_123], %241 {strides = array<i32>} : memref<224x128xbf16, #tpu.memory_space<vmem>>, vector<16x128xbf16>,
    %c544_i32_124 = arith.constant 544 : i32
    %245 = arith.addi %12, %c544_i32_124 : i32
    %246 = arith.index_cast %245 : i32 to index
    %c0_125 = arith.constant 0 : index
    %247 = vector.load %arg5[%246, %c0_125] : memref<832x128xf32, #tpu.memory_space<vmem>>, vector<32x128xf32>
    %c576_i32 = arith.constant 576 : i32
    %248 = arith.addi %12, %c576_i32 : i32
    %249 = arith.index_cast %248 : i32 to index
    %c0_126 = arith.constant 0 : index
    %250 = vector.load %arg5[%249, %c0_126] : memref<832x128xf32, #tpu.memory_space<vmem>>, vector<32x128xf32>
    %251 = arith.maximumf %247, %250 : vector<32x128xf32>
    %c608_i32 = arith.constant 608 : i32
    %252 = arith.addi %12, %c608_i32 : i32
    %253 = arith.index_cast %252 : i32 to index
    %c0_127 = arith.constant 0 : index
    %254 = vector.load %arg5[%253, %c0_127] : memref<832x128xf32, #tpu.memory_space<vmem>>, vector<32x128xf32>
    %255 = arith.maximumf %251, %254 : vector<32x128xf32>
    %c0_128 = arith.constant 0 : index
    %c0_129 = arith.constant 0 : index
    %256 = vector.load %arg6[%c0_128, %c0_129] : memref<32x128xf32, #tpu.memory_space<vmem>>, vector<32x128xf32>
    tpu.vector_store %arg6[%c0_128, %c0_129], %255 {strides = array<i32>} : memref<32x128xf32, #tpu.memory_space<vmem>>, vector<32x128xf32>,
    %c0_130 = arith.constant 0 : index
    %c0_131 = arith.constant 0 : index
    %257 = tpu.strided_load %arg6[%c0_130, %c0_131] {strides = array<i32: 2, 1>} : memref<32x128xf32, #tpu.memory_space<vmem>>, vector<13x128xf32>
    %c1_132 = arith.constant 1 : index
    %c0_133 = arith.constant 0 : index
    %258 = tpu.strided_load %arg6[%c1_132, %c0_133] {strides = array<i32: 2, 1>} : memref<32x128xf32, #tpu.memory_space<vmem>>, vector<13x128xf32>
    %259 = arith.maximumf %257, %258 : vector<13x128xf32>
    %260 = vector.extract_strided_slice %259 {offsets = [1, 0], sizes = [12, 128], strides = [1, 1]} : vector<13x128xf32> to vector<12x128xf32>
    %261 = vector.extract_strided_slice %258 {offsets = [0, 0], sizes = [12, 128], strides = [1, 1]} : vector<13x128xf32> to vector<12x128xf32>
    %262 = arith.maximumf %260, %261 : vector<12x128xf32>
    %263 = vector.extract_strided_slice %259 {offsets = [0, 0], sizes = [1, 128], strides = [1, 1]} : vector<13x128xf32> to vector<1x128xf32>
    %264 = tpu.concatenate %263, %262 in 0 : vector<1x128xf32>, vector<12x128xf32> -> vector<13x128xf32>
    %cst_134 = arith.constant 0.000000e+00 : f32
    %265 = vector.broadcast %cst_134 : f32 to vector<3x128xf32>
    %266 = tpu.concatenate %264, %265 in 0 : vector<13x128xf32>, vector<3x128xf32> -> vector<16x128xf32>
    %267 = arith.truncf %266 : vector<16x128xf32> to vector<16x128xbf16>
    %c144_i32 = arith.constant 144 : i32
    %268 = arith.addi %14, %c144_i32 : i32
    %269 = arith.index_cast %268 : i32 to index
    %c0_135 = arith.constant 0 : index
    %270 = vector.load %arg4[%269, %c0_135] : memref<224x128xbf16, #tpu.memory_space<vmem>>, vector<16x128xbf16>
    tpu.vector_store %arg4[%269, %c0_135], %267 {strides = array<i32>} : memref<224x128xbf16, #tpu.memory_space<vmem>>, vector<16x128xbf16>,
    %c608_i32_136 = arith.constant 608 : i32
    %271 = arith.addi %12, %c608_i32_136 : i32
    %272 = arith.index_cast %271 : i32 to index
    %c0_137 = arith.constant 0 : index
    %273 = vector.load %arg5[%272, %c0_137] : memref<832x128xf32, #tpu.memory_space<vmem>>, vector<32x128xf32>
    %c640_i32 = arith.constant 640 : i32
    %274 = arith.addi %12, %c640_i32 : i32
    %275 = arith.index_cast %274 : i32 to index
    %c0_138 = arith.constant 0 : index
    %276 = vector.load %arg5[%275, %c0_138] : memref<832x128xf32, #tpu.memory_space<vmem>>, vector<32x128xf32>
    %277 = arith.maximumf %273, %276 : vector<32x128xf32>
    %c672_i32 = arith.constant 672 : i32
    %278 = arith.addi %12, %c672_i32 : i32
    %279 = arith.index_cast %278 : i32 to index
    %c0_139 = arith.constant 0 : index
    %280 = vector.load %arg5[%279, %c0_139] : memref<832x128xf32, #tpu.memory_space<vmem>>, vector<32x128xf32>
    %281 = arith.maximumf %277, %280 : vector<32x128xf32>
    %c0_140 = arith.constant 0 : index
    %c0_141 = arith.constant 0 : index
    %282 = vector.load %arg6[%c0_140, %c0_141] : memref<32x128xf32, #tpu.memory_space<vmem>>, vector<32x128xf32>
    tpu.vector_store %arg6[%c0_140, %c0_141], %281 {strides = array<i32>} : memref<32x128xf32, #tpu.memory_space<vmem>>, vector<32x128xf32>,
    %c0_142 = arith.constant 0 : index
    %c0_143 = arith.constant 0 : index
    %283 = tpu.strided_load %arg6[%c0_142, %c0_143] {strides = array<i32: 2, 1>} : memref<32x128xf32, #tpu.memory_space<vmem>>, vector<13x128xf32>
    %c1_144 = arith.constant 1 : index
    %c0_145 = arith.constant 0 : index
    %284 = tpu.strided_load %arg6[%c1_144, %c0_145] {strides = array<i32: 2, 1>} : memref<32x128xf32, #tpu.memory_space<vmem>>, vector<13x128xf32>
    %285 = arith.maximumf %283, %284 : vector<13x128xf32>
    %286 = vector.extract_strided_slice %285 {offsets = [1, 0], sizes = [12, 128], strides = [1, 1]} : vector<13x128xf32> to vector<12x128xf32>
    %287 = vector.extract_strided_slice %284 {offsets = [0, 0], sizes = [12, 128], strides = [1, 1]} : vector<13x128xf32> to vector<12x128xf32>
    %288 = arith.maximumf %286, %287 : vector<12x128xf32>
    %289 = vector.extract_strided_slice %285 {offsets = [0, 0], sizes = [1, 128], strides = [1, 1]} : vector<13x128xf32> to vector<1x128xf32>
    %290 = tpu.concatenate %289, %288 in 0 : vector<1x128xf32>, vector<12x128xf32> -> vector<13x128xf32>
    %cst_146 = arith.constant 0.000000e+00 : f32
    %291 = vector.broadcast %cst_146 : f32 to vector<3x128xf32>
    %292 = tpu.concatenate %290, %291 in 0 : vector<13x128xf32>, vector<3x128xf32> -> vector<16x128xf32>
    %293 = arith.truncf %292 : vector<16x128xf32> to vector<16x128xbf16>
    %c160_i32_147 = arith.constant 160 : i32
    %294 = arith.addi %14, %c160_i32_147 : i32
    %295 = arith.index_cast %294 : i32 to index
    %c0_148 = arith.constant 0 : index
    %296 = vector.load %arg4[%295, %c0_148] : memref<224x128xbf16, #tpu.memory_space<vmem>>, vector<16x128xbf16>
    tpu.vector_store %arg4[%295, %c0_148], %293 {strides = array<i32>} : memref<224x128xbf16, #tpu.memory_space<vmem>>, vector<16x128xbf16>,
    %c672_i32_149 = arith.constant 672 : i32
    %297 = arith.addi %12, %c672_i32_149 : i32
    %298 = arith.index_cast %297 : i32 to index
    %c0_150 = arith.constant 0 : index
    %299 = vector.load %arg5[%298, %c0_150] : memref<832x128xf32, #tpu.memory_space<vmem>>, vector<32x128xf32>
    %c704_i32 = arith.constant 704 : i32
    %300 = arith.addi %12, %c704_i32 : i32
    %301 = arith.index_cast %300 : i32 to index
    %c0_151 = arith.constant 0 : index
    %302 = vector.load %arg5[%301, %c0_151] : memref<832x128xf32, #tpu.memory_space<vmem>>, vector<32x128xf32>
    %303 = arith.maximumf %299, %302 : vector<32x128xf32>
    %c736_i32 = arith.constant 736 : i32
    %304 = arith.addi %12, %c736_i32 : i32
    %305 = arith.index_cast %304 : i32 to index
    %c0_152 = arith.constant 0 : index
    %306 = vector.load %arg5[%305, %c0_152] : memref<832x128xf32, #tpu.memory_space<vmem>>, vector<32x128xf32>
    %307 = arith.maximumf %303, %306 : vector<32x128xf32>
    %c0_153 = arith.constant 0 : index
    %c0_154 = arith.constant 0 : index
    %308 = vector.load %arg6[%c0_153, %c0_154] : memref<32x128xf32, #tpu.memory_space<vmem>>, vector<32x128xf32>
    tpu.vector_store %arg6[%c0_153, %c0_154], %307 {strides = array<i32>} : memref<32x128xf32, #tpu.memory_space<vmem>>, vector<32x128xf32>,
    %c0_155 = arith.constant 0 : index
    %c0_156 = arith.constant 0 : index
    %309 = tpu.strided_load %arg6[%c0_155, %c0_156] {strides = array<i32: 2, 1>} : memref<32x128xf32, #tpu.memory_space<vmem>>, vector<13x128xf32>
    %c1_157 = arith.constant 1 : index
    %c0_158 = arith.constant 0 : index
    %310 = tpu.strided_load %arg6[%c1_157, %c0_158] {strides = array<i32: 2, 1>} : memref<32x128xf32, #tpu.memory_space<vmem>>, vector<13x128xf32>
    %311 = arith.maximumf %309, %310 : vector<13x128xf32>
    %312 = vector.extract_strided_slice %311 {offsets = [1, 0], sizes = [12, 128], strides = [1, 1]} : vector<13x128xf32> to vector<12x128xf32>
    %313 = vector.extract_strided_slice %310 {offsets = [0, 0], sizes = [12, 128], strides = [1, 1]} : vector<13x128xf32> to vector<12x128xf32>
    %314 = arith.maximumf %312, %313 : vector<12x128xf32>
    %315 = vector.extract_strided_slice %311 {offsets = [0, 0], sizes = [1, 128], strides = [1, 1]} : vector<13x128xf32> to vector<1x128xf32>
    %316 = tpu.concatenate %315, %314 in 0 : vector<1x128xf32>, vector<12x128xf32> -> vector<13x128xf32>
    %cst_159 = arith.constant 0.000000e+00 : f32
    %317 = vector.broadcast %cst_159 : f32 to vector<3x128xf32>
    %318 = tpu.concatenate %316, %317 in 0 : vector<13x128xf32>, vector<3x128xf32> -> vector<16x128xf32>
    %319 = arith.truncf %318 : vector<16x128xf32> to vector<16x128xbf16>
    %c176_i32 = arith.constant 176 : i32
    %320 = arith.addi %14, %c176_i32 : i32
    %321 = arith.index_cast %320 : i32 to index
    %c0_160 = arith.constant 0 : index
    %322 = vector.load %arg4[%321, %c0_160] : memref<224x128xbf16, #tpu.memory_space<vmem>>, vector<16x128xbf16>
    tpu.vector_store %arg4[%321, %c0_160], %319 {strides = array<i32>} : memref<224x128xbf16, #tpu.memory_space<vmem>>, vector<16x128xbf16>,
    %c736_i32_161 = arith.constant 736 : i32
    %323 = arith.addi %12, %c736_i32_161 : i32
    %324 = arith.index_cast %323 : i32 to index
    %c0_162 = arith.constant 0 : index
    %325 = vector.load %arg5[%324, %c0_162] : memref<832x128xf32, #tpu.memory_space<vmem>>, vector<32x128xf32>
    %c768_i32 = arith.constant 768 : i32
    %326 = arith.addi %12, %c768_i32 : i32
    %327 = arith.index_cast %326 : i32 to index
    %c0_163 = arith.constant 0 : index
    %328 = vector.load %arg5[%327, %c0_163] : memref<832x128xf32, #tpu.memory_space<vmem>>, vector<32x128xf32>
    %329 = arith.maximumf %325, %328 : vector<32x128xf32>
    %c800_i32 = arith.constant 800 : i32
    %330 = arith.addi %12, %c800_i32 : i32
    %331 = arith.index_cast %330 : i32 to index
    %c0_164 = arith.constant 0 : index
    %332 = vector.load %arg5[%331, %c0_164] : memref<832x128xf32, #tpu.memory_space<vmem>>, vector<32x128xf32>
    %333 = arith.maximumf %329, %332 : vector<32x128xf32>
    %c0_165 = arith.constant 0 : index
    %c0_166 = arith.constant 0 : index
    %334 = vector.load %arg6[%c0_165, %c0_166] : memref<32x128xf32, #tpu.memory_space<vmem>>, vector<32x128xf32>
    tpu.vector_store %arg6[%c0_165, %c0_166], %333 {strides = array<i32>} : memref<32x128xf32, #tpu.memory_space<vmem>>, vector<32x128xf32>,
    %c0_167 = arith.constant 0 : index
    %c0_168 = arith.constant 0 : index
    %335 = tpu.strided_load %arg6[%c0_167, %c0_168] {strides = array<i32: 2, 1>} : memref<32x128xf32, #tpu.memory_space<vmem>>, vector<13x128xf32>
    %c1_169 = arith.constant 1 : index
    %c0_170 = arith.constant 0 : index
    %336 = tpu.strided_load %arg6[%c1_169, %c0_170] {strides = array<i32: 2, 1>} : memref<32x128xf32, #tpu.memory_space<vmem>>, vector<13x128xf32>
    %337 = arith.maximumf %335, %336 : vector<13x128xf32>
    %338 = vector.extract_strided_slice %337 {offsets = [1, 0], sizes = [12, 128], strides = [1, 1]} : vector<13x128xf32> to vector<12x128xf32>
    %339 = vector.extract_strided_slice %336 {offsets = [0, 0], sizes = [12, 128], strides = [1, 1]} : vector<13x128xf32> to vector<12x128xf32>
    %340 = arith.maximumf %338, %339 : vector<12x128xf32>
    %341 = vector.extract_strided_slice %337 {offsets = [0, 0], sizes = [1, 128], strides = [1, 1]} : vector<13x128xf32> to vector<1x128xf32>
    %342 = tpu.concatenate %341, %340 in 0 : vector<1x128xf32>, vector<12x128xf32> -> vector<13x128xf32>
    %cst_171 = arith.constant 0.000000e+00 : f32
    %343 = vector.broadcast %cst_171 : f32 to vector<3x128xf32>
    %344 = tpu.concatenate %342, %343 in 0 : vector<13x128xf32>, vector<3x128xf32> -> vector<16x128xf32>
    %345 = arith.truncf %344 : vector<16x128xf32> to vector<16x128xbf16>
    %c192_i32_172 = arith.constant 192 : i32
    %346 = arith.addi %14, %c192_i32_172 : i32
    %347 = arith.index_cast %346 : i32 to index
    %c0_173 = arith.constant 0 : index
    %348 = vector.load %arg4[%347, %c0_173] : memref<224x128xbf16, #tpu.memory_space<vmem>>, vector<16x128xbf16>
    tpu.vector_store %arg4[%347, %c0_173], %345 {strides = array<i32>} : memref<224x128xbf16, #tpu.memory_space<vmem>>, vector<16x128xbf16>,
    %cst_174 = arith.constant 0.000000e+00 : bf16
    %349 = vector.broadcast %cst_174 : bf16 to vector<16x128xbf16>
    %c208_i32 = arith.constant 208 : i32
    %350 = arith.addi %14, %c208_i32 : i32
    %351 = arith.index_cast %350 : i32 to index
    %c0_175 = arith.constant 0 : index
    %352 = vector.load %arg4[%351, %c0_175] : memref<224x128xbf16, #tpu.memory_space<vmem>>, vector<16x128xbf16>
    tpu.vector_store %arg4[%351, %c0_175], %349 {strides = array<i32>} : memref<224x128xbf16, #tpu.memory_space<vmem>>, vector<16x128xbf16>,
    %c1_i32 = arith.constant 1 : i32
    return
  }
  func.func @transform_0(%arg0: i32) -> (i32, i32) {
    %c0_i32 = arith.constant 0 : i32
    %c0_i32_0 = arith.constant 0 : i32
    return %arg0, %c0_i32 : i32, i32
  }
  func.func @transform_1(%arg0: i32) -> (i32, i32) {
    %c0_i32 = arith.constant 0 : i32
    %c0_i32_0 = arith.constant 0 : i32
    %c0_i32_1 = arith.constant 0 : i32
    return %c0_i32, %c0_i32_0 : i32, i32
  }
  func.func @transform_2(%arg0: i32) -> (i32, i32) {
    %c0_i32 = arith.constant 0 : i32
    %c0_i32_0 = arith.constant 0 : i32
    %c0_i32_1 = arith.constant 0 : i32
    return %c0_i32, %c0_i32_0 : i32, i32
  }
  func.func @transform_3(%arg0: i32) -> (i32, i32) {
    %c0_i32 = arith.constant 0 : i32
    %c0_i32_0 = arith.constant 0 : i32
    return %arg0, %c0_i32 : i32, i32
  }
}

module attributes {stable_mosaic.version = 11 : i64} {
  func.func @kernel(%arg0: i32, %arg1: memref<224x128xbf16, #tpu.memory_space<vmem>>, %arg2: memref<9x128x128xbf16, #tpu.memory_space<vmem>>, %arg3: memref<1x128xf32, #tpu.memory_space<vmem>>, %arg4: memref<96x128xbf16, #tpu.memory_space<vmem>>, %arg5: memref<224x128xf32, #tpu.memory_space<vmem>>, %arg6: memref<16x128xf32, #tpu.memory_space<vmem>>) attributes {dimension_semantics = [#tpu.dimension_semantics<parallel>], iteration_bounds = array<i64: 1>, scalar_prefetch = 0 : i64, scratch_operands = 2 : i64, tpu.core_type = #tpu.core_type<tc>, window_params = [{transform_indices = @transform_0, window_bounds = array<i64: 224, 128>}, {pipeline_mode = #tpu.pipeline_mode<synchronous>, transform_indices = @transform_1, window_bounds = array<i64: 9, 128, 128>}, {pipeline_mode = #tpu.pipeline_mode<synchronous>, transform_indices = @transform_2, window_bounds = array<i64: 1, 128>}, {transform_indices = @transform_3, window_bounds = array<i64: 96, 128>}]} {
    %c0 = arith.constant 0 : index
    %c0_0 = arith.constant 0 : index
    %0 = vector.load %arg1[%c0, %c0_0] : memref<224x128xbf16, #tpu.memory_space<vmem>>, vector<176x128xbf16>
    %c0_1 = arith.constant 0 : index
    %c0_2 = arith.constant 0 : index
    %c0_3 = arith.constant 0 : index
    %1 = vector.load %arg2[%c0_1, %c0_2, %c0_3] : memref<9x128x128xbf16, #tpu.memory_space<vmem>>, vector<1x128x128xbf16>
    %2 = vector.shape_cast %1 : vector<1x128x128xbf16> to vector<128x128xbf16>
    %cst = arith.constant dense<0.000000e+00> : vector<176x128xf32>
    %3 = tpu.matmul %0, %2, %cst {dimension_numbers = #tpu.dot_dimension_numbers<[1], [0], [0], [1], [0, 0, 1, 1], [], []>} : vector<176x128xbf16>, vector<128x128xbf16>, vector<176x128xf32> -> vector<176x128xf32>
    %c0_4 = arith.constant 0 : index
    %c0_5 = arith.constant 0 : index
    %4 = vector.load %arg5[%c0_4, %c0_5] : memref<224x128xf32, #tpu.memory_space<vmem>>, vector<176x128xf32>
    tpu.vector_store %arg5[%c0_4, %c0_5], %3 {strides = array<i32>} : memref<224x128xf32, #tpu.memory_space<vmem>>, vector<176x128xf32>,
    %c1 = arith.constant 1 : index
    %c0_6 = arith.constant 0 : index
    %5 = vector.load %arg1[%c1, %c0_6] : memref<224x128xbf16, #tpu.memory_space<vmem>>, vector<176x128xbf16>
    %c1_7 = arith.constant 1 : index
    %c0_8 = arith.constant 0 : index
    %c0_9 = arith.constant 0 : index
    %6 = vector.load %arg2[%c1_7, %c0_8, %c0_9] : memref<9x128x128xbf16, #tpu.memory_space<vmem>>, vector<1x128x128xbf16>
    %7 = vector.shape_cast %6 : vector<1x128x128xbf16> to vector<128x128xbf16>
    %cst_10 = arith.constant dense<0.000000e+00> : vector<176x128xf32>
    %8 = tpu.matmul %5, %7, %cst_10 {dimension_numbers = #tpu.dot_dimension_numbers<[1], [0], [0], [1], [0, 0, 1, 1], [], []>} : vector<176x128xbf16>, vector<128x128xbf16>, vector<176x128xf32> -> vector<176x128xf32>
    %c0_11 = arith.constant 0 : index
    %c0_12 = arith.constant 0 : index
    %9 = vector.load %arg5[%c0_11, %c0_12] : memref<224x128xf32, #tpu.memory_space<vmem>>, vector<176x128xf32>
    %10 = arith.addf %9, %8 : vector<176x128xf32>
    %c0_13 = arith.constant 0 : index
    %c0_14 = arith.constant 0 : index
    %11 = vector.load %arg5[%c0_13, %c0_14] : memref<224x128xf32, #tpu.memory_space<vmem>>, vector<176x128xf32>
    tpu.vector_store %arg5[%c0_13, %c0_14], %10 {strides = array<i32>} : memref<224x128xf32, #tpu.memory_space<vmem>>, vector<176x128xf32>,
    %c2 = arith.constant 2 : index
    %c0_15 = arith.constant 0 : index
    %12 = vector.load %arg1[%c2, %c0_15] : memref<224x128xbf16, #tpu.memory_space<vmem>>, vector<176x128xbf16>
    %c2_16 = arith.constant 2 : index
    %c0_17 = arith.constant 0 : index
    %c0_18 = arith.constant 0 : index
    %13 = vector.load %arg2[%c2_16, %c0_17, %c0_18] : memref<9x128x128xbf16, #tpu.memory_space<vmem>>, vector<1x128x128xbf16>
    %14 = vector.shape_cast %13 : vector<1x128x128xbf16> to vector<128x128xbf16>
    %cst_19 = arith.constant dense<0.000000e+00> : vector<176x128xf32>
    %15 = tpu.matmul %12, %14, %cst_19 {dimension_numbers = #tpu.dot_dimension_numbers<[1], [0], [0], [1], [0, 0, 1, 1], [], []>} : vector<176x128xbf16>, vector<128x128xbf16>, vector<176x128xf32> -> vector<176x128xf32>
    %c0_20 = arith.constant 0 : index
    %c0_21 = arith.constant 0 : index
    %16 = vector.load %arg5[%c0_20, %c0_21] : memref<224x128xf32, #tpu.memory_space<vmem>>, vector<176x128xf32>
    %17 = arith.addf %16, %15 : vector<176x128xf32>
    %c0_22 = arith.constant 0 : index
    %c0_23 = arith.constant 0 : index
    %18 = vector.load %arg5[%c0_22, %c0_23] : memref<224x128xf32, #tpu.memory_space<vmem>>, vector<176x128xf32>
    tpu.vector_store %arg5[%c0_22, %c0_23], %17 {strides = array<i32>} : memref<224x128xf32, #tpu.memory_space<vmem>>, vector<176x128xf32>,
    %c16 = arith.constant 16 : index
    %c0_24 = arith.constant 0 : index
    %19 = vector.load %arg1[%c16, %c0_24] : memref<224x128xbf16, #tpu.memory_space<vmem>>, vector<176x128xbf16>
    %c3 = arith.constant 3 : index
    %c0_25 = arith.constant 0 : index
    %c0_26 = arith.constant 0 : index
    %20 = vector.load %arg2[%c3, %c0_25, %c0_26] : memref<9x128x128xbf16, #tpu.memory_space<vmem>>, vector<1x128x128xbf16>
    %21 = vector.shape_cast %20 : vector<1x128x128xbf16> to vector<128x128xbf16>
    %cst_27 = arith.constant dense<0.000000e+00> : vector<176x128xf32>
    %22 = tpu.matmul %19, %21, %cst_27 {dimension_numbers = #tpu.dot_dimension_numbers<[1], [0], [0], [1], [0, 0, 1, 1], [], []>} : vector<176x128xbf16>, vector<128x128xbf16>, vector<176x128xf32> -> vector<176x128xf32>
    %c0_28 = arith.constant 0 : index
    %c0_29 = arith.constant 0 : index
    %23 = vector.load %arg5[%c0_28, %c0_29] : memref<224x128xf32, #tpu.memory_space<vmem>>, vector<176x128xf32>
    %24 = arith.addf %23, %22 : vector<176x128xf32>
    %c0_30 = arith.constant 0 : index
    %c0_31 = arith.constant 0 : index
    %25 = vector.load %arg5[%c0_30, %c0_31] : memref<224x128xf32, #tpu.memory_space<vmem>>, vector<176x128xf32>
    tpu.vector_store %arg5[%c0_30, %c0_31], %24 {strides = array<i32>} : memref<224x128xf32, #tpu.memory_space<vmem>>, vector<176x128xf32>,
    %c17 = arith.constant 17 : index
    %c0_32 = arith.constant 0 : index
    %26 = vector.load %arg1[%c17, %c0_32] : memref<224x128xbf16, #tpu.memory_space<vmem>>, vector<176x128xbf16>
    %c4 = arith.constant 4 : index
    %c0_33 = arith.constant 0 : index
    %c0_34 = arith.constant 0 : index
    %27 = vector.load %arg2[%c4, %c0_33, %c0_34] : memref<9x128x128xbf16, #tpu.memory_space<vmem>>, vector<1x128x128xbf16>
    %28 = vector.shape_cast %27 : vector<1x128x128xbf16> to vector<128x128xbf16>
    %cst_35 = arith.constant dense<0.000000e+00> : vector<176x128xf32>
    %29 = tpu.matmul %26, %28, %cst_35 {dimension_numbers = #tpu.dot_dimension_numbers<[1], [0], [0], [1], [0, 0, 1, 1], [], []>} : vector<176x128xbf16>, vector<128x128xbf16>, vector<176x128xf32> -> vector<176x128xf32>
    %c0_36 = arith.constant 0 : index
    %c0_37 = arith.constant 0 : index
    %30 = vector.load %arg5[%c0_36, %c0_37] : memref<224x128xf32, #tpu.memory_space<vmem>>, vector<176x128xf32>
    %31 = arith.addf %30, %29 : vector<176x128xf32>
    %c0_38 = arith.constant 0 : index
    %c0_39 = arith.constant 0 : index
    %32 = vector.load %arg5[%c0_38, %c0_39] : memref<224x128xf32, #tpu.memory_space<vmem>>, vector<176x128xf32>
    tpu.vector_store %arg5[%c0_38, %c0_39], %31 {strides = array<i32>} : memref<224x128xf32, #tpu.memory_space<vmem>>, vector<176x128xf32>,
    %c18 = arith.constant 18 : index
    %c0_40 = arith.constant 0 : index
    %33 = vector.load %arg1[%c18, %c0_40] : memref<224x128xbf16, #tpu.memory_space<vmem>>, vector<176x128xbf16>
    %c5 = arith.constant 5 : index
    %c0_41 = arith.constant 0 : index
    %c0_42 = arith.constant 0 : index
    %34 = vector.load %arg2[%c5, %c0_41, %c0_42] : memref<9x128x128xbf16, #tpu.memory_space<vmem>>, vector<1x128x128xbf16>
    %35 = vector.shape_cast %34 : vector<1x128x128xbf16> to vector<128x128xbf16>
    %cst_43 = arith.constant dense<0.000000e+00> : vector<176x128xf32>
    %36 = tpu.matmul %33, %35, %cst_43 {dimension_numbers = #tpu.dot_dimension_numbers<[1], [0], [0], [1], [0, 0, 1, 1], [], []>} : vector<176x128xbf16>, vector<128x128xbf16>, vector<176x128xf32> -> vector<176x128xf32>
    %c0_44 = arith.constant 0 : index
    %c0_45 = arith.constant 0 : index
    %37 = vector.load %arg5[%c0_44, %c0_45] : memref<224x128xf32, #tpu.memory_space<vmem>>, vector<176x128xf32>
    %38 = arith.addf %37, %36 : vector<176x128xf32>
    %c0_46 = arith.constant 0 : index
    %c0_47 = arith.constant 0 : index
    %39 = vector.load %arg5[%c0_46, %c0_47] : memref<224x128xf32, #tpu.memory_space<vmem>>, vector<176x128xf32>
    tpu.vector_store %arg5[%c0_46, %c0_47], %38 {strides = array<i32>} : memref<224x128xf32, #tpu.memory_space<vmem>>, vector<176x128xf32>,
    %c32 = arith.constant 32 : index
    %c0_48 = arith.constant 0 : index
    %40 = vector.load %arg1[%c32, %c0_48] : memref<224x128xbf16, #tpu.memory_space<vmem>>, vector<176x128xbf16>
    %c6 = arith.constant 6 : index
    %c0_49 = arith.constant 0 : index
    %c0_50 = arith.constant 0 : index
    %41 = vector.load %arg2[%c6, %c0_49, %c0_50] : memref<9x128x128xbf16, #tpu.memory_space<vmem>>, vector<1x128x128xbf16>
    %42 = vector.shape_cast %41 : vector<1x128x128xbf16> to vector<128x128xbf16>
    %cst_51 = arith.constant dense<0.000000e+00> : vector<176x128xf32>
    %43 = tpu.matmul %40, %42, %cst_51 {dimension_numbers = #tpu.dot_dimension_numbers<[1], [0], [0], [1], [0, 0, 1, 1], [], []>} : vector<176x128xbf16>, vector<128x128xbf16>, vector<176x128xf32> -> vector<176x128xf32>
    %c0_52 = arith.constant 0 : index
    %c0_53 = arith.constant 0 : index
    %44 = vector.load %arg5[%c0_52, %c0_53] : memref<224x128xf32, #tpu.memory_space<vmem>>, vector<176x128xf32>
    %45 = arith.addf %44, %43 : vector<176x128xf32>
    %c0_54 = arith.constant 0 : index
    %c0_55 = arith.constant 0 : index
    %46 = vector.load %arg5[%c0_54, %c0_55] : memref<224x128xf32, #tpu.memory_space<vmem>>, vector<176x128xf32>
    tpu.vector_store %arg5[%c0_54, %c0_55], %45 {strides = array<i32>} : memref<224x128xf32, #tpu.memory_space<vmem>>, vector<176x128xf32>,
    %c33 = arith.constant 33 : index
    %c0_56 = arith.constant 0 : index
    %47 = vector.load %arg1[%c33, %c0_56] : memref<224x128xbf16, #tpu.memory_space<vmem>>, vector<176x128xbf16>
    %c7 = arith.constant 7 : index
    %c0_57 = arith.constant 0 : index
    %c0_58 = arith.constant 0 : index
    %48 = vector.load %arg2[%c7, %c0_57, %c0_58] : memref<9x128x128xbf16, #tpu.memory_space<vmem>>, vector<1x128x128xbf16>
    %49 = vector.shape_cast %48 : vector<1x128x128xbf16> to vector<128x128xbf16>
    %cst_59 = arith.constant dense<0.000000e+00> : vector<176x128xf32>
    %50 = tpu.matmul %47, %49, %cst_59 {dimension_numbers = #tpu.dot_dimension_numbers<[1], [0], [0], [1], [0, 0, 1, 1], [], []>} : vector<176x128xbf16>, vector<128x128xbf16>, vector<176x128xf32> -> vector<176x128xf32>
    %c0_60 = arith.constant 0 : index
    %c0_61 = arith.constant 0 : index
    %51 = vector.load %arg5[%c0_60, %c0_61] : memref<224x128xf32, #tpu.memory_space<vmem>>, vector<176x128xf32>
    %52 = arith.addf %51, %50 : vector<176x128xf32>
    %c0_62 = arith.constant 0 : index
    %c0_63 = arith.constant 0 : index
    %53 = vector.load %arg5[%c0_62, %c0_63] : memref<224x128xf32, #tpu.memory_space<vmem>>, vector<176x128xf32>
    tpu.vector_store %arg5[%c0_62, %c0_63], %52 {strides = array<i32>} : memref<224x128xf32, #tpu.memory_space<vmem>>, vector<176x128xf32>,
    %c34 = arith.constant 34 : index
    %c0_64 = arith.constant 0 : index
    %54 = vector.load %arg1[%c34, %c0_64] : memref<224x128xbf16, #tpu.memory_space<vmem>>, vector<176x128xbf16>
    %c8 = arith.constant 8 : index
    %c0_65 = arith.constant 0 : index
    %c0_66 = arith.constant 0 : index
    %55 = vector.load %arg2[%c8, %c0_65, %c0_66] : memref<9x128x128xbf16, #tpu.memory_space<vmem>>, vector<1x128x128xbf16>
    %56 = vector.shape_cast %55 : vector<1x128x128xbf16> to vector<128x128xbf16>
    %cst_67 = arith.constant dense<0.000000e+00> : vector<176x128xf32>
    %57 = tpu.matmul %54, %56, %cst_67 {dimension_numbers = #tpu.dot_dimension_numbers<[1], [0], [0], [1], [0, 0, 1, 1], [], []>} : vector<176x128xbf16>, vector<128x128xbf16>, vector<176x128xf32> -> vector<176x128xf32>
    %c0_68 = arith.constant 0 : index
    %c0_69 = arith.constant 0 : index
    %58 = vector.load %arg5[%c0_68, %c0_69] : memref<224x128xf32, #tpu.memory_space<vmem>>, vector<176x128xf32>
    %59 = arith.addf %58, %57 : vector<176x128xf32>
    %c0_70 = arith.constant 0 : index
    %c0_71 = arith.constant 0 : index
    %60 = vector.load %arg5[%c0_70, %c0_71] : memref<224x128xf32, #tpu.memory_space<vmem>>, vector<176x128xf32>
    tpu.vector_store %arg5[%c0_70, %c0_71], %59 {strides = array<i32>} : memref<224x128xf32, #tpu.memory_space<vmem>>, vector<176x128xf32>,
    %c0_72 = arith.constant 0 : index
    %c0_73 = arith.constant 0 : index
    %61 = vector.load %arg5[%c0_72, %c0_73] : memref<224x128xf32, #tpu.memory_space<vmem>>, vector<176x128xf32>
    %c0_74 = arith.constant 0 : index
    %c0_75 = arith.constant 0 : index
    %62 = vector.load %arg3[%c0_74, %c0_75] : memref<1x128xf32, #tpu.memory_space<vmem>>, vector<1x128xf32>
    %63 = vector.broadcast %62 : vector<1x128xf32> to vector<176x128xf32>
    %64 = arith.addf %61, %63 : vector<176x128xf32>
    %cst_76 = arith.constant 0.000000e+00 : f32
    %65 = vector.broadcast %cst_76 : f32 to vector<176x128xf32>
    %66 = arith.maximumf %64, %65 : vector<176x128xf32>
    %c0_77 = arith.constant 0 : index
    %c0_78 = arith.constant 0 : index
    %67 = vector.load %arg5[%c0_77, %c0_78] : memref<224x128xf32, #tpu.memory_space<vmem>>, vector<176x128xf32>
    tpu.vector_store %arg5[%c0_77, %c0_78], %66 {strides = array<i32>} : memref<224x128xf32, #tpu.memory_space<vmem>>, vector<176x128xf32>,
    %c0_i32 = arith.constant 0 : i32
    %c224_i32 = arith.constant 224 : i32
    %68 = arith.muli %c0_i32, %c224_i32 : i32
    %69 = tpu.assume_multiple %68, 32 : i32
    %c96_i32 = arith.constant 96 : i32
    %70 = arith.muli %c0_i32, %c96_i32 : i32
    %71 = tpu.assume_multiple %70, 32 : i32
    %c0_i32_79 = arith.constant 0 : i32
    %72 = arith.addi %69, %c0_i32_79 : i32
    %73 = arith.index_cast %72 : i32 to index
    %c0_80 = arith.constant 0 : index
    %74 = vector.load %arg5[%73, %c0_80] : memref<224x128xf32, #tpu.memory_space<vmem>>, vector<16x128xf32>
    %c16_i32 = arith.constant 16 : i32
    %75 = arith.addi %69, %c16_i32 : i32
    %76 = arith.index_cast %75 : i32 to index
    %c0_81 = arith.constant 0 : index
    %77 = vector.load %arg5[%76, %c0_81] : memref<224x128xf32, #tpu.memory_space<vmem>>, vector<16x128xf32>
    %78 = arith.maximumf %74, %77 : vector<16x128xf32>
    %c0_82 = arith.constant 0 : index
    %c0_83 = arith.constant 0 : index
    %79 = vector.load %arg6[%c0_82, %c0_83] : memref<16x128xf32, #tpu.memory_space<vmem>>, vector<16x128xf32>
    tpu.vector_store %arg6[%c0_82, %c0_83], %78 {strides = array<i32>} : memref<16x128xf32, #tpu.memory_space<vmem>>, vector<16x128xf32>,
    %c0_84 = arith.constant 0 : index
    %c0_85 = arith.constant 0 : index
    %80 = tpu.strided_load %arg6[%c0_84, %c0_85] {strides = array<i32: 2, 1>} : memref<16x128xf32, #tpu.memory_space<vmem>>, vector<6x128xf32>
    %c1_86 = arith.constant 1 : index
    %c0_87 = arith.constant 0 : index
    %81 = tpu.strided_load %arg6[%c1_86, %c0_87] {strides = array<i32: 2, 1>} : memref<16x128xf32, #tpu.memory_space<vmem>>, vector<5x128xf32>
    %82 = vector.extract_strided_slice %80 {offsets = [0, 0], sizes = [5, 128], strides = [1, 1]} : vector<6x128xf32> to vector<5x128xf32>
    %83 = arith.maximumf %82, %81 : vector<5x128xf32>
    %84 = vector.extract_strided_slice %80 {offsets = [5, 0], sizes = [1, 128], strides = [1, 1]} : vector<6x128xf32> to vector<1x128xf32>
    %85 = tpu.concatenate %83, %84 in 0 : vector<5x128xf32>, vector<1x128xf32> -> vector<6x128xf32>
    %86 = vector.extract_strided_slice %85 {offsets = [1, 0], sizes = [5, 128], strides = [1, 1]} : vector<6x128xf32> to vector<5x128xf32>
    %87 = arith.maximumf %86, %81 : vector<5x128xf32>
    %88 = vector.extract_strided_slice %85 {offsets = [0, 0], sizes = [1, 128], strides = [1, 1]} : vector<6x128xf32> to vector<1x128xf32>
    %89 = tpu.concatenate %88, %87 in 0 : vector<1x128xf32>, vector<5x128xf32> -> vector<6x128xf32>
    %cst_88 = arith.constant 0.000000e+00 : f32
    %90 = vector.broadcast %cst_88 : f32 to vector<10x128xf32>
    %91 = tpu.concatenate %89, %90 in 0 : vector<6x128xf32>, vector<10x128xf32> -> vector<16x128xf32>
    %92 = arith.truncf %91 : vector<16x128xf32> to vector<16x128xbf16>
    %c0_i32_89 = arith.constant 0 : i32
    %93 = arith.addi %71, %c0_i32_89 : i32
    %94 = arith.index_cast %93 : i32 to index
    %c0_90 = arith.constant 0 : index
    %95 = vector.load %arg4[%94, %c0_90] : memref<96x128xbf16, #tpu.memory_space<vmem>>, vector<16x128xbf16>
    tpu.vector_store %arg4[%94, %c0_90], %92 {strides = array<i32>} : memref<96x128xbf16, #tpu.memory_space<vmem>>, vector<16x128xbf16>,
    %c16_i32_91 = arith.constant 16 : i32
    %96 = arith.addi %69, %c16_i32_91 : i32
    %97 = arith.index_cast %96 : i32 to index
    %c0_92 = arith.constant 0 : index
    %98 = vector.load %arg5[%97, %c0_92] : memref<224x128xf32, #tpu.memory_space<vmem>>, vector<16x128xf32>
    %c32_i32 = arith.constant 32 : i32
    %99 = arith.addi %69, %c32_i32 : i32
    %100 = arith.index_cast %99 : i32 to index
    %c0_93 = arith.constant 0 : index
    %101 = vector.load %arg5[%100, %c0_93] : memref<224x128xf32, #tpu.memory_space<vmem>>, vector<16x128xf32>
    %102 = arith.maximumf %98, %101 : vector<16x128xf32>
    %c48_i32 = arith.constant 48 : i32
    %103 = arith.addi %69, %c48_i32 : i32
    %104 = arith.index_cast %103 : i32 to index
    %c0_94 = arith.constant 0 : index
    %105 = vector.load %arg5[%104, %c0_94] : memref<224x128xf32, #tpu.memory_space<vmem>>, vector<16x128xf32>
    %106 = arith.maximumf %102, %105 : vector<16x128xf32>
    %c0_95 = arith.constant 0 : index
    %c0_96 = arith.constant 0 : index
    %107 = vector.load %arg6[%c0_95, %c0_96] : memref<16x128xf32, #tpu.memory_space<vmem>>, vector<16x128xf32>
    tpu.vector_store %arg6[%c0_95, %c0_96], %106 {strides = array<i32>} : memref<16x128xf32, #tpu.memory_space<vmem>>, vector<16x128xf32>,
    %c0_97 = arith.constant 0 : index
    %c0_98 = arith.constant 0 : index
    %108 = tpu.strided_load %arg6[%c0_97, %c0_98] {strides = array<i32: 2, 1>} : memref<16x128xf32, #tpu.memory_space<vmem>>, vector<6x128xf32>
    %c1_99 = arith.constant 1 : index
    %c0_100 = arith.constant 0 : index
    %109 = tpu.strided_load %arg6[%c1_99, %c0_100] {strides = array<i32: 2, 1>} : memref<16x128xf32, #tpu.memory_space<vmem>>, vector<5x128xf32>
    %110 = vector.extract_strided_slice %108 {offsets = [0, 0], sizes = [5, 128], strides = [1, 1]} : vector<6x128xf32> to vector<5x128xf32>
    %111 = arith.maximumf %110, %109 : vector<5x128xf32>
    %112 = vector.extract_strided_slice %108 {offsets = [5, 0], sizes = [1, 128], strides = [1, 1]} : vector<6x128xf32> to vector<1x128xf32>
    %113 = tpu.concatenate %111, %112 in 0 : vector<5x128xf32>, vector<1x128xf32> -> vector<6x128xf32>
    %114 = vector.extract_strided_slice %113 {offsets = [1, 0], sizes = [5, 128], strides = [1, 1]} : vector<6x128xf32> to vector<5x128xf32>
    %115 = arith.maximumf %114, %109 : vector<5x128xf32>
    %116 = vector.extract_strided_slice %113 {offsets = [0, 0], sizes = [1, 128], strides = [1, 1]} : vector<6x128xf32> to vector<1x128xf32>
    %117 = tpu.concatenate %116, %115 in 0 : vector<1x128xf32>, vector<5x128xf32> -> vector<6x128xf32>
    %cst_101 = arith.constant 0.000000e+00 : f32
    %118 = vector.broadcast %cst_101 : f32 to vector<10x128xf32>
    %119 = tpu.concatenate %117, %118 in 0 : vector<6x128xf32>, vector<10x128xf32> -> vector<16x128xf32>
    %120 = arith.truncf %119 : vector<16x128xf32> to vector<16x128xbf16>
    %c16_i32_102 = arith.constant 16 : i32
    %121 = arith.addi %71, %c16_i32_102 : i32
    %122 = arith.index_cast %121 : i32 to index
    %c0_103 = arith.constant 0 : index
    %123 = vector.load %arg4[%122, %c0_103] : memref<96x128xbf16, #tpu.memory_space<vmem>>, vector<16x128xbf16>
    tpu.vector_store %arg4[%122, %c0_103], %120 {strides = array<i32>} : memref<96x128xbf16, #tpu.memory_space<vmem>>, vector<16x128xbf16>,
    %c48_i32_104 = arith.constant 48 : i32
    %124 = arith.addi %69, %c48_i32_104 : i32
    %125 = arith.index_cast %124 : i32 to index
    %c0_105 = arith.constant 0 : index
    %126 = vector.load %arg5[%125, %c0_105] : memref<224x128xf32, #tpu.memory_space<vmem>>, vector<16x128xf32>
    %c64_i32 = arith.constant 64 : i32
    %127 = arith.addi %69, %c64_i32 : i32
    %128 = arith.index_cast %127 : i32 to index
    %c0_106 = arith.constant 0 : index
    %129 = vector.load %arg5[%128, %c0_106] : memref<224x128xf32, #tpu.memory_space<vmem>>, vector<16x128xf32>
    %130 = arith.maximumf %126, %129 : vector<16x128xf32>
    %c80_i32 = arith.constant 80 : i32
    %131 = arith.addi %69, %c80_i32 : i32
    %132 = arith.index_cast %131 : i32 to index
    %c0_107 = arith.constant 0 : index
    %133 = vector.load %arg5[%132, %c0_107] : memref<224x128xf32, #tpu.memory_space<vmem>>, vector<16x128xf32>
    %134 = arith.maximumf %130, %133 : vector<16x128xf32>
    %c0_108 = arith.constant 0 : index
    %c0_109 = arith.constant 0 : index
    %135 = vector.load %arg6[%c0_108, %c0_109] : memref<16x128xf32, #tpu.memory_space<vmem>>, vector<16x128xf32>
    tpu.vector_store %arg6[%c0_108, %c0_109], %134 {strides = array<i32>} : memref<16x128xf32, #tpu.memory_space<vmem>>, vector<16x128xf32>,
    %c0_110 = arith.constant 0 : index
    %c0_111 = arith.constant 0 : index
    %136 = tpu.strided_load %arg6[%c0_110, %c0_111] {strides = array<i32: 2, 1>} : memref<16x128xf32, #tpu.memory_space<vmem>>, vector<6x128xf32>
    %c1_112 = arith.constant 1 : index
    %c0_113 = arith.constant 0 : index
    %137 = tpu.strided_load %arg6[%c1_112, %c0_113] {strides = array<i32: 2, 1>} : memref<16x128xf32, #tpu.memory_space<vmem>>, vector<5x128xf32>
    %138 = vector.extract_strided_slice %136 {offsets = [0, 0], sizes = [5, 128], strides = [1, 1]} : vector<6x128xf32> to vector<5x128xf32>
    %139 = arith.maximumf %138, %137 : vector<5x128xf32>
    %140 = vector.extract_strided_slice %136 {offsets = [5, 0], sizes = [1, 128], strides = [1, 1]} : vector<6x128xf32> to vector<1x128xf32>
    %141 = tpu.concatenate %139, %140 in 0 : vector<5x128xf32>, vector<1x128xf32> -> vector<6x128xf32>
    %142 = vector.extract_strided_slice %141 {offsets = [1, 0], sizes = [5, 128], strides = [1, 1]} : vector<6x128xf32> to vector<5x128xf32>
    %143 = arith.maximumf %142, %137 : vector<5x128xf32>
    %144 = vector.extract_strided_slice %141 {offsets = [0, 0], sizes = [1, 128], strides = [1, 1]} : vector<6x128xf32> to vector<1x128xf32>
    %145 = tpu.concatenate %144, %143 in 0 : vector<1x128xf32>, vector<5x128xf32> -> vector<6x128xf32>
    %cst_114 = arith.constant 0.000000e+00 : f32
    %146 = vector.broadcast %cst_114 : f32 to vector<10x128xf32>
    %147 = tpu.concatenate %145, %146 in 0 : vector<6x128xf32>, vector<10x128xf32> -> vector<16x128xf32>
    %148 = arith.truncf %147 : vector<16x128xf32> to vector<16x128xbf16>
    %c32_i32_115 = arith.constant 32 : i32
    %149 = arith.addi %71, %c32_i32_115 : i32
    %150 = arith.index_cast %149 : i32 to index
    %c0_116 = arith.constant 0 : index
    %151 = vector.load %arg4[%150, %c0_116] : memref<96x128xbf16, #tpu.memory_space<vmem>>, vector<16x128xbf16>
    tpu.vector_store %arg4[%150, %c0_116], %148 {strides = array<i32>} : memref<96x128xbf16, #tpu.memory_space<vmem>>, vector<16x128xbf16>,
    %c80_i32_117 = arith.constant 80 : i32
    %152 = arith.addi %69, %c80_i32_117 : i32
    %153 = arith.index_cast %152 : i32 to index
    %c0_118 = arith.constant 0 : index
    %154 = vector.load %arg5[%153, %c0_118] : memref<224x128xf32, #tpu.memory_space<vmem>>, vector<16x128xf32>
    %c96_i32_119 = arith.constant 96 : i32
    %155 = arith.addi %69, %c96_i32_119 : i32
    %156 = arith.index_cast %155 : i32 to index
    %c0_120 = arith.constant 0 : index
    %157 = vector.load %arg5[%156, %c0_120] : memref<224x128xf32, #tpu.memory_space<vmem>>, vector<16x128xf32>
    %158 = arith.maximumf %154, %157 : vector<16x128xf32>
    %c112_i32 = arith.constant 112 : i32
    %159 = arith.addi %69, %c112_i32 : i32
    %160 = arith.index_cast %159 : i32 to index
    %c0_121 = arith.constant 0 : index
    %161 = vector.load %arg5[%160, %c0_121] : memref<224x128xf32, #tpu.memory_space<vmem>>, vector<16x128xf32>
    %162 = arith.maximumf %158, %161 : vector<16x128xf32>
    %c0_122 = arith.constant 0 : index
    %c0_123 = arith.constant 0 : index
    %163 = vector.load %arg6[%c0_122, %c0_123] : memref<16x128xf32, #tpu.memory_space<vmem>>, vector<16x128xf32>
    tpu.vector_store %arg6[%c0_122, %c0_123], %162 {strides = array<i32>} : memref<16x128xf32, #tpu.memory_space<vmem>>, vector<16x128xf32>,
    %c0_124 = arith.constant 0 : index
    %c0_125 = arith.constant 0 : index
    %164 = tpu.strided_load %arg6[%c0_124, %c0_125] {strides = array<i32: 2, 1>} : memref<16x128xf32, #tpu.memory_space<vmem>>, vector<6x128xf32>
    %c1_126 = arith.constant 1 : index
    %c0_127 = arith.constant 0 : index
    %165 = tpu.strided_load %arg6[%c1_126, %c0_127] {strides = array<i32: 2, 1>} : memref<16x128xf32, #tpu.memory_space<vmem>>, vector<5x128xf32>
    %166 = vector.extract_strided_slice %164 {offsets = [0, 0], sizes = [5, 128], strides = [1, 1]} : vector<6x128xf32> to vector<5x128xf32>
    %167 = arith.maximumf %166, %165 : vector<5x128xf32>
    %168 = vector.extract_strided_slice %164 {offsets = [5, 0], sizes = [1, 128], strides = [1, 1]} : vector<6x128xf32> to vector<1x128xf32>
    %169 = tpu.concatenate %167, %168 in 0 : vector<5x128xf32>, vector<1x128xf32> -> vector<6x128xf32>
    %170 = vector.extract_strided_slice %169 {offsets = [1, 0], sizes = [5, 128], strides = [1, 1]} : vector<6x128xf32> to vector<5x128xf32>
    %171 = arith.maximumf %170, %165 : vector<5x128xf32>
    %172 = vector.extract_strided_slice %169 {offsets = [0, 0], sizes = [1, 128], strides = [1, 1]} : vector<6x128xf32> to vector<1x128xf32>
    %173 = tpu.concatenate %172, %171 in 0 : vector<1x128xf32>, vector<5x128xf32> -> vector<6x128xf32>
    %cst_128 = arith.constant 0.000000e+00 : f32
    %174 = vector.broadcast %cst_128 : f32 to vector<10x128xf32>
    %175 = tpu.concatenate %173, %174 in 0 : vector<6x128xf32>, vector<10x128xf32> -> vector<16x128xf32>
    %176 = arith.truncf %175 : vector<16x128xf32> to vector<16x128xbf16>
    %c48_i32_129 = arith.constant 48 : i32
    %177 = arith.addi %71, %c48_i32_129 : i32
    %178 = arith.index_cast %177 : i32 to index
    %c0_130 = arith.constant 0 : index
    %179 = vector.load %arg4[%178, %c0_130] : memref<96x128xbf16, #tpu.memory_space<vmem>>, vector<16x128xbf16>
    tpu.vector_store %arg4[%178, %c0_130], %176 {strides = array<i32>} : memref<96x128xbf16, #tpu.memory_space<vmem>>, vector<16x128xbf16>,
    %c112_i32_131 = arith.constant 112 : i32
    %180 = arith.addi %69, %c112_i32_131 : i32
    %181 = arith.index_cast %180 : i32 to index
    %c0_132 = arith.constant 0 : index
    %182 = vector.load %arg5[%181, %c0_132] : memref<224x128xf32, #tpu.memory_space<vmem>>, vector<16x128xf32>
    %c128_i32 = arith.constant 128 : i32
    %183 = arith.addi %69, %c128_i32 : i32
    %184 = arith.index_cast %183 : i32 to index
    %c0_133 = arith.constant 0 : index
    %185 = vector.load %arg5[%184, %c0_133] : memref<224x128xf32, #tpu.memory_space<vmem>>, vector<16x128xf32>
    %186 = arith.maximumf %182, %185 : vector<16x128xf32>
    %c144_i32 = arith.constant 144 : i32
    %187 = arith.addi %69, %c144_i32 : i32
    %188 = arith.index_cast %187 : i32 to index
    %c0_134 = arith.constant 0 : index
    %189 = vector.load %arg5[%188, %c0_134] : memref<224x128xf32, #tpu.memory_space<vmem>>, vector<16x128xf32>
    %190 = arith.maximumf %186, %189 : vector<16x128xf32>
    %c0_135 = arith.constant 0 : index
    %c0_136 = arith.constant 0 : index
    %191 = vector.load %arg6[%c0_135, %c0_136] : memref<16x128xf32, #tpu.memory_space<vmem>>, vector<16x128xf32>
    tpu.vector_store %arg6[%c0_135, %c0_136], %190 {strides = array<i32>} : memref<16x128xf32, #tpu.memory_space<vmem>>, vector<16x128xf32>,
    %c0_137 = arith.constant 0 : index
    %c0_138 = arith.constant 0 : index
    %192 = tpu.strided_load %arg6[%c0_137, %c0_138] {strides = array<i32: 2, 1>} : memref<16x128xf32, #tpu.memory_space<vmem>>, vector<6x128xf32>
    %c1_139 = arith.constant 1 : index
    %c0_140 = arith.constant 0 : index
    %193 = tpu.strided_load %arg6[%c1_139, %c0_140] {strides = array<i32: 2, 1>} : memref<16x128xf32, #tpu.memory_space<vmem>>, vector<5x128xf32>
    %194 = vector.extract_strided_slice %192 {offsets = [0, 0], sizes = [5, 128], strides = [1, 1]} : vector<6x128xf32> to vector<5x128xf32>
    %195 = arith.maximumf %194, %193 : vector<5x128xf32>
    %196 = vector.extract_strided_slice %192 {offsets = [5, 0], sizes = [1, 128], strides = [1, 1]} : vector<6x128xf32> to vector<1x128xf32>
    %197 = tpu.concatenate %195, %196 in 0 : vector<5x128xf32>, vector<1x128xf32> -> vector<6x128xf32>
    %198 = vector.extract_strided_slice %197 {offsets = [1, 0], sizes = [5, 128], strides = [1, 1]} : vector<6x128xf32> to vector<5x128xf32>
    %199 = arith.maximumf %198, %193 : vector<5x128xf32>
    %200 = vector.extract_strided_slice %197 {offsets = [0, 0], sizes = [1, 128], strides = [1, 1]} : vector<6x128xf32> to vector<1x128xf32>
    %201 = tpu.concatenate %200, %199 in 0 : vector<1x128xf32>, vector<5x128xf32> -> vector<6x128xf32>
    %cst_141 = arith.constant 0.000000e+00 : f32
    %202 = vector.broadcast %cst_141 : f32 to vector<10x128xf32>
    %203 = tpu.concatenate %201, %202 in 0 : vector<6x128xf32>, vector<10x128xf32> -> vector<16x128xf32>
    %204 = arith.truncf %203 : vector<16x128xf32> to vector<16x128xbf16>
    %c64_i32_142 = arith.constant 64 : i32
    %205 = arith.addi %71, %c64_i32_142 : i32
    %206 = arith.index_cast %205 : i32 to index
    %c0_143 = arith.constant 0 : index
    %207 = vector.load %arg4[%206, %c0_143] : memref<96x128xbf16, #tpu.memory_space<vmem>>, vector<16x128xbf16>
    tpu.vector_store %arg4[%206, %c0_143], %204 {strides = array<i32>} : memref<96x128xbf16, #tpu.memory_space<vmem>>, vector<16x128xbf16>,
    %c144_i32_144 = arith.constant 144 : i32
    %208 = arith.addi %69, %c144_i32_144 : i32
    %209 = arith.index_cast %208 : i32 to index
    %c0_145 = arith.constant 0 : index
    %210 = vector.load %arg5[%209, %c0_145] : memref<224x128xf32, #tpu.memory_space<vmem>>, vector<16x128xf32>
    %c160_i32 = arith.constant 160 : i32
    %211 = arith.addi %69, %c160_i32 : i32
    %212 = arith.index_cast %211 : i32 to index
    %c0_146 = arith.constant 0 : index
    %213 = vector.load %arg5[%212, %c0_146] : memref<224x128xf32, #tpu.memory_space<vmem>>, vector<16x128xf32>
    %214 = arith.maximumf %210, %213 : vector<16x128xf32>
    %c0_147 = arith.constant 0 : index
    %c0_148 = arith.constant 0 : index
    %215 = vector.load %arg6[%c0_147, %c0_148] : memref<16x128xf32, #tpu.memory_space<vmem>>, vector<16x128xf32>
    tpu.vector_store %arg6[%c0_147, %c0_148], %214 {strides = array<i32>} : memref<16x128xf32, #tpu.memory_space<vmem>>, vector<16x128xf32>,
    %c0_149 = arith.constant 0 : index
    %c0_150 = arith.constant 0 : index
    %216 = tpu.strided_load %arg6[%c0_149, %c0_150] {strides = array<i32: 2, 1>} : memref<16x128xf32, #tpu.memory_space<vmem>>, vector<6x128xf32>
    %c1_151 = arith.constant 1 : index
    %c0_152 = arith.constant 0 : index
    %217 = tpu.strided_load %arg6[%c1_151, %c0_152] {strides = array<i32: 2, 1>} : memref<16x128xf32, #tpu.memory_space<vmem>>, vector<5x128xf32>
    %218 = vector.extract_strided_slice %216 {offsets = [0, 0], sizes = [5, 128], strides = [1, 1]} : vector<6x128xf32> to vector<5x128xf32>
    %219 = arith.maximumf %218, %217 : vector<5x128xf32>
    %220 = vector.extract_strided_slice %216 {offsets = [5, 0], sizes = [1, 128], strides = [1, 1]} : vector<6x128xf32> to vector<1x128xf32>
    %221 = tpu.concatenate %219, %220 in 0 : vector<5x128xf32>, vector<1x128xf32> -> vector<6x128xf32>
    %222 = vector.extract_strided_slice %221 {offsets = [1, 0], sizes = [5, 128], strides = [1, 1]} : vector<6x128xf32> to vector<5x128xf32>
    %223 = arith.maximumf %222, %217 : vector<5x128xf32>
    %224 = vector.extract_strided_slice %221 {offsets = [0, 0], sizes = [1, 128], strides = [1, 1]} : vector<6x128xf32> to vector<1x128xf32>
    %225 = tpu.concatenate %224, %223 in 0 : vector<1x128xf32>, vector<5x128xf32> -> vector<6x128xf32>
    %cst_153 = arith.constant 0.000000e+00 : f32
    %226 = vector.broadcast %cst_153 : f32 to vector<10x128xf32>
    %227 = tpu.concatenate %225, %226 in 0 : vector<6x128xf32>, vector<10x128xf32> -> vector<16x128xf32>
    %228 = arith.truncf %227 : vector<16x128xf32> to vector<16x128xbf16>
    %c80_i32_154 = arith.constant 80 : i32
    %229 = arith.addi %71, %c80_i32_154 : i32
    %230 = arith.index_cast %229 : i32 to index
    %c0_155 = arith.constant 0 : index
    %231 = vector.load %arg4[%230, %c0_155] : memref<96x128xbf16, #tpu.memory_space<vmem>>, vector<16x128xbf16>
    tpu.vector_store %arg4[%230, %c0_155], %228 {strides = array<i32>} : memref<96x128xbf16, #tpu.memory_space<vmem>>, vector<16x128xbf16>,
    %c1_i32 = arith.constant 1 : i32
    return
  }
  func.func @transform_0(%arg0: i32) -> (i32, i32) {
    %c0_i32 = arith.constant 0 : i32
    %c0_i32_0 = arith.constant 0 : i32
    return %arg0, %c0_i32 : i32, i32
  }
  func.func @transform_1(%arg0: i32) -> (i32, i32, i32) {
    %c0_i32 = arith.constant 0 : i32
    %c0_i32_0 = arith.constant 0 : i32
    %c0_i32_1 = arith.constant 0 : i32
    %c0_i32_2 = arith.constant 0 : i32
    return %c0_i32, %c0_i32_0, %c0_i32_1 : i32, i32, i32
  }
  func.func @transform_2(%arg0: i32) -> (i32, i32) {
    %c0_i32 = arith.constant 0 : i32
    %c0_i32_0 = arith.constant 0 : i32
    %c0_i32_1 = arith.constant 0 : i32
    return %c0_i32, %c0_i32_0 : i32, i32
  }
  func.func @transform_3(%arg0: i32) -> (i32, i32) {
    %c0_i32 = arith.constant 0 : i32
    %c0_i32_0 = arith.constant 0 : i32
    return %arg0, %c0_i32 : i32, i32
  }
}

module attributes {stable_mosaic.version = 11 : i64} {
  func.func @_head_kernel(%arg0: i32, %arg1: memref<2x2304xbf16, #tpu.memory_space<vmem>>, %arg2: memref<2304x64xbf16, #tpu.memory_space<vmem>>, %arg3: memref<1x64xf32, #tpu.memory_space<vmem>>, %arg4: memref<64x10xbf16, #tpu.memory_space<vmem>>, %arg5: memref<1x10xf32, #tpu.memory_space<vmem>>, %arg6: memref<2x10xf32, #tpu.memory_space<vmem>>) attributes {dimension_semantics = [#tpu.dimension_semantics<parallel>], iteration_bounds = array<i64: 1>, scalar_prefetch = 0 : i64, scratch_operands = 0 : i64, tpu.core_type = #tpu.core_type<tc>, window_params = [{transform_indices = @transform_0, window_bounds = array<i64: 2, 2304>}, {pipeline_mode = #tpu.pipeline_mode<synchronous>, transform_indices = @transform_1, window_bounds = array<i64: 2304, 64>}, {pipeline_mode = #tpu.pipeline_mode<synchronous>, transform_indices = @transform_2, window_bounds = array<i64: 1, 64>}, {pipeline_mode = #tpu.pipeline_mode<synchronous>, transform_indices = @transform_3, window_bounds = array<i64: 64, 10>}, {pipeline_mode = #tpu.pipeline_mode<synchronous>, transform_indices = @transform_4, window_bounds = array<i64: 1, 10>}, {transform_indices = @transform_5, window_bounds = array<i64: 2, 10>}]} {
    %c0 = arith.constant 0 : index
    %c0_0 = arith.constant 0 : index
    %0 = vector.load %arg1[%c0, %c0_0] : memref<2x2304xbf16, #tpu.memory_space<vmem>>, vector<2x2304xbf16>
    %c0_1 = arith.constant 0 : index
    %c0_2 = arith.constant 0 : index
    %1 = vector.load %arg2[%c0_1, %c0_2] : memref<2304x64xbf16, #tpu.memory_space<vmem>>, vector<2304x64xbf16>
    %cst = arith.constant dense<0.000000e+00> : vector<2x64xf32>
    %2 = tpu.matmul %0, %1, %cst {dimension_numbers = #tpu.dot_dimension_numbers<[1], [0], [0], [1], [0, 0, 1, 1], [], []>} : vector<2x2304xbf16>, vector<2304x64xbf16>, vector<2x64xf32> -> vector<2x64xf32>
    %c0_3 = arith.constant 0 : index
    %c0_4 = arith.constant 0 : index
    %3 = vector.load %arg3[%c0_3, %c0_4] : memref<1x64xf32, #tpu.memory_space<vmem>>, vector<1x64xf32>
    %4 = vector.broadcast %3 : vector<1x64xf32> to vector<2x64xf32>
    %5 = arith.addf %2, %4 : vector<2x64xf32>
    %cst_5 = arith.constant 0.000000e+00 : f32
    %6 = vector.broadcast %cst_5 : f32 to vector<2x64xf32>
    %7 = arith.maximumf %5, %6 : vector<2x64xf32>
    %8 = arith.truncf %7 : vector<2x64xf32> to vector<2x64xbf16>
    %c0_6 = arith.constant 0 : index
    %c0_7 = arith.constant 0 : index
    %9 = vector.load %arg4[%c0_6, %c0_7] : memref<64x10xbf16, #tpu.memory_space<vmem>>, vector<64x10xbf16>
    %cst_8 = arith.constant dense<0.000000e+00> : vector<2x10xf32>
    %10 = tpu.matmul %8, %9, %cst_8 {dimension_numbers = #tpu.dot_dimension_numbers<[1], [0], [0], [1], [0, 0, 1, 1], [], []>} : vector<2x64xbf16>, vector<64x10xbf16>, vector<2x10xf32> -> vector<2x10xf32>
    %c0_9 = arith.constant 0 : index
    %c0_10 = arith.constant 0 : index
    %11 = vector.load %arg5[%c0_9, %c0_10] : memref<1x10xf32, #tpu.memory_space<vmem>>, vector<1x10xf32>
    %12 = vector.broadcast %11 : vector<1x10xf32> to vector<2x10xf32>
    %13 = arith.addf %10, %12 : vector<2x10xf32>
    %cst_11 = arith.constant dense<0xFF800000> : vector<2xf32>
    %14 = vector.multi_reduction <maximumf>, %13, %cst_11 [1] : vector<2x10xf32> to vector<2xf32>
    %15 = vector.shape_cast %14 : vector<2xf32> to vector<2x1xf32>
    %16 = vector.broadcast %15 : vector<2x1xf32> to vector<2x10xf32>
    %17 = arith.subf %13, %16 : vector<2x10xf32>
    %18 = math.exp %17 : vector<2x10xf32>
    %cst_12 = arith.constant dense<0.000000e+00> : vector<2xf32>
    %19 = vector.multi_reduction <add>, %18, %cst_12 [1] : vector<2x10xf32> to vector<2xf32>
    %20 = vector.shape_cast %19 : vector<2xf32> to vector<2x1xf32>
    %21 = tpu.reciprocal %20 {approx = true} : vector<2x1xf32> -> vector<2x1xf32>
    %22 = vector.broadcast %21 : vector<2x1xf32> to vector<2x10xf32>
    %23 = arith.mulf %18, %22 : vector<2x10xf32>
    %c0_13 = arith.constant 0 : index
    %c0_14 = arith.constant 0 : index
    %24 = vector.load %arg6[%c0_13, %c0_14] : memref<2x10xf32, #tpu.memory_space<vmem>>, vector<2x10xf32>
    tpu.vector_store %arg6[%c0_13, %c0_14], %23 {strides = array<i32>} : memref<2x10xf32, #tpu.memory_space<vmem>>, vector<2x10xf32>,
    return
  }
  func.func @transform_0(%arg0: i32) -> (i32, i32) {
    %c0_i32 = arith.constant 0 : i32
    %c0_i32_0 = arith.constant 0 : i32
    return %arg0, %c0_i32 : i32, i32
  }
  func.func @transform_1(%arg0: i32) -> (i32, i32) {
    %c0_i32 = arith.constant 0 : i32
    %c0_i32_0 = arith.constant 0 : i32
    %c0_i32_1 = arith.constant 0 : i32
    return %c0_i32, %c0_i32_0 : i32, i32
  }
  func.func @transform_2(%arg0: i32) -> (i32, i32) {
    %c0_i32 = arith.constant 0 : i32
    %c0_i32_0 = arith.constant 0 : i32
    %c0_i32_1 = arith.constant 0 : i32
    return %c0_i32, %c0_i32_0 : i32, i32
  }
  func.func @transform_3(%arg0: i32) -> (i32, i32) {
    %c0_i32 = arith.constant 0 : i32
    %c0_i32_0 = arith.constant 0 : i32
    %c0_i32_1 = arith.constant 0 : i32
    return %c0_i32, %c0_i32_0 : i32, i32
  }
  func.func @transform_4(%arg0: i32) -> (i32, i32) {
    %c0_i32 = arith.constant 0 : i32
    %c0_i32_0 = arith.constant 0 : i32
    %c0_i32_1 = arith.constant 0 : i32
    return %c0_i32, %c0_i32_0 : i32, i32
  }
  func.func @transform_5(%arg0: i32) -> (i32, i32) {
    %c0_i32 = arith.constant 0 : i32
    %c0_i32_0 = arith.constant 0 : i32
    return %arg0, %c0_i32 : i32, i32
  }
}

</mosaic_0001>

<llo_original>
// kernel: conv_net_forward.3
$region0: #{conv_net_forward.3}
  #allocation0 [shape = 'u32[]', space=smem, size = 0x4, offset = 0x4, fixed_abs, tag = 'smem constant byte address 0x4 - core index']
  #allocation1 [shape = 'u32[144,128]{1,0:T(1,128)}', space=vmem, size = 0x12000, scoped, tag = 'internal scratch']
  #allocation2 [shape = 'f32[832,128]{1,0:T(8,128)}', space=vmem, size = 0x68000, scoped, tag = 'scratch operand']
  #allocation3 [shape = 'f32[32,128]{1,0:T(8,128)}', space=vmem, size = 0x4000, scoped, tag = 'scratch operand']
  %s0 = inlined_call_operand.vmem [shape: bf16[832,18], index: 0, kind: input, shape index: {}]
  %s1 = inlined_call_operand.vmem [shape: bf16[18,128], index: 1, kind: input, shape index: {}]
  %s2 = inlined_call_operand.vmem [shape: f32[1,128], index: 2, kind: input, shape index: {}]
  %s3 = inlined_call_operand.vmem [shape: bf16[224,128], index: 3, kind: output, shape index: {}]
  %s4 = sld [smem:[#allocation0]]
  $region22: #{conv_net_forward.3} parent=0
    _
  %s6 = ssub.s32 1, %s4
  %s7 = scalar_select 0, %s6, %s4
  // Predicated region
  $region2: #{conv_net_forward.3} parent=0 // pred_check
    _
  $region3: #{conv_net_forward.3} parent=0 // pred_check_branch
    %9 = sbr.rel (0) target = $region5
  $region4: #{conv_net_forward.3} parent=0 // pred_region
    _
  $region5: #{conv_net_forward.3} parent=0 // pred_fallthru
    _
  // Predicated region
  $region6: #{conv_net_forward.3} parent=0 // pred_check
    _
  $region7: #{conv_net_forward.3} parent=0 // pred_check_branch
    %11 = sbr.rel (0) target = $region9
  $region8: #{conv_net_forward.3} parent=0 // pred_region
    _
  $region9: #{conv_net_forward.3} parent=0 // pred_fallthru
    _
  // Predicated region
  $region10: #{conv_net_forward.3} parent=0 // pred_check
    _
  $region11: #{conv_net_forward.3} parent=0 // pred_check_branch
    %13 = sbr.rel (0) target = $region13
  $region12: #{conv_net_forward.3} parent=0 // pred_region
    _
  $region13: #{conv_net_forward.3} parent=0 // pred_fallthru
    _
  %v15 = vld [vmem:[%s0] sm:$0xf]
  %v16 = vld [vmem:[%s0 + $0x4] sm:$0xf]
  %v17 = vld [vmem:[%s0 + $0x8] sm:$0xf]
  %v18 = vld [vmem:[%s0 + $0xc] sm:$0xf]
  %v19 = vld [vmem:[%s0 + $0x10] sm:$0xf]
  %v20 = vld [vmem:[%s0 + $0x14] sm:$0xf]
  %v21 = vld [vmem:[%s0 + $0x18] sm:$0xf]
  %v22 = vld [vmem:[%s0 + $0x1c] sm:$0xf]
  %v23 = vld [vmem:[%s0 + $0x20] sm:$0xf]
  %v24 = vld [vmem:[%s0 + $0x24] sm:$0xf]
  %v25 = vld [vmem:[%s0 + $0x28] sm:$0xf]
  %v26 = vld [vmem:[%s0 + $0x2c] sm:$0xf]
  %v27 = vld [vmem:[%s0 + $0x30] sm:$0xf]
  %v28 = vld [vmem:[%s0 + $0x34] sm:$0xf]
  %v29 = vld [vmem:[%s0 + $0x38] sm:$0xf]
  %v30 = vld [vmem:[%s0 + $0x3c] sm:$0xf]
  %v31 = vld [vmem:[%s0 + $0x40] sm:$0xf]
  %v32 = vld [vmem:[%s0 + $0x44] sm:$0xf]
  %v33 = vld [vmem:[%s0 + $0x48] sm:$0xf]
  %v34 = vld [vmem:[%s0 + $0x4c] sm:$0xf]
  %v35 = vld [vmem:[%s0 + $0x50] sm:$0xf]
  %v36 = vld [vmem:[%s0 + $0x54] sm:$0xf]
  %v37 = vld [vmem:[%s0 + $0x58] sm:$0xf]
  %v38 = vld [vmem:[%s0 + $0x5c] sm:$0xf]
  %v39 = vld [vmem:[%s0 + $0x60] sm:$0xf]
  %v40 = vld [vmem:[%s0 + $0x64] sm:$0xf]
  %v41 = vld [vmem:[%s0 + $0x68] sm:$0xf]
  %v42 = vld [vmem:[%s0 + $0x6c] sm:$0xf]
  %v43 = vld [vmem:[%s0 + $0x70] sm:$0xf]
  %v44 = vld [vmem:[%s0 + $0x74] sm:$0xf]
  %v45 = vld [vmem:[%s0 + $0x78] sm:$0xf]
  %v46 = vld [vmem:[%s0 + $0x7c] sm:$0xf]
  %v47 = vld [vmem:[%s0 + $0x80] sm:$0xf]
  %v48 = vld [vmem:[%s0 + $0x84] sm:$0xf]
  %v49 = vld [vmem:[%s0 + $0x88] sm:$0xf]
  %v50 = vld [vmem:[%s0 + $0x8c] sm:$0xf]
  %v51 = vld [vmem:[%s0 + $0x90] sm:$0xf]
  %v52 = vld [vmem:[%s0 + $0x94] sm:$0xf]
  %v53 = vld [vmem:[%s0 + $0x98] sm:$0xf]
  %v54 = vld [vmem:[%s0 + $0x9c] sm:$0xf]
  %v55 = vld [vmem:[%s0 + $0xa0] sm:$0xf]
  %v56 = vld [vmem:[%s0 + $0xa4] sm:$0xf]
  %v57 = vld [vmem:[%s0 + $0xa8] sm:$0xf]
  %v58 = vld [vmem:[%s0 + $0xac] sm:$0xf]
  %v59 = vld [vmem:[%s0 + $0xb0] sm:$0xf]
  %v60 = vld [vmem:[%s0 + $0xb4] sm:$0xf]
  %v61 = vld [vmem:[%s0 + $0xb8] sm:$0xf]
  %v62 = vld [vmem:[%s0 + $0xbc] sm:$0xf]
  %v63 = vld [vmem:[%s0 + $0xc0] sm:$0xf]
  %v64 = vld [vmem:[%s0 + $0xc4] sm:$0xf]
  %v65 = vld [vmem:[%s0 + $0xc8] sm:$0xf]
  %v66 = vld [vmem:[%s0 + $0xcc] sm:$0xf]
  %v67 = vld [vmem:[%s0 + $0xd0] sm:$0xf]
  %v68 = vld [vmem:[%s0 + $0xd4] sm:$0xf]
  %v69 = vld [vmem:[%s0 + $0xd8] sm:$0xf]
  %v70 = vld [vmem:[%s0 + $0xdc] sm:$0xf]
  %v71 = vld [vmem:[%s0 + $0xe0] sm:$0xf]
  %v72 = vld [vmem:[%s0 + $0xe4] sm:$0xf]
  %v73 = vld [vmem:[%s0 + $0xe8] sm:$0xf]
  %v74 = vld [vmem:[%s0 + $0xec] sm:$0xf]
  %v75 = vld [vmem:[%s0 + $0xf0] sm:$0xf]
  %v76 = vld [vmem:[%s0 + $0xf4] sm:$0xf]
  %v77 = vld [vmem:[%s0 + $0xf8] sm:$0xf]
  %v78 = vld [vmem:[%s0 + $0xfc] sm:$0xf]
  %v79 = vld [vmem:[%s0 + $0x100] sm:$0xf]
  %v80 = vld [vmem:[%s0 + $0x104] sm:$0xf]
  %v81 = vld [vmem:[%s0 + $0x108] sm:$0xf]
  %v82 = vld [vmem:[%s0 + $0x10c] sm:$0xf]
  %v83 = vld [vmem:[%s0 + $0x110] sm:$0xf]
  %v84 = vld [vmem:[%s0 + $0x114] sm:$0xf]
  %v85 = vld [vmem:[%s0 + $0x118] sm:$0xf]
  %v86 = vld [vmem:[%s0 + $0x11c] sm:$0xf]
  %v87 = vld [vmem:[%s0 + $0x120] sm:$0xf]
  %v88 = vld [vmem:[%s0 + $0x124] sm:$0xf]
  %v89 = vld [vmem:[%s0 + $0x128] sm:$0xf]
  %v90 = vld [vmem:[%s0 + $0x12c] sm:$0xf]
  %v91 = vld [vmem:[%s0 + $0x130] sm:$0xf]
  %v92 = vld [vmem:[%s0 + $0x134] sm:$0xf]
  %v93 = vld [vmem:[%s0 + $0x138] sm:$0xf]
  %v94 = vld [vmem:[%s0 + $0x13c] sm:$0xf]
  %v95 = vld [vmem:[%s0 + $0x140] sm:$0xf]
  %v96 = vld [vmem:[%s0 + $0x144] sm:$0xf]
  %v97 = vld [vmem:[%s0 + $0x148] sm:$0xf]
  %v98 = vld [vmem:[%s0 + $0x14c] sm:$0xf]
  %v99 = vld [vmem:[%s0 + $0x150] sm:$0xf]
  %v100 = vld [vmem:[%s0 + $0x154] sm:$0xf]
  %v101 = vld [vmem:[%s0 + $0x158] sm:$0xf]
  %v102 = vld [vmem:[%s0 + $0x15c] sm:$0xf]
  %v103 = vld [vmem:[%s0 + $0x160] sm:$0xf]
  %v104 = vld [vmem:[%s0 + $0x164] sm:$0xf]
  %v105 = vld [vmem:[%s0 + $0x168] sm:$0xf]
  %v106 = vld [vmem:[%s0 + $0x16c] sm:$0xf]
  %v107 = vld [vmem:[%s0 + $0x170] sm:$0xf]
  %v108 = vld [vmem:[%s0 + $0x174] sm:$0xf]
  %v109 = vld [vmem:[%s0 + $0x178] sm:$0xf]
  %v110 = vld [vmem:[%s0 + $0x17c] sm:$0xf]
  %v111 = vld [vmem:[%s0 + $0x180] sm:$0xf]
  %v112 = vld [vmem:[%s0 + $0x184] sm:$0xf]
  %v113 = vld [vmem:[%s0 + $0x188] sm:$0xf]
  %v114 = vld [vmem:[%s0 + $0x18c] sm:$0xf]
  %v115 = vld [vmem:[%s0 + $0x190] sm:$0xf]
  %v116 = vld [vmem:[%s0 + $0x194] sm:$0xf]
  %v117 = vld [vmem:[%s0 + $0x198] sm:$0xf]
  %v118 = vld [vmem:[%s0 + $0x19c] sm:$0xf]
  %v119 = vld [vmem:[%s1] sm:$0xf]
  %v120 = vld [vmem:[%s1 + $0x4] sm:$0xf]
  %v121 = vld [vmem:[%s1 + $0x8] sm:$0x1]
  %v226 = vunpack.c.l.b16 %v15
  %v227 = vunpack.c.l.b16 %v16
  %v228 = vunpack.c.l.b16 %v17
  %v229 = vunpack.c.l.b16 %v18
  %v230 = vunpack.c.l.b16 %v19
  %v231 = vunpack.c.l.b16 %v20
  %v232 = vunpack.c.l.b16 %v21
  %v233 = vunpack.c.l.b16 %v22
  %v234 = vunpack.c.l.b16 %v23
  %v235 = vunpack.c.l.b16 %v24
  %v236 = vunpack.c.l.b16 %v25
  %v237 = vunpack.c.l.b16 %v26
  %v238 = vunpack.c.l.b16 %v27
  %v239 = vunpack.c.l.b16 %v28
  %v240 = vunpack.c.l.b16 %v29
  %v241 = vunpack.c.l.b16 %v30
  %v242 = vunpack.c.l.b16 %v31
  %v243 = vunpack.c.l.b16 %v32
  %v244 = vunpack.c.l.b16 %v33
  %v245 = vunpack.c.l.b16 %v34
  %v246 = vunpack.c.l.b16 %v35
  %v247 = vunpack.c.l.b16 %v36
  %v248 = vunpack.c.l.b16 %v37
  %v249 = vunpack.c.l.b16 %v38
  %v250 = vunpack.c.l.b16 %v39
  %v251 = vunpack.c.l.b16 %v40
  %v252 = vunpack.c.l.b16 %v41
  %v253 = vunpack.c.l.b16 %v42
  %v254 = vunpack.c.l.b16 %v43
  %v255 = vunpack.c.l.b16 %v44
  %v256 = vunpack.c.l.b16 %v45
  %v257 = vunpack.c.l.b16 %v46
  %v258 = vunpack.c.l.b16 %v47
  %v259 = vunpack.c.l.b16 %v48
  %v260 = vunpack.c.l.b16 %v49
  %v261 = vunpack.c.l.b16 %v50
  %v262 = vunpack.c.l.b16 %v51
  %v263 = vunpack.c.l.b16 %v52
  %v264 = vunpack.c.l.b16 %v53
  %v265 = vunpack.c.l.b16 %v54
  %v266 = vunpack.c.l.b16 %v55
  %v267 = vunpack.c.l.b16 %v56
  %v268 = vunpack.c.l.b16 %v57
  %v269 = vunpack.c.l.b16 %v58
  %v270 = vunpack.c.l.b16 %v59
  %v271 = vunpack.c.l.b16 %v60
  %v272 = vunpack.c.l.b16 %v61
  %v273 = vunpack.c.l.b16 %v62
  %v274 = vunpack.c.l.b16 %v63
  %v275 = vunpack.c.l.b16 %v64
  %v276 = vunpack.c.l.b16 %v65
  %v277 = vunpack.c.l.b16 %v66
  %v278 = vunpack.c.l.b16 %v67
  %v279 = vunpack.c.l.b16 %v68
  %v280 = vunpack.c.l.b16 %v69
  %v281 = vunpack.c.l.b16 %v70
  %v282 = vunpack.c.l.b16 %v71
  %v283 = vunpack.c.l.b16 %v72
  %v284 = vunpack.c.l.b16 %v73
  %v285 = vunpack.c.l.b16 %v74
  %v286 = vunpack.c.l.b16 %v75
  %v287 = vunpack.c.l.b16 %v76
  %v288 = vunpack.c.l.b16 %v77
  %v289 = vunpack.c.l.b16 %v78
  %v290 = vunpack.c.l.b16 %v79
  %v291 = vunpack.c.l.b16 %v80
  %v292 = vunpack.c.l.b16 %v81
  %v293 = vunpack.c.l.b16 %v82
  %v294 = vunpack.c.l.b16 %v83
  %v295 = vunpack.c.l.b16 %v84
  %v296 = vunpack.c.l.b16 %v85
  %v297 = vunpack.c.l.b16 %v86
  %v298 = vunpack.c.l.b16 %v87
  %v299 = vunpack.c.l.b16 %v88
  %v300 = vunpack.c.l.b16 %v89
  %v301 = vunpack.c.l.b16 %v90
  %v302 = vunpack.c.l.b16 %v91
  %v303 = vunpack.c.l.b16 %v92
  %v304 = vunpack.c.l.b16 %v93
  %v305 = vunpack.c.l.b16 %v94
  %v306 = vunpack.c.l.b16 %v95
  %v307 = vunpack.c.l.b16 %v96
  %v308 = vunpack.c.l.b16 %v97
  %v309 = vunpack.c.l.b16 %v98
  %v310 = vunpack.c.l.b16 %v99
  %v311 = vunpack.c.l.b16 %v100
  %v312 = vunpack.c.l.b16 %v101
  %v313 = vunpack.c.l.b16 %v102
  %v314 = vunpack.c.l.b16 %v103
  %v315 = vunpack.c.l.b16 %v104
  %v316 = vunpack.c.l.b16 %v105
  %v317 = vunpack.c.l.b16 %v106
  %v318 = vunpack.c.l.b16 %v107
  %v319 = vunpack.c.l.b16 %v108
  %v320 = vunpack.c.l.b16 %v109
  %v321 = vunpack.c.l.b16 %v110
  %v322 = vunpack.c.l.b16 %v111
  %v323 = vunpack.c.l.b16 %v112
  %v324 = vunpack.c.l.b16 %v113
  %v325 = vunpack.c.l.b16 %v114
  %v326 = vunpack.c.l.b16 %v115
  %v327 = vunpack.c.l.b16 %v116
  %v328 = vunpack.c.l.b16 %v117
  %v329 = vunpack.c.l.b16 %v118
  %v330 = vpack.c.b16 %v227, %v226
  %v331 = vpack.c.b16 %v229, %v228
  %v332 = vpack.c.b16 %v231, %v230
  %v333 = vpack.c.b16 %v233, %v232
  %v334 = vpack.c.b16 %v235, %v234
  %v335 = vpack.c.b16 %v237, %v236
  %v336 = vpack.c.b16 %v239, %v238
  %v337 = vpack.c.b16 %v241, %v240
  %v338 = vpack.c.b16 %v243, %v242
  %v339 = vpack.c.b16 %v245, %v244
  %v340 = vpack.c.b16 %v247, %v246
  %v341 = vpack.c.b16 %v249, %v248
  %v342 = vpack.c.b16 %v251, %v250
  %v343 = vpack.c.b16 %v253, %v252
  %v344 = vpack.c.b16 %v255, %v254
  %v345 = vpack.c.b16 %v257, %v256
  %v346 = vpack.c.b16 %v259, %v258
  %v347 = vpack.c.b16 %v261, %v260
  %v348 = vpack.c.b16 %v263, %v262
  %v349 = vpack.c.b16 %v265, %v264
  %v350 = vpack.c.b16 %v267, %v266
  %v351 = vpack.c.b16 %v269, %v268
  %v352 = vpack.c.b16 %v271, %v270
  %v353 = vpack.c.b16 %v273, %v272
  %v354 = vpack.c.b16 %v275, %v274
  %v355 = vpack.c.b16 %v277, %v276
  %v356 = vpack.c.b16 %v279, %v278
  %v357 = vpack.c.b16 %v281, %v280
  %v358 = vpack.c.b16 %v283, %v282
  %v359 = vpack.c.b16 %v285, %v284
  %v360 = vpack.c.b16 %v287, %v286
  %v361 = vpack.c.b16 %v289, %v288
  %v362 = vpack.c.b16 %v291, %v290
  %v363 = vpack.c.b16 %v293, %v292
  %v364 = vpack.c.b16 %v295, %v294
  %v365 = vpack.c.b16 %v297, %v296
  %v366 = vpack.c.b16 %v299, %v298
  %v367 = vpack.c.b16 %v301, %v300
  %v368 = vpack.c.b16 %v303, %v302
  %v369 = vpack.c.b16 %v305, %v304
  %v370 = vpack.c.b16 %v307, %v306
  %v371 = vpack.c.b16 %v309, %v308
  %v372 = vpack.c.b16 %v311, %v310
  %v373 = vpack.c.b16 %v313, %v312
  %v374 = vpack.c.b16 %v315, %v314
  %v375 = vpack.c.b16 %v317, %v316
  %v376 = vpack.c.b16 %v319, %v318
  %v377 = vpack.c.b16 %v321, %v320
  %v378 = vpack.c.b16 %v323, %v322
  %v379 = vpack.c.b16 %v325, %v324
  %v380 = vpack.c.b16 %v327, %v326
  %v381 = vpack.c.b16 %v329, %v328
  %v385 = vunpack.c.l.b16 %v119
  %v386 = vunpack.c.l.b16 %v120
  %v387 = vunpack.c.l.b16 %v121
  %v388 = vpack.c.b16 %v386, %v385
  %v389 = vpack.c.b16 %v387, %v387
  %vm391 = vcmask 146432
  %v393 = vsel %vm391, %v330, 0
  %v396 = vsel %vm391, %v331, 0
  %v399 = vsel %vm391, %v332, 0
  %v402 = vsel %vm391, %v333, 0
  %v405 = vsel %vm391, %v334, 0
  %v408 = vsel %vm391, %v335, 0
  %v411 = vsel %vm391, %v336, 0
  %v414 = vsel %vm391, %v337, 0
  %v417 = vsel %vm391, %v338, 0
  %v420 = vsel %vm391, %v339, 0
  %v423 = vsel %vm391, %v340, 0
  %v426 = vsel %vm391, %v341, 0
  %v429 = vsel %vm391, %v342, 0
  %v432 = vsel %vm391, %v343, 0
  %v435 = vsel %vm391, %v344, 0
  %v438 = vsel %vm391, %v345, 0
  %v441 = vsel %vm391, %v346, 0
  %v444 = vsel %vm391, %v347, 0
  %v447 = vsel %vm391, %v348, 0
  %v450 = vsel %vm391, %v349, 0
  %v453 = vsel %vm391, %v350, 0
  %v456 = vsel %vm391, %v351, 0
  %v459 = vsel %vm391, %v352, 0
  %v462 = vsel %vm391, %v353, 0
  %v465 = vsel %vm391, %v354, 0
  %v468 = vsel %vm391, %v355, 0
  %v471 = vsel %vm391, %v356, 0
  %v474 = vsel %vm391, %v357, 0
  %v477 = vsel %vm391, %v358, 0
  %v480 = vsel %vm391, %v359, 0
  %v483 = vsel %vm391, %v360, 0
  %v486 = vsel %vm391, %v361, 0
  %v489 = vsel %vm391, %v362, 0
  %v492 = vsel %vm391, %v363, 0
  %v495 = vsel %vm391, %v364, 0
  %v498 = vsel %vm391, %v365, 0
  %v501 = vsel %vm391, %v366, 0
  %v504 = vsel %vm391, %v367, 0
  %v507 = vsel %vm391, %v368, 0
  %v510 = vsel %vm391, %v369, 0
  %v513 = vsel %vm391, %v370, 0
  %v516 = vsel %vm391, %v371, 0
  %v519 = vsel %vm391, %v372, 0
  %v522 = vsel %vm391, %v373, 0
  %v525 = vsel %vm391, %v374, 0
  %v528 = vsel %vm391, %v375, 0
  %v531 = vsel %vm391, %v376, 0
  %v534 = vsel %vm391, %v377, 0
  %v537 = vsel %vm391, %v378, 0
  %v540 = vsel %vm391, %v379, 0
  %v543 = vsel %vm391, %v380, 0
  %v546 = vsel %vm391, %v381, 0
  %vm548 = vcmask 1040384
  %v550 = vsel %vm548, %v389, 0
  %552 = vmatprep.subr.bf16.mxu0 0
  %553 = vmatpush1.bf16.msra.mxu0 0
  %554 = vmatprep.subr.bf16.mxu0 0
  %555 = vmatpush1.bf16.msra.mxu0 0
  %556 = vmatprep.subr.bf16.mxu0 0
  %557 = vmatpush1.bf16.msra.mxu0 0
  %558 = vmatprep.subr.bf16.mxu0 0
  %559 = vmatpush1.bf16.msra.mxu0 0
  %560 = vmatprep.subr.bf16.mxu0 0
  %561 = vmatpush1.bf16.msra.mxu0 0
  %562 = vmatprep.subr.bf16.mxu0 0
  %563 = vmatpush1.bf16.msra.mxu0 0
  %564 = vmatprep.subr.bf16.mxu0 0
  %565 = vmatpush1.bf16.msra.mxu0 %v550
  %566 = vmatprep.subr.bf16.mxu0 0
  %567 = vmatpush1.bf16.msra.mxu0 %v388
  %568 = vmatprep.subr.bf16.mxu0 0
  %569 = vmatpush2.bf16.msra.mxu0 0
  %570 = vmatprep.subr.bf16.mxu0 0
  %571 = vmatpush2.bf16.msra.mxu0 0
  %572 = vmatprep.subr.bf16.mxu0 0
  %573 = vmatpush2.bf16.msra.mxu0 0
  %574 = vmatprep.subr.bf16.mxu0 0
  %575 = vmatpush2.bf16.msra.mxu0 0
  %576 = vmatprep.subr.bf16.mxu0 0
  %577 = vmatpush2.bf16.msra.mxu0 0
  %578 = vmatprep.subr.bf16.mxu0 0
  %579 = vmatpush2.bf16.msra.mxu0 0
  %580 = vmatprep.subr.bf16.mxu0 0
  %581 = vmatpush2.bf16.msra.mxu0 0
  %582 = vmatprep.subr.bf16.mxu0 0
  %583 = vmatpush2.bf16.msra.mxu0 0
  %584 = vmatprep.mubr.bf16.mxu0 0
  %585 = vmatmul.mubr.bf16.gmra.mxu0 %v393
  %v586 = vpop.f32.mrf.mxu0
  %v587 = vadd.f32 0.0, %v586
  %v588 = vpop.f32.mrf.mxu0
  %v589 = vpop.f32.mrf.mxu0
  %v590 = vadd.f32 0.0, %v589
  %v591 = vpop.f32.mrf.mxu0
  %592 = vmatprep.mubr.bf16.mxu0 0
  %593 = vmatmul.mubr.bf16.gmra.mxu0 %v396
  %v594 = vpop.f32.mrf.mxu0
  %v595 = vadd.f32 0.0, %v594
  %v596 = vpop.f32.mrf.mxu0
  %v597 = vpop.f32.mrf.mxu0
  %v598 = vadd.f32 0.0, %v597
  %v599 = vpop.f32.mrf.mxu0
  %600 = vmatprep.mubr.bf16.mxu0 0
  %601 = vmatmul.mubr.bf16.gmra.mxu0 %v399
  %v602 = vpop.f32.mrf.mxu0
  %v603 = vadd.f32 0.0, %v602
  %v604 = vpop.f32.mrf.mxu0
  %v605 = vpop.f32.mrf.mxu0
  %v606 = vadd.f32 0.0, %v605
  %v607 = vpop.f32.mrf.mxu0
  %608 = vmatprep.mubr.bf16.mxu0 0
  %609 = vmatmul.mubr.bf16.gmra.mxu0 %v402
  %v610 = vpop.f32.mrf.mxu0
  %v611 = vadd.f32 0.0, %v610
  %v612 = vpop.f32.mrf.mxu0
  %v613 = vpop.f32.mrf.mxu0
  %v614 = vadd.f32 0.0, %v613
  %v615 = vpop.f32.mrf.mxu0
  %616 = vmatprep.mubr.bf16.mxu0 0
  %617 = vmatmul.mubr.bf16.gmra.mxu0 %v405
  %v618 = vpop.f32.mrf.mxu0
  %v619 = vadd.f32 0.0, %v618
  %v620 = vpop.f32.mrf.mxu0
  %v621 = vpop.f32.mrf.mxu0
  %v622 = vadd.f32 0.0, %v621
  %v623 = vpop.f32.mrf.mxu0
  %624 = vmatprep.mubr.bf16.mxu0 0
  %625 = vmatmul.mubr.bf16.gmra.mxu0 %v408
  %v626 = vpop.f32.mrf.mxu0
  %v627 = vadd.f32 0.0, %v626
  %v628 = vpop.f32.mrf.mxu0
  %v629 = vpop.f32.mrf.mxu0
  %v630 = vadd.f32 0.0, %v629
  %v631 = vpop.f32.mrf.mxu0
  %632 = vmatprep.mubr.bf16.mxu0 0
  %633 = vmatmul.mubr.bf16.gmra.mxu0 %v411
  %v634 = vpop.f32.mrf.mxu0
  %v635 = vadd.f32 0.0, %v634
  %v636 = vpop.f32.mrf.mxu0
  %v637 = vpop.f32.mrf.mxu0
  %v638 = vadd.f32 0.0, %v637
  %v639 = vpop.f32.mrf.mxu0
  %640 = vmatprep.mubr.bf16.mxu0 0
  %641 = vmatmul.mubr.bf16.gmra.mxu0 %v414
  %v642 = vpop.f32.mrf.mxu0
  %v643 = vadd.f32 0.0, %v642
  %v644 = vpop.f32.mrf.mxu0
  %v645 = vpop.f32.mrf.mxu0
  %v646 = vadd.f32 0.0, %v645
  %v647 = vpop.f32.mrf.mxu0
  %648 = vmatprep.mubr.bf16.mxu0 0
  %649 = vmatmul.mubr.bf16.gmra.mxu0 %v417
  %v650 = vpop.f32.mrf.mxu0
  %v651 = vadd.f32 0.0, %v650
  %v652 = vpop.f32.mrf.mxu0
  %v653 = vpop.f32.mrf.mxu0
  %v654 = vadd.f32 0.0, %v653
  %v655 = vpop.f32.mrf.mxu0
  %656 = vmatprep.mubr.bf16.mxu0 0
  %657 = vmatmul.mubr.bf16.gmra.mxu0 %v420
  %v658 = vpop.f32.mrf.mxu0
  %v659 = vadd.f32 0.0, %v658
  %v660 = vpop.f32.mrf.mxu0
  %v661 = vpop.f32.mrf.mxu0
  %v662 = vadd.f32 0.0, %v661
  %v663 = vpop.f32.mrf.mxu0
  %664 = vmatprep.mubr.bf16.mxu0 0
  %665 = vmatmul.mubr.bf16.gmra.mxu0 %v423
  %v666 = vpop.f32.mrf.mxu0
  %v667 = vadd.f32 0.0, %v666
  %v668 = vpop.f32.mrf.mxu0
  %v669 = vpop.f32.mrf.mxu0
  %v670 = vadd.f32 0.0, %v669
  %v671 = vpop.f32.mrf.mxu0
  %672 = vmatprep.mubr.bf16.mxu0 0
  %673 = vmatmul.mubr.bf16.gmra.mxu0 %v426
  %v674 = vpop.f32.mrf.mxu0
  %v675 = vadd.f32 0.0, %v674
  %v676 = vpop.f32.mrf.mxu0
  %v677 = vpop.f32.mrf.mxu0
  %v678 = vadd.f32 0.0, %v677
  %v679 = vpop.f32.mrf.mxu0
  %680 = vmatprep.mubr.bf16.mxu0 0
  %681 = vmatmul.mubr.bf16.gmra.mxu0 %v429
  %v682 = vpop.f32.mrf.mxu0
  %v683 = vadd.f32 0.0, %v682
  %v684 = vpop.f32.mrf.mxu0
  %v685 = vpop.f32.mrf.mxu0
  %v686 = vadd.f32 0.0, %v685
  %v687 = vpop.f32.mrf.mxu0
  %688 = vmatprep.mubr.bf16.mxu0 0
  %689 = vmatmul.mubr.bf16.gmra.mxu0 %v432
  %v690 = vpop.f32.mrf.mxu0
  %v691 = vadd.f32 0.0, %v690
  %v692 = vpop.f32.mrf.mxu0
  %v693 = vpop.f32.mrf.mxu0
  %v694 = vadd.f32 0.0, %v693
  %v695 = vpop.f32.mrf.mxu0
  %696 = vmatprep.mubr.bf16.mxu0 0
  %697 = vmatmul.mubr.bf16.gmra.mxu0 %v435
  %v698 = vpop.f32.mrf.mxu0
  %v699 = vadd.f32 0.0, %v698
  %v700 = vpop.f32.mrf.mxu0
  %v701 = vpop.f32.mrf.mxu0
  %v702 = vadd.f32 0.0, %v701
  %v703 = vpop.f32.mrf.mxu0
  %704 = vmatprep.mubr.bf16.mxu0 0
  %705 = vmatmul.mubr.bf16.gmra.mxu0 %v438
  %v706 = vpop.f32.mrf.mxu0
  %v707 = vadd.f32 0.0, %v706
  %v708 = vpop.f32.mrf.mxu0
  %v709 = vpop.f32.mrf.mxu0
  %v710 = vadd.f32 0.0, %v709
  %v711 = vpop.f32.mrf.mxu0
  %712 = vmatprep.mubr.bf16.mxu0 0
  %713 = vmatmul.mubr.bf16.gmra.mxu0 %v441
  %v714 = vpop.f32.mrf.mxu0
  %v715 = vadd.f32 0.0, %v714
  %v716 = vpop.f32.mrf.mxu0
  %v717 = vpop.f32.mrf.mxu0
  %v718 = vadd.f32 0.0, %v717
  %v719 = vpop.f32.mrf.mxu0
  %720 = vmatprep.mubr.bf16.mxu0 0
  %721 = vmatmul.mubr.bf16.gmra.mxu0 %v444
  %v722 = vpop.f32.mrf.mxu0
  %v723 = vadd.f32 0.0, %v722
  %v724 = vpop.f32.mrf.mxu0
  %v725 = vpop.f32.mrf.mxu0
  %v726 = vadd.f32 0.0, %v725
  %v727 = vpop.f32.mrf.mxu0
  %728 = vmatprep.mubr.bf16.mxu0 0
  %729 = vmatmul.mubr.bf16.gmra.mxu0 %v447
  %v730 = vpop.f32.mrf.mxu0
  %v731 = vadd.f32 0.0, %v730
  %v732 = vpop.f32.mrf.mxu0
  %v733 = vpop.f32.mrf.mxu0
  %v734 = vadd.f32 0.0, %v733
  %v735 = vpop.f32.mrf.mxu0
  %736 = vmatprep.mubr.bf16.mxu0 0
  %737 = vmatmul.mubr.bf16.gmra.mxu0 %v450
  %v738 = vpop.f32.mrf.mxu0
  %v739 = vadd.f32 0.0, %v738
  %v740 = vpop.f32.mrf.mxu0
  %v741 = vpop.f32.mrf.mxu0
  %v742 = vadd.f32 0.0, %v741
  %v743 = vpop.f32.mrf.mxu0
  %744 = vmatprep.mubr.bf16.mxu0 0
  %745 = vmatmul.mubr.bf16.gmra.mxu0 %v453
  %v746 = vpop.f32.mrf.mxu0
  %v747 = vadd.f32 0.0, %v746
  %v748 = vpop.f32.mrf.mxu0
  %v749 = vpop.f32.mrf.mxu0
  %v750 = vadd.f32 0.0, %v749
  %v751 = vpop.f32.mrf.mxu0
  %752 = vmatprep.mubr.bf16.mxu0 0
  %753 = vmatmul.mubr.bf16.gmra.mxu0 %v456
  %v754 = vpop.f32.mrf.mxu0
  %v755 = vadd.f32 0.0, %v754
  %v756 = vpop.f32.mrf.mxu0
  %v757 = vpop.f32.mrf.mxu0
  %v758 = vadd.f32 0.0, %v757
  %v759 = vpop.f32.mrf.mxu0
  %760 = vmatprep.mubr.bf16.mxu0 0
  %761 = vmatmul.mubr.bf16.gmra.mxu0 %v459
  %v762 = vpop.f32.mrf.mxu0
  %v763 = vadd.f32 0.0, %v762
  %v764 = vpop.f32.mrf.mxu0
  %v765 = vpop.f32.mrf.mxu0
  %v766 = vadd.f32 0.0, %v765
  %v767 = vpop.f32.mrf.mxu0
  %768 = vmatprep.mubr.bf16.mxu0 0
  %769 = vmatmul.mubr.bf16.gmra.mxu0 %v462
  %v770 = vpop.f32.mrf.mxu0
  %v771 = vadd.f32 0.0, %v770
  %v772 = vpop.f32.mrf.mxu0
  %v773 = vpop.f32.mrf.mxu0
  %v774 = vadd.f32 0.0, %v773
  %v775 = vpop.f32.mrf.mxu0
  %776 = vmatprep.mubr.bf16.mxu0 0
  %777 = vmatmul.mubr.bf16.gmra.mxu0 %v465
  %v778 = vpop.f32.mrf.mxu0
  %v779 = vadd.f32 0.0, %v778
  %v780 = vpop.f32.mrf.mxu0
  %v781 = vpop.f32.mrf.mxu0
  %v782 = vadd.f32 0.0, %v781
  %v783 = vpop.f32.mrf.mxu0
  %784 = vmatprep.mubr.bf16.mxu0 0
  %785 = vmatmul.mubr.bf16.gmra.mxu0 %v468
  %v786 = vpop.f32.mrf.mxu0
  %v787 = vadd.f32 0.0, %v786
  %v788 = vpop.f32.mrf.mxu0
  %v789 = vpop.f32.mrf.mxu0
  %v790 = vadd.f32 0.0, %v789
  %v791 = vpop.f32.mrf.mxu0
  %792 = vmatprep.mubr.bf16.mxu0 0
  %793 = vmatmul.mubr.bf16.gmra.mxu0 %v471
  %v794 = vpop.f32.mrf.mxu0
  %v795 = vadd.f32 0.0, %v794
  %v796 = vpop.f32.mrf.mxu0
  %v797 = vpop.f32.mrf.mxu0
  %v798 = vadd.f32 0.0, %v797
  %v799 = vpop.f32.mrf.mxu0
  %800 = vmatprep.mubr.bf16.mxu0 0
  %801 = vmatmul.mubr.bf16.gmra.mxu0 %v474
  %v802 = vpop.f32.mrf.mxu0
  %v803 = vadd.f32 0.0, %v802
  %v804 = vpop.f32.mrf.mxu0
  %v805 = vpop.f32.mrf.mxu0
  %v806 = vadd.f32 0.0, %v805
  %v807 = vpop.f32.mrf.mxu0
  %808 = vmatprep.mubr.bf16.mxu0 0
  %809 = vmatmul.mubr.bf16.gmra.mxu0 %v477
  %v810 = vpop.f32.mrf.mxu0
  %v811 = vadd.f32 0.0, %v810
  %v812 = vpop.f32.mrf.mxu0
  %v813 = vpop.f32.mrf.mxu0
  %v814 = vadd.f32 0.0, %v813
  %v815 = vpop.f32.mrf.mxu0
  %816 = vmatprep.mubr.bf16.mxu0 0
  %817 = vmatmul.mubr.bf16.gmra.mxu0 %v480
  %v818 = vpop.f32.mrf.mxu0
  %v819 = vadd.f32 0.0, %v818
  %v820 = vpop.f32.mrf.mxu0
  %v821 = vpop.f32.mrf.mxu0
  %v822 = vadd.f32 0.0, %v821
  %v823 = vpop.f32.mrf.mxu0
  %824 = vmatprep.mubr.bf16.mxu0 0
  %825 = vmatmul.mubr.bf16.gmra.mxu0 %v483
  %v826 = vpop.f32.mrf.mxu0
  %v827 = vadd.f32 0.0, %v826
  %v828 = vpop.f32.mrf.mxu0
  %v829 = vpop.f32.mrf.mxu0
  %v830 = vadd.f32 0.0, %v829
  %v831 = vpop.f32.mrf.mxu0
  %832 = vmatprep.mubr.bf16.mxu0 0
  %833 = vmatmul.mubr.bf16.gmra.mxu0 %v486
  %v834 = vpop.f32.mrf.mxu0
  %v835 = vadd.f32 0.0, %v834
  %v836 = vpop.f32.mrf.mxu0
  %v837 = vpop.f32.mrf.mxu0
  %v838 = vadd.f32 0.0, %v837
  %v839 = vpop.f32.mrf.mxu0
  %840 = vmatprep.mubr.bf16.mxu0 0
  %841 = vmatmul.mubr.bf16.gmra.mxu0 %v489
  %v842 = vpop.f32.mrf.mxu0
  %v843 = vadd.f32 0.0, %v842
  %v844 = vpop.f32.mrf.mxu0
  %v845 = vpop.f32.mrf.mxu0
  %v846 = vadd.f32 0.0, %v845
  %v847 = vpop.f32.mrf.mxu0
  %848 = vmatprep.mubr.bf16.mxu0 0
  %849 = vmatmul.mubr.bf16.gmra.mxu0 %v492
  %v850 = vpop.f32.mrf.mxu0
  %v851 = vadd.f32 0.0, %v850
  %v852 = vpop.f32.mrf.mxu0
  %v853 = vpop.f32.mrf.mxu0
  %v854 = vadd.f32 0.0, %v853
  %v855 = vpop.f32.mrf.mxu0
  %856 = vmatprep.mubr.bf16.mxu0 0
  %857 = vmatmul.mubr.bf16.gmra.mxu0 %v495
  %v858 = vpop.f32.mrf.mxu0
  %v859 = vadd.f32 0.0, %v858
  %v860 = vpop.f32.mrf.mxu0
  %v861 = vpop.f32.mrf.mxu0
  %v862 = vadd.f32 0.0, %v861
  %v863 = vpop.f32.mrf.mxu0
  %864 = vmatprep.mubr.bf16.mxu0 0
  %865 = vmatmul.mubr.bf16.gmra.mxu0 %v498
  %v866 = vpop.f32.mrf.mxu0
  %v867 = vadd.f32 0.0, %v866
  %v868 = vpop.f32.mrf.mxu0
  %v869 = vpop.f32.mrf.mxu0
  %v870 = vadd.f32 0.0, %v869
  %v871 = vpop.f32.mrf.mxu0
  %872 = vmatprep.mubr.bf16.mxu0 0
  %873 = vmatmul.mubr.bf16.gmra.mxu0 %v501
  %v874 = vpop.f32.mrf.mxu0
  %v875 = vadd.f32 0.0, %v874
  %v876 = vpop.f32.mrf.mxu0
  %v877 = vpop.f32.mrf.mxu0
  %v878 = vadd.f32 0.0, %v877
  %v879 = vpop.f32.mrf.mxu0
  %880 = vmatprep.mubr.bf16.mxu0 0
  %881 = vmatmul.mubr.bf16.gmra.mxu0 %v504
  %v882 = vpop.f32.mrf.mxu0
  %v883 = vadd.f32 0.0, %v882
  %v884 = vpop.f32.mrf.mxu0
  %v885 = vpop.f32.mrf.mxu0
  %v886 = vadd.f32 0.0, %v885
  %v887 = vpop.f32.mrf.mxu0
  %888 = vmatprep.mubr.bf16.mxu0 0
  %889 = vmatmul.mubr.bf16.gmra.mxu0 %v507
  %v890 = vpop.f32.mrf.mxu0
  %v891 = vadd.f32 0.0, %v890
  %v892 = vpop.f32.mrf.mxu0
  %v893 = vpop.f32.mrf.mxu0
  %v894 = vadd.f32 0.0, %v893
  %v895 = vpop.f32.mrf.mxu0
  %896 = vmatprep.mubr.bf16.mxu0 0
  %897 = vmatmul.mubr.bf16.gmra.mxu0 %v510
  %v898 = vpop.f32.mrf.mxu0
  %v899 = vadd.f32 0.0, %v898
  %v900 = vpop.f32.mrf.mxu0
  %v901 = vpop.f32.mrf.mxu0
  %v902 = vadd.f32 0.0, %v901
  %v903 = vpop.f32.mrf.mxu0
  %904 = vmatprep.mubr.bf16.mxu0 0
  %905 = vmatmul.mubr.bf16.gmra.mxu0 %v513
  %v906 = vpop.f32.mrf.mxu0
  %v907 = vadd.f32 0.0, %v906
  %v908 = vpop.f32.mrf.mxu0
  %v909 = vpop.f32.mrf.mxu0
  %v910 = vadd.f32 0.0, %v909
  %v911 = vpop.f32.mrf.mxu0
  %912 = vmatprep.mubr.bf16.mxu0 0
  %913 = vmatmul.mubr.bf16.gmra.mxu0 %v516
  %v914 = vpop.f32.mrf.mxu0
  %v915 = vadd.f32 0.0, %v914
  %v916 = vpop.f32.mrf.mxu0
  %v917 = vpop.f32.mrf.mxu0
  %v918 = vadd.f32 0.0, %v917
  %v919 = vpop.f32.mrf.mxu0
  %920 = vmatprep.mubr.bf16.mxu0 0
  %921 = vmatmul.mubr.bf16.gmra.mxu0 %v519
  %v922 = vpop.f32.mrf.mxu0
  %v923 = vadd.f32 0.0, %v922
  %v924 = vpop.f32.mrf.mxu0
  %v925 = vpop.f32.mrf.mxu0
  %v926 = vadd.f32 0.0, %v925
  %v927 = vpop.f32.mrf.mxu0
  %928 = vmatprep.mubr.bf16.mxu0 0
  %929 = vmatmul.mubr.bf16.gmra.mxu0 %v522
  %v930 = vpop.f32.mrf.mxu0
  %v931 = vadd.f32 0.0, %v930
  %v932 = vpop.f32.mrf.mxu0
  %v933 = vpop.f32.mrf.mxu0
  %v934 = vadd.f32 0.0, %v933
  %v935 = vpop.f32.mrf.mxu0
  %936 = vmatprep.mubr.bf16.mxu0 0
  %937 = vmatmul.mubr.bf16.gmra.mxu0 %v525
  %v938 = vpop.f32.mrf.mxu0
  %v939 = vadd.f32 0.0, %v938
  %v940 = vpop.f32.mrf.mxu0
  %v941 = vpop.f32.mrf.mxu0
  %v942 = vadd.f32 0.0, %v941
  %v943 = vpop.f32.mrf.mxu0
  %944 = vmatprep.mubr.bf16.mxu0 0
  %945 = vmatmul.mubr.bf16.gmra.mxu0 %v528
  %v946 = vpop.f32.mrf.mxu0
  %v947 = vadd.f32 0.0, %v946
  %v948 = vpop.f32.mrf.mxu0
  %v949 = vpop.f32.mrf.mxu0
  %v950 = vadd.f32 0.0, %v949
  %v951 = vpop.f32.mrf.mxu0
  %952 = vmatprep.mubr.bf16.mxu0 0
  %953 = vmatmul.mubr.bf16.gmra.mxu0 %v531
  %v954 = vpop.f32.mrf.mxu0
  %v955 = vadd.f32 0.0, %v954
  %v956 = vpop.f32.mrf.mxu0
  %v957 = vpop.f32.mrf.mxu0
  %v958 = vadd.f32 0.0, %v957
  %v959 = vpop.f32.mrf.mxu0
  %960 = vmatprep.mubr.bf16.mxu0 0
  %961 = vmatmul.mubr.bf16.gmra.mxu0 %v534
  %v962 = vpop.f32.mrf.mxu0
  %v963 = vadd.f32 0.0, %v962
  %v964 = vpop.f32.mrf.mxu0
  %v965 = vpop.f32.mrf.mxu0
  %v966 = vadd.f32 0.0, %v965
  %v967 = vpop.f32.mrf.mxu0
  %968 = vmatprep.mubr.bf16.mxu0 0
  %969 = vmatmul.mubr.bf16.gmra.mxu0 %v537
  %v970 = vpop.f32.mrf.mxu0
  %v971 = vadd.f32 0.0, %v970
  %v972 = vpop.f32.mrf.mxu0
  %v973 = vpop.f32.mrf.mxu0
  %v974 = vadd.f32 0.0, %v973
  %v975 = vpop.f32.mrf.mxu0
  %976 = vmatprep.mubr.bf16.mxu0 0
  %977 = vmatmul.mubr.bf16.gmra.mxu0 %v540
  %v978 = vpop.f32.mrf.mxu0
  %v979 = vadd.f32 0.0, %v978
  %v980 = vpop.f32.mrf.mxu0
  %v981 = vpop.f32.mrf.mxu0
  %v982 = vadd.f32 0.0, %v981
  %v983 = vpop.f32.mrf.mxu0
  %984 = vmatprep.mubr.bf16.mxu0 0
  %985 = vmatmul.mubr.bf16.gmra.mxu0 %v543
  %v986 = vpop.f32.mrf.mxu0
  %v987 = vadd.f32 0.0, %v986
  %v988 = vpop.f32.mrf.mxu0
  %v989 = vpop.f32.mrf.mxu0
  %v990 = vadd.f32 0.0, %v989
  %v991 = vpop.f32.mrf.mxu0
  %992 = vmatprep.mubr.bf16.mxu0 0
  %993 = vmatmul.mubr.bf16.gmra.mxu0 %v546
  %v994 = vpop.f32.mrf.mxu0
  %v995 = vadd.f32 0.0, %v994
  %v996 = vpop.f32.mrf.mxu0
  %v997 = vpop.f32.mrf.mxu0
  %v998 = vadd.f32 0.0, %v997
  %v999 = vpop.f32.mrf.mxu0
  %1000 = vdwg.mxu0
  %1001 = vst [vmem:[#allocation2] sm:$0xff] %v587
  %1002 = vst [vmem:[#allocation2 + $0x8] sm:$0xff] %v590
  %1003 = vst [vmem:[#allocation2 + $0x10] sm:$0xff] %v595
  %1004 = vst [vmem:[#allocation2 + $0x18] sm:$0xff] %v598
  %1005 = vst [vmem:[#allocation2 + $0x20] sm:$0xff] %v603
  %1006 = vst [vmem:[#allocation2 + $0x28] sm:$0xff] %v606
  %1007 = vst [vmem:[#allocation2 + $0x30] sm:$0xff] %v611
  %1008 = vst [vmem:[#allocation2 + $0x38] sm:$0xff] %v614
  %1009 = vst [vmem:[#allocation2 + $0x40] sm:$0xff] %v619
  %1010 = vst [vmem:[#allocation2 + $0x48] sm:$0xff] %v622
  %1011 = vst [vmem:[#allocation2 + $0x50] sm:$0xff] %v627
  %1012 = vst [vmem:[#allocation2 + $0x58] sm:$0xff] %v630
  %1013 = vst [vmem:[#allocation2 + $0x60] sm:$0xff] %v635
  %1014 = vst [vmem:[#allocation2 + $0x68] sm:$0xff] %v638
  %1015 = vst [vmem:[#allocation2 + $0x70] sm:$0xff] %v643
  %1016 = vst [vmem:[#allocation2 + $0x78] sm:$0xff] %v646
  %1017 = vst [vmem:[#allocation2 + $0x80] sm:$0xff] %v651
  %1018 = vst [vmem:[#allocation2 + $0x88] sm:$0xff] %v654
  %1019 = vst [vmem:[#allocation2 + $0x90] sm:$0xff] %v659
  %1020 = vst [vmem:[#allocation2 + $0x98] sm:$0xff] %v662
  %1021 = vst [vmem:[#allocation2 + $0xa0] sm:$0xff] %v667
  %1022 = vst [vmem:[#allocation2 + $0xa8] sm:$0xff] %v670
  %1023 = vst [vmem:[#allocation2 + $0xb0] sm:$0xff] %v675
  %1024 = vst [vmem:[#allocation2 + $0xb8] sm:$0xff] %v678
  %1025 = vst [vmem:[#allocation2 + $0xc0] sm:$0xff] %v683
  %1026 = vst [vmem:[#allocation2 + $0xc8] sm:$0xff] %v686
  %1027 = vst [vmem:[#allocation2 + $0xd0] sm:$0xff] %v691
  %1028 = vst [vmem:[#allocation2 + $0xd8] sm:$0xff] %v694
  %1029 = vst [vmem:[#allocation2 + $0xe0] sm:$0xff] %v699
  %1030 = vst [vmem:[#allocation2 + $0xe8] sm:$0xff] %v702
  %1031 = vst [vmem:[#allocation2 + $0xf0] sm:$0xff] %v707
  %1032 = vst [vmem:[#allocation2 + $0xf8] sm:$0xff] %v710
  %1033 = vst [vmem:[#allocation2 + $0x100] sm:$0xff] %v715
  %1034 = vst [vmem:[#allocation2 + $0x108] sm:$0xff] %v718
  %1035 = vst [vmem:[#allocation2 + $0x110] sm:$0xff] %v723
  %1036 = vst [vmem:[#allocation2 + $0x118] sm:$0xff] %v726
  %1037 = vst [vmem:[#allocation2 + $0x120] sm:$0xff] %v731
  %1038 = vst [vmem:[#allocation2 + $0x128] sm:$0xff] %v734
  %1039 = vst [vmem:[#allocation2 + $0x130] sm:$0xff] %v739
  %1040 = vst [vmem:[#allocation2 + $0x138] sm:$0xff] %v742
  %1041 = vst [vmem:[#allocation2 + $0x140] sm:$0xff] %v747
  %1042 = vst [vmem:[#allocation2 + $0x148] sm:$0xff] %v750
  %1043 = vst [vmem:[#allocation2 + $0x150] sm:$0xff] %v755
  %1044 = vst [vmem:[#allocation2 + $0x158] sm:$0xff] %v758
  %1045 = vst [vmem:[#allocation2 + $0x160] sm:$0xff] %v763
  %1046 = vst [vmem:[#allocation2 + $0x168] sm:$0xff] %v766
  %1047 = vst [vmem:[#allocation2 + $0x170] sm:$0xff] %v771
  %1048 = vst [vmem:[#allocation2 + $0x178] sm:$0xff] %v774
  %1049 = vst [vmem:[#allocation2 + $0x180] sm:$0xff] %v779
  %1050 = vst [vmem:[#allocation2 + $0x188] sm:$0xff] %v782
  %1051 = vst [vmem:[#allocation2 + $0x190] sm:$0xff] %v787
  %1052 = vst [vmem:[#allocation2 + $0x198] sm:$0xff] %v790
  %1053 = vst [vmem:[#allocation2 + $0x1a0] sm:$0xff] %v795
  %1054 = vst [vmem:[#allocation2 + $0x1a8] sm:$0xff] %v798
  %1055 = vst [vmem:[#allocation2 + $0x1b0] sm:$0xff] %v803
  %1056 = vst [vmem:[#allocation2 + $0x1b8] sm:$0xff] %v806
  %1057 = vst [vmem:[#allocation2 + $0x1c0] sm:$0xff] %v811
  %1058 = vst [vmem:[#allocation2 + $0x1c8] sm:$0xff] %v814
  %1059 = vst [vmem:[#allocation2 + $0x1d0] sm:$0xff] %v819
  %1060 = vst [vmem:[#allocation2 + $0x1d8] sm:$0xff] %v822
  %1061 = vst [vmem:[#allocation2 + $0x1e0] sm:$0xff] %v827
  %1062 = vst [vmem:[#allocation2 + $0x1e8] sm:$0xff] %v830
  %1063 = vst [vmem:[#allocation2 + $0x1f0] sm:$0xff] %v835
  %1064 = vst [vmem:[#allocation2 + $0x1f8] sm:$0xff] %v838
  %1065 = vst [vmem:[#allocation2 + $0x200] sm:$0xff] %v843
  %1066 = vst [vmem:[#allocation2 + $0x208] sm:$0xff] %v846
  %1067 = vst [vmem:[#allocation2 + $0x210] sm:$0xff] %v851
  %1068 = vst [vmem:[#allocation2 + $0x218] sm:$0xff] %v854
  %1069 = vst [vmem:[#allocation2 + $0x220] sm:$0xff] %v859
  %1070 = vst [vmem:[#allocation2 + $0x228] sm:$0xff] %v862
  %1071 = vst [vmem:[#allocation2 + $0x230] sm:$0xff] %v867
  %1072 = vst [vmem:[#allocation2 + $0x238] sm:$0xff] %v870
  %1073 = vst [vmem:[#allocation2 + $0x240] sm:$0xff] %v875
  %1074 = vst [vmem:[#allocation2 + $0x248] sm:$0xff] %v878
  %1075 = vst [vmem:[#allocation2 + $0x250] sm:$0xff] %v883
  %1076 = vst [vmem:[#allocation2 + $0x258] sm:$0xff] %v886
  %1077 = vst [vmem:[#allocation2 + $0x260] sm:$0xff] %v891
  %1078 = vst [vmem:[#allocation2 + $0x268] sm:$0xff] %v894
  %1079 = vst [vmem:[#allocation2 + $0x270] sm:$0xff] %v899
  %1080 = vst [vmem:[#allocation2 + $0x278] sm:$0xff] %v902
  %1081 = vst [vmem:[#allocation2 + $0x280] sm:$0xff] %v907
  %1082 = vst [vmem:[#allocation2 + $0x288] sm:$0xff] %v910
  %1083 = vst [vmem:[#allocation2 + $0x290] sm:$0xff] %v915
  %1084 = vst [vmem:[#allocation2 + $0x298] sm:$0xff] %v918
  %1085 = vst [vmem:[#allocation2 + $0x2a0] sm:$0xff] %v923
  %1086 = vst [vmem:[#allocation2 + $0x2a8] sm:$0xff] %v926
  %1087 = vst [vmem:[#allocation2 + $0x2b0] sm:$0xff] %v931
  %1088 = vst [vmem:[#allocation2 + $0x2b8] sm:$0xff] %v934
  %1089 = vst [vmem:[#allocation2 + $0x2c0] sm:$0xff] %v939
  %1090 = vst [vmem:[#allocation2 + $0x2c8] sm:$0xff] %v942
  %1091 = vst [vmem:[#allocation2 + $0x2d0] sm:$0xff] %v947
  %1092 = vst [vmem:[#allocation2 + $0x2d8] sm:$0xff] %v950
  %1093 = vst [vmem:[#allocation2 + $0x2e0] sm:$0xff] %v955
  %1094 = vst [vmem:[#allocation2 + $0x2e8] sm:$0xff] %v958
  %1095 = vst [vmem:[#allocation2 + $0x2f0] sm:$0xff] %v963
  %1096 = vst [vmem:[#allocation2 + $0x2f8] sm:$0xff] %v966
  %1097 = vst [vmem:[#allocation2 + $0x300] sm:$0xff] %v971
  %1098 = vst [vmem:[#allocation2 + $0x308] sm:$0xff] %v974
  %1099 = vst [vmem:[#allocation2 + $0x310] sm:$0xff] %v979
  %1100 = vst [vmem:[#allocation2 + $0x318] sm:$0xff] %v982
  %1101 = vst [vmem:[#allocation2 + $0x320] sm:$0xff] %v987
  %1102 = vst [vmem:[#allocation2 + $0x328] sm:$0xff] %v990
  %1103 = vst [vmem:[#allocation2 + $0x330] sm:$0xff] %v995
  %1104 = vst [vmem:[#allocation2 + $0x338] sm:$0xff] %v998
  %v1105 = vld [vmem:[#allocation2] sm:$0xff]
  %v1106 = vld [vmem:[#allocation2 + $0x8] sm:$0xff]
  %v1107 = vld [vmem:[#allocation2 + $0x10] sm:$0xff]
  %v1108 = vld [vmem:[#allocation2 + $0x18] sm:$0xff]
  %v1109 = vld [vmem:[#allocation2 + $0x20] sm:$0xff]
  %v1110 = vld [vmem:[#allocation2 + $0x28] sm:$0xff]
  %v1111 = vld [vmem:[#allocation2 + $0x30] sm:$0xff]
  %v1112 = vld [vmem:[#allocation2 + $0x38] sm:$0xff]
  %v1113 = vld [vmem:[#allocation2 + $0x40] sm:$0xff]
  %v1114 = vld [vmem:[#allocation2 + $0x48] sm:$0xff]
  %v1115 = vld [vmem:[#allocation2 + $0x50] sm:$0xff]
  %v1116 = vld [vmem:[#allocation2 + $0x58] sm:$0xff]
  %v1117 = vld [vmem:[#allocation2 + $0x60] sm:$0xff]
  %v1118 = vld [vmem:[#allocation2 + $0x68] sm:$0xff]
  %v1119 = vld [vmem:[#allocation2 + $0x70] sm:$0xff]
  %v1120 = vld [vmem:[#allocation2 + $0x78] sm:$0xff]
  %v1121 = vld [vmem:[#allocation2 + $0x80] sm:$0xff]
  %v1122 = vld [vmem:[#allocation2 + $0x88] sm:$0xff]
  %v1123 = vld [vmem:[#allocation2 + $0x90] sm:$0xff]
  %v1124 = vld [vmem:[#allocation2 + $0x98] sm:$0xff]
  %v1125 = vld [vmem:[#allocation2 + $0xa0] sm:$0xff]
  %v1126 = vld [vmem:[#allocation2 + $0xa8] sm:$0xff]
  %v1127 = vld [vmem:[#allocation2 + $0xb0] sm:$0xff]
  %v1128 = vld [vmem:[#allocation2 + $0xb8] sm:$0xff]
  %v1129 = vld [vmem:[#allocation2 + $0xc0] sm:$0xff]
  %v1130 = vld [vmem:[#allocation2 + $0xc8] sm:$0xff]
  %v1131 = vld [vmem:[#allocation2 + $0xd0] sm:$0xff]
  %v1132 = vld [vmem:[#allocation2 + $0xd8] sm:$0xff]
  %v1133 = vld [vmem:[#allocation2 + $0xe0] sm:$0xff]
  %v1134 = vld [vmem:[#allocation2 + $0xe8] sm:$0xff]
  %v1135 = vld [vmem:[#allocation2 + $0xf0] sm:$0xff]
  %v1136 = vld [vmem:[#allocation2 + $0xf8] sm:$0xff]
  %v1137 = vld [vmem:[#allocation2 + $0x100] sm:$0xff]
  %v1138 = vld [vmem:[#allocation2 + $0x108] sm:$0xff]
  %v1139 = vld [vmem:[#allocation2 + $0x110] sm:$0xff]
  %v1140 = vld [vmem:[#allocation2 + $0x118] sm:$0xff]
  %v1141 = vld [vmem:[#allocation2 + $0x120] sm:$0xff]
  %v1142 = vld [vmem:[#allocation2 + $0x128] sm:$0xff]
  %v1143 = vld [vmem:[#allocation2 + $0x130] sm:$0xff]
  %v1144 = vld [vmem:[#allocation2 + $0x138] sm:$0xff]
  %v1145 = vld [vmem:[#allocation2 + $0x140] sm:$0xff]
  %v1146 = vld [vmem:[#allocation2 + $0x148] sm:$0xff]
  %v1147 = vld [vmem:[#allocation2 + $0x150] sm:$0xff]
  %v1148 = vld [vmem:[#allocation2 + $0x158] sm:$0xff]
  %v1149 = vld [vmem:[#allocation2 + $0x160] sm:$0xff]
  %v1150 = vld [vmem:[#allocation2 + $0x168] sm:$0xff]
  %v1151 = vld [vmem:[#allocation2 + $0x170] sm:$0xff]
  %v1152 = vld [vmem:[#allocation2 + $0x178] sm:$0xff]
  %v1153 = vld [vmem:[#allocation2 + $0x180] sm:$0xff]
  %v1154 = vld [vmem:[#allocation2 + $0x188] sm:$0xff]
  %v1155 = vld [vmem:[#allocation2 + $0x190] sm:$0xff]
  %v1156 = vld [vmem:[#allocation2 + $0x198] sm:$0xff]
  %v1157 = vld [vmem:[#allocation2 + $0x1a0] sm:$0xff]
  %v1158 = vld [vmem:[#allocation2 + $0x1a8] sm:$0xff]
  %v1159 = vld [vmem:[#allocation2 + $0x1b0] sm:$0xff]
  %v1160 = vld [vmem:[#allocation2 + $0x1b8] sm:$0xff]
  %v1161 = vld [vmem:[#allocation2 + $0x1c0] sm:$0xff]
  %v1162 = vld [vmem:[#allocation2 + $0x1c8] sm:$0xff]
  %v1163 = vld [vmem:[#allocation2 + $0x1d0] sm:$0xff]
  %v1164 = vld [vmem:[#allocation2 + $0x1d8] sm:$0xff]
  %v1165 = vld [vmem:[#allocation2 + $0x1e0] sm:$0xff]
  %v1166 = vld [vmem:[#allocation2 + $0x1e8] sm:$0xff]
  %v1167 = vld [vmem:[#allocation2 + $0x1f0] sm:$0xff]
  %v1168 = vld [vmem:[#allocation2 + $0x1f8] sm:$0xff]
  %v1169 = vld [vmem:[#allocation2 + $0x200] sm:$0xff]
  %v1170 = vld [vmem:[#allocation2 + $0x208] sm:$0xff]
  %v1171 = vld [vmem:[#allocation2 + $0x210] sm:$0xff]
  %v1172 = vld [vmem:[#allocation2 + $0x218] sm:$0xff]
  %v1173 = vld [vmem:[#allocation2 + $0x220] sm:$0xff]
  %v1174 = vld [vmem:[#allocation2 + $0x228] sm:$0xff]
  %v1175 = vld [vmem:[#allocation2 + $0x230] sm:$0xff]
  %v1176 = vld [vmem:[#allocation2 + $0x238] sm:$0xff]
  %v1177 = vld [vmem:[#allocation2 + $0x240] sm:$0xff]
  %v1178 = vld [vmem:[#allocation2 + $0x248] sm:$0xff]
  %v1179 = vld [vmem:[#allocation2 + $0x250] sm:$0xff]
  %v1180 = vld [vmem:[#allocation2 + $0x258] sm:$0xff]
  %v1181 = vld [vmem:[#allocation2 + $0x260] sm:$0xff]
  %v1182 = vld [vmem:[#allocation2 + $0x268] sm:$0xff]
  %v1183 = vld [vmem:[#allocation2 + $0x270] sm:$0xff]
  %v1184 = vld [vmem:[#allocation2 + $0x278] sm:$0xff]
  %v1185 = vld [vmem:[#allocation2 + $0x280] sm:$0xff]
  %v1186 = vld [vmem:[#allocation2 + $0x288] sm:$0xff]
  %v1187 = vld [vmem:[#allocation2 + $0x290] sm:$0xff]
  %v1188 = vld [vmem:[#allocation2 + $0x298] sm:$0xff]
  %v1189 = vld [vmem:[#allocation2 + $0x2a0] sm:$0xff]
  %v1190 = vld [vmem:[#allocation2 + $0x2a8] sm:$0xff]
  %v1191 = vld [vmem:[#allocation2 + $0x2b0] sm:$0xff]
  %v1192 = vld [vmem:[#allocation2 + $0x2b8] sm:$0xff]
  %v1193 = vld [vmem:[#allocation2 + $0x2c0] sm:$0xff]
  %v1194 = vld [vmem:[#allocation2 + $0x2c8] sm:$0xff]
  %v1195 = vld [vmem:[#allocation2 + $0x2d0] sm:$0xff]
  %v1196 = vld [vmem:[#allocation2 + $0x2d8] sm:$0xff]
  %v1197 = vld [vmem:[#allocation2 + $0x2e0] sm:$0xff]
  %v1198 = vld [vmem:[#allocation2 + $0x2e8] sm:$0xff]
  %v1199 = vld [vmem:[#allocation2 + $0x2f0] sm:$0xff]
  %v1200 = vld [vmem:[#allocation2 + $0x2f8] sm:$0xff]
  %v1201 = vld [vmem:[#allocation2 + $0x300] sm:$0xff]
  %v1202 = vld [vmem:[#allocation2 + $0x308] sm:$0xff]
  %v1203 = vld [vmem:[#allocation2 + $0x310] sm:$0xff]
  %v1204 = vld [vmem:[#allocation2 + $0x318] sm:$0xff]
  %v1205 = vld [vmem:[#allocation2 + $0x320] sm:$0xff]
  %v1206 = vld [vmem:[#allocation2 + $0x328] sm:$0xff]
  %v1207 = vld [vmem:[#allocation2 + $0x330] sm:$0xff]
  %v1208 = vld [vmem:[#allocation2 + $0x338] sm:$0xff]
  %v1209 = vld [vmem:[%s2] sm:$0x1]
  %v1211 = vlaneseq
  %v1212 = vshrl.u32 %v1211, 7
  %v1213 = vsub.s32 0, %v1212
  %v1214 = vrot.slane %v1209, %v1213
  %v1216 = vadd.f32 %v1105, %v1214
  %v1217 = vadd.f32 %v1106, %v1214
  %v1218 = vadd.f32 %v1107, %v1214
  %v1219 = vadd.f32 %v1108, %v1214
  %v1220 = vadd.f32 %v1109, %v1214
  %v1221 = vadd.f32 %v1110, %v1214
  %v1222 = vadd.f32 %v1111, %v1214
  %v1223 = vadd.f32 %v1112, %v1214
  %v1224 = vadd.f32 %v1113, %v1214
  %v1225 = vadd.f32 %v1114, %v1214
  %v1226 = vadd.f32 %v1115, %v1214
  %v1227 = vadd.f32 %v1116, %v1214
  %v1228 = vadd.f32 %v1117, %v1214
  %v1229 = vadd.f32 %v1118, %v1214
  %v1230 = vadd.f32 %v1119, %v1214
  %v1231 = vadd.f32 %v1120, %v1214
  %v1232 = vadd.f32 %v1121, %v1214
  %v1233 = vadd.f32 %v1122, %v1214
  %v1234 = vadd.f32 %v1123, %v1214
  %v1235 = vadd.f32 %v1124, %v1214
  %v1236 = vadd.f32 %v1125, %v1214
  %v1237 = vadd.f32 %v1126, %v1214
  %v1238 = vadd.f32 %v1127, %v1214
  %v1239 = vadd.f32 %v1128, %v1214
  %v1240 = vadd.f32 %v1129, %v1214
  %v1241 = vadd.f32 %v1130, %v1214
  %v1242 = vadd.f32 %v1131, %v1214
  %v1243 = vadd.f32 %v1132, %v1214
  %v1244 = vadd.f32 %v1133, %v1214
  %v1245 = vadd.f32 %v1134, %v1214
  %v1246 = vadd.f32 %v1135, %v1214
  %v1247 = vadd.f32 %v1136, %v1214
  %v1248 = vadd.f32 %v1137, %v1214
  %v1249 = vadd.f32 %v1138, %v1214
  %v1250 = vadd.f32 %v1139, %v1214
  %v1251 = vadd.f32 %v1140, %v1214
  %v1252 = vadd.f32 %v1141, %v1214
  %v1253 = vadd.f32 %v1142, %v1214
  %v1254 = vadd.f32 %v1143, %v1214
  %v1255 = vadd.f32 %v1144, %v1214
  %v1256 = vadd.f32 %v1145, %v1214
  %v1257 = vadd.f32 %v1146, %v1214
  %v1258 = vadd.f32 %v1147, %v1214
  %v1259 = vadd.f32 %v1148, %v1214
  %v1260 = vadd.f32 %v1149, %v1214
  %v1261 = vadd.f32 %v1150, %v1214
  %v1262 = vadd.f32 %v1151, %v1214
  %v1263 = vadd.f32 %v1152, %v1214
  %v1264 = vadd.f32 %v1153, %v1214
  %v1265 = vadd.f32 %v1154, %v1214
  %v1266 = vadd.f32 %v1155, %v1214
  %v1267 = vadd.f32 %v1156, %v1214
  %v1268 = vadd.f32 %v1157, %v1214
  %v1269 = vadd.f32 %v1158, %v1214
  %v1270 = vadd.f32 %v1159, %v1214
  %v1271 = vadd.f32 %v1160, %v1214
  %v1272 = vadd.f32 %v1161, %v1214
  %v1273 = vadd.f32 %v1162, %v1214
  %v1274 = vadd.f32 %v1163, %v1214
  %v1275 = vadd.f32 %v1164, %v1214
  %v1276 = vadd.f32 %v1165, %v1214
  %v1277 = vadd.f32 %v1166, %v1214
  %v1278 = vadd.f32 %v1167, %v1214
  %v1279 = vadd.f32 %v1168, %v1214
  %v1280 = vadd.f32 %v1169, %v1214
  %v1281 = vadd.f32 %v1170, %v1214
  %v1282 = vadd.f32 %v1171, %v1214
  %v1283 = vadd.f32 %v1172, %v1214
  %v1284 = vadd.f32 %v1173, %v1214
  %v1285 = vadd.f32 %v1174, %v1214
  %v1286 = vadd.f32 %v1175, %v1214
  %v1287 = vadd.f32 %v1176, %v1214
  %v1288 = vadd.f32 %v1177, %v1214
  %v1289 = vadd.f32 %v1178, %v1214
  %v1290 = vadd.f32 %v1179, %v1214
  %v1291 = vadd.f32 %v1180, %v1214
  %v1292 = vadd.f32 %v1181, %v1214
  %v1293 = vadd.f32 %v1182, %v1214
  %v1294 = vadd.f32 %v1183, %v1214
  %v1295 = vadd.f32 %v1184, %v1214
  %v1296 = vadd.f32 %v1185, %v1214
  %v1297 = vadd.f32 %v1186, %v1214
  %v1298 = vadd.f32 %v1187, %v1214
  %v1299 = vadd.f32 %v1188, %v1214
  %v1300 = vadd.f32 %v1189, %v1214
  %v1301 = vadd.f32 %v1190, %v1214
  %v1302 = vadd.f32 %v1191, %v1214
  %v1303 = vadd.f32 %v1192, %v1214
  %v1304 = vadd.f32 %v1193, %v1214
  %v1305 = vadd.f32 %v1194, %v1214
  %v1306 = vadd.f32 %v1195, %v1214
  %v1307 = vadd.f32 %v1196, %v1214
  %v1308 = vadd.f32 %v1197, %v1214
  %v1309 = vadd.f32 %v1198, %v1214
  %v1310 = vadd.f32 %v1199, %v1214
  %v1311 = vadd.f32 %v1200, %v1214
  %v1312 = vadd.f32 %v1201, %v1214
  %v1313 = vadd.f32 %v1202, %v1214
  %v1314 = vadd.f32 %v1203, %v1214
  %v1315 = vadd.f32 %v1204, %v1214
  %v1316 = vadd.f32 %v1205, %v1214
  %v1317 = vadd.f32 %v1206, %v1214
  %v1318 = vadd.f32 %v1207, %v1214
  %v1319 = vadd.f32 %v1208, %v1214
  %v1320 = vmax.f32 %v1216, 0.0
  %v1321 = vmax.f32 %v1217, 0.0
  %v1322 = vmax.f32 %v1218, 0.0
  %v1323 = vmax.f32 %v1219, 0.0
  %v1324 = vmax.f32 %v1220, 0.0
  %v1325 = vmax.f32 %v1221, 0.0
  %v1326 = vmax.f32 %v1222, 0.0
  %v1327 = vmax.f32 %v1223, 0.0
  %v1328 = vmax.f32 %v1224, 0.0
  %v1329 = vmax.f32 %v1225, 0.0
  %v1330 = vmax.f32 %v1226, 0.0
  %v1331 = vmax.f32 %v1227, 0.0
  %v1332 = vmax.f32 %v1228, 0.0
  %v1333 = vmax.f32 %v1229, 0.0
  %v1334 = vmax.f32 %v1230, 0.0
  %v1335 = vmax.f32 %v1231, 0.0
  %v1336 = vmax.f32 %v1232, 0.0
  %v1337 = vmax.f32 %v1233, 0.0
  %v1338 = vmax.f32 %v1234, 0.0
  %v1339 = vmax.f32 %v1235, 0.0
  %v1340 = vmax.f32 %v1236, 0.0
  %v1341 = vmax.f32 %v1237, 0.0
  %v1342 = vmax.f32 %v1238, 0.0
  %v1343 = vmax.f32 %v1239, 0.0
  %v1344 = vmax.f32 %v1240, 0.0
  %v1345 = vmax.f32 %v1241, 0.0
  %v1346 = vmax.f32 %v1242, 0.0
  %v1347 = vmax.f32 %v1243, 0.0
  %v1348 = vmax.f32 %v1244, 0.0
  %v1349 = vmax.f32 %v1245, 0.0
  %v1350 = vmax.f32 %v1246, 0.0
  %v1351 = vmax.f32 %v1247, 0.0
  %v1352 = vmax.f32 %v1248, 0.0
  %v1353 = vmax.f32 %v1249, 0.0
  %v1354 = vmax.f32 %v1250, 0.0
  %v1355 = vmax.f32 %v1251, 0.0
  %v1356 = vmax.f32 %v1252, 0.0
  %v1357 = vmax.f32 %v1253, 0.0
  %v1358 = vmax.f32 %v1254, 0.0
  %v1359 = vmax.f32 %v1255, 0.0
  %v1360 = vmax.f32 %v1256, 0.0
  %v1361 = vmax.f32 %v1257, 0.0
  %v1362 = vmax.f32 %v1258, 0.0
  %v1363 = vmax.f32 %v1259, 0.0
  %v1364 = vmax.f32 %v1260, 0.0
  %v1365 = vmax.f32 %v1261, 0.0
  %v1366 = vmax.f32 %v1262, 0.0
  %v1367 = vmax.f32 %v1263, 0.0
  %v1368 = vmax.f32 %v1264, 0.0
  %v1369 = vmax.f32 %v1265, 0.0
  %v1370 = vmax.f32 %v1266, 0.0
  %v1371 = vmax.f32 %v1267, 0.0
  %v1372 = vmax.f32 %v1268, 0.0
  %v1373 = vmax.f32 %v1269, 0.0
  %v1374 = vmax.f32 %v1270, 0.0
  %v1375 = vmax.f32 %v1271, 0.0
  %v1376 = vmax.f32 %v1272, 0.0
  %v1377 = vmax.f32 %v1273, 0.0
  %v1378 = vmax.f32 %v1274, 0.0
  %v1379 = vmax.f32 %v1275, 0.0
  %v1380 = vmax.f32 %v1276, 0.0
  %v1381 = vmax.f32 %v1277, 0.0
  %v1382 = vmax.f32 %v1278, 0.0
  %v1383 = vmax.f32 %v1279, 0.0
  %v1384 = vmax.f32 %v1280, 0.0
  %v1385 = vmax.f32 %v1281, 0.0
  %v1386 = vmax.f32 %v1282, 0.0
  %v1387 = vmax.f32 %v1283, 0.0
  %v1388 = vmax.f32 %v1284, 0.0
  %v1389 = vmax.f32 %v1285, 0.0
  %v1390 = vmax.f32 %v1286, 0.0
  %v1391 = vmax.f32 %v1287, 0.0
  %v1392 = vmax.f32 %v1288, 0.0
  %v1393 = vmax.f32 %v1289, 0.0
  %v1394 = vmax.f32 %v1290, 0.0
  %v1395 = vmax.f32 %v1291, 0.0
  %v1396 = vmax.f32 %v1292, 0.0
  %v1397 = vmax.f32 %v1293, 0.0
  %v1398 = vmax.f32 %v1294, 0.0
  %v1399 = vmax.f32 %v1295, 0.0
  %v1400 = vmax.f32 %v1296, 0.0
  %v1401 = vmax.f32 %v1297, 0.0
  %v1402 = vmax.f32 %v1298, 0.0
  %v1403 = vmax.f32 %v1299, 0.0
  %v1404 = vmax.f32 %v1300, 0.0
  %v1405 = vmax.f32 %v1301, 0.0
  %v1406 = vmax.f32 %v1302, 0.0
  %v1407 = vmax.f32 %v1303, 0.0
  %v1408 = vmax.f32 %v1304, 0.0
  %v1409 = vmax.f32 %v1305, 0.0
  %v1410 = vmax.f32 %v1306, 0.0
  %v1411 = vmax.f32 %v1307, 0.0
  %v1412 = vmax.f32 %v1308, 0.0
  %v1413 = vmax.f32 %v1309, 0.0
  %v1414 = vmax.f32 %v1310, 0.0
  %v1415 = vmax.f32 %v1311, 0.0
  %v1416 = vmax.f32 %v1312, 0.0
  %v1417 = vmax.f32 %v1313, 0.0
  %v1418 = vmax.f32 %v1314, 0.0
  %v1419 = vmax.f32 %v1315, 0.0
  %v1420 = vmax.f32 %v1316, 0.0
  %v1421 = vmax.f32 %v1317, 0.0
  %v1422 = vmax.f32 %v1318, 0.0
  %v1423 = vmax.f32 %v1319, 0.0
  %1424 = vst [vmem:[#allocation2] sm:$0xff] %v1320
  %1425 = vst [vmem:[#allocation2 + $0x8] sm:$0xff] %v1321
  %1426 = vst [vmem:[#allocation2 + $0x10] sm:$0xff] %v1322
  %1427 = vst [vmem:[#allocation2 + $0x18] sm:$0xff] %v1323
  %1428 = vst [vmem:[#allocation2 + $0x20] sm:$0xff] %v1324
  %1429 = vst [vmem:[#allocation2 + $0x28] sm:$0xff] %v1325
  %1430 = vst [vmem:[#allocation2 + $0x30] sm:$0xff] %v1326
  %1431 = vst [vmem:[#allocation2 + $0x38] sm:$0xff] %v1327
  %1432 = vst [vmem:[#allocation2 + $0x40] sm:$0xff] %v1328
  %1433 = vst [vmem:[#allocation2 + $0x48] sm:$0xff] %v1329
  %1434 = vst [vmem:[#allocation2 + $0x50] sm:$0xff] %v1330
  %1435 = vst [vmem:[#allocation2 + $0x58] sm:$0xff] %v1331
  %1436 = vst [vmem:[#allocation2 + $0x60] sm:$0xff] %v1332
  %1437 = vst [vmem:[#allocation2 + $0x68] sm:$0xff] %v1333
  %1438 = vst [vmem:[#allocation2 + $0x70] sm:$0xff] %v1334
  %1439 = vst [vmem:[#allocation2 + $0x78] sm:$0xff] %v1335
  %1440 = vst [vmem:[#allocation2 + $0x80] sm:$0xff] %v1336
  %1441 = vst [vmem:[#allocation2 + $0x88] sm:$0xff] %v1337
  %1442 = vst [vmem:[#allocation2 + $0x90] sm:$0xff] %v1338
  %1443 = vst [vmem:[#allocation2 + $0x98] sm:$0xff] %v1339
  %1444 = vst [vmem:[#allocation2 + $0xa0] sm:$0xff] %v1340
  %1445 = vst [vmem:[#allocation2 + $0xa8] sm:$0xff] %v1341
  %1446 = vst [vmem:[#allocation2 + $0xb0] sm:$0xff] %v1342
  %1447 = vst [vmem:[#allocation2 + $0xb8] sm:$0xff] %v1343
  %1448 = vst [vmem:[#allocation2 + $0xc0] sm:$0xff] %v1344
  %1449 = vst [vmem:[#allocation2 + $0xc8] sm:$0xff] %v1345
  %1450 = vst [vmem:[#allocation2 + $0xd0] sm:$0xff] %v1346
  %1451 = vst [vmem:[#allocation2 + $0xd8] sm:$0xff] %v1347
  %1452 = vst [vmem:[#allocation2 + $0xe0] sm:$0xff] %v1348
  %1453 = vst [vmem:[#allocation2 + $0xe8] sm:$0xff] %v1349
  %1454 = vst [vmem:[#allocation2 + $0xf0] sm:$0xff] %v1350
  %1455 = vst [vmem:[#allocation2 + $0xf8] sm:$0xff] %v1351
  %1456 = vst [vmem:[#allocation2 + $0x100] sm:$0xff] %v1352
  %1457 = vst [vmem:[#allocation2 + $0x108] sm:$0xff] %v1353
  %1458 = vst [vmem:[#allocation2 + $0x110] sm:$0xff] %v1354
  %1459 = vst [vmem:[#allocation2 + $0x118] sm:$0xff] %v1355
  %1460 = vst [vmem:[#allocation2 + $0x120] sm:$0xff] %v1356
  %1461 = vst [vmem:[#allocation2 + $0x128] sm:$0xff] %v1357
  %1462 = vst [vmem:[#allocation2 + $0x130] sm:$0xff] %v1358
  %1463 = vst [vmem:[#allocation2 + $0x138] sm:$0xff] %v1359
  %1464 = vst [vmem:[#allocation2 + $0x140] sm:$0xff] %v1360
  %1465 = vst [vmem:[#allocation2 + $0x148] sm:$0xff] %v1361
  %1466 = vst [vmem:[#allocation2 + $0x150] sm:$0xff] %v1362
  %1467 = vst [vmem:[#allocation2 + $0x158] sm:$0xff] %v1363
  %1468 = vst [vmem:[#allocation2 + $0x160] sm:$0xff] %v1364
  %1469 = vst [vmem:[#allocation2 + $0x168] sm:$0xff] %v1365
  %1470 = vst [vmem:[#allocation2 + $0x170] sm:$0xff] %v1366
  %1471 = vst [vmem:[#allocation2 + $0x178] sm:$0xff] %v1367
  %1472 = vst [vmem:[#allocation2 + $0x180] sm:$0xff] %v1368
  %1473 = vst [vmem:[#allocation2 + $0x188] sm:$0xff] %v1369
  %1474 = vst [vmem:[#allocation2 + $0x190] sm:$0xff] %v1370
  %1475 = vst [vmem:[#allocation2 + $0x198] sm:$0xff] %v1371
  %1476 = vst [vmem:[#allocation2 + $0x1a0] sm:$0xff] %v1372
  %1477 = vst [vmem:[#allocation2 + $0x1a8] sm:$0xff] %v1373
  %1478 = vst [vmem:[#allocation2 + $0x1b0] sm:$0xff] %v1374
  %1479 = vst [vmem:[#allocation2 + $0x1b8] sm:$0xff] %v1375
  %1480 = vst [vmem:[#allocation2 + $0x1c0] sm:$0xff] %v1376
  %1481 = vst [vmem:[#allocation2 + $0x1c8] sm:$0xff] %v1377
  %1482 = vst [vmem:[#allocation2 + $0x1d0] sm:$0xff] %v1378
  %1483 = vst [vmem:[#allocation2 + $0x1d8] sm:$0xff] %v1379
  %1484 = vst [vmem:[#allocation2 + $0x1e0] sm:$0xff] %v1380
  %1485 = vst [vmem:[#allocation2 + $0x1e8] sm:$0xff] %v1381
  %1486 = vst [vmem:[#allocation2 + $0x1f0] sm:$0xff] %v1382
  %1487 = vst [vmem:[#allocation2 + $0x1f8] sm:$0xff] %v1383
  %1488 = vst [vmem:[#allocation2 + $0x200] sm:$0xff] %v1384
  %1489 = vst [vmem:[#allocation2 + $0x208] sm:$0xff] %v1385
  %1490 = vst [vmem:[#allocation2 + $0x210] sm:$0xff] %v1386
  %1491 = vst [vmem:[#allocation2 + $0x218] sm:$0xff] %v1387
  %1492 = vst [vmem:[#allocation2 + $0x220] sm:$0xff] %v1388
  %1493 = vst [vmem:[#allocation2 + $0x228] sm:$0xff] %v1389
  %1494 = vst [vmem:[#allocation2 + $0x230] sm:$0xff] %v1390
  %1495 = vst [vmem:[#allocation2 + $0x238] sm:$0xff] %v1391
  %1496 = vst [vmem:[#allocation2 + $0x240] sm:$0xff] %v1392
  %1497 = vst [vmem:[#allocation2 + $0x248] sm:$0xff] %v1393
  %1498 = vst [vmem:[#allocation2 + $0x250] sm:$0xff] %v1394
  %1499 = vst [vmem:[#allocation2 + $0x258] sm:$0xff] %v1395
  %1500 = vst [vmem:[#allocation2 + $0x260] sm:$0xff] %v1396
  %1501 = vst [vmem:[#allocation2 + $0x268] sm:$0xff] %v1397
  %1502 = vst [vmem:[#allocation2 + $0x270] sm:$0xff] %v1398
  %1503 = vst [vmem:[#allocation2 + $0x278] sm:$0xff] %v1399
  %1504 = vst [vmem:[#allocation2 + $0x280] sm:$0xff] %v1400
  %1505 = vst [vmem:[#allocation2 + $0x288] sm:$0xff] %v1401
  %1506 = vst [vmem:[#allocation2 + $0x290] sm:$0xff] %v1402
  %1507 = vst [vmem:[#allocation2 + $0x298] sm:$0xff] %v1403
  %1508 = vst [vmem:[#allocation2 + $0x2a0] sm:$0xff] %v1404
  %1509 = vst [vmem:[#allocation2 + $0x2a8] sm:$0xff] %v1405
  %1510 = vst [vmem:[#allocation2 + $0x2b0] sm:$0xff] %v1406
  %1511 = vst [vmem:[#allocation2 + $0x2b8] sm:$0xff] %v1407
  %1512 = vst [vmem:[#allocation2 + $0x2c0] sm:$0xff] %v1408
  %1513 = vst [vmem:[#allocation2 + $0x2c8] sm:$0xff] %v1409
  %1514 = vst [vmem:[#allocation2 + $0x2d0] sm:$0xff] %v1410
  %1515 = vst [vmem:[#allocation2 + $0x2d8] sm:$0xff] %v1411
  %1516 = vst [vmem:[#allocation2 + $0x2e0] sm:$0xff] %v1412
  %1517 = vst [vmem:[#allocation2 + $0x2e8] sm:$0xff] %v1413
  %1518 = vst [vmem:[#allocation2 + $0x2f0] sm:$0xff] %v1414
  %1519 = vst [vmem:[#allocation2 + $0x2f8] sm:$0xff] %v1415
  %1520 = vst [vmem:[#allocation2 + $0x300] sm:$0xff] %v1416
  %1521 = vst [vmem:[#allocation2 + $0x308] sm:$0xff] %v1417
  %1522 = vst [vmem:[#allocation2 + $0x310] sm:$0xff] %v1418
  %1523 = vst [vmem:[#allocation2 + $0x318] sm:$0xff] %v1419
  %1524 = vst [vmem:[#allocation2 + $0x320] sm:$0xff] %v1420
  %1525 = vst [vmem:[#allocation2 + $0x328] sm:$0xff] %v1421
  %1526 = vst [vmem:[#allocation2 + $0x330] sm:$0xff] %v1422
  %1527 = vst [vmem:[#allocation2 + $0x338] sm:$0xff] %v1423
  %v1528 = vld [vmem:[#allocation2] sm:$0xff]
  %v1529 = vld [vmem:[#allocation2 + $0x8] sm:$0xff]
  %v1530 = vld [vmem:[#allocation2 + $0x10] sm:$0xff]
  %v1531 = vld [vmem:[#allocation2 + $0x18] sm:$0xff]
  %s1532 = sadd.s32 0, 32
  %s1533 = scalar_lea.vmem [#allocation2], %s1532
  %v1534 = vld [vmem:[%s1533] sm:$0xff]
  %v1535 = vld [vmem:[%s1533 + $0x8] sm:$0xff]
  %v1536 = vld [vmem:[%s1533 + $0x10] sm:$0xff]
  %v1537 = vld [vmem:[%s1533 + $0x18] sm:$0xff]
  %v1538 = vmax.f32 %v1528, %v1534
  %v1539 = vmax.f32 %v1529, %v1535
  %v1540 = vmax.f32 %v1530, %v1536
  %v1541 = vmax.f32 %v1531, %v1537
  %1542 = vst [vmem:[#allocation3] sm:$0xff] %v1538
  %1543 = vst [vmem:[#allocation3 + $0x8] sm:$0xff] %v1539
  %1544 = vst [vmem:[#allocation3 + $0x10] sm:$0xff] %v1540
  %1545 = vst [vmem:[#allocation3 + $0x18] sm:$0xff] %v1541
  %v1546 = vld [vmem:[#allocation3] ss:$2 sm:$0xff]
  %s1547 = scalar_lea.vmem [#allocation3], 16
  %v1548 = vld [vmem:[%s1547] ss:$2 sm:$0x1f]
  %s1549 = scalar_lea.vmem [#allocation3], 1
  %v1550 = vld [vmem:[%s1549] ss:$2 sm:$0xff]
  %s1551 = scalar_lea.vmem [#allocation3], 17
  %v1552 = vld [vmem:[%s1551] ss:$2 sm:$0x1f]
  %v1553 = vmax.f32 %v1546, %v1550
  %v1554 = vmax.f32 %v1548, %v1552
  %v1557 = vrot.slane %v1550, 7
  %v1558 = vrot.slane %v1552, 7
  %v1559 = vsel %vm548, %v1557, %v1558
  %v1562 = vmax.f32 %v1553, %v1557
  %v1563 = vmax.f32 %v1554, %v1559
  %v1564 = vsel %vm548, %v1553, %v1562
  %vm1565 = vcmask 1044480
  %v1566 = vsel %vm1565, %v1563, 0.0
  %v1567 = vpack.c.bf16 %v1566, %v1564
  %v1569 = vunpack.c.l.b16 %v1567
  %v1570 = vunpack.c.h.b16 %v1567
  %v1571 = vpack.c.b16 %v1569, %v1569
  %v1572 = vpack.c.b16 %v1570, %v1570
  %1575 = vst [vmem:[%s3] sm:$0xf] %v1571
  %1576 = vst [vmem:[%s3 + $0x4] sm:$0xf] %v1572
  %v1577 = vld [vmem:[%s1533] sm:$0xff]
  %v1578 = vld [vmem:[%s1533 + $0x8] sm:$0xff]
  %v1579 = vld [vmem:[%s1533 + $0x10] sm:$0xff]
  %v1580 = vld [vmem:[%s1533 + $0x18] sm:$0xff]
  %s1581 = sadd.s32 0, 64
  %s1582 = scalar_lea.vmem [#allocation2], %s1581
  %v1583 = vld [vmem:[%s1582] sm:$0xff]
  %v1584 = vld [vmem:[%s1582 + $0x8] sm:$0xff]
  %v1585 = vld [vmem:[%s1582 + $0x10] sm:$0xff]
  %v1586 = vld [vmem:[%s1582 + $0x18] sm:$0xff]
  %v1587 = vmax.f32 %v1577, %v1583
  %v1588 = vmax.f32 %v1578, %v1584
  %v1589 = vmax.f32 %v1579, %v1585
  %v1590 = vmax.f32 %v1580, %v1586
  %s1591 = sadd.s32 0, 96
  %s1592 = scalar_lea.vmem [#allocation2], %s1591
  %v1593 = vld [vmem:[%s1592] sm:$0xff]
  %v1594 = vld [vmem:[%s1592 + $0x8] sm:$0xff]
  %v1595 = vld [vmem:[%s1592 + $0x10] sm:$0xff]
  %v1596 = vld [vmem:[%s1592 + $0x18] sm:$0xff]
  %v1597 = vmax.f32 %v1587, %v1593
  %v1598 = vmax.f32 %v1588, %v1594
  %v1599 = vmax.f32 %v1589, %v1595
  %v1600 = vmax.f32 %v1590, %v1596
  %1601 = vst [vmem:[#allocation3] sm:$0xff] %v1597
  %1602 = vst [vmem:[#allocation3 + $0x8] sm:$0xff] %v1598
  %1603 = vst [vmem:[#allocation3 + $0x10] sm:$0xff] %v1599
  %1604 = vst [vmem:[#allocation3 + $0x18] sm:$0xff] %v1600
  %v1605 = vld [vmem:[#allocation3] ss:$2 sm:$0xff]
  %v1606 = vld [vmem:[%s1547] ss:$2 sm:$0x1f]
  %v1607 = vld [vmem:[%s1549] ss:$2 sm:$0xff]
  %v1608 = vld [vmem:[%s1551] ss:$2 sm:$0x1f]
  %v1609 = vmax.f32 %v1605, %v1607
  %v1610 = vmax.f32 %v1606, %v1608
  %v1613 = vrot.slane %v1607, 7
  %v1614 = vrot.slane %v1608, 7
  %v1615 = vsel %vm548, %v1613, %v1614
  %v1618 = vmax.f32 %v1609, %v1613
  %v1619 = vmax.f32 %v1610, %v1615
  %v1620 = vsel %vm548, %v1609, %v1618
  %v1621 = vsel %vm1565, %v1619, 0.0
  %v1622 = vpack.c.bf16 %v1621, %v1620
  %s1623 = sadd.s32 0, 16
  %v1625 = vunpack.c.l.b16 %v1622
  %v1626 = vunpack.c.h.b16 %v1622
  %v1627 = vpack.c.b16 %v1625, %v1625
  %v1628 = vpack.c.b16 %v1626, %v1626
  %s1631 = sshra.s32 %s1623, 3
  %s1632 = sand.u32 %s1623, 7
  %s1633 = smul.addr %s1631, 4
  %s1634 = scalar_lea.vmem %s3, %s1633
  %1635 = vst [vmem:[%s1634] sm:$0xf] %v1627
  %1636 = vst [vmem:[%s1634 + $0x4] sm:$0xf] %v1628
  %v1637 = vld [vmem:[%s1592] sm:$0xff]
  %v1638 = vld [vmem:[%s1592 + $0x8] sm:$0xff]
  %v1639 = vld [vmem:[%s1592 + $0x10] sm:$0xff]
  %v1640 = vld [vmem:[%s1592 + $0x18] sm:$0xff]
  %s1641 = sadd.s32 0, 128
  %s1642 = scalar_lea.vmem [#allocation2], %s1641
  %v1643 = vld [vmem:[%s1642] sm:$0xff]
  %v1644 = vld [vmem:[%s1642 + $0x8] sm:$0xff]
  %v1645 = vld [vmem:[%s1642 + $0x10] sm:$0xff]
  %v1646 = vld [vmem:[%s1642 + $0x18] sm:$0xff]
  %v1647 = vmax.f32 %v1637, %v1643
  %v1648 = vmax.f32 %v1638, %v1644
  %v1649 = vmax.f32 %v1639, %v1645
  %v1650 = vmax.f32 %v1640, %v1646
  %s1651 = sadd.s32 0, 160
  %s1652 = scalar_lea.vmem [#allocation2], %s1651
  %v1653 = vld [vmem:[%s1652] sm:$0xff]
  %v1654 = vld [vmem:[%s1652 + $0x8] sm:$0xff]
  %v1655 = vld [vmem:[%s1652 + $0x10] sm:$0xff]
  %v1656 = vld [vmem:[%s1652 + $0x18] sm:$0xff]
  %v1657 = vmax.f32 %v1647, %v1653
  %v1658 = vmax.f32 %v1648, %v1654
  %v1659 = vmax.f32 %v1649, %v1655
  %v1660 = vmax.f32 %v1650, %v1656
  %1661 = vst [vmem:[#allocation3] sm:$0xff] %v1657
  %1662 = vst [vmem:[#allocation3 + $0x8] sm:$0xff] %v1658
  %1663 = vst [vmem:[#allocation3 + $0x10] sm:$0xff] %v1659
  %1664 = vst [vmem:[#allocation3 + $0x18] sm:$0xff] %v1660
  %v1665 = vld [vmem:[#allocation3] ss:$2 sm:$0xff]
  %v1666 = vld [vmem:[%s1547] ss:$2 sm:$0x1f]
  %v1667 = vld [vmem:[%s1549] ss:$2 sm:$0xff]
  %v1668 = vld [vmem:[%s1551] ss:$2 sm:$0x1f]
  %v1669 = vmax.f32 %v1665, %v1667
  %v1670 = vmax.f32 %v1666, %v1668
  %v1673 = vrot.slane %v1667, 7
  %v1674 = vrot.slane %v1668, 7
  %v1675 = vsel %vm548, %v1673, %v1674
  %v1678 = vmax.f32 %v1669, %v1673
  %v1679 = vmax.f32 %v1670, %v1675
  %v1680 = vsel %vm548, %v1669, %v1678
  %v1681 = vsel %vm1565, %v1679, 0.0
  %v1682 = vpack.c.bf16 %v1681, %v1680
  %v1684 = vunpack.c.l.b16 %v1682
  %v1685 = vunpack.c.h.b16 %v1682
  %v1686 = vpack.c.b16 %v1684, %v1684
  %v1687 = vpack.c.b16 %v1685, %v1685
  %s1690 = sshra.s32 %s1532, 3
  %s1691 = sand.u32 %s1532, 7
  %s1692 = smul.addr %s1690, 4
  %s1693 = scalar_lea.vmem %s3, %s1692
  %1694 = vst [vmem:[%s1693] sm:$0xf] %v1686
  %1695 = vst [vmem:[%s1693 + $0x4] sm:$0xf] %v1687
  %v1696 = vld [vmem:[%s1652] sm:$0xff]
  %v1697 = vld [vmem:[%s1652 + $0x8] sm:$0xff]
  %v1698 = vld [vmem:[%s1652 + $0x10] sm:$0xff]
  %v1699 = vld [vmem:[%s1652 + $0x18] sm:$0xff]
  %s1700 = sadd.s32 0, 192
  %s1701 = scalar_lea.vmem [#allocation2], %s1700
  %v1702 = vld [vmem:[%s1701] sm:$0xff]
  %v1703 = vld [vmem:[%s1701 + $0x8] sm:$0xff]
  %v1704 = vld [vmem:[%s1701 + $0x10] sm:$0xff]
  %v1705 = vld [vmem:[%s1701 + $0x18] sm:$0xff]
  %v1706 = vmax.f32 %v1696, %v1702
  %v1707 = vmax.f32 %v1697, %v1703
  %v1708 = vmax.f32 %v1698, %v1704
  %v1709 = vmax.f32 %v1699, %v1705
  %s1710 = sadd.s32 0, 224
  %s1711 = scalar_lea.vmem [#allocation2], %s1710
  %v1712 = vld [vmem:[%s1711] sm:$0xff]
  %v1713 = vld [vmem:[%s1711 + $0x8] sm:$0xff]
  %v1714 = vld [vmem:[%s1711 + $0x10] sm:$0xff]
  %v1715 = vld [vmem:[%s1711 + $0x18] sm:$0xff]
  %v1716 = vmax.f32 %v1706, %v1712
  %v1717 = vmax.f32 %v1707, %v1713
  %v1718 = vmax.f32 %v1708, %v1714
  %v1719 = vmax.f32 %v1709, %v1715
  %1720 = vst [vmem:[#allocation3] sm:$0xff] %v1716
  %1721 = vst [vmem:[#allocation3 + $0x8] sm:$0xff] %v1717
  %1722 = vst [vmem:[#allocation3 + $0x10] sm:$0xff] %v1718
  %1723 = vst [vmem:[#allocation3 + $0x18] sm:$0xff] %v1719
  %v1724 = vld [vmem:[#allocation3] ss:$2 sm:$0xff]
  %v1725 = vld [vmem:[%s1547] ss:$2 sm:$0x1f]
  %v1726 = vld [vmem:[%s1549] ss:$2 sm:$0xff]
  %v1727 = vld [vmem:[%s1551] ss:$2 sm:$0x1f]
  %v1728 = vmax.f32 %v1724, %v1726
  %v1729 = vmax.f32 %v1725, %v1727
  %v1732 = vrot.slane %v1726, 7
  %v1733 = vrot.slane %v1727, 7
  %v1734 = vsel %vm548, %v1732, %v1733
  %v1737 = vmax.f32 %v1728, %v1732
  %v1738 = vmax.f32 %v1729, %v1734
  %v1739 = vsel %vm548, %v1728, %v1737
  %v1740 = vsel %vm1565, %v1738, 0.0
  %v1741 = vpack.c.bf16 %v1740, %v1739
  %s1742 = sadd.s32 0, 48
  %v1744 = vunpack.c.l.b16 %v1741
  %v1745 = vunpack.c.h.b16 %v1741
  %v1746 = vpack.c.b16 %v1744, %v1744
  %v1747 = vpack.c.b16 %v1745, %v1745
  %s1750 = sshra.s32 %s1742, 3
  %s1751 = sand.u32 %s1742, 7
  %s1752 = smul.addr %s1750, 4
  %s1753 = scalar_lea.vmem %s3, %s1752
  %1754 = vst [vmem:[%s1753] sm:$0xf] %v1746
  %1755 = vst [vmem:[%s1753 + $0x4] sm:$0xf] %v1747
  %v1756 = vld [vmem:[%s1711] sm:$0xff]
  %v1757 = vld [vmem:[%s1711 + $0x8] sm:$0xff]
  %v1758 = vld [vmem:[%s1711 + $0x10] sm:$0xff]
  %v1759 = vld [vmem:[%s1711 + $0x18] sm:$0xff]
  %s1760 = sadd.s32 0, 256
  %s1761 = scalar_lea.vmem [#allocation2], %s1760
  %v1762 = vld [vmem:[%s1761] sm:$0xff]
  %v1763 = vld [vmem:[%s1761 + $0x8] sm:$0xff]
  %v1764 = vld [vmem:[%s1761 + $0x10] sm:$0xff]
  %v1765 = vld [vmem:[%s1761 + $0x18] sm:$0xff]
  %v1766 = vmax.f32 %v1756, %v1762
  %v1767 = vmax.f32 %v1757, %v1763
  %v1768 = vmax.f32 %v1758, %v1764
  %v1769 = vmax.f32 %v1759, %v1765
  %s1770 = sadd.s32 0, 288
  %s1771 = scalar_lea.vmem [#allocation2], %s1770
  %v1772 = vld [vmem:[%s1771] sm:$0xff]
  %v1773 = vld [vmem:[%s1771 + $0x8] sm:$0xff]
  %v1774 = vld [vmem:[%s1771 + $0x10] sm:$0xff]
  %v1775 = vld [vmem:[%s1771 + $0x18] sm:$0xff]
  %v1776 = vmax.f32 %v1766, %v1772
  %v1777 = vmax.f32 %v1767, %v1773
  %v1778 = vmax.f32 %v1768, %v1774
  %v1779 = vmax.f32 %v1769, %v1775
  %1780 = vst [vmem:[#allocation3] sm:$0xff] %v1776
  %1781 = vst [vmem:[#allocation3 + $0x8] sm:$0xff] %v1777
  %1782 = vst [vmem:[#allocation3 + $0x10] sm:$0xff] %v1778
  %1783 = vst [vmem:[#allocation3 + $0x18] sm:$0xff] %v1779
  %v1784 = vld [vmem:[#allocation3] ss:$2 sm:$0xff]
  %v1785 = vld [vmem:[%s1547] ss:$2 sm:$0x1f]
  %v1786 = vld [vmem:[%s1549] ss:$2 sm:$0xff]
  %v1787 = vld [vmem:[%s1551] ss:$2 sm:$0x1f]
  %v1788 = vmax.f32 %v1784, %v1786
  %v1789 = vmax.f32 %v1785, %v1787
  %v1792 = vrot.slane %v1786, 7
  %v1793 = vrot.slane %v1787, 7
  %v1794 = vsel %vm548, %v1792, %v1793
  %v1797 = vmax.f32 %v1788, %v1792
  %v1798 = vmax.f32 %v1789, %v1794
  %v1799 = vsel %vm548, %v1788, %v1797
  %v1800 = vsel %vm1565, %v1798, 0.0
  %v1801 = vpack.c.bf16 %v1800, %v1799
  %v1803 = vunpack.c.l.b16 %v1801
  %v1804 = vunpack.c.h.b16 %v1801
  %v1805 = vpack.c.b16 %v1803, %v1803
  %v1806 = vpack.c.b16 %v1804, %v1804
  %s1809 = sshra.s32 %s1581, 3
  %s1810 = sand.u32 %s1581, 7
  %s1811 = smul.addr %s1809, 4
  %s1812 = scalar_lea.vmem %s3, %s1811
  %1813 = vst [vmem:[%s1812] sm:$0xf] %v1805
  %1814 = vst [vmem:[%s1812 + $0x4] sm:$0xf] %v1806
  %v1815 = vld [vmem:[%s1771] sm:$0xff]
  %v1816 = vld [vmem:[%s1771 + $0x8] sm:$0xff]
  %v1817 = vld [vmem:[%s1771 + $0x10] sm:$0xff]
  %v1818 = vld [vmem:[%s1771 + $0x18] sm:$0xff]
  %s1819 = sadd.s32 0, 320
  %s1820 = scalar_lea.vmem [#allocation2], %s1819
  %v1821 = vld [vmem:[%s1820] sm:$0xff]
  %v1822 = vld [vmem:[%s1820 + $0x8] sm:$0xff]
  %v1823 = vld [vmem:[%s1820 + $0x10] sm:$0xff]
  %v1824 = vld [vmem:[%s1820 + $0x18] sm:$0xff]
  %v1825 = vmax.f32 %v1815, %v1821
  %v1826 = vmax.f32 %v1816, %v1822
  %v1827 = vmax.f32 %v1817, %v1823
  %v1828 = vmax.f32 %v1818, %v1824
  %s1829 = sadd.s32 0, 352
  %s1830 = scalar_lea.vmem [#allocation2], %s1829
  %v1831 = vld [vmem:[%s1830] sm:$0xff]
  %v1832 = vld [vmem:[%s1830 + $0x8] sm:$0xff]
  %v1833 = vld [vmem:[%s1830 + $0x10] sm:$0xff]
  %v1834 = vld [vmem:[%s1830 + $0x18] sm:$0xff]
  %v1835 = vmax.f32 %v1825, %v1831
  %v1836 = vmax.f32 %v1826, %v1832
  %v1837 = vmax.f32 %v1827, %v1833
  %v1838 = vmax.f32 %v1828, %v1834
  %1839 = vst [vmem:[#allocation3] sm:$0xff] %v1835
  %1840 = vst [vmem:[#allocation3 + $0x8] sm:$0xff] %v1836
  %1841 = vst [vmem:[#allocation3 + $0x10] sm:$0xff] %v1837
  %1842 = vst [vmem:[#allocation3 + $0x18] sm:$0xff] %v1838
  %v1843 = vld [vmem:[#allocation3] ss:$2 sm:$0xff]
  %v1844 = vld [vmem:[%s1547] ss:$2 sm:$0x1f]
  %v1845 = vld [vmem:[%s1549] ss:$2 sm:$0xff]
  %v1846 = vld [vmem:[%s1551] ss:$2 sm:$0x1f]
  %v1847 = vmax.f32 %v1843, %v1845
  %v1848 = vmax.f32 %v1844, %v1846
  %v1851 = vrot.slane %v1845, 7
  %v1852 = vrot.slane %v1846, 7
  %v1853 = vsel %vm548, %v1851, %v1852
  %v1856 = vmax.f32 %v1847, %v1851
  %v1857 = vmax.f32 %v1848, %v1853
  %v1858 = vsel %vm548, %v1847, %v1856
  %v1859 = vsel %vm1565, %v1857, 0.0
  %v1860 = vpack.c.bf16 %v1859, %v1858
  %s1861 = sadd.s32 0, 80
  %v1863 = vunpack.c.l.b16 %v1860
  %v1864 = vunpack.c.h.b16 %v1860
  %v1865 = vpack.c.b16 %v1863, %v1863
  %v1866 = vpack.c.b16 %v1864, %v1864
  %s1869 = sshra.s32 %s1861, 3
  %s1870 = sand.u32 %s1861, 7
  %s1871 = smul.addr %s1869, 4
  %s1872 = scalar_lea.vmem %s3, %s1871
  %1873 = vst [vmem:[%s1872] sm:$0xf] %v1865
  %1874 = vst [vmem:[%s1872 + $0x4] sm:$0xf] %v1866
  %v1875 = vld [vmem:[%s1830] sm:$0xff]
  %v1876 = vld [vmem:[%s1830 + $0x8] sm:$0xff]
  %v1877 = vld [vmem:[%s1830 + $0x10] sm:$0xff]
  %v1878 = vld [vmem:[%s1830 + $0x18] sm:$0xff]
  %s1879 = sadd.s32 0, 384
  %s1880 = scalar_lea.vmem [#allocation2], %s1879
  %v1881 = vld [vmem:[%s1880] sm:$0xff]
  %v1882 = vld [vmem:[%s1880 + $0x8] sm:$0xff]
  %v1883 = vld [vmem:[%s1880 + $0x10] sm:$0xff]
  %v1884 = vld [vmem:[%s1880 + $0x18] sm:$0xff]
  %v1885 = vmax.f32 %v1875, %v1881
  %v1886 = vmax.f32 %v1876, %v1882
  %v1887 = vmax.f32 %v1877, %v1883
  %v1888 = vmax.f32 %v1878, %v1884
  %s1889 = sadd.s32 0, 416
  %s1890 = scalar_lea.vmem [#allocation2], %s1889
  %v1891 = vld [vmem:[%s1890] sm:$0xff]
  %v1892 = vld [vmem:[%s1890 + $0x8] sm:$0xff]
  %v1893 = vld [vmem:[%s1890 + $0x10] sm:$0xff]
  %v1894 = vld [vmem:[%s1890 + $0x18] sm:$0xff]
  %v1895 = vmax.f32 %v1885, %v1891
  %v1896 = vmax.f32 %v1886, %v1892
  %v1897 = vmax.f32 %v1887, %v1893
  %v1898 = vmax.f32 %v1888, %v1894
  %1899 = vst [vmem:[#allocation3] sm:$0xff] %v1895
  %1900 = vst [vmem:[#allocation3 + $0x8] sm:$0xff] %v1896
  %1901 = vst [vmem:[#allocation3 + $0x10] sm:$0xff] %v1897
  %1902 = vst [vmem:[#allocation3 + $0x18] sm:$0xff] %v1898
  %v1903 = vld [vmem:[#allocation3] ss:$2 sm:$0xff]
  %v1904 = vld [vmem:[%s1547] ss:$2 sm:$0x1f]
  %v1905 = vld [vmem:[%s1549] ss:$2 sm:$0xff]
  %v1906 = vld [vmem:[%s1551] ss:$2 sm:$0x1f]
  %v1907 = vmax.f32 %v1903, %v1905
  %v1908 = vmax.f32 %v1904, %v1906
  %v1911 = vrot.slane %v1905, 7
  %v1912 = vrot.slane %v1906, 7
  %v1913 = vsel %vm548, %v1911, %v1912
  %v1916 = vmax.f32 %v1907, %v1911
  %v1917 = vmax.f32 %v1908, %v1913
  %v1918 = vsel %vm548, %v1907, %v1916
  %v1919 = vsel %vm1565, %v1917, 0.0
  %v1920 = vpack.c.bf16 %v1919, %v1918
  %v1922 = vunpack.c.l.b16 %v1920
  %v1923 = vunpack.c.h.b16 %v1920
  %v1924 = vpack.c.b16 %v1922, %v1922
  %v1925 = vpack.c.b16 %v1923, %v1923
  %s1928 = sshra.s32 %s1591, 3
  %s1929 = sand.u32 %s1591, 7
  %s1930 = smul.addr %s1928, 4
  %s1931 = scalar_lea.vmem %s3, %s1930
  %1932 = vst [vmem:[%s1931] sm:$0xf] %v1924
  %1933 = vst [vmem:[%s1931 + $0x4] sm:$0xf] %v1925
  %v1934 = vld [vmem:[%s1890] sm:$0xff]
  %v1935 = vld [vmem:[%s1890 + $0x8] sm:$0xff]
  %v1936 = vld [vmem:[%s1890 + $0x10] sm:$0xff]
  %v1937 = vld [vmem:[%s1890 + $0x18] sm:$0xff]
  %s1938 = sadd.s32 0, 448
  %s1939 = scalar_lea.vmem [#allocation2], %s1938
  %v1940 = vld [vmem:[%s1939] sm:$0xff]
  %v1941 = vld [vmem:[%s1939 + $0x8] sm:$0xff]
  %v1942 = vld [vmem:[%s1939 + $0x10] sm:$0xff]
  %v1943 = vld [vmem:[%s1939 + $0x18] sm:$0xff]
  %v1944 = vmax.f32 %v1934, %v1940
  %v1945 = vmax.f32 %v1935, %v1941
  %v1946 = vmax.f32 %v1936, %v1942
  %v1947 = vmax.f32 %v1937, %v1943
  %s1948 = sadd.s32 0, 480
  %s1949 = scalar_lea.vmem [#allocation2], %s1948
  %v1950 = vld [vmem:[%s1949] sm:$0xff]
  %v1951 = vld [vmem:[%s1949 + $0x8] sm:$0xff]
  %v1952 = vld [vmem:[%s1949 + $0x10] sm:$0xff]
  %v1953 = vld [vmem:[%s1949 + $0x18] sm:$0xff]
  %v1954 = vmax.f32 %v1944, %v1950
  %v1955 = vmax.f32 %v1945, %v1951
  %v1956 = vmax.f32 %v1946, %v1952
  %v1957 = vmax.f32 %v1947, %v1953
  %1958 = vst [vmem:[#allocation3] sm:$0xff] %v1954
  %1959 = vst [vmem:[#allocation3 + $0x8] sm:$0xff] %v1955
  %1960 = vst [vmem:[#allocation3 + $0x10] sm:$0xff] %v1956
  %1961 = vst [vmem:[#allocation3 + $0x18] sm:$0xff] %v1957
  %v1962 = vld [vmem:[#allocation3] ss:$2 sm:$0xff]
  %v1963 = vld [vmem:[%s1547] ss:$2 sm:$0x1f]
  %v1964 = vld [vmem:[%s1549] ss:$2 sm:$0xff]
  %v1965 = vld [vmem:[%s1551] ss:$2 sm:$0x1f]
  %v1966 = vmax.f32 %v1962, %v1964
  %v1967 = vmax.f32 %v1963, %v1965
  %v1970 = vrot.slane %v1964, 7
  %v1971 = vrot.slane %v1965, 7
  %v1972 = vsel %vm548, %v1970, %v1971
  %v1975 = vmax.f32 %v1966, %v1970
  %v1976 = vmax.f32 %v1967, %v1972
  %v1977 = vsel %vm548, %v1966, %v1975
  %v1978 = vsel %vm1565, %v1976, 0.0
  %v1979 = vpack.c.bf16 %v1978, %v1977
  %s1980 = sadd.s32 0, 112
  %v1982 = vunpack.c.l.b16 %v1979
  %v1983 = vunpack.c.h.b16 %v1979
  %v1984 = vpack.c.b16 %v1982, %v1982
  %v1985 = vpack.c.b16 %v1983, %v1983
  %s1988 = sshra.s32 %s1980, 3
  %s1989 = sand.u32 %s1980, 7
  %s1990 = smul.addr %s1988, 4
  %s1991 = scalar_lea.vmem %s3, %s1990
  %1992 = vst [vmem:[%s1991] sm:$0xf] %v1984
  %1993 = vst [vmem:[%s1991 + $0x4] sm:$0xf] %v1985
  %v1994 = vld [vmem:[%s1949] sm:$0xff]
  %v1995 = vld [vmem:[%s1949 + $0x8] sm:$0xff]
  %v1996 = vld [vmem:[%s1949 + $0x10] sm:$0xff]
  %v1997 = vld [vmem:[%s1949 + $0x18] sm:$0xff]
  %s1998 = sadd.s32 0, 512
  %s1999 = scalar_lea.vmem [#allocation2], %s1998
  %v2000 = vld [vmem:[%s1999] sm:$0xff]
  %v2001 = vld [vmem:[%s1999 + $0x8] sm:$0xff]
  %v2002 = vld [vmem:[%s1999 + $0x10] sm:$0xff]
  %v2003 = vld [vmem:[%s1999 + $0x18] sm:$0xff]
  %v2004 = vmax.f32 %v1994, %v2000
  %v2005 = vmax.f32 %v1995, %v2001
  %v2006 = vmax.f32 %v1996, %v2002
  %v2007 = vmax.f32 %v1997, %v2003
  %s2008 = sadd.s32 0, 544
  %s2009 = scalar_lea.vmem [#allocation2], %s2008
  %v2010 = vld [vmem:[%s2009] sm:$0xff]
  %v2011 = vld [vmem:[%s2009 + $0x8] sm:$0xff]
  %v2012 = vld [vmem:[%s2009 + $0x10] sm:$0xff]
  %v2013 = vld [vmem:[%s2009 + $0x18] sm:$0xff]
  %v2014 = vmax.f32 %v2004, %v2010
  %v2015 = vmax.f32 %v2005, %v2011
  %v2016 = vmax.f32 %v2006, %v2012
  %v2017 = vmax.f32 %v2007, %v2013
  %2018 = vst [vmem:[#allocation3] sm:$0xff] %v2014
  %2019 = vst [vmem:[#allocation3 + $0x8] sm:$0xff] %v2015
  %2020 = vst [vmem:[#allocation3 + $0x10] sm:$0xff] %v2016
  %2021 = vst [vmem:[#allocation3 + $0x18] sm:$0xff] %v2017
  %v2022 = vld [vmem:[#allocation3] ss:$2 sm:$0xff]
  %v2023 = vld [vmem:[%s1547] ss:$2 sm:$0x1f]
  %v2024 = vld [vmem:[%s1549] ss:$2 sm:$0xff]
  %v2025 = vld [vmem:[%s1551] ss:$2 sm:$0x1f]
  %v2026 = vmax.f32 %v2022, %v2024
  %v2027 = vmax.f32 %v2023, %v2025
  %v2030 = vrot.slane %v2024, 7
  %v2031 = vrot.slane %v2025, 7
  %v2032 = vsel %vm548, %v2030, %v2031
  %v2035 = vmax.f32 %v2026, %v2030
  %v2036 = vmax.f32 %v2027, %v2032
  %v2037 = vsel %vm548, %v2026, %v2035
  %v2038 = vsel %vm1565, %v2036, 0.0
  %v2039 = vpack.c.bf16 %v2038, %v2037
  %v2041 = vunpack.c.l.b16 %v2039
  %v2042 = vunpack.c.h.b16 %v2039
  %v2043 = vpack.c.b16 %v2041, %v2041
  %v2044 = vpack.c.b16 %v2042, %v2042
  %s2047 = sshra.s32 %s1641, 3
  %s2048 = sand.u32 %s1641, 7
  %s2049 = smul.addr %s2047, 4
  %s2050 = scalar_lea.vmem %s3, %s2049
  %2051 = vst [vmem:[%s2050] sm:$0xf] %v2043
  %2052 = vst [vmem:[%s2050 + $0x4] sm:$0xf] %v2044
  %v2053 = vld [vmem:[%s2009] sm:$0xff]
  %v2054 = vld [vmem:[%s2009 + $0x8] sm:$0xff]
  %v2055 = vld [vmem:[%s2009 + $0x10] sm:$0xff]
  %v2056 = vld [vmem:[%s2009 + $0x18] sm:$0xff]
  %s2057 = sadd.s32 0, 576
  %s2058 = scalar_lea.vmem [#allocation2], %s2057
  %v2059 = vld [vmem:[%s2058] sm:$0xff]
  %v2060 = vld [vmem:[%s2058 + $0x8] sm:$0xff]
  %v2061 = vld [vmem:[%s2058 + $0x10] sm:$0xff]
  %v2062 = vld [vmem:[%s2058 + $0x18] sm:$0xff]
  %v2063 = vmax.f32 %v2053, %v2059
  %v2064 = vmax.f32 %v2054, %v2060
  %v2065 = vmax.f32 %v2055, %v2061
  %v2066 = vmax.f32 %v2056, %v2062
  %s2067 = sadd.s32 0, 608
  %s2068 = scalar_lea.vmem [#allocation2], %s2067
  %v2069 = vld [vmem:[%s2068] sm:$0xff]
  %v2070 = vld [vmem:[%s2068 + $0x8] sm:$0xff]
  %v2071 = vld [vmem:[%s2068 + $0x10] sm:$0xff]
  %v2072 = vld [vmem:[%s2068 + $0x18] sm:$0xff]
  %v2073 = vmax.f32 %v2063, %v2069
  %v2074 = vmax.f32 %v2064, %v2070
  %v2075 = vmax.f32 %v2065, %v2071
  %v2076 = vmax.f32 %v2066, %v2072
  %2077 = vst [vmem:[#allocation3] sm:$0xff] %v2073
  %2078 = vst [vmem:[#allocation3 + $0x8] sm:$0xff] %v2074
  %2079 = vst [vmem:[#allocation3 + $0x10] sm:$0xff] %v2075
  %2080 = vst [vmem:[#allocation3 + $0x18] sm:$0xff] %v2076
  %v2081 = vld [vmem:[#allocation3] ss:$2 sm:$0xff]
  %v2082 = vld [vmem:[%s1547] ss:$2 sm:$0x1f]
  %v2083 = vld [vmem:[%s1549] ss:$2 sm:$0xff]
  %v2084 = vld [vmem:[%s1551] ss:$2 sm:$0x1f]
  %v2085 = vmax.f32 %v2081, %v2083
  %v2086 = vmax.f32 %v2082, %v2084
  %v2089 = vrot.slane %v2083, 7
  %v2090 = vrot.slane %v2084, 7
  %v2091 = vsel %vm548, %v2089, %v2090
  %v2094 = vmax.f32 %v2085, %v2089
  %v2095 = vmax.f32 %v2086, %v2091
  %v2096 = vsel %vm548, %v2085, %v2094
  %v2097 = vsel %vm1565, %v2095, 0.0
  %v2098 = vpack.c.bf16 %v2097, %v2096
  %s2099 = sadd.s32 0, 144
  %v2101 = vunpack.c.l.b16 %v2098
  %v2102 = vunpack.c.h.b16 %v2098
  %v2103 = vpack.c.b16 %v2101, %v2101
  %v2104 = vpack.c.b16 %v2102, %v2102
  %s2107 = sshra.s32 %s2099, 3
  %s2108 = sand.u32 %s2099, 7
  %s2109 = smul.addr %s2107, 4
  %s2110 = scalar_lea.vmem %s3, %s2109
  %2111 = vst [vmem:[%s2110] sm:$0xf] %v2103
  %2112 = vst [vmem:[%s2110 + $0x4] sm:$0xf] %v2104
  %v2113 = vld [vmem:[%s2068] sm:$0xff]
  %v2114 = vld [vmem:[%s2068 + $0x8] sm:$0xff]
  %v2115 = vld [vmem:[%s2068 + $0x10] sm:$0xff]
  %v2116 = vld [vmem:[%s2068 + $0x18] sm:$0xff]
  %s2117 = sadd.s32 0, 640
  %s2118 = scalar_lea.vmem [#allocation2], %s2117
  %v2119 = vld [vmem:[%s2118] sm:$0xff]
  %v2120 = vld [vmem:[%s2118 + $0x8] sm:$0xff]
  %v2121 = vld [vmem:[%s2118 + $0x10] sm:$0xff]
  %v2122 = vld [vmem:[%s2118 + $0x18] sm:$0xff]
  %v2123 = vmax.f32 %v2113, %v2119
  %v2124 = vmax.f32 %v2114, %v2120
  %v2125 = vmax.f32 %v2115, %v2121
  %v2126 = vmax.f32 %v2116, %v2122
  %s2127 = sadd.s32 0, 672
  %s2128 = scalar_lea.vmem [#allocation2], %s2127
  %v2129 = vld [vmem:[%s2128] sm:$0xff]
  %v2130 = vld [vmem:[%s2128 + $0x8] sm:$0xff]
  %v2131 = vld [vmem:[%s2128 + $0x10] sm:$0xff]
  %v2132 = vld [vmem:[%s2128 + $0x18] sm:$0xff]
  %v2133 = vmax.f32 %v2123, %v2129
  %v2134 = vmax.f32 %v2124, %v2130
  %v2135 = vmax.f32 %v2125, %v2131
  %v2136 = vmax.f32 %v2126, %v2132
  %2137 = vst [vmem:[#allocation3] sm:$0xff] %v2133
  %2138 = vst [vmem:[#allocation3 + $0x8] sm:$0xff] %v2134
  %2139 = vst [vmem:[#allocation3 + $0x10] sm:$0xff] %v2135
  %2140 = vst [vmem:[#allocation3 + $0x18] sm:$0xff] %v2136
  %v2141 = vld [vmem:[#allocation3] ss:$2 sm:$0xff]
  %v2142 = vld [vmem:[%s1547] ss:$2 sm:$0x1f]
  %v2143 = vld [vmem:[%s1549] ss:$2 sm:$0xff]
  %v2144 = vld [vmem:[%s1551] ss:$2 sm:$0x1f]
  %v2145 = vmax.f32 %v2141, %v2143
  %v2146 = vmax.f32 %v2142, %v2144
  %v2149 = vrot.slane %v2143, 7
  %v2150 = vrot.slane %v2144, 7
  %v2151 = vsel %vm548, %v2149, %v2150
  %v2154 = vmax.f32 %v2145, %v2149
  %v2155 = vmax.f32 %v2146, %v2151
  %v2156 = vsel %vm548, %v2145, %v2154
  %v2157 = vsel %vm1565, %v2155, 0.0
  %v2158 = vpack.c.bf16 %v2157, %v2156
  %v2160 = vunpack.c.l.b16 %v2158
  %v2161 = vunpack.c.h.b16 %v2158
  %v2162 = vpack.c.b16 %v2160, %v2160
  %v2163 = vpack.c.b16 %v2161, %v2161
  %s2166 = sshra.s32 %s1651, 3
  %s2167 = sand.u32 %s1651, 7
  %s2168 = smul.addr %s2166, 4
  %s2169 = scalar_lea.vmem %s3, %s2168
  %2170 = vst [vmem:[%s2169] sm:$0xf] %v2162
  %2171 = vst [vmem:[%s2169 + $0x4] sm:$0xf] %v2163
  %v2172 = vld [vmem:[%s2128] sm:$0xff]
  %v2173 = vld [vmem:[%s2128 + $0x8] sm:$0xff]
  %v2174 = vld [vmem:[%s2128 + $0x10] sm:$0xff]
  %v2175 = vld [vmem:[%s2128 + $0x18] sm:$0xff]
  %s2176 = sadd.s32 0, 704
  %s2177 = scalar_lea.vmem [#allocation2], %s2176
  %v2178 = vld [vmem:[%s2177] sm:$0xff]
  %v2179 = vld [vmem:[%s2177 + $0x8] sm:$0xff]
  %v2180 = vld [vmem:[%s2177 + $0x10] sm:$0xff]
  %v2181 = vld [vmem:[%s2177 + $0x18] sm:$0xff]
  %v2182 = vmax.f32 %v2172, %v2178
  %v2183 = vmax.f32 %v2173, %v2179
  %v2184 = vmax.f32 %v2174, %v2180
  %v2185 = vmax.f32 %v2175, %v2181
  %s2186 = sadd.s32 0, 736
  %s2187 = scalar_lea.vmem [#allocation2], %s2186
  %v2188 = vld [vmem:[%s2187] sm:$0xff]
  %v2189 = vld [vmem:[%s2187 + $0x8] sm:$0xff]
  %v2190 = vld [vmem:[%s2187 + $0x10] sm:$0xff]
  %v2191 = vld [vmem:[%s2187 + $0x18] sm:$0xff]
  %v2192 = vmax.f32 %v2182, %v2188
  %v2193 = vmax.f32 %v2183, %v2189
  %v2194 = vmax.f32 %v2184, %v2190
  %v2195 = vmax.f32 %v2185, %v2191
  %2196 = vst [vmem:[#allocation3] sm:$0xff] %v2192
  %2197 = vst [vmem:[#allocation3 + $0x8] sm:$0xff] %v2193
  %2198 = vst [vmem:[#allocation3 + $0x10] sm:$0xff] %v2194
  %2199 = vst [vmem:[#allocation3 + $0x18] sm:$0xff] %v2195
  %v2200 = vld [vmem:[#allocation3] ss:$2 sm:$0xff]
  %v2201 = vld [vmem:[%s1547] ss:$2 sm:$0x1f]
  %v2202 = vld [vmem:[%s1549] ss:$2 sm:$0xff]
  %v2203 = vld [vmem:[%s1551] ss:$2 sm:$0x1f]
  %v2204 = vmax.f32 %v2200, %v2202
  %v2205 = vmax.f32 %v2201, %v2203
  %v2208 = vrot.slane %v2202, 7
  %v2209 = vrot.slane %v2203, 7
  %v2210 = vsel %vm548, %v2208, %v2209
  %v2213 = vmax.f32 %v2204, %v2208
  %v2214 = vmax.f32 %v2205, %v2210
  %v2215 = vsel %vm548, %v2204, %v2213
  %v2216 = vsel %vm1565, %v2214, 0.0
  %v2217 = vpack.c.bf16 %v2216, %v2215
  %s2218 = sadd.s32 0, 176
  %v2220 = vunpack.c.l.b16 %v2217
  %v2221 = vunpack.c.h.b16 %v2217
  %v2222 = vpack.c.b16 %v2220, %v2220
  %v2223 = vpack.c.b16 %v2221, %v2221
  %s2226 = sshra.s32 %s2218, 3
  %s2227 = sand.u32 %s2218, 7
  %s2228 = smul.addr %s2226, 4
  %s2229 = scalar_lea.vmem %s3, %s2228
  %2230 = vst [vmem:[%s2229] sm:$0xf] %v2222
  %2231 = vst [vmem:[%s2229 + $0x4] sm:$0xf] %v2223
  %v2232 = vld [vmem:[%s2187] sm:$0xff]
  %v2233 = vld [vmem:[%s2187 + $0x8] sm:$0xff]
  %v2234 = vld [vmem:[%s2187 + $0x10] sm:$0xff]
  %v2235 = vld [vmem:[%s2187 + $0x18] sm:$0xff]
  %s2236 = sadd.s32 0, 768
  %s2237 = scalar_lea.vmem [#allocation2], %s2236
  %v2238 = vld [vmem:[%s2237] sm:$0xff]
  %v2239 = vld [vmem:[%s2237 + $0x8] sm:$0xff]
  %v2240 = vld [vmem:[%s2237 + $0x10] sm:$0xff]
  %v2241 = vld [vmem:[%s2237 + $0x18] sm:$0xff]
  %v2242 = vmax.f32 %v2232, %v2238
  %v2243 = vmax.f32 %v2233, %v2239
  %v2244 = vmax.f32 %v2234, %v2240
  %v2245 = vmax.f32 %v2235, %v2241
  %s2246 = sadd.s32 0, 800
  %s2247 = scalar_lea.vmem [#allocation2], %s2246
  %v2248 = vld [vmem:[%s2247] sm:$0xff]
  %v2249 = vld [vmem:[%s2247 + $0x8] sm:$0xff]
  %v2250 = vld [vmem:[%s2247 + $0x10] sm:$0xff]
  %v2251 = vld [vmem:[%s2247 + $0x18] sm:$0xff]
  %v2252 = vmax.f32 %v2242, %v2248
  %v2253 = vmax.f32 %v2243, %v2249
  %v2254 = vmax.f32 %v2244, %v2250
  %v2255 = vmax.f32 %v2245, %v2251
  %2256 = vst [vmem:[#allocation3] sm:$0xff] %v2252
  %2257 = vst [vmem:[#allocation3 + $0x8] sm:$0xff] %v2253
  %2258 = vst [vmem:[#allocation3 + $0x10] sm:$0xff] %v2254
  %2259 = vst [vmem:[#allocation3 + $0x18] sm:$0xff] %v2255
  %v2260 = vld [vmem:[#allocation3] ss:$2 sm:$0xff]
  %v2261 = vld [vmem:[%s1547] ss:$2 sm:$0x1f]
  %v2262 = vld [vmem:[%s1549] ss:$2 sm:$0xff]
  %v2263 = vld [vmem:[%s1551] ss:$2 sm:$0x1f]
  %v2264 = vmax.f32 %v2260, %v2262
  %v2265 = vmax.f32 %v2261, %v2263
  %v2268 = vrot.slane %v2262, 7
  %v2269 = vrot.slane %v2263, 7
  %v2270 = vsel %vm548, %v2268, %v2269
  %v2273 = vmax.f32 %v2264, %v2268
  %v2274 = vmax.f32 %v2265, %v2270
  %v2275 = vsel %vm548, %v2264, %v2273
  %v2276 = vsel %vm1565, %v2274, 0.0
  %v2277 = vpack.c.bf16 %v2276, %v2275
  %v2279 = vunpack.c.l.b16 %v2277
  %v2280 = vunpack.c.h.b16 %v2277
  %v2281 = vpack.c.b16 %v2279, %v2279
  %v2282 = vpack.c.b16 %v2280, %v2280
  %s2285 = sshra.s32 %s1700, 3
  %s2286 = sand.u32 %s1700, 7
  %s2287 = smul.addr %s2285, 4
  %s2288 = scalar_lea.vmem %s3, %s2287
  %2289 = vst [vmem:[%s2288] sm:$0xf] %v2281
  %2290 = vst [vmem:[%s2288 + $0x4] sm:$0xf] %v2282
  %s2291 = sadd.s32 0, 208
  %s2292 = sshra.s32 %s2291, 3
  %s2293 = sand.u32 %s2291, 7
  %s2294 = smul.addr %s2292, 4
  %s2295 = scalar_lea.vmem %s3, %s2294
  %2296 = vst [vmem:[%s2295] sm:$0xf] 0
  %2297 = vst [vmem:[%s2295 + $0x4] sm:$0xf] 0
  // Predicated region
  $region14: #{conv_net_forward.3} parent=0 // pred_check
    _
  $region15: #{conv_net_forward.3} parent=0 // pred_check_branch
    %2299 = sbr.rel (0) target = $region17
  $region16: #{conv_net_forward.3} parent=0 // pred_region
    _
  $region17: #{conv_net_forward.3} parent=0 // pred_fallthru
    _
  // Predicated region
  $region18: #{conv_net_forward.3} parent=0 // pred_check
    _
  $region19: #{conv_net_forward.3} parent=0 // pred_check_branch
    %2301 = sbr.rel (0) target = $region21
  $region20: #{conv_net_forward.3} parent=0 // pred_region
    _
  $region21: #{conv_net_forward.3} parent=0 // pred_fallthru
    _

// kernel: conv_net_forward.5
$region0: #{conv_net_forward.5}
  #allocation0 [shape = 'u32[]', space=smem, size = 0x4, offset = 0x4, fixed_abs, tag = 'smem constant byte address 0x4 - core index']
  #allocation1 [shape = 'u32[144,128]{1,0:T(1,128)}', space=vmem, size = 0x12000, scoped, tag = 'internal scratch']
  %s0 = inlined_call_operand.vmem [shape: bf16[2,2304], index: 0, kind: input, shape index: {}]
  %s1 = inlined_call_operand.vmem [shape: bf16[2304,64], index: 1, kind: input, shape index: {}]
  %s2 = inlined_call_operand.vmem [shape: f32[1,64], index: 2, kind: input, shape index: {}]
  %s3 = inlined_call_operand.vmem [shape: bf16[64,10], index: 3, kind: input, shape index: {}]
  %s4 = inlined_call_operand.vmem [shape: f32[1,10], index: 4, kind: input, shape index: {}]
  %s5 = inlined_call_operand.hbm [shape: f32[2,10], index: 5, kind: output, shape index: {}]
  %s6 = sld [smem:[#allocation0]]
  $region30: #{conv_net_forward.5} parent=0
    _
  %s8 = ssub.s32 1, %s6
  %s9 = scalar_select 0, %s8, %s6
  $region1: #{conv_net_forward.5} parent=0
    #allocation2 [shape = 'u8[1024]{0}', space=vmem, size = 0x400, scoped, tag = 'output window, operand 0, single buffered']
    #allocation3 [shape = 's32[1]{0}', space=sflag, size = 0x4, scoped, tag = 'scoped memory for conv_net_forward.5']
    %10 = vsyncpa [#allocation3], 0
    // Predicated region
    $region2: #{conv_net_forward.5} parent=1 // pred_check
      _
    $region3: #{conv_net_forward.5} parent=1 // pred_check_branch
      %12 = sbr.rel (0) target = $region5
    $region4: #{conv_net_forward.5} parent=1 // pred_region
      _
    $region5: #{conv_net_forward.5} parent=1 // pred_fallthru
      _
    // Predicated region
    $region6: #{conv_net_forward.5} parent=1 // pred_check
      _
    $region7: #{conv_net_forward.5} parent=1 // pred_check_branch
      %14 = sbr.rel (0) target = $region9
    $region8: #{conv_net_forward.5} parent=1 // pred_region
      _
    $region9: #{conv_net_forward.5} parent=1 // pred_fallthru
      _
    // Predicated region
    $region10: #{conv_net_forward.5} parent=1 // pred_check
      _
    $region11: #{conv_net_forward.5} parent=1 // pred_check_branch
      %16 = sbr.rel (0) target = $region13
    $region12: #{conv_net_forward.5} parent=1 // pred_region
      _
    $region13: #{conv_net_forward.5} parent=1 // pred_fallthru
      _
    // Predicated region
    $region14: #{conv_net_forward.5} parent=1 // pred_check
      _
    $region15: #{conv_net_forward.5} parent=1 // pred_check_branch
      %18 = sbr.rel (0) target = $region17
    $region16: #{conv_net_forward.5} parent=1 // pred_region
      _
    $region17: #{conv_net_forward.5} parent=1 // pred_fallthru
      _
    // Predicated region
    $region18: #{conv_net_forward.5} parent=1 // pred_check
      _
    $region19: #{conv_net_forward.5} parent=1 // pred_check_branch
      %20 = sbr.rel (0) target = $region21
    $region20: #{conv_net_forward.5} parent=1 // pred_region
      _
    $region21: #{conv_net_forward.5} parent=1 // pred_fallthru
      _
    %v22 = vld [vmem:[%s0] sm:$0xff]
    %v23 = vld [vmem:[%s0 + $0x8] sm:$0xff]
    %v24 = vld [vmem:[%s0 + $0x10] sm:$0x3]
    %v25 = vld [vmem:[%s1] sm:$0xf]
    %v26 = vld [vmem:[%s1 + $0x4] sm:$0xf]
    %v27 = vld [vmem:[%s1 + $0x8] sm:$0xf]
    %v28 = vld [vmem:[%s1 + $0xc] sm:$0xf]
    %v29 = vld [vmem:[%s1 + $0x10] sm:$0xf]
    %v30 = vld [vmem:[%s1 + $0x14] sm:$0xf]
    %v31 = vld [vmem:[%s1 + $0x18] sm:$0xf]
    %v32 = vld [vmem:[%s1 + $0x1c] sm:$0xf]
    %v33 = vld [vmem:[%s1 + $0x20] sm:$0xf]
    %v34 = vld [vmem:[%s1 + $0x24] sm:$0xf]
    %v35 = vld [vmem:[%s1 + $0x28] sm:$0xf]
    %v36 = vld [vmem:[%s1 + $0x2c] sm:$0xf]
    %v37 = vld [vmem:[%s1 + $0x30] sm:$0xf]
    %v38 = vld [vmem:[%s1 + $0x34] sm:$0xf]
    %v39 = vld [vmem:[%s1 + $0x38] sm:$0xf]
    %v40 = vld [vmem:[%s1 + $0x3c] sm:$0xf]
    %v41 = vld [vmem:[%s1 + $0x40] sm:$0xf]
    %v42 = vld [vmem:[%s1 + $0x44] sm:$0xf]
    %v43 = vld [vmem:[%s1 + $0x48] sm:$0xf]
    %v44 = vld [vmem:[%s1 + $0x4c] sm:$0xf]
    %v45 = vld [vmem:[%s1 + $0x50] sm:$0xf]
    %v46 = vld [vmem:[%s1 + $0x54] sm:$0xf]
    %v47 = vld [vmem:[%s1 + $0x58] sm:$0xf]
    %v48 = vld [vmem:[%s1 + $0x5c] sm:$0xf]
    %v49 = vld [vmem:[%s1 + $0x60] sm:$0xf]
    %v50 = vld [vmem:[%s1 + $0x64] sm:$0xf]
    %v51 = vld [vmem:[%s1 + $0x68] sm:$0xf]
    %v52 = vld [vmem:[%s1 + $0x6c] sm:$0xf]
    %v53 = vld [vmem:[%s1 + $0x70] sm:$0xf]
    %v54 = vld [vmem:[%s1 + $0x74] sm:$0xf]
    %v55 = vld [vmem:[%s1 + $0x78] sm:$0xf]
    %v56 = vld [vmem:[%s1 + $0x7c] sm:$0xf]
    %v57 = vld [vmem:[%s1 + $0x80] sm:$0xf]
    %v58 = vld [vmem:[%s1 + $0x84] sm:$0xf]
    %v59 = vld [vmem:[%s1 + $0x88] sm:$0xf]
    %v60 = vld [vmem:[%s1 + $0x8c] sm:$0xf]
    %v61 = vld [vmem:[%s1 + $0x90] sm:$0xf]
    %v62 = vld [vmem:[%s1 + $0x94] sm:$0xf]
    %v63 = vld [vmem:[%s1 + $0x98] sm:$0xf]
    %v64 = vld [vmem:[%s1 + $0x9c] sm:$0xf]
    %v65 = vld [vmem:[%s1 + $0xa0] sm:$0xf]
    %v66 = vld [vmem:[%s1 + $0xa4] sm:$0xf]
    %v67 = vld [vmem:[%s1 + $0xa8] sm:$0xf]
    %v68 = vld [vmem:[%s1 + $0xac] sm:$0xf]
    %v69 = vld [vmem:[%s1 + $0xb0] sm:$0xf]
    %v70 = vld [vmem:[%s1 + $0xb4] sm:$0xf]
    %v71 = vld [vmem:[%s1 + $0xb8] sm:$0xf]
    %v72 = vld [vmem:[%s1 + $0xbc] sm:$0xf]
    %v73 = vld [vmem:[%s1 + $0xc0] sm:$0xf]
    %v74 = vld [vmem:[%s1 + $0xc4] sm:$0xf]
    %v75 = vld [vmem:[%s1 + $0xc8] sm:$0xf]
    %v76 = vld [vmem:[%s1 + $0xcc] sm:$0xf]
    %v77 = vld [vmem:[%s1 + $0xd0] sm:$0xf]
    %v78 = vld [vmem:[%s1 + $0xd4] sm:$0xf]
    %v79 = vld [vmem:[%s1 + $0xd8] sm:$0xf]
    %v80 = vld [vmem:[%s1 + $0xdc] sm:$0xf]
    %v81 = vld [vmem:[%s1 + $0xe0] sm:$0xf]
    %v82 = vld [vmem:[%s1 + $0xe4] sm:$0xf]
    %v83 = vld [vmem:[%s1 + $0xe8] sm:$0xf]
    %v84 = vld [vmem:[%s1 + $0xec] sm:$0xf]
    %v85 = vld [vmem:[%s1 + $0xf0] sm:$0xf]
    %v86 = vld [vmem:[%s1 + $0xf4] sm:$0xf]
    %v87 = vld [vmem:[%s1 + $0xf8] sm:$0xf]
    %v88 = vld [vmem:[%s1 + $0xfc] sm:$0xf]
    %v89 = vld [vmem:[%s1 + $0x100] sm:$0xf]
    %v90 = vld [vmem:[%s1 + $0x104] sm:$0xf]
    %v91 = vld [vmem:[%s1 + $0x108] sm:$0xf]
    %v92 = vld [vmem:[%s1 + $0x10c] sm:$0xf]
    %v93 = vld [vmem:[%s1 + $0x110] sm:$0xf]
    %v94 = vld [vmem:[%s1 + $0x114] sm:$0xf]
    %v95 = vld [vmem:[%s1 + $0x118] sm:$0xf]
    %v96 = vld [vmem:[%s1 + $0x11c] sm:$0xf]
    %v97 = vld [vmem:[%s1 + $0x120] sm:$0xf]
    %v98 = vld [vmem:[%s1 + $0x124] sm:$0xf]
    %v99 = vld [vmem:[%s1 + $0x128] sm:$0xf]
    %v100 = vld [vmem:[%s1 + $0x12c] sm:$0xf]
    %v101 = vld [vmem:[%s1 + $0x130] sm:$0xf]
    %v102 = vld [vmem:[%s1 + $0x134] sm:$0xf]
    %v103 = vld [vmem:[%s1 + $0x138] sm:$0xf]
    %v104 = vld [vmem:[%s1 + $0x13c] sm:$0xf]
    %v105 = vld [vmem:[%s1 + $0x140] sm:$0xf]
    %v106 = vld [vmem:[%s1 + $0x144] sm:$0xf]
    %v107 = vld [vmem:[%s1 + $0x148] sm:$0xf]
    %v108 = vld [vmem:[%s1 + $0x14c] sm:$0xf]
    %v109 = vld [vmem:[%s1 + $0x150] sm:$0xf]
    %v110 = vld [vmem:[%s1 + $0x154] sm:$0xf]
    %v111 = vld [vmem:[%s1 + $0x158] sm:$0xf]
    %v112 = vld [vmem:[%s1 + $0x15c] sm:$0xf]
    %v113 = vld [vmem:[%s1 + $0x160] sm:$0xf]
    %v114 = vld [vmem:[%s1 + $0x164] sm:$0xf]
    %v115 = vld [vmem:[%s1 + $0x168] sm:$0xf]
    %v116 = vld [vmem:[%s1 + $0x16c] sm:$0xf]
    %v117 = vld [vmem:[%s1 + $0x170] sm:$0xf]
    %v118 = vld [vmem:[%s1 + $0x174] sm:$0xf]
    %v119 = vld [vmem:[%s1 + $0x178] sm:$0xf]
    %v120 = vld [vmem:[%s1 + $0x17c] sm:$0xf]
    %v121 = vld [vmem:[%s1 + $0x180] sm:$0xf]
    %v122 = vld [vmem:[%s1 + $0x184] sm:$0xf]
    %v123 = vld [vmem:[%s1 + $0x188] sm:$0xf]
    %v124 = vld [vmem:[%s1 + $0x18c] sm:$0xf]
    %v125 = vld [vmem:[%s1 + $0x190] sm:$0xf]
    %v126 = vld [vmem:[%s1 + $0x194] sm:$0xf]
    %v127 = vld [vmem:[%s1 + $0x198] sm:$0xf]
    %v128 = vld [vmem:[%s1 + $0x19c] sm:$0xf]
    %v129 = vld [vmem:[%s1 + $0x1a0] sm:$0xf]
    %v130 = vld [vmem:[%s1 + $0x1a4] sm:$0xf]
    %v131 = vld [vmem:[%s1 + $0x1a8] sm:$0xf]
    %v132 = vld [vmem:[%s1 + $0x1ac] sm:$0xf]
    %v133 = vld [vmem:[%s1 + $0x1b0] sm:$0xf]
    %v134 = vld [vmem:[%s1 + $0x1b4] sm:$0xf]
    %v135 = vld [vmem:[%s1 + $0x1b8] sm:$0xf]
    %v136 = vld [vmem:[%s1 + $0x1bc] sm:$0xf]
    %v137 = vld [vmem:[%s1 + $0x1c0] sm:$0xf]
    %v138 = vld [vmem:[%s1 + $0x1c4] sm:$0xf]
    %v139 = vld [vmem:[%s1 + $0x1c8] sm:$0xf]
    %v140 = vld [vmem:[%s1 + $0x1cc] sm:$0xf]
    %v141 = vld [vmem:[%s1 + $0x1d0] sm:$0xf]
    %v142 = vld [vmem:[%s1 + $0x1d4] sm:$0xf]
    %v143 = vld [vmem:[%s1 + $0x1d8] sm:$0xf]
    %v144 = vld [vmem:[%s1 + $0x1dc] sm:$0xf]
    %v145 = vld [vmem:[%s1 + $0x1e0] sm:$0xf]
    %v146 = vld [vmem:[%s1 + $0x1e4] sm:$0xf]
    %v147 = vld [vmem:[%s1 + $0x1e8] sm:$0xf]
    %v148 = vld [vmem:[%s1 + $0x1ec] sm:$0xf]
    %v149 = vld [vmem:[%s1 + $0x1f0] sm:$0xf]
    %v150 = vld [vmem:[%s1 + $0x1f4] sm:$0xf]
    %v151 = vld [vmem:[%s1 + $0x1f8] sm:$0xf]
    %v152 = vld [vmem:[%s1 + $0x1fc] sm:$0xf]
    %v153 = vld [vmem:[%s1 + $0x200] sm:$0xf]
    %v154 = vld [vmem:[%s1 + $0x204] sm:$0xf]
    %v155 = vld [vmem:[%s1 + $0x208] sm:$0xf]
    %v156 = vld [vmem:[%s1 + $0x20c] sm:$0xf]
    %v157 = vld [vmem:[%s1 + $0x210] sm:$0xf]
    %v158 = vld [vmem:[%s1 + $0x214] sm:$0xf]
    %v159 = vld [vmem:[%s1 + $0x218] sm:$0xf]
    %v160 = vld [vmem:[%s1 + $0x21c] sm:$0xf]
    %v161 = vld [vmem:[%s1 + $0x220] sm:$0xf]
    %v162 = vld [vmem:[%s1 + $0x224] sm:$0xf]
    %v163 = vld [vmem:[%s1 + $0x228] sm:$0xf]
    %v164 = vld [vmem:[%s1 + $0x22c] sm:$0xf]
    %v165 = vld [vmem:[%s1 + $0x230] sm:$0xf]
    %v166 = vld [vmem:[%s1 + $0x234] sm:$0xf]
    %v167 = vld [vmem:[%s1 + $0x238] sm:$0xf]
    %v168 = vld [vmem:[%s1 + $0x23c] sm:$0xf]
    %v169 = vld [vmem:[%s1 + $0x240] sm:$0xf]
    %v170 = vld [vmem:[%s1 + $0x244] sm:$0xf]
    %v171 = vld [vmem:[%s1 + $0x248] sm:$0xf]
    %v172 = vld [vmem:[%s1 + $0x24c] sm:$0xf]
    %v173 = vld [vmem:[%s1 + $0x250] sm:$0xf]
    %v174 = vld [vmem:[%s1 + $0x254] sm:$0xf]
    %v175 = vld [vmem:[%s1 + $0x258] sm:$0xf]
    %v176 = vld [vmem:[%s1 + $0x25c] sm:$0xf]
    %v177 = vld [vmem:[%s1 + $0x260] sm:$0xf]
    %v178 = vld [vmem:[%s1 + $0x264] sm:$0xf]
    %v179 = vld [vmem:[%s1 + $0x268] sm:$0xf]
    %v180 = vld [vmem:[%s1 + $0x26c] sm:$0xf]
    %v181 = vld [vmem:[%s1 + $0x270] sm:$0xf]
    %v182 = vld [vmem:[%s1 + $0x274] sm:$0xf]
    %v183 = vld [vmem:[%s1 + $0x278] sm:$0xf]
    %v184 = vld [vmem:[%s1 + $0x27c] sm:$0xf]
    %v185 = vld [vmem:[%s1 + $0x280] sm:$0xf]
    %v186 = vld [vmem:[%s1 + $0x284] sm:$0xf]
    %v187 = vld [vmem:[%s1 + $0x288] sm:$0xf]
    %v188 = vld [vmem:[%s1 + $0x28c] sm:$0xf]
    %v189 = vld [vmem:[%s1 + $0x290] sm:$0xf]
    %v190 = vld [vmem:[%s1 + $0x294] sm:$0xf]
    %v191 = vld [vmem:[%s1 + $0x298] sm:$0xf]
    %v192 = vld [vmem:[%s1 + $0x29c] sm:$0xf]
    %v193 = vld [vmem:[%s1 + $0x2a0] sm:$0xf]
    %v194 = vld [vmem:[%s1 + $0x2a4] sm:$0xf]
    %v195 = vld [vmem:[%s1 + $0x2a8] sm:$0xf]
    %v196 = vld [vmem:[%s1 + $0x2ac] sm:$0xf]
    %v197 = vld [vmem:[%s1 + $0x2b0] sm:$0xf]
    %v198 = vld [vmem:[%s1 + $0x2b4] sm:$0xf]
    %v199 = vld [vmem:[%s1 + $0x2b8] sm:$0xf]
    %v200 = vld [vmem:[%s1 + $0x2bc] sm:$0xf]
    %v201 = vld [vmem:[%s1 + $0x2c0] sm:$0xf]
    %v202 = vld [vmem:[%s1 + $0x2c4] sm:$0xf]
    %v203 = vld [vmem:[%s1 + $0x2c8] sm:$0xf]
    %v204 = vld [vmem:[%s1 + $0x2cc] sm:$0xf]
    %v205 = vld [vmem:[%s1 + $0x2d0] sm:$0xf]
    %v206 = vld [vmem:[%s1 + $0x2d4] sm:$0xf]
    %v207 = vld [vmem:[%s1 + $0x2d8] sm:$0xf]
    %v208 = vld [vmem:[%s1 + $0x2dc] sm:$0xf]
    %v209 = vld [vmem:[%s1 + $0x2e0] sm:$0xf]
    %v210 = vld [vmem:[%s1 + $0x2e4] sm:$0xf]
    %v211 = vld [vmem:[%s1 + $0x2e8] sm:$0xf]
    %v212 = vld [vmem:[%s1 + $0x2ec] sm:$0xf]
    %v213 = vld [vmem:[%s1 + $0x2f0] sm:$0xf]
    %v214 = vld [vmem:[%s1 + $0x2f4] sm:$0xf]
    %v215 = vld [vmem:[%s1 + $0x2f8] sm:$0xf]
    %v216 = vld [vmem:[%s1 + $0x2fc] sm:$0xf]
    %v217 = vld [vmem:[%s1 + $0x300] sm:$0xf]
    %v218 = vld [vmem:[%s1 + $0x304] sm:$0xf]
    %v219 = vld [vmem:[%s1 + $0x308] sm:$0xf]
    %v220 = vld [vmem:[%s1 + $0x30c] sm:$0xf]
    %v221 = vld [vmem:[%s1 + $0x310] sm:$0xf]
    %v222 = vld [vmem:[%s1 + $0x314] sm:$0xf]
    %v223 = vld [vmem:[%s1 + $0x318] sm:$0xf]
    %v224 = vld [vmem:[%s1 + $0x31c] sm:$0xf]
    %v225 = vld [vmem:[%s1 + $0x320] sm:$0xf]
    %v226 = vld [vmem:[%s1 + $0x324] sm:$0xf]
    %v227 = vld [vmem:[%s1 + $0x328] sm:$0xf]
    %v228 = vld [vmem:[%s1 + $0x32c] sm:$0xf]
    %v229 = vld [vmem:[%s1 + $0x330] sm:$0xf]
    %v230 = vld [vmem:[%s1 + $0x334] sm:$0xf]
    %v231 = vld [vmem:[%s1 + $0x338] sm:$0xf]
    %v232 = vld [vmem:[%s1 + $0x33c] sm:$0xf]
    %v233 = vld [vmem:[%s1 + $0x340] sm:$0xf]
    %v234 = vld [vmem:[%s1 + $0x344] sm:$0xf]
    %v235 = vld [vmem:[%s1 + $0x348] sm:$0xf]
    %v236 = vld [vmem:[%s1 + $0x34c] sm:$0xf]
    %v237 = vld [vmem:[%s1 + $0x350] sm:$0xf]
    %v238 = vld [vmem:[%s1 + $0x354] sm:$0xf]
    %v239 = vld [vmem:[%s1 + $0x358] sm:$0xf]
    %v240 = vld [vmem:[%s1 + $0x35c] sm:$0xf]
    %v241 = vld [vmem:[%s1 + $0x360] sm:$0xf]
    %v242 = vld [vmem:[%s1 + $0x364] sm:$0xf]
    %v243 = vld [vmem:[%s1 + $0x368] sm:$0xf]
    %v244 = vld [vmem:[%s1 + $0x36c] sm:$0xf]
    %v245 = vld [vmem:[%s1 + $0x370] sm:$0xf]
    %v246 = vld [vmem:[%s1 + $0x374] sm:$0xf]
    %v247 = vld [vmem:[%s1 + $0x378] sm:$0xf]
    %v248 = vld [vmem:[%s1 + $0x37c] sm:$0xf]
    %v249 = vld [vmem:[%s1 + $0x380] sm:$0xf]
    %v250 = vld [vmem:[%s1 + $0x384] sm:$0xf]
    %v251 = vld [vmem:[%s1 + $0x388] sm:$0xf]
    %v252 = vld [vmem:[%s1 + $0x38c] sm:$0xf]
    %v253 = vld [vmem:[%s1 + $0x390] sm:$0xf]
    %v254 = vld [vmem:[%s1 + $0x394] sm:$0xf]
    %v255 = vld [vmem:[%s1 + $0x398] sm:$0xf]
    %v256 = vld [vmem:[%s1 + $0x39c] sm:$0xf]
    %v257 = vld [vmem:[%s1 + $0x3a0] sm:$0xf]
    %v258 = vld [vmem:[%s1 + $0x3a4] sm:$0xf]
    %v259 = vld [vmem:[%s1 + $0x3a8] sm:$0xf]
    %v260 = vld [vmem:[%s1 + $0x3ac] sm:$0xf]
    %v261 = vld [vmem:[%s1 + $0x3b0] sm:$0xf]
    %v262 = vld [vmem:[%s1 + $0x3b4] sm:$0xf]
    %v263 = vld [vmem:[%s1 + $0x3b8] sm:$0xf]
    %v264 = vld [vmem:[%s1 + $0x3bc] sm:$0xf]
    %v265 = vld [vmem:[%s1 + $0x3c0] sm:$0xf]
    %v266 = vld [vmem:[%s1 + $0x3c4] sm:$0xf]
    %v267 = vld [vmem:[%s1 + $0x3c8] sm:$0xf]
    %v268 = vld [vmem:[%s1 + $0x3cc] sm:$0xf]
    %v269 = vld [vmem:[%s1 + $0x3d0] sm:$0xf]
    %v270 = vld [vmem:[%s1 + $0x3d4] sm:$0xf]
    %v271 = vld [vmem:[%s1 + $0x3d8] sm:$0xf]
    %v272 = vld [vmem:[%s1 + $0x3dc] sm:$0xf]
    %v273 = vld [vmem:[%s1 + $0x3e0] sm:$0xf]
    %v274 = vld [vmem:[%s1 + $0x3e4] sm:$0xf]
    %v275 = vld [vmem:[%s1 + $0x3e8] sm:$0xf]
    %v276 = vld [vmem:[%s1 + $0x3ec] sm:$0xf]
    %v277 = vld [vmem:[%s1 + $0x3f0] sm:$0xf]
    %v278 = vld [vmem:[%s1 + $0x3f4] sm:$0xf]
    %v279 = vld [vmem:[%s1 + $0x3f8] sm:$0xf]
    %v280 = vld [vmem:[%s1 + $0x3fc] sm:$0xf]
    %v281 = vld [vmem:[%s1 + $0x400] sm:$0xf]
    %v282 = vld [vmem:[%s1 + $0x404] sm:$0xf]
    %v283 = vld [vmem:[%s1 + $0x408] sm:$0xf]
    %v284 = vld [vmem:[%s1 + $0x40c] sm:$0xf]
    %v285 = vld [vmem:[%s1 + $0x410] sm:$0xf]
    %v286 = vld [vmem:[%s1 + $0x414] sm:$0xf]
    %v287 = vld [vmem:[%s1 + $0x418] sm:$0xf]
    %v288 = vld [vmem:[%s1 + $0x41c] sm:$0xf]
    %v289 = vld [vmem:[%s1 + $0x420] sm:$0xf]
    %v290 = vld [vmem:[%s1 + $0x424] sm:$0xf]
    %v291 = vld [vmem:[%s1 + $0x428] sm:$0xf]
    %v292 = vld [vmem:[%s1 + $0x42c] sm:$0xf]
    %v293 = vld [vmem:[%s1 + $0x430] sm:$0xf]
    %v294 = vld [vmem:[%s1 + $0x434] sm:$0xf]
    %v295 = vld [vmem:[%s1 + $0x438] sm:$0xf]
    %v296 = vld [vmem:[%s1 + $0x43c] sm:$0xf]
    %v297 = vld [vmem:[%s1 + $0x440] sm:$0xf]
    %v298 = vld [vmem:[%s1 + $0x444] sm:$0xf]
    %v299 = vld [vmem:[%s1 + $0x448] sm:$0xf]
    %v300 = vld [vmem:[%s1 + $0x44c] sm:$0xf]
    %v301 = vld [vmem:[%s1 + $0x450] sm:$0xf]
    %v302 = vld [vmem:[%s1 + $0x454] sm:$0xf]
    %v303 = vld [vmem:[%s1 + $0x458] sm:$0xf]
    %v304 = vld [vmem:[%s1 + $0x45c] sm:$0xf]
    %v305 = vld [vmem:[%s1 + $0x460] sm:$0xf]
    %v306 = vld [vmem:[%s1 + $0x464] sm:$0xf]
    %v307 = vld [vmem:[%s1 + $0x468] sm:$0xf]
    %v308 = vld [vmem:[%s1 + $0x46c] sm:$0xf]
    %v309 = vld [vmem:[%s1 + $0x470] sm:$0xf]
    %v310 = vld [vmem:[%s1 + $0x474] sm:$0xf]
    %v311 = vld [vmem:[%s1 + $0x478] sm:$0xf]
    %v312 = vld [vmem:[%s1 + $0x47c] sm:$0xf]
    %v313 = vld [vmem:[%s2] sm:$0x1]
    %v315 = vlaneseq
    %v316 = vshrl.u32 %v315, 7
    %v317 = vsub.s32 0, %v316
    %v318 = vrot.slane %v313, %v317
    %v323 = vcombine.high %v22, %v22
    %v325 = vunpack.c.l.s4 1966171168
    %v326 = vunpack.c.0.s8 %v325
    %v327 = vlaneseq
    %v328 = vshrl.u32 %v327, 7
    %v329 = vsub.s32 %v326, %v328
    %v330 = vrot.slane %v22, %v329
    %v332 = vunpack.c.l.s4 1966171168
    %v333 = vunpack.c.0.s8 %v332
    %v334 = vlaneseq
    %v335 = vshrl.u32 %v334, 7
    %v336 = vsub.s32 %v333, %v335
    %v337 = vrot.slane %v323, %v336
    %v338 = vcombine.high %v330, %v330
    %v339 = vcombine.high %v337, %v337
    %v341 = vunpack.c.l.s4 1966171168
    %v342 = vunpack.c.0.s8 %v341
    %v343 = vlaneseq
    %v344 = vshrl.u32 %v343, 7
    %v345 = vsub.s32 %v342, %v344
    %v346 = vrot.slane %v330, %v345
    %v348 = vunpack.c.l.s4 1966171168
    %v349 = vunpack.c.0.s8 %v348
    %v350 = vlaneseq
    %v351 = vshrl.u32 %v350, 7
    %v352 = vsub.s32 %v349, %v351
    %v353 = vrot.slane %v337, %v352
    %v355 = vunpack.c.l.s4 1966171168
    %v356 = vunpack.c.0.s8 %v355
    %v357 = vlaneseq
    %v358 = vshrl.u32 %v357, 7
    %v359 = vsub.s32 %v356, %v358
    %v360 = vrot.slane %v338, %v359
    %v362 = vunpack.c.l.s4 1966171168
    %v363 = vunpack.c.0.s8 %v362
    %v364 = vlaneseq
    %v365 = vshrl.u32 %v364, 7
    %v366 = vsub.s32 %v363, %v365
    %v367 = vrot.slane %v339, %v366
    %v368 = vcombine.high %v346, %v346
    %v369 = vcombine.high %v353, %v353
    %v370 = vcombine.high %v360, %v360
    %v371 = vcombine.high %v367, %v367
    %v372 = vcombine.high %v23, %v23
    %v374 = vunpack.c.l.s4 1966171168
    %v375 = vunpack.c.0.s8 %v374
    %v376 = vlaneseq
    %v377 = vshrl.u32 %v376, 7
    %v378 = vsub.s32 %v375, %v377
    %v379 = vrot.slane %v23, %v378
    %v381 = vunpack.c.l.s4 1966171168
    %v382 = vunpack.c.0.s8 %v381
    %v383 = vlaneseq
    %v384 = vshrl.u32 %v383, 7
    %v385 = vsub.s32 %v382, %v384
    %v386 = vrot.slane %v372, %v385
    %v387 = vcombine.high %v379, %v379
    %v388 = vcombine.high %v386, %v386
    %v390 = vunpack.c.l.s4 1966171168
    %v391 = vunpack.c.0.s8 %v390
    %v392 = vlaneseq
    %v393 = vshrl.u32 %v392, 7
    %v394 = vsub.s32 %v391, %v393
    %v395 = vrot.slane %v379, %v394
    %v397 = vunpack.c.l.s4 1966171168
    %v398 = vunpack.c.0.s8 %v397
    %v399 = vlaneseq
    %v400 = vshrl.u32 %v399, 7
    %v401 = vsub.s32 %v398, %v400
    %v402 = vrot.slane %v386, %v401
    %v404 = vunpack.c.l.s4 1966171168
    %v405 = vunpack.c.0.s8 %v404
    %v406 = vlaneseq
    %v407 = vshrl.u32 %v406, 7
    %v408 = vsub.s32 %v405, %v407
    %v409 = vrot.slane %v387, %v408
    %v411 = vunpack.c.l.s4 1966171168
    %v412 = vunpack.c.0.s8 %v411
    %v413 = vlaneseq
    %v414 = vshrl.u32 %v413, 7
    %v415 = vsub.s32 %v412, %v414
    %v416 = vrot.slane %v388, %v415
    %v417 = vcombine.high %v395, %v395
    %v418 = vcombine.high %v402, %v402
    %v419 = vcombine.high %v409, %v409
    %v420 = vcombine.high %v416, %v416
    %v422 = vunpack.c.l.s4 1966171168
    %v423 = vunpack.c.0.s8 %v422
    %v424 = vlaneseq
    %v425 = vshrl.u32 %v424, 7
    %v426 = vsub.s32 %v423, %v425
    %v427 = vrot.slane %v24, %v426
    %v428 = vcombine.high %v427, %v427
    %v430 = vunpack.c.l.s4 1966171168
    %v431 = vunpack.c.0.s8 %v430
    %v432 = vlaneseq
    %v433 = vshrl.u32 %v432, 7
    %v434 = vsub.s32 %v431, %v433
    %v435 = vrot.slane %v427, %v434
    %v437 = vunpack.c.l.s4 1966171168
    %v438 = vunpack.c.0.s8 %v437
    %v439 = vlaneseq
    %v440 = vshrl.u32 %v439, 7
    %v441 = vsub.s32 %v438, %v440
    %v442 = vrot.slane %v428, %v441
    %v749 = vunpack.c.l.b16 %v25
    %v750 = vunpack.c.l.b16 %v26
    %v751 = vunpack.c.l.b16 %v27
    %v752 = vunpack.c.l.b16 %v28
    %v753 = vunpack.c.l.b16 %v29
    %v754 = vunpack.c.l.b16 %v30
    %v755 = vunpack.c.l.b16 %v31
    %v756 = vunpack.c.l.b16 %v32
    %v757 = vunpack.c.l.b16 %v33
    %v758 = vunpack.c.l.b16 %v34
    %v759 = vunpack.c.l.b16 %v35
    %v760 = vunpack.c.l.b16 %v36
    %v761 = vunpack.c.l.b16 %v37
    %v762 = vunpack.c.l.b16 %v38
    %v763 = vunpack.c.l.b16 %v39
    %v764 = vunpack.c.l.b16 %v40
    %v765 = vunpack.c.l.b16 %v41
    %v766 = vunpack.c.l.b16 %v42
    %v767 = vunpack.c.l.b16 %v43
    %v768 = vunpack.c.l.b16 %v44
    %v769 = vunpack.c.l.b16 %v45
    %v770 = vunpack.c.l.b16 %v46
    %v771 = vunpack.c.l.b16 %v47
    %v772 = vunpack.c.l.b16 %v48
    %v773 = vunpack.c.l.b16 %v49
    %v774 = vunpack.c.l.b16 %v50
    %v775 = vunpack.c.l.b16 %v51
    %v776 = vunpack.c.l.b16 %v52
    %v777 = vunpack.c.l.b16 %v53
    %v778 = vunpack.c.l.b16 %v54
    %v779 = vunpack.c.l.b16 %v55
    %v780 = vunpack.c.l.b16 %v56
    %v781 = vunpack.c.l.b16 %v57
    %v782 = vunpack.c.l.b16 %v58
    %v783 = vunpack.c.l.b16 %v59
    %v784 = vunpack.c.l.b16 %v60
    %v785 = vunpack.c.l.b16 %v61
    %v786 = vunpack.c.l.b16 %v62
    %v787 = vunpack.c.l.b16 %v63
    %v788 = vunpack.c.l.b16 %v64
    %v789 = vunpack.c.l.b16 %v65
    %v790 = vunpack.c.l.b16 %v66
    %v791 = vunpack.c.l.b16 %v67
    %v792 = vunpack.c.l.b16 %v68
    %v793 = vunpack.c.l.b16 %v69
    %v794 = vunpack.c.l.b16 %v70
    %v795 = vunpack.c.l.b16 %v71
    %v796 = vunpack.c.l.b16 %v72
    %v797 = vunpack.c.l.b16 %v73
    %v798 = vunpack.c.l.b16 %v74
    %v799 = vunpack.c.l.b16 %v75
    %v800 = vunpack.c.l.b16 %v76
    %v801 = vunpack.c.l.b16 %v77
    %v802 = vunpack.c.l.b16 %v78
    %v803 = vunpack.c.l.b16 %v79
    %v804 = vunpack.c.l.b16 %v80
    %v805 = vunpack.c.l.b16 %v81
    %v806 = vunpack.c.l.b16 %v82
    %v807 = vunpack.c.l.b16 %v83
    %v808 = vunpack.c.l.b16 %v84
    %v809 = vunpack.c.l.b16 %v85
    %v810 = vunpack.c.l.b16 %v86
    %v811 = vunpack.c.l.b16 %v87
    %v812 = vunpack.c.l.b16 %v88
    %v813 = vunpack.c.l.b16 %v89
    %v814 = vunpack.c.l.b16 %v90
    %v815 = vunpack.c.l.b16 %v91
    %v816 = vunpack.c.l.b16 %v92
    %v817 = vunpack.c.l.b16 %v93
    %v818 = vunpack.c.l.b16 %v94
    %v819 = vunpack.c.l.b16 %v95
    %v820 = vunpack.c.l.b16 %v96
    %v821 = vunpack.c.l.b16 %v97
    %v822 = vunpack.c.l.b16 %v98
    %v823 = vunpack.c.l.b16 %v99
    %v824 = vunpack.c.l.b16 %v100
    %v825 = vunpack.c.l.b16 %v101
    %v826 = vunpack.c.l.b16 %v102
    %v827 = vunpack.c.l.b16 %v103
    %v828 = vunpack.c.l.b16 %v104
    %v829 = vunpack.c.l.b16 %v105
    %v830 = vunpack.c.l.b16 %v106
    %v831 = vunpack.c.l.b16 %v107
    %v832 = vunpack.c.l.b16 %v108
    %v833 = vunpack.c.l.b16 %v109
    %v834 = vunpack.c.l.b16 %v110
    %v835 = vunpack.c.l.b16 %v111
    %v836 = vunpack.c.l.b16 %v112
    %v837 = vunpack.c.l.b16 %v113
    %v838 = vunpack.c.l.b16 %v114
    %v839 = vunpack.c.l.b16 %v115
    %v840 = vunpack.c.l.b16 %v116
    %v841 = vunpack.c.l.b16 %v117
    %v842 = vunpack.c.l.b16 %v118
    %v843 = vunpack.c.l.b16 %v119
    %v844 = vunpack.c.l.b16 %v120
    %v845 = vunpack.c.l.b16 %v121
    %v846 = vunpack.c.l.b16 %v122
    %v847 = vunpack.c.l.b16 %v123
    %v848 = vunpack.c.l.b16 %v124
    %v849 = vunpack.c.l.b16 %v125
    %v850 = vunpack.c.l.b16 %v126
    %v851 = vunpack.c.l.b16 %v127
    %v852 = vunpack.c.l.b16 %v128
    %v853 = vunpack.c.l.b16 %v129
    %v854 = vunpack.c.l.b16 %v130
    %v855 = vunpack.c.l.b16 %v131
    %v856 = vunpack.c.l.b16 %v132
    %v857 = vunpack.c.l.b16 %v133
    %v858 = vunpack.c.l.b16 %v134
    %v859 = vunpack.c.l.b16 %v135
    %v860 = vunpack.c.l.b16 %v136
    %v861 = vunpack.c.l.b16 %v137
    %v862 = vunpack.c.l.b16 %v138
    %v863 = vunpack.c.l.b16 %v139
    %v864 = vunpack.c.l.b16 %v140
    %v865 = vunpack.c.l.b16 %v141
    %v866 = vunpack.c.l.b16 %v142
    %v867 = vunpack.c.l.b16 %v143
    %v868 = vunpack.c.l.b16 %v144
    %v869 = vunpack.c.l.b16 %v145
    %v870 = vunpack.c.l.b16 %v146
    %v871 = vunpack.c.l.b16 %v147
    %v872 = vunpack.c.l.b16 %v148
    %v873 = vunpack.c.l.b16 %v149
    %v874 = vunpack.c.l.b16 %v150
    %v875 = vunpack.c.l.b16 %v151
    %v876 = vunpack.c.l.b16 %v152
    %v877 = vunpack.c.l.b16 %v153
    %v878 = vunpack.c.l.b16 %v154
    %v879 = vunpack.c.l.b16 %v155
    %v880 = vunpack.c.l.b16 %v156
    %v881 = vunpack.c.l.b16 %v157
    %v882 = vunpack.c.l.b16 %v158
    %v883 = vunpack.c.l.b16 %v159
    %v884 = vunpack.c.l.b16 %v160
    %v885 = vunpack.c.l.b16 %v161
    %v886 = vunpack.c.l.b16 %v162
    %v887 = vunpack.c.l.b16 %v163
    %v888 = vunpack.c.l.b16 %v164
    %v889 = vunpack.c.l.b16 %v165
    %v890 = vunpack.c.l.b16 %v166
    %v891 = vunpack.c.l.b16 %v167
    %v892 = vunpack.c.l.b16 %v168
    %v893 = vunpack.c.l.b16 %v169
    %v894 = vunpack.c.l.b16 %v170
    %v895 = vunpack.c.l.b16 %v171
    %v896 = vunpack.c.l.b16 %v172
    %v897 = vunpack.c.l.b16 %v173
    %v898 = vunpack.c.l.b16 %v174
    %v899 = vunpack.c.l.b16 %v175
    %v900 = vunpack.c.l.b16 %v176
    %v901 = vunpack.c.l.b16 %v177
    %v902 = vunpack.c.l.b16 %v178
    %v903 = vunpack.c.l.b16 %v179
    %v904 = vunpack.c.l.b16 %v180
    %v905 = vunpack.c.l.b16 %v181
    %v906 = vunpack.c.l.b16 %v182
    %v907 = vunpack.c.l.b16 %v183
    %v908 = vunpack.c.l.b16 %v184
    %v909 = vunpack.c.l.b16 %v185
    %v910 = vunpack.c.l.b16 %v186
    %v911 = vunpack.c.l.b16 %v187
    %v912 = vunpack.c.l.b16 %v188
    %v913 = vunpack.c.l.b16 %v189
    %v914 = vunpack.c.l.b16 %v190
    %v915 = vunpack.c.l.b16 %v191
    %v916 = vunpack.c.l.b16 %v192
    %v917 = vunpack.c.l.b16 %v193
    %v918 = vunpack.c.l.b16 %v194
    %v919 = vunpack.c.l.b16 %v195
    %v920 = vunpack.c.l.b16 %v196
    %v921 = vunpack.c.l.b16 %v197
    %v922 = vunpack.c.l.b16 %v198
    %v923 = vunpack.c.l.b16 %v199
    %v924 = vunpack.c.l.b16 %v200
    %v925 = vunpack.c.l.b16 %v201
    %v926 = vunpack.c.l.b16 %v202
    %v927 = vunpack.c.l.b16 %v203
    %v928 = vunpack.c.l.b16 %v204
    %v929 = vunpack.c.l.b16 %v205
    %v930 = vunpack.c.l.b16 %v206
    %v931 = vunpack.c.l.b16 %v207
    %v932 = vunpack.c.l.b16 %v208
    %v933 = vunpack.c.l.b16 %v209
    %v934 = vunpack.c.l.b16 %v210
    %v935 = vunpack.c.l.b16 %v211
    %v936 = vunpack.c.l.b16 %v212
    %v937 = vunpack.c.l.b16 %v213
    %v938 = vunpack.c.l.b16 %v214
    %v939 = vunpack.c.l.b16 %v215
    %v940 = vunpack.c.l.b16 %v216
    %v941 = vunpack.c.l.b16 %v217
    %v942 = vunpack.c.l.b16 %v218
    %v943 = vunpack.c.l.b16 %v219
    %v944 = vunpack.c.l.b16 %v220
    %v945 = vunpack.c.l.b16 %v221
    %v946 = vunpack.c.l.b16 %v222
    %v947 = vunpack.c.l.b16 %v223
    %v948 = vunpack.c.l.b16 %v224
    %v949 = vunpack.c.l.b16 %v225
    %v950 = vunpack.c.l.b16 %v226
    %v951 = vunpack.c.l.b16 %v227
    %v952 = vunpack.c.l.b16 %v228
    %v953 = vunpack.c.l.b16 %v229
    %v954 = vunpack.c.l.b16 %v230
    %v955 = vunpack.c.l.b16 %v231
    %v956 = vunpack.c.l.b16 %v232
    %v957 = vunpack.c.l.b16 %v233
    %v958 = vunpack.c.l.b16 %v234
    %v959 = vunpack.c.l.b16 %v235
    %v960 = vunpack.c.l.b16 %v236
    %v961 = vunpack.c.l.b16 %v237
    %v962 = vunpack.c.l.b16 %v238
    %v963 = vunpack.c.l.b16 %v239
    %v964 = vunpack.c.l.b16 %v240
    %v965 = vunpack.c.l.b16 %v241
    %v966 = vunpack.c.l.b16 %v242
    %v967 = vunpack.c.l.b16 %v243
    %v968 = vunpack.c.l.b16 %v244
    %v969 = vunpack.c.l.b16 %v245
    %v970 = vunpack.c.l.b16 %v246
    %v971 = vunpack.c.l.b16 %v247
    %v972 = vunpack.c.l.b16 %v248
    %v973 = vunpack.c.l.b16 %v249
    %v974 = vunpack.c.l.b16 %v250
    %v975 = vunpack.c.l.b16 %v251
    %v976 = vunpack.c.l.b16 %v252
    %v977 = vunpack.c.l.b16 %v253
    %v978 = vunpack.c.l.b16 %v254
    %v979 = vunpack.c.l.b16 %v255
    %v980 = vunpack.c.l.b16 %v256
    %v981 = vunpack.c.l.b16 %v257
    %v982 = vunpack.c.l.b16 %v258
    %v983 = vunpack.c.l.b16 %v259
    %v984 = vunpack.c.l.b16 %v260
    %v985 = vunpack.c.l.b16 %v261
    %v986 = vunpack.c.l.b16 %v262
    %v987 = vunpack.c.l.b16 %v263
    %v988 = vunpack.c.l.b16 %v264
    %v989 = vunpack.c.l.b16 %v265
    %v990 = vunpack.c.l.b16 %v266
    %v991 = vunpack.c.l.b16 %v267
    %v992 = vunpack.c.l.b16 %v268
    %v993 = vunpack.c.l.b16 %v269
    %v994 = vunpack.c.l.b16 %v270
    %v995 = vunpack.c.l.b16 %v271
    %v996 = vunpack.c.l.b16 %v272
    %v997 = vunpack.c.l.b16 %v273
    %v998 = vunpack.c.l.b16 %v274
    %v999 = vunpack.c.l.b16 %v275
    %v1000 = vunpack.c.l.b16 %v276
    %v1001 = vunpack.c.l.b16 %v277
    %v1002 = vunpack.c.l.b16 %v278
    %v1003 = vunpack.c.l.b16 %v279
    %v1004 = vunpack.c.l.b16 %v280
    %v1005 = vunpack.c.l.b16 %v281
    %v1006 = vunpack.c.l.b16 %v282
    %v1007 = vunpack.c.l.b16 %v283
    %v1008 = vunpack.c.l.b16 %v284
    %v1009 = vunpack.c.l.b16 %v285
    %v1010 = vunpack.c.l.b16 %v286
    %v1011 = vunpack.c.l.b16 %v287
    %v1012 = vunpack.c.l.b16 %v288
    %v1013 = vunpack.c.l.b16 %v289
    %v1014 = vunpack.c.l.b16 %v290
    %v1015 = vunpack.c.l.b16 %v291
    %v1016 = vunpack.c.l.b16 %v292
    %v1017 = vunpack.c.l.b16 %v293
    %v1018 = vunpack.c.l.b16 %v294
    %v1019 = vunpack.c.l.b16 %v295
    %v1020 = vunpack.c.l.b16 %v296
    %v1021 = vunpack.c.l.b16 %v297
    %v1022 = vunpack.c.l.b16 %v298
    %v1023 = vunpack.c.l.b16 %v299
    %v1024 = vunpack.c.l.b16 %v300
    %v1025 = vunpack.c.l.b16 %v301
    %v1026 = vunpack.c.l.b16 %v302
    %v1027 = vunpack.c.l.b16 %v303
    %v1028 = vunpack.c.l.b16 %v304
    %v1029 = vunpack.c.l.b16 %v305
    %v1030 = vunpack.c.l.b16 %v306
    %v1031 = vunpack.c.l.b16 %v307
    %v1032 = vunpack.c.l.b16 %v308
    %v1033 = vunpack.c.l.b16 %v309
    %v1034 = vunpack.c.l.b16 %v310
    %v1035 = vunpack.c.l.b16 %v311
    %v1036 = vunpack.c.l.b16 %v312
    %v1037 = vpack.c.b16 %v750, %v749
    %v1038 = vpack.c.b16 %v752, %v751
    %v1039 = vpack.c.b16 %v754, %v753
    %v1040 = vpack.c.b16 %v756, %v755
    %v1041 = vpack.c.b16 %v758, %v757
    %v1042 = vpack.c.b16 %v760, %v759
    %v1043 = vpack.c.b16 %v762, %v761
    %v1044 = vpack.c.b16 %v764, %v763
    %v1045 = vpack.c.b16 %v766, %v765
    %v1046 = vpack.c.b16 %v768, %v767
    %v1047 = vpack.c.b16 %v770, %v769
    %v1048 = vpack.c.b16 %v772, %v771
    %v1049 = vpack.c.b16 %v774, %v773
    %v1050 = vpack.c.b16 %v776, %v775
    %v1051 = vpack.c.b16 %v778, %v777
    %v1052 = vpack.c.b16 %v780, %v779
    %v1053 = vpack.c.b16 %v782, %v781
    %v1054 = vpack.c.b16 %v784, %v783
    %v1055 = vpack.c.b16 %v786, %v785
    %v1056 = vpack.c.b16 %v788, %v787
    %v1057 = vpack.c.b16 %v790, %v789
    %v1058 = vpack.c.b16 %v792, %v791
    %v1059 = vpack.c.b16 %v794, %v793
    %v1060 = vpack.c.b16 %v796, %v795
    %v1061 = vpack.c.b16 %v798, %v797
    %v1062 = vpack.c.b16 %v800, %v799
    %v1063 = vpack.c.b16 %v802, %v801
    %v1064 = vpack.c.b16 %v804, %v803
    %v1065 = vpack.c.b16 %v806, %v805
    %v1066 = vpack.c.b16 %v808, %v807
    %v1067 = vpack.c.b16 %v810, %v809
    %v1068 = vpack.c.b16 %v812, %v811
    %v1069 = vpack.c.b16 %v814, %v813
    %v1070 = vpack.c.b16 %v816, %v815
    %v1071 = vpack.c.b16 %v818, %v817
    %v1072 = vpack.c.b16 %v820, %v819
    %v1073 = vpack.c.b16 %v822, %v821
    %v1074 = vpack.c.b16 %v824, %v823
    %v1075 = vpack.c.b16 %v826, %v825
    %v1076 = vpack.c.b16 %v828, %v827
    %v1077 = vpack.c.b16 %v830, %v829
    %v1078 = vpack.c.b16 %v832, %v831
    %v1079 = vpack.c.b16 %v834, %v833
    %v1080 = vpack.c.b16 %v836, %v835
    %v1081 = vpack.c.b16 %v838, %v837
    %v1082 = vpack.c.b16 %v840, %v839
    %v1083 = vpack.c.b16 %v842, %v841
    %v1084 = vpack.c.b16 %v844, %v843
    %v1085 = vpack.c.b16 %v846, %v845
    %v1086 = vpack.c.b16 %v848, %v847
    %v1087 = vpack.c.b16 %v850, %v849
    %v1088 = vpack.c.b16 %v852, %v851
    %v1089 = vpack.c.b16 %v854, %v853
    %v1090 = vpack.c.b16 %v856, %v855
    %v1091 = vpack.c.b16 %v858, %v857
    %v1092 = vpack.c.b16 %v860, %v859
    %v1093 = vpack.c.b16 %v862, %v861
    %v1094 = vpack.c.b16 %v864, %v863
    %v1095 = vpack.c.b16 %v866, %v865
    %v1096 = vpack.c.b16 %v868, %v867
    %v1097 = vpack.c.b16 %v870, %v869
    %v1098 = vpack.c.b16 %v872, %v871
    %v1099 = vpack.c.b16 %v874, %v873
    %v1100 = vpack.c.b16 %v876, %v875
    %v1101 = vpack.c.b16 %v878, %v877
    %v1102 = vpack.c.b16 %v880, %v879
    %v1103 = vpack.c.b16 %v882, %v881
    %v1104 = vpack.c.b16 %v884, %v883
    %v1105 = vpack.c.b16 %v886, %v885
    %v1106 = vpack.c.b16 %v888, %v887
    %v1107 = vpack.c.b16 %v890, %v889
    %v1108 = vpack.c.b16 %v892, %v891
    %v1109 = vpack.c.b16 %v894, %v893
    %v1110 = vpack.c.b16 %v896, %v895
    %v1111 = vpack.c.b16 %v898, %v897
    %v1112 = vpack.c.b16 %v900, %v899
    %v1113 = vpack.c.b16 %v902, %v901
    %v1114 = vpack.c.b16 %v904, %v903
    %v1115 = vpack.c.b16 %v906, %v905
    %v1116 = vpack.c.b16 %v908, %v907
    %v1117 = vpack.c.b16 %v910, %v909
    %v1118 = vpack.c.b16 %v912, %v911
    %v1119 = vpack.c.b16 %v914, %v913
    %v1120 = vpack.c.b16 %v916, %v915
    %v1121 = vpack.c.b16 %v918, %v917
    %v1122 = vpack.c.b16 %v920, %v919
    %v1123 = vpack.c.b16 %v922, %v921
    %v1124 = vpack.c.b16 %v924, %v923
    %v1125 = vpack.c.b16 %v926, %v925
    %v1126 = vpack.c.b16 %v928, %v927
    %v1127 = vpack.c.b16 %v930, %v929
    %v1128 = vpack.c.b16 %v932, %v931
    %v1129 = vpack.c.b16 %v934, %v933
    %v1130 = vpack.c.b16 %v936, %v935
    %v1131 = vpack.c.b16 %v938, %v937
    %v1132 = vpack.c.b16 %v940, %v939
    %v1133 = vpack.c.b16 %v942, %v941
    %v1134 = vpack.c.b16 %v944, %v943
    %v1135 = vpack.c.b16 %v946, %v945
    %v1136 = vpack.c.b16 %v948, %v947
    %v1137 = vpack.c.b16 %v950, %v949
    %v1138 = vpack.c.b16 %v952, %v951
    %v1139 = vpack.c.b16 %v954, %v953
    %v1140 = vpack.c.b16 %v956, %v955
    %v1141 = vpack.c.b16 %v958, %v957
    %v1142 = vpack.c.b16 %v960, %v959
    %v1143 = vpack.c.b16 %v962, %v961
    %v1144 = vpack.c.b16 %v964, %v963
    %v1145 = vpack.c.b16 %v966, %v965
    %v1146 = vpack.c.b16 %v968, %v967
    %v1147 = vpack.c.b16 %v970, %v969
    %v1148 = vpack.c.b16 %v972, %v971
    %v1149 = vpack.c.b16 %v974, %v973
    %v1150 = vpack.c.b16 %v976, %v975
    %v1151 = vpack.c.b16 %v978, %v977
    %v1152 = vpack.c.b16 %v980, %v979
    %v1153 = vpack.c.b16 %v982, %v981
    %v1154 = vpack.c.b16 %v984, %v983
    %v1155 = vpack.c.b16 %v986, %v985
    %v1156 = vpack.c.b16 %v988, %v987
    %v1157 = vpack.c.b16 %v990, %v989
    %v1158 = vpack.c.b16 %v992, %v991
    %v1159 = vpack.c.b16 %v994, %v993
    %v1160 = vpack.c.b16 %v996, %v995
    %v1161 = vpack.c.b16 %v998, %v997
    %v1162 = vpack.c.b16 %v1000, %v999
    %v1163 = vpack.c.b16 %v1002, %v1001
    %v1164 = vpack.c.b16 %v1004, %v1003
    %v1165 = vpack.c.b16 %v1006, %v1005
    %v1166 = vpack.c.b16 %v1008, %v1007
    %v1167 = vpack.c.b16 %v1010, %v1009
    %v1168 = vpack.c.b16 %v1012, %v1011
    %v1169 = vpack.c.b16 %v1014, %v1013
    %v1170 = vpack.c.b16 %v1016, %v1015
    %v1171 = vpack.c.b16 %v1018, %v1017
    %v1172 = vpack.c.b16 %v1020, %v1019
    %v1173 = vpack.c.b16 %v1022, %v1021
    %v1174 = vpack.c.b16 %v1024, %v1023
    %v1175 = vpack.c.b16 %v1026, %v1025
    %v1176 = vpack.c.b16 %v1028, %v1027
    %v1177 = vpack.c.b16 %v1030, %v1029
    %v1178 = vpack.c.b16 %v1032, %v1031
    %v1179 = vpack.c.b16 %v1034, %v1033
    %v1180 = vpack.c.b16 %v1036, %v1035
    %1325 = vmatprep.subr.bf16.mxu0 0
    %1326 = vmatpush1.bf16.msra.mxu0 %v1044
    %1327 = vmatprep.subr.bf16.mxu0 0
    %1328 = vmatpush1.bf16.msra.mxu0 %v1043
    %1329 = vmatprep.subr.bf16.mxu0 0
    %1330 = vmatpush1.bf16.msra.mxu0 %v1042
    %1331 = vmatprep.subr.bf16.mxu0 0
    %1332 = vmatpush1.bf16.msra.mxu0 %v1041
    %1333 = vmatprep.subr.bf16.mxu0 0
    %1334 = vmatpush1.bf16.msra.mxu0 %v1040
    %1335 = vmatprep.subr.bf16.mxu0 0
    %1336 = vmatpush1.bf16.msra.mxu0 %v1039
    %1337 = vmatprep.subr.bf16.mxu0 0
    %1338 = vmatpush1.bf16.msra.mxu0 %v1038
    %1339 = vmatprep.subr.bf16.mxu0 0
    %1340 = vmatpush1.bf16.msra.mxu0 %v1037
    %1341 = vmatprep.subr.bf16.mxu0 0
    %1342 = vmatpush2.bf16.msra.mxu0 %v1052
    %1343 = vmatprep.subr.bf16.mxu0 0
    %1344 = vmatpush2.bf16.msra.mxu0 %v1051
    %1345 = vmatprep.subr.bf16.mxu0 0
    %1346 = vmatpush2.bf16.msra.mxu0 %v1050
    %1347 = vmatprep.subr.bf16.mxu0 0
    %1348 = vmatpush2.bf16.msra.mxu0 %v1049
    %1349 = vmatprep.subr.bf16.mxu0 0
    %1350 = vmatpush2.bf16.msra.mxu0 %v1048
    %1351 = vmatprep.subr.bf16.mxu0 0
    %1352 = vmatpush2.bf16.msra.mxu0 %v1047
    %1353 = vmatprep.subr.bf16.mxu0 0
    %1354 = vmatpush2.bf16.msra.mxu0 %v1046
    %1355 = vmatprep.subr.bf16.mxu0 0
    %1356 = vmatpush2.bf16.msra.mxu0 %v1045
    %1357 = vmatprep.mubr.bf16.mxu0 %v360
    %1358 = vmatmul.mubr.bf16.gmra.mxu0 %v346
    %v1359 = vpop.f32.mrf.mxu0
    %v1360 = vadd.f32 %v318, %v1359
    %v1361 = vpop.f32.mrf.mxu0
    %v1362 = vpop.f32.mrf.mxu0
    %v1363 = vpop.f32.mrf.mxu0
    %1364 = vdwg.mxu0
    %1365 = vmatprep.subr.bf16.mxu0 0
    %1366 = vmatpush1.bf16.msra.mxu0 %v1060
    %1367 = vmatprep.subr.bf16.mxu0 0
    %1368 = vmatpush1.bf16.msra.mxu0 %v1059
    %1369 = vmatprep.subr.bf16.mxu0 0
    %1370 = vmatpush1.bf16.msra.mxu0 %v1058
    %1371 = vmatprep.subr.bf16.mxu0 0
    %1372 = vmatpush1.bf16.msra.mxu0 %v1057
    %1373 = vmatprep.subr.bf16.mxu0 0
    %1374 = vmatpush1.bf16.msra.mxu0 %v1056
    %1375 = vmatprep.subr.bf16.mxu0 0
    %1376 = vmatpush1.bf16.msra.mxu0 %v1055
    %1377 = vmatprep.subr.bf16.mxu0 0
    %1378 = vmatpush1.bf16.msra.mxu0 %v1054
    %1379 = vmatprep.subr.bf16.mxu0 0
    %1380 = vmatpush1.bf16.msra.mxu0 %v1053
    %1381 = vmatprep.subr.bf16.mxu0 0
    %1382 = vmatpush2.bf16.msra.mxu0 %v1068
    %1383 = vmatprep.subr.bf16.mxu0 0
    %1384 = vmatpush2.bf16.msra.mxu0 %v1067
    %1385 = vmatprep.subr.bf16.mxu0 0
    %1386 = vmatpush2.bf16.msra.mxu0 %v1066
    %1387 = vmatprep.subr.bf16.mxu0 0
    %1388 = vmatpush2.bf16.msra.mxu0 %v1065
    %1389 = vmatprep.subr.bf16.mxu0 0
    %1390 = vmatpush2.bf16.msra.mxu0 %v1064
    %1391 = vmatprep.subr.bf16.mxu0 0
    %1392 = vmatpush2.bf16.msra.mxu0 %v1063
    %1393 = vmatprep.subr.bf16.mxu0 0
    %1394 = vmatpush2.bf16.msra.mxu0 %v1062
    %1395 = vmatprep.subr.bf16.mxu0 0
    %1396 = vmatpush2.bf16.msra.mxu0 %v1061
    %1397 = vmatprep.mubr.bf16.mxu0 %v370
    %1398 = vmatmul.mubr.bf16.gmra.mxu0 %v368
    %v1399 = vpop.f32.mrf.mxu0
    %v1400 = vadd.f32 %v1360, %v1399
    %v1401 = vpop.f32.mrf.mxu0
    %v1402 = vpop.f32.mrf.mxu0
    %v1403 = vpop.f32.mrf.mxu0
    %1404 = vdwg.mxu0
    %1405 = vmatprep.subr.bf16.mxu0 0
    %1406 = vmatpush1.bf16.msra.mxu0 %v1076
    %1407 = vmatprep.subr.bf16.mxu0 0
    %1408 = vmatpush1.bf16.msra.mxu0 %v1075
    %1409 = vmatprep.subr.bf16.mxu0 0
    %1410 = vmatpush1.bf16.msra.mxu0 %v1074
    %1411 = vmatprep.subr.bf16.mxu0 0
    %1412 = vmatpush1.bf16.msra.mxu0 %v1073
    %1413 = vmatprep.subr.bf16.mxu0 0
    %1414 = vmatpush1.bf16.msra.mxu0 %v1072
    %1415 = vmatprep.subr.bf16.mxu0 0
    %1416 = vmatpush1.bf16.msra.mxu0 %v1071
    %1417 = vmatprep.subr.bf16.mxu0 0
    %1418 = vmatpush1.bf16.msra.mxu0 %v1070
    %1419 = vmatprep.subr.bf16.mxu0 0
    %1420 = vmatpush1.bf16.msra.mxu0 %v1069
    %1421 = vmatprep.subr.bf16.mxu0 0
    %1422 = vmatpush2.bf16.msra.mxu0 %v1084
    %1423 = vmatprep.subr.bf16.mxu0 0
    %1424 = vmatpush2.bf16.msra.mxu0 %v1083
    %1425 = vmatprep.subr.bf16.mxu0 0
    %1426 = vmatpush2.bf16.msra.mxu0 %v1082
    %1427 = vmatprep.subr.bf16.mxu0 0
    %1428 = vmatpush2.bf16.msra.mxu0 %v1081
    %1429 = vmatprep.subr.bf16.mxu0 0
    %1430 = vmatpush2.bf16.msra.mxu0 %v1080
    %1431 = vmatprep.subr.bf16.mxu0 0
    %1432 = vmatpush2.bf16.msra.mxu0 %v1079
    %1433 = vmatprep.subr.bf16.mxu0 0
    %1434 = vmatpush2.bf16.msra.mxu0 %v1078
    %1435 = vmatprep.subr.bf16.mxu0 0
    %1436 = vmatpush2.bf16.msra.mxu0 %v1077
    %1437 = vmatprep.mubr.bf16.mxu0 %v367
    %1438 = vmatmul.mubr.bf16.gmra.mxu0 %v353
    %v1439 = vpop.f32.mrf.mxu0
    %v1440 = vadd.f32 %v1400, %v1439
    %v1441 = vpop.f32.mrf.mxu0
    %v1442 = vpop.f32.mrf.mxu0
    %v1443 = vpop.f32.mrf.mxu0
    %1444 = vdwg.mxu0
    %1445 = vmatprep.subr.bf16.mxu0 0
    %1446 = vmatpush1.bf16.msra.mxu0 %v1092
    %1447 = vmatprep.subr.bf16.mxu0 0
    %1448 = vmatpush1.bf16.msra.mxu0 %v1091
    %1449 = vmatprep.subr.bf16.mxu0 0
    %1450 = vmatpush1.bf16.msra.mxu0 %v1090
    %1451 = vmatprep.subr.bf16.mxu0 0
    %1452 = vmatpush1.bf16.msra.mxu0 %v1089
    %1453 = vmatprep.subr.bf16.mxu0 0
    %1454 = vmatpush1.bf16.msra.mxu0 %v1088
    %1455 = vmatprep.subr.bf16.mxu0 0
    %1456 = vmatpush1.bf16.msra.mxu0 %v1087
    %1457 = vmatprep.subr.bf16.mxu0 0
    %1458 = vmatpush1.bf16.msra.mxu0 %v1086
    %1459 = vmatprep.subr.bf16.mxu0 0
    %1460 = vmatpush1.bf16.msra.mxu0 %v1085
    %1461 = vmatprep.subr.bf16.mxu0 0
    %1462 = vmatpush2.bf16.msra.mxu0 %v1100
    %1463 = vmatprep.subr.bf16.mxu0 0
    %1464 = vmatpush2.bf16.msra.mxu0 %v1099
    %1465 = vmatprep.subr.bf16.mxu0 0
    %1466 = vmatpush2.bf16.msra.mxu0 %v1098
    %1467 = vmatprep.subr.bf16.mxu0 0
    %1468 = vmatpush2.bf16.msra.mxu0 %v1097
    %1469 = vmatprep.subr.bf16.mxu0 0
    %1470 = vmatpush2.bf16.msra.mxu0 %v1096
    %1471 = vmatprep.subr.bf16.mxu0 0
    %1472 = vmatpush2.bf16.msra.mxu0 %v1095
    %1473 = vmatprep.subr.bf16.mxu0 0
    %1474 = vmatpush2.bf16.msra.mxu0 %v1094
    %1475 = vmatprep.subr.bf16.mxu0 0
    %1476 = vmatpush2.bf16.msra.mxu0 %v1093
    %1477 = vmatprep.mubr.bf16.mxu0 %v371
    %1478 = vmatmul.mubr.bf16.gmra.mxu0 %v369
    %v1479 = vpop.f32.mrf.mxu0
    %v1480 = vadd.f32 %v1440, %v1479
    %v1481 = vpop.f32.mrf.mxu0
    %v1482 = vpop.f32.mrf.mxu0
    %v1483 = vpop.f32.mrf.mxu0
    %1484 = vdwg.mxu0
    %1485 = vmatprep.subr.bf16.mxu0 0
    %1486 = vmatpush1.bf16.msra.mxu0 %v1108
    %1487 = vmatprep.subr.bf16.mxu0 0
    %1488 = vmatpush1.bf16.msra.mxu0 %v1107
    %1489 = vmatprep.subr.bf16.mxu0 0
    %1490 = vmatpush1.bf16.msra.mxu0 %v1106
    %1491 = vmatprep.subr.bf16.mxu0 0
    %1492 = vmatpush1.bf16.msra.mxu0 %v1105
    %1493 = vmatprep.subr.bf16.mxu0 0
    %1494 = vmatpush1.bf16.msra.mxu0 %v1104
    %1495 = vmatprep.subr.bf16.mxu0 0
    %1496 = vmatpush1.bf16.msra.mxu0 %v1103
    %1497 = vmatprep.subr.bf16.mxu0 0
    %1498 = vmatpush1.bf16.msra.mxu0 %v1102
    %1499 = vmatprep.subr.bf16.mxu0 0
    %1500 = vmatpush1.bf16.msra.mxu0 %v1101
    %1501 = vmatprep.subr.bf16.mxu0 0
    %1502 = vmatpush2.bf16.msra.mxu0 %v1116
    %1503 = vmatprep.subr.bf16.mxu0 0
    %1504 = vmatpush2.bf16.msra.mxu0 %v1115
    %1505 = vmatprep.subr.bf16.mxu0 0
    %1506 = vmatpush2.bf16.msra.mxu0 %v1114
    %1507 = vmatprep.subr.bf16.mxu0 0
    %1508 = vmatpush2.bf16.msra.mxu0 %v1113
    %1509 = vmatprep.subr.bf16.mxu0 0
    %1510 = vmatpush2.bf16.msra.mxu0 %v1112
    %1511 = vmatprep.subr.bf16.mxu0 0
    %1512 = vmatpush2.bf16.msra.mxu0 %v1111
    %1513 = vmatprep.subr.bf16.mxu0 0
    %1514 = vmatpush2.bf16.msra.mxu0 %v1110
    %1515 = vmatprep.subr.bf16.mxu0 0
    %1516 = vmatpush2.bf16.msra.mxu0 %v1109
    %1517 = vmatprep.mubr.bf16.mxu0 %v409
    %1518 = vmatmul.mubr.bf16.gmra.mxu0 %v395
    %v1519 = vpop.f32.mrf.mxu0
    %v1520 = vadd.f32 %v1480, %v1519
    %v1521 = vpop.f32.mrf.mxu0
    %v1522 = vpop.f32.mrf.mxu0
    %v1523 = vpop.f32.mrf.mxu0
    %1524 = vdwg.mxu0
    %1525 = vmatprep.subr.bf16.mxu0 0
    %1526 = vmatpush1.bf16.msra.mxu0 %v1124
    %1527 = vmatprep.subr.bf16.mxu0 0
    %1528 = vmatpush1.bf16.msra.mxu0 %v1123
    %1529 = vmatprep.subr.bf16.mxu0 0
    %1530 = vmatpush1.bf16.msra.mxu0 %v1122
    %1531 = vmatprep.subr.bf16.mxu0 0
    %1532 = vmatpush1.bf16.msra.mxu0 %v1121
    %1533 = vmatprep.subr.bf16.mxu0 0
    %1534 = vmatpush1.bf16.msra.mxu0 %v1120
    %1535 = vmatprep.subr.bf16.mxu0 0
    %1536 = vmatpush1.bf16.msra.mxu0 %v1119
    %1537 = vmatprep.subr.bf16.mxu0 0
    %1538 = vmatpush1.bf16.msra.mxu0 %v1118
    %1539 = vmatprep.subr.bf16.mxu0 0
    %1540 = vmatpush1.bf16.msra.mxu0 %v1117
    %1541 = vmatprep.subr.bf16.mxu0 0
    %1542 = vmatpush2.bf16.msra.mxu0 %v1132
    %1543 = vmatprep.subr.bf16.mxu0 0
    %1544 = vmatpush2.bf16.msra.mxu0 %v1131
    %1545 = vmatprep.subr.bf16.mxu0 0
    %1546 = vmatpush2.bf16.msra.mxu0 %v1130
    %1547 = vmatprep.subr.bf16.mxu0 0
    %1548 = vmatpush2.bf16.msra.mxu0 %v1129
    %1549 = vmatprep.subr.bf16.mxu0 0
    %1550 = vmatpush2.bf16.msra.mxu0 %v1128
    %1551 = vmatprep.subr.bf16.mxu0 0
    %1552 = vmatpush2.bf16.msra.mxu0 %v1127
    %1553 = vmatprep.subr.bf16.mxu0 0
    %1554 = vmatpush2.bf16.msra.mxu0 %v1126
    %1555 = vmatprep.subr.bf16.mxu0 0
    %1556 = vmatpush2.bf16.msra.mxu0 %v1125
    %1557 = vmatprep.mubr.bf16.mxu0 %v419
    %1558 = vmatmul.mubr.bf16.gmra.mxu0 %v417
    %v1559 = vpop.f32.mrf.mxu0
    %v1560 = vadd.f32 %v1520, %v1559
    %v1561 = vpop.f32.mrf.mxu0
    %v1562 = vpop.f32.mrf.mxu0
    %v1563 = vpop.f32.mrf.mxu0
    %1564 = vdwg.mxu0
    %1565 = vmatprep.subr.bf16.mxu0 0
    %1566 = vmatpush1.bf16.msra.mxu0 %v1140
    %1567 = vmatprep.subr.bf16.mxu0 0
    %1568 = vmatpush1.bf16.msra.mxu0 %v1139
    %1569 = vmatprep.subr.bf16.mxu0 0
    %1570 = vmatpush1.bf16.msra.mxu0 %v1138
    %1571 = vmatprep.subr.bf16.mxu0 0
    %1572 = vmatpush1.bf16.msra.mxu0 %v1137
    %1573 = vmatprep.subr.bf16.mxu0 0
    %1574 = vmatpush1.bf16.msra.mxu0 %v1136
    %1575 = vmatprep.subr.bf16.mxu0 0
    %1576 = vmatpush1.bf16.msra.mxu0 %v1135
    %1577 = vmatprep.subr.bf16.mxu0 0
    %1578 = vmatpush1.bf16.msra.mxu0 %v1134
    %1579 = vmatprep.subr.bf16.mxu0 0
    %1580 = vmatpush1.bf16.msra.mxu0 %v1133
    %1581 = vmatprep.subr.bf16.mxu0 0
    %1582 = vmatpush2.bf16.msra.mxu0 %v1148
    %1583 = vmatprep.subr.bf16.mxu0 0
    %1584 = vmatpush2.bf16.msra.mxu0 %v1147
    %1585 = vmatprep.subr.bf16.mxu0 0
    %1586 = vmatpush2.bf16.msra.mxu0 %v1146
    %1587 = vmatprep.subr.bf16.mxu0 0
    %1588 = vmatpush2.bf16.msra.mxu0 %v1145
    %1589 = vmatprep.subr.bf16.mxu0 0
    %1590 = vmatpush2.bf16.msra.mxu0 %v1144
    %1591 = vmatprep.subr.bf16.mxu0 0
    %1592 = vmatpush2.bf16.msra.mxu0 %v1143
    %1593 = vmatprep.subr.bf16.mxu0 0
    %1594 = vmatpush2.bf16.msra.mxu0 %v1142
    %1595 = vmatprep.subr.bf16.mxu0 0
    %1596 = vmatpush2.bf16.msra.mxu0 %v1141
    %1597 = vmatprep.mubr.bf16.mxu0 %v416
    %1598 = vmatmul.mubr.bf16.gmra.mxu0 %v402
    %v1599 = vpop.f32.mrf.mxu0
    %v1600 = vadd.f32 %v1560, %v1599
    %v1601 = vpop.f32.mrf.mxu0
    %v1602 = vpop.f32.mrf.mxu0
    %v1603 = vpop.f32.mrf.mxu0
    %1604 = vdwg.mxu0
    %1605 = vmatprep.subr.bf16.mxu0 0
    %1606 = vmatpush1.bf16.msra.mxu0 %v1156
    %1607 = vmatprep.subr.bf16.mxu0 0
    %1608 = vmatpush1.bf16.msra.mxu0 %v1155
    %1609 = vmatprep.subr.bf16.mxu0 0
    %1610 = vmatpush1.bf16.msra.mxu0 %v1154
    %1611 = vmatprep.subr.bf16.mxu0 0
    %1612 = vmatpush1.bf16.msra.mxu0 %v1153
    %1613 = vmatprep.subr.bf16.mxu0 0
    %1614 = vmatpush1.bf16.msra.mxu0 %v1152
    %1615 = vmatprep.subr.bf16.mxu0 0
    %1616 = vmatpush1.bf16.msra.mxu0 %v1151
    %1617 = vmatprep.subr.bf16.mxu0 0
    %1618 = vmatpush1.bf16.msra.mxu0 %v1150
    %1619 = vmatprep.subr.bf16.mxu0 0
    %1620 = vmatpush1.bf16.msra.mxu0 %v1149
    %1621 = vmatprep.subr.bf16.mxu0 0
    %1622 = vmatpush2.bf16.msra.mxu0 %v1164
    %1623 = vmatprep.subr.bf16.mxu0 0
    %1624 = vmatpush2.bf16.msra.mxu0 %v1163
    %1625 = vmatprep.subr.bf16.mxu0 0
    %1626 = vmatpush2.bf16.msra.mxu0 %v1162
    %1627 = vmatprep.subr.bf16.mxu0 0
    %1628 = vmatpush2.bf16.msra.mxu0 %v1161
    %1629 = vmatprep.subr.bf16.mxu0 0
    %1630 = vmatpush2.bf16.msra.mxu0 %v1160
    %1631 = vmatprep.subr.bf16.mxu0 0
    %1632 = vmatpush2.bf16.msra.mxu0 %v1159
    %1633 = vmatprep.subr.bf16.mxu0 0
    %1634 = vmatpush2.bf16.msra.mxu0 %v1158
    %1635 = vmatprep.subr.bf16.mxu0 0
    %1636 = vmatpush2.bf16.msra.mxu0 %v1157
    %1637 = vmatprep.mubr.bf16.mxu0 %v420
    %1638 = vmatmul.mubr.bf16.gmra.mxu0 %v418
    %v1639 = vpop.f32.mrf.mxu0
    %v1640 = vadd.f32 %v1600, %v1639
    %v1641 = vpop.f32.mrf.mxu0
    %v1642 = vpop.f32.mrf.mxu0
    %v1643 = vpop.f32.mrf.mxu0
    %1644 = vdwg.mxu0
    %1645 = vmatprep.subr.bf16.mxu0 0
    %1646 = vmatpush1.bf16.msra.mxu0 %v1172
    %1647 = vmatprep.subr.bf16.mxu0 0
    %1648 = vmatpush1.bf16.msra.mxu0 %v1171
    %1649 = vmatprep.subr.bf16.mxu0 0
    %1650 = vmatpush1.bf16.msra.mxu0 %v1170
    %1651 = vmatprep.subr.bf16.mxu0 0
    %1652 = vmatpush1.bf16.msra.mxu0 %v1169
    %1653 = vmatprep.subr.bf16.mxu0 0
    %1654 = vmatpush1.bf16.msra.mxu0 %v1168
    %1655 = vmatprep.subr.bf16.mxu0 0
    %1656 = vmatpush1.bf16.msra.mxu0 %v1167
    %1657 = vmatprep.subr.bf16.mxu0 0
    %1658 = vmatpush1.bf16.msra.mxu0 %v1166
    %1659 = vmatprep.subr.bf16.mxu0 0
    %1660 = vmatpush1.bf16.msra.mxu0 %v1165
    %1661 = vmatprep.subr.bf16.mxu0 0
    %1662 = vmatpush2.bf16.msra.mxu0 %v1180
    %1663 = vmatprep.subr.bf16.mxu0 0
    %1664 = vmatpush2.bf16.msra.mxu0 %v1179
    %1665 = vmatprep.subr.bf16.mxu0 0
    %1666 = vmatpush2.bf16.msra.mxu0 %v1178
    %1667 = vmatprep.subr.bf16.mxu0 0
    %1668 = vmatpush2.bf16.msra.mxu0 %v1177
    %1669 = vmatprep.subr.bf16.mxu0 0
    %1670 = vmatpush2.bf16.msra.mxu0 %v1176
    %1671 = vmatprep.subr.bf16.mxu0 0
    %1672 = vmatpush2.bf16.msra.mxu0 %v1175
    %1673 = vmatprep.subr.bf16.mxu0 0
    %1674 = vmatpush2.bf16.msra.mxu0 %v1174
    %1675 = vmatprep.subr.bf16.mxu0 0
    %1676 = vmatpush2.bf16.msra.mxu0 %v1173
    %1677 = vmatprep.mubr.bf16.mxu0 %v442
    %1678 = vmatmul.mubr.bf16.gmra.mxu0 %v435
    %v1679 = vpop.f32.mrf.mxu0
    %v1680 = vadd.f32 %v1640, %v1679
    %v1681 = vpop.f32.mrf.mxu0
    %v1682 = vpop.f32.mrf.mxu0
    %v1683 = vpop.f32.mrf.mxu0
    %1684 = vdwg.mxu0
    %v1685 = vmax.f32 %v1680, 0.0
    %v1686 = vpack.c.bf16 %v1685, %v1685
    %v1687 = vld [vmem:[%s3] sm:$0xf]
    %v1688 = vld [vmem:[%s3 + $0x4] sm:$0xf]
    %v1689 = vld [vmem:[%s3 + $0x8] sm:$0xf]
    %v1690 = vld [vmem:[%s3 + $0xc] sm:$0xf]
    %v1691 = vld [vmem:[%s3 + $0x10] sm:$0xf]
    %v1692 = vld [vmem:[%s3 + $0x14] sm:$0xf]
    %v1693 = vld [vmem:[%s3 + $0x18] sm:$0xf]
    %v1694 = vld [vmem:[%s3 + $0x1c] sm:$0xf]
    %v1695 = vld [vmem:[%s4] sm:$0x1]
    %v1697 = vlaneseq
    %v1698 = vshrl.u32 %v1697, 7
    %v1699 = vsub.s32 0, %v1698
    %v1700 = vrot.slane %v1695, %v1699
    %v1710 = vunpack.c.l.b16 %v1687
    %v1711 = vunpack.c.l.b16 %v1688
    %v1712 = vunpack.c.l.b16 %v1689
    %v1713 = vunpack.c.l.b16 %v1690
    %v1714 = vunpack.c.l.b16 %v1691
    %v1715 = vunpack.c.l.b16 %v1692
    %v1716 = vunpack.c.l.b16 %v1693
    %v1717 = vunpack.c.l.b16 %v1694
    %v1718 = vpack.c.b16 %v1711, %v1710
    %v1719 = vpack.c.b16 %v1713, %v1712
    %v1720 = vpack.c.b16 %v1715, %v1714
    %v1721 = vpack.c.b16 %v1717, %v1716
    %vm1726 = vcmask 523264
    %v1728 = vsel %vm1726, %v1686, 0
    %1730 = vmatprep.subr.bf16.mxu0 0
    %1731 = vmatpush1.bf16.msra.mxu0 0
    %1732 = vmatprep.subr.bf16.mxu0 0
    %1733 = vmatpush1.bf16.msra.mxu0 0
    %1734 = vmatprep.subr.bf16.mxu0 0
    %1735 = vmatpush1.bf16.msra.mxu0 0
    %1736 = vmatprep.subr.bf16.mxu0 0
    %1737 = vmatpush1.bf16.msra.mxu0 0
    %1738 = vmatprep.subr.bf16.mxu0 0
    %1739 = vmatpush1.bf16.msra.mxu0 %v1721
    %1740 = vmatprep.subr.bf16.mxu0 0
    %1741 = vmatpush1.bf16.msra.mxu0 %v1720
    %1742 = vmatprep.subr.bf16.mxu0 0
    %1743 = vmatpush1.bf16.msra.mxu0 %v1719
    %1744 = vmatprep.subr.bf16.mxu0 0
    %1745 = vmatpush1.bf16.msra.mxu0 %v1718
    %1746 = vmatprep.subr.bf16.mxu0 0
    %1747 = vmatpush2.bf16.msra.mxu0 0
    %1748 = vmatprep.subr.bf16.mxu0 0
    %1749 = vmatpush2.bf16.msra.mxu0 0
    %1750 = vmatprep.subr.bf16.mxu0 0
    %1751 = vmatpush2.bf16.msra.mxu0 0
    %1752 = vmatprep.subr.bf16.mxu0 0
    %1753 = vmatpush2.bf16.msra.mxu0 0
    %1754 = vmatprep.subr.bf16.mxu0 0
    %1755 = vmatpush2.bf16.msra.mxu0 0
    %1756 = vmatprep.subr.bf16.mxu0 0
    %1757 = vmatpush2.bf16.msra.mxu0 0
    %1758 = vmatprep.subr.bf16.mxu0 0
    %1759 = vmatpush2.bf16.msra.mxu0 0
    %1760 = vmatprep.subr.bf16.mxu0 0
    %1761 = vmatpush2.bf16.msra.mxu0 0
    %1762 = vmatprep.mubr.bf16.mxu0 0
    %1763 = vmatmul.mubr.bf16.gmra.mxu0 %v1728
    %v1764 = vpop.f32.mrf.mxu0
    %v1765 = vadd.f32 %v1700, %v1764
    %v1766 = vpop.f32.mrf.mxu0
    %v1767 = vpop.f32.mrf.mxu0
    %v1768 = vpop.f32.mrf.mxu0
    %1769 = vdwg.mxu0
    %vm1770 = vcmask 74752
    %v1771 = vsel %vm1770, %v1765, -inf
    %1772 = vmax.xlane.f32.xlu0 %v1771
    %v1773 = vpop.xlane.xlu0 %1772
    %v1774 = vsub.f32 %v1765, %v1773
    %v1775 = vmul.f32 %v1774, 1.442695
    %v1776 = vpow.pop %v1775
    %v1777 = vsel %vm1770, %v1776, 0.0
    %1778 = vadd.xlane.f32.xlu0 %v1777
    %v1779 = vpop.xlane.xlu0 %1778
    %v1780 = vrcp.pop %v1779
    %v1781 = vmul.f32 %v1776, %v1780
    %1782 = vst.msk [vmem:[#allocation2] sm:$0x3] %vm1770, %v1781
    // Predicated region
    $region22: #{conv_net_forward.5} parent=1 // pred_check
      _
    $region23: #{conv_net_forward.5} parent=1 // pred_check_branch
      %1784 = sbr.rel (0) target = $region25
    $region24: #{conv_net_forward.5} parent=1 // pred_region
      %s1786 = ssub.s32 32, 32
      %1787 = vsyncadd [#allocation3], %s1786
      %s1789 = sshll.u32 [#allocation2], 4
      %s1790 = int_to_ptr.vmem [resolvable:$true] %s1789
      %1792 = dma.vmem_to_hbm [thread:$0]  %s1790, 32, %s5, [#allocation3]
    $region25: #{conv_net_forward.5} parent=1 // pred_fallthru
      _
    // Predicated region
    $region26: #{conv_net_forward.5} parent=1 // pred_check
      _
    $region27: #{conv_net_forward.5} parent=1 // pred_check_branch
      %1794 = sbr.rel (0) target = $region29
    $region28: #{conv_net_forward.5} parent=1 // pred_region
      %1795 = dma.done [#allocation3], 32
    $region29: #{conv_net_forward.5} parent=1 // pred_fallthru
      _
    %1796 = vsyncpa [#allocation3], 1

// kernel: conv_net_forward.4
$region0: #{conv_net_forward.4}
  #allocation0 [shape = 'u32[]', space=smem, size = 0x4, offset = 0x4, fixed_abs, tag = 'smem constant byte address 0x4 - core index']
  #allocation1 [shape = 'u32[144,128]{1,0:T(1,128)}', space=vmem, size = 0x12000, scoped, tag = 'internal scratch']
  #allocation2 [shape = 'f32[224,128]{1,0:T(8,128)}', space=vmem, size = 0x1c000, scoped, tag = 'scratch operand']
  #allocation3 [shape = 'f32[16,128]{1,0:T(8,128)}', space=vmem, size = 0x2000, scoped, tag = 'scratch operand']
  %s0 = inlined_call_operand.vmem [shape: bf16[224,128], index: 0, kind: input, shape index: {}]
  %s1 = inlined_call_operand.vmem [shape: bf16[9,128,128], index: 1, kind: input, shape index: {}]
  %s2 = inlined_call_operand.vmem [shape: f32[1,128], index: 2, kind: input, shape index: {}]
  %s3 = inlined_call_operand.vmem [shape: bf16[96,128], index: 3, kind: output, shape index: {}]
  %s4 = sld [smem:[#allocation0]]
  $region22: #{conv_net_forward.4} parent=0
    _
  %s6 = ssub.s32 1, %s4
  %s7 = scalar_select 0, %s6, %s4
  // Predicated region
  $region2: #{conv_net_forward.4} parent=0 // pred_check
    _
  $region3: #{conv_net_forward.4} parent=0 // pred_check_branch
    %9 = sbr.rel (0) target = $region5
  $region4: #{conv_net_forward.4} parent=0 // pred_region
    _
  $region5: #{conv_net_forward.4} parent=0 // pred_fallthru
    _
  // Predicated region
  $region6: #{conv_net_forward.4} parent=0 // pred_check
    _
  $region7: #{conv_net_forward.4} parent=0 // pred_check_branch
    %11 = sbr.rel (0) target = $region9
  $region8: #{conv_net_forward.4} parent=0 // pred_region
    _
  $region9: #{conv_net_forward.4} parent=0 // pred_fallthru
    _
  // Predicated region
  $region10: #{conv_net_forward.4} parent=0 // pred_check
    _
  $region11: #{conv_net_forward.4} parent=0 // pred_check_branch
    %13 = sbr.rel (0) target = $region13
  $region12: #{conv_net_forward.4} parent=0 // pred_region
    _
  $region13: #{conv_net_forward.4} parent=0 // pred_fallthru
    _
  %v15 = vld [vmem:[%s0] sm:$0xf]
  %v16 = vld [vmem:[%s0 + $0x4] sm:$0xf]
  %v17 = vld [vmem:[%s0 + $0x8] sm:$0xf]
  %v18 = vld [vmem:[%s0 + $0xc] sm:$0xf]
  %v19 = vld [vmem:[%s0 + $0x10] sm:$0xf]
  %v20 = vld [vmem:[%s0 + $0x14] sm:$0xf]
  %v21 = vld [vmem:[%s0 + $0x18] sm:$0xf]
  %v22 = vld [vmem:[%s0 + $0x1c] sm:$0xf]
  %v23 = vld [vmem:[%s0 + $0x20] sm:$0xf]
  %v24 = vld [vmem:[%s0 + $0x24] sm:$0xf]
  %v25 = vld [vmem:[%s0 + $0x28] sm:$0xf]
  %v26 = vld [vmem:[%s0 + $0x2c] sm:$0xf]
  %v27 = vld [vmem:[%s0 + $0x30] sm:$0xf]
  %v28 = vld [vmem:[%s0 + $0x34] sm:$0xf]
  %v29 = vld [vmem:[%s0 + $0x38] sm:$0xf]
  %v30 = vld [vmem:[%s0 + $0x3c] sm:$0xf]
  %v31 = vld [vmem:[%s0 + $0x40] sm:$0xf]
  %v32 = vld [vmem:[%s0 + $0x44] sm:$0xf]
  %v33 = vld [vmem:[%s0 + $0x48] sm:$0xf]
  %v34 = vld [vmem:[%s0 + $0x4c] sm:$0xf]
  %v35 = vld [vmem:[%s0 + $0x50] sm:$0xf]
  %v36 = vld [vmem:[%s0 + $0x54] sm:$0xf]
  %v37 = vld [vmem:[%s1] sm:$0xf]
  %v38 = vld [vmem:[%s1 + $0x4] sm:$0xf]
  %v39 = vld [vmem:[%s1 + $0x8] sm:$0xf]
  %v40 = vld [vmem:[%s1 + $0xc] sm:$0xf]
  %v41 = vld [vmem:[%s1 + $0x10] sm:$0xf]
  %v42 = vld [vmem:[%s1 + $0x14] sm:$0xf]
  %v43 = vld [vmem:[%s1 + $0x18] sm:$0xf]
  %v44 = vld [vmem:[%s1 + $0x1c] sm:$0xf]
  %v45 = vld [vmem:[%s1 + $0x20] sm:$0xf]
  %v46 = vld [vmem:[%s1 + $0x24] sm:$0xf]
  %v47 = vld [vmem:[%s1 + $0x28] sm:$0xf]
  %v48 = vld [vmem:[%s1 + $0x2c] sm:$0xf]
  %v49 = vld [vmem:[%s1 + $0x30] sm:$0xf]
  %v50 = vld [vmem:[%s1 + $0x34] sm:$0xf]
  %v51 = vld [vmem:[%s1 + $0x38] sm:$0xf]
  %v52 = vld [vmem:[%s1 + $0x3c] sm:$0xf]
  %v75 = vunpack.c.l.b16 %v15
  %v76 = vunpack.c.l.b16 %v16
  %v77 = vunpack.c.l.b16 %v17
  %v78 = vunpack.c.l.b16 %v18
  %v79 = vunpack.c.l.b16 %v19
  %v80 = vunpack.c.l.b16 %v20
  %v81 = vunpack.c.l.b16 %v21
  %v82 = vunpack.c.l.b16 %v22
  %v83 = vunpack.c.l.b16 %v23
  %v84 = vunpack.c.l.b16 %v24
  %v85 = vunpack.c.l.b16 %v25
  %v86 = vunpack.c.l.b16 %v26
  %v87 = vunpack.c.l.b16 %v27
  %v88 = vunpack.c.l.b16 %v28
  %v89 = vunpack.c.l.b16 %v29
  %v90 = vunpack.c.l.b16 %v30
  %v91 = vunpack.c.l.b16 %v31
  %v92 = vunpack.c.l.b16 %v32
  %v93 = vunpack.c.l.b16 %v33
  %v94 = vunpack.c.l.b16 %v34
  %v95 = vunpack.c.l.b16 %v35
  %v96 = vunpack.c.l.b16 %v36
  %v97 = vpack.c.b16 %v76, %v75
  %v98 = vpack.c.b16 %v78, %v77
  %v99 = vpack.c.b16 %v80, %v79
  %v100 = vpack.c.b16 %v82, %v81
  %v101 = vpack.c.b16 %v84, %v83
  %v102 = vpack.c.b16 %v86, %v85
  %v103 = vpack.c.b16 %v88, %v87
  %v104 = vpack.c.b16 %v90, %v89
  %v105 = vpack.c.b16 %v92, %v91
  %v106 = vpack.c.b16 %v94, %v93
  %v107 = vpack.c.b16 %v96, %v95
  %v135 = vunpack.c.l.b16 %v37
  %v136 = vunpack.c.l.b16 %v38
  %v137 = vunpack.c.l.b16 %v39
  %v138 = vunpack.c.l.b16 %v40
  %v139 = vunpack.c.l.b16 %v41
  %v140 = vunpack.c.l.b16 %v42
  %v141 = vunpack.c.l.b16 %v43
  %v142 = vunpack.c.l.b16 %v44
  %v143 = vunpack.c.l.b16 %v45
  %v144 = vunpack.c.l.b16 %v46
  %v145 = vunpack.c.l.b16 %v47
  %v146 = vunpack.c.l.b16 %v48
  %v147 = vunpack.c.l.b16 %v49
  %v148 = vunpack.c.l.b16 %v50
  %v149 = vunpack.c.l.b16 %v51
  %v150 = vunpack.c.l.b16 %v52
  %v151 = vpack.c.b16 %v136, %v135
  %v152 = vpack.c.b16 %v138, %v137
  %v153 = vpack.c.b16 %v140, %v139
  %v154 = vpack.c.b16 %v142, %v141
  %v155 = vpack.c.b16 %v144, %v143
  %v156 = vpack.c.b16 %v146, %v145
  %v157 = vpack.c.b16 %v148, %v147
  %v158 = vpack.c.b16 %v150, %v149
  %167 = vmatprep.subr.bf16.mxu0 0
  %168 = vmatpush1.bf16.msra.mxu0 %v158
  %169 = vmatprep.subr.bf16.mxu0 0
  %170 = vmatpush1.bf16.msra.mxu0 %v157
  %171 = vmatprep.subr.bf16.mxu0 0
  %172 = vmatpush1.bf16.msra.mxu0 %v156
  %173 = vmatprep.subr.bf16.mxu0 0
  %174 = vmatpush1.bf16.msra.mxu0 %v155
  %175 = vmatprep.subr.bf16.mxu0 0
  %176 = vmatpush1.bf16.msra.mxu0 %v154
  %177 = vmatprep.subr.bf16.mxu0 0
  %178 = vmatpush1.bf16.msra.mxu0 %v153
  %179 = vmatprep.subr.bf16.mxu0 0
  %180 = vmatpush1.bf16.msra.mxu0 %v152
  %181 = vmatprep.subr.bf16.mxu0 0
  %182 = vmatpush1.bf16.msra.mxu0 %v151
  %183 = vmatprep.subr.bf16.mxu0 0
  %184 = vmatpush2.bf16.msra.mxu0 0
  %185 = vmatprep.subr.bf16.mxu0 0
  %186 = vmatpush2.bf16.msra.mxu0 0
  %187 = vmatprep.subr.bf16.mxu0 0
  %188 = vmatpush2.bf16.msra.mxu0 0
  %189 = vmatprep.subr.bf16.mxu0 0
  %190 = vmatpush2.bf16.msra.mxu0 0
  %191 = vmatprep.subr.bf16.mxu0 0
  %192 = vmatpush2.bf16.msra.mxu0 0
  %193 = vmatprep.subr.bf16.mxu0 0
  %194 = vmatpush2.bf16.msra.mxu0 0
  %195 = vmatprep.subr.bf16.mxu0 0
  %196 = vmatpush2.bf16.msra.mxu0 0
  %197 = vmatprep.subr.bf16.mxu0 0
  %198 = vmatpush2.bf16.msra.mxu0 0
  %199 = vmatprep.mubr.bf16.mxu0 0
  %200 = vmatmul.mubr.bf16.gmra.mxu0 %v97
  %v201 = vpop.f32.mrf.mxu0
  %v202 = vadd.f32 0.0, %v201
  %v203 = vpop.f32.mrf.mxu0
  %v204 = vpop.f32.mrf.mxu0
  %v205 = vadd.f32 0.0, %v204
  %v206 = vpop.f32.mrf.mxu0
  %207 = vmatprep.mubr.bf16.mxu0 0
  %208 = vmatmul.mubr.bf16.gmra.mxu0 %v98
  %v209 = vpop.f32.mrf.mxu0
  %v210 = vadd.f32 0.0, %v209
  %v211 = vpop.f32.mrf.mxu0
  %v212 = vpop.f32.mrf.mxu0
  %v213 = vadd.f32 0.0, %v212
  %v214 = vpop.f32.mrf.mxu0
  %215 = vmatprep.mubr.bf16.mxu0 0
  %216 = vmatmul.mubr.bf16.gmra.mxu0 %v99
  %v217 = vpop.f32.mrf.mxu0
  %v218 = vadd.f32 0.0, %v217
  %v219 = vpop.f32.mrf.mxu0
  %v220 = vpop.f32.mrf.mxu0
  %v221 = vadd.f32 0.0, %v220
  %v222 = vpop.f32.mrf.mxu0
  %223 = vmatprep.mubr.bf16.mxu0 0
  %224 = vmatmul.mubr.bf16.gmra.mxu0 %v100
  %v225 = vpop.f32.mrf.mxu0
  %v226 = vadd.f32 0.0, %v225
  %v227 = vpop.f32.mrf.mxu0
  %v228 = vpop.f32.mrf.mxu0
  %v229 = vadd.f32 0.0, %v228
  %v230 = vpop.f32.mrf.mxu0
  %231 = vmatprep.mubr.bf16.mxu0 0
  %232 = vmatmul.mubr.bf16.gmra.mxu0 %v101
  %v233 = vpop.f32.mrf.mxu0
  %v234 = vadd.f32 0.0, %v233
  %v235 = vpop.f32.mrf.mxu0
  %v236 = vpop.f32.mrf.mxu0
  %v237 = vadd.f32 0.0, %v236
  %v238 = vpop.f32.mrf.mxu0
  %239 = vmatprep.mubr.bf16.mxu0 0
  %240 = vmatmul.mubr.bf16.gmra.mxu0 %v102
  %v241 = vpop.f32.mrf.mxu0
  %v242 = vadd.f32 0.0, %v241
  %v243 = vpop.f32.mrf.mxu0
  %v244 = vpop.f32.mrf.mxu0
  %v245 = vadd.f32 0.0, %v244
  %v246 = vpop.f32.mrf.mxu0
  %247 = vmatprep.mubr.bf16.mxu0 0
  %248 = vmatmul.mubr.bf16.gmra.mxu0 %v103
  %v249 = vpop.f32.mrf.mxu0
  %v250 = vadd.f32 0.0, %v249
  %v251 = vpop.f32.mrf.mxu0
  %v252 = vpop.f32.mrf.mxu0
  %v253 = vadd.f32 0.0, %v252
  %v254 = vpop.f32.mrf.mxu0
  %255 = vmatprep.mubr.bf16.mxu0 0
  %256 = vmatmul.mubr.bf16.gmra.mxu0 %v104
  %v257 = vpop.f32.mrf.mxu0
  %v258 = vadd.f32 0.0, %v257
  %v259 = vpop.f32.mrf.mxu0
  %v260 = vpop.f32.mrf.mxu0
  %v261 = vadd.f32 0.0, %v260
  %v262 = vpop.f32.mrf.mxu0
  %263 = vmatprep.mubr.bf16.mxu0 0
  %264 = vmatmul.mubr.bf16.gmra.mxu0 %v105
  %v265 = vpop.f32.mrf.mxu0
  %v266 = vadd.f32 0.0, %v265
  %v267 = vpop.f32.mrf.mxu0
  %v268 = vpop.f32.mrf.mxu0
  %v269 = vadd.f32 0.0, %v268
  %v270 = vpop.f32.mrf.mxu0
  %271 = vmatprep.mubr.bf16.mxu0 0
  %272 = vmatmul.mubr.bf16.gmra.mxu0 %v106
  %v273 = vpop.f32.mrf.mxu0
  %v274 = vadd.f32 0.0, %v273
  %v275 = vpop.f32.mrf.mxu0
  %v276 = vpop.f32.mrf.mxu0
  %v277 = vadd.f32 0.0, %v276
  %v278 = vpop.f32.mrf.mxu0
  %279 = vmatprep.mubr.bf16.mxu0 0
  %280 = vmatmul.mubr.bf16.gmra.mxu0 %v107
  %v281 = vpop.f32.mrf.mxu0
  %v282 = vadd.f32 0.0, %v281
  %v283 = vpop.f32.mrf.mxu0
  %v284 = vpop.f32.mrf.mxu0
  %v285 = vadd.f32 0.0, %v284
  %v286 = vpop.f32.mrf.mxu0
  %287 = vdwg.mxu0
  %288 = vst [vmem:[#allocation2] sm:$0xff] %v202
  %289 = vst [vmem:[#allocation2 + $0x8] sm:$0xff] %v205
  %290 = vst [vmem:[#allocation2 + $0x10] sm:$0xff] %v210
  %291 = vst [vmem:[#allocation2 + $0x18] sm:$0xff] %v213
  %292 = vst [vmem:[#allocation2 + $0x20] sm:$0xff] %v218
  %293 = vst [vmem:[#allocation2 + $0x28] sm:$0xff] %v221
  %294 = vst [vmem:[#allocation2 + $0x30] sm:$0xff] %v226
  %295 = vst [vmem:[#allocation2 + $0x38] sm:$0xff] %v229
  %296 = vst [vmem:[#allocation2 + $0x40] sm:$0xff] %v234
  %297 = vst [vmem:[#allocation2 + $0x48] sm:$0xff] %v237
  %298 = vst [vmem:[#allocation2 + $0x50] sm:$0xff] %v242
  %299 = vst [vmem:[#allocation2 + $0x58] sm:$0xff] %v245
  %300 = vst [vmem:[#allocation2 + $0x60] sm:$0xff] %v250
  %301 = vst [vmem:[#allocation2 + $0x68] sm:$0xff] %v253
  %302 = vst [vmem:[#allocation2 + $0x70] sm:$0xff] %v258
  %303 = vst [vmem:[#allocation2 + $0x78] sm:$0xff] %v261
  %304 = vst [vmem:[#allocation2 + $0x80] sm:$0xff] %v266
  %305 = vst [vmem:[#allocation2 + $0x88] sm:$0xff] %v269
  %306 = vst [vmem:[#allocation2 + $0x90] sm:$0xff] %v274
  %307 = vst [vmem:[#allocation2 + $0x98] sm:$0xff] %v277
  %308 = vst [vmem:[#allocation2 + $0xa0] sm:$0xff] %v282
  %309 = vst [vmem:[#allocation2 + $0xa8] sm:$0xff] %v285
  %v310 = vld [vmem:[%s0] sm:$0xf]
  %v311 = vld [vmem:[%s0 + $0x4] sm:$0xf]
  %v312 = vld [vmem:[%s0 + $0x8] sm:$0xf]
  %v313 = vld [vmem:[%s0 + $0xc] sm:$0xf]
  %v314 = vld [vmem:[%s0 + $0x10] sm:$0xf]
  %v315 = vld [vmem:[%s0 + $0x14] sm:$0xf]
  %v316 = vld [vmem:[%s0 + $0x18] sm:$0xf]
  %v317 = vld [vmem:[%s0 + $0x1c] sm:$0xf]
  %v318 = vld [vmem:[%s0 + $0x20] sm:$0xf]
  %v319 = vld [vmem:[%s0 + $0x24] sm:$0xf]
  %v320 = vld [vmem:[%s0 + $0x28] sm:$0xf]
  %v321 = vld [vmem:[%s0 + $0x2c] sm:$0xf]
  %v322 = vld [vmem:[%s0 + $0x30] sm:$0xf]
  %v323 = vld [vmem:[%s0 + $0x34] sm:$0xf]
  %v324 = vld [vmem:[%s0 + $0x38] sm:$0xf]
  %v325 = vld [vmem:[%s0 + $0x3c] sm:$0xf]
  %v326 = vld [vmem:[%s0 + $0x40] sm:$0xf]
  %v327 = vld [vmem:[%s0 + $0x44] sm:$0xf]
  %v328 = vld [vmem:[%s0 + $0x48] sm:$0xf]
  %v329 = vld [vmem:[%s0 + $0x4c] sm:$0xf]
  %v330 = vld [vmem:[%s0 + $0x50] sm:$0xf]
  %v331 = vld [vmem:[%s0 + $0x54] sm:$0xf]
  %v332 = vld [vmem:[%s0 + $0x58] sm:$0x1]
  %s333 = scalar_lea.vmem %s1, 64
  %v334 = vld [vmem:[%s333] sm:$0xf]
  %v335 = vld [vmem:[%s333 + $0x4] sm:$0xf]
  %v336 = vld [vmem:[%s333 + $0x8] sm:$0xf]
  %v337 = vld [vmem:[%s333 + $0xc] sm:$0xf]
  %v338 = vld [vmem:[%s333 + $0x10] sm:$0xf]
  %v339 = vld [vmem:[%s333 + $0x14] sm:$0xf]
  %v340 = vld [vmem:[%s333 + $0x18] sm:$0xf]
  %v341 = vld [vmem:[%s333 + $0x1c] sm:$0xf]
  %v342 = vld [vmem:[%s333 + $0x20] sm:$0xf]
  %v343 = vld [vmem:[%s333 + $0x24] sm:$0xf]
  %v344 = vld [vmem:[%s333 + $0x28] sm:$0xf]
  %v345 = vld [vmem:[%s333 + $0x2c] sm:$0xf]
  %v346 = vld [vmem:[%s333 + $0x30] sm:$0xf]
  %v347 = vld [vmem:[%s333 + $0x34] sm:$0xf]
  %v348 = vld [vmem:[%s333 + $0x38] sm:$0xf]
  %v349 = vld [vmem:[%s333 + $0x3c] sm:$0xf]
  %v373 = vunpack.c.l.b16 %v310
  %v374 = vunpack.c.l.b16 %v311
  %v375 = vunpack.c.l.b16 %v312
  %v376 = vunpack.c.l.b16 %v313
  %v377 = vunpack.c.l.b16 %v314
  %v378 = vunpack.c.l.b16 %v315
  %v379 = vunpack.c.l.b16 %v316
  %v380 = vunpack.c.l.b16 %v317
  %v381 = vunpack.c.l.b16 %v318
  %v382 = vunpack.c.l.b16 %v319
  %v383 = vunpack.c.l.b16 %v320
  %v384 = vunpack.c.l.b16 %v321
  %v385 = vunpack.c.l.b16 %v322
  %v386 = vunpack.c.l.b16 %v323
  %v387 = vunpack.c.l.b16 %v324
  %v388 = vunpack.c.l.b16 %v325
  %v389 = vunpack.c.l.b16 %v326
  %v390 = vunpack.c.l.b16 %v327
  %v391 = vunpack.c.l.b16 %v328
  %v392 = vunpack.c.l.b16 %v329
  %v393 = vunpack.c.l.b16 %v330
  %v394 = vunpack.c.l.b16 %v331
  %v395 = vunpack.c.l.b16 %v332
  %v396 = vpack.c.b16 %v374, %v373
  %v397 = vpack.c.b16 %v376, %v375
  %v398 = vpack.c.b16 %v378, %v377
  %v399 = vpack.c.b16 %v380, %v379
  %v400 = vpack.c.b16 %v382, %v381
  %v401 = vpack.c.b16 %v384, %v383
  %v402 = vpack.c.b16 %v386, %v385
  %v403 = vpack.c.b16 %v388, %v387
  %v404 = vpack.c.b16 %v390, %v389
  %v405 = vpack.c.b16 %v392, %v391
  %v406 = vpack.c.b16 %v394, %v393
  %v407 = vpack.c.b16 %v395, %v395
  %vm408 = vsmask.f32 7424
  %v410 = vshrl.u32 %v396, 16
  %v412 = vshll.u32 %v396, 16
  %v414 = vrot.slane %v412, 1
  %v415 = vor.u32 %v410, %v414
  %v417 = vshll.u32 %v397, 16
  %v419 = vrot.slane %v417, 1
  %v420 = vsel %vm408, %v415, %v419
  %v421 = vshrl.u32 %v397, 16
  %v423 = vor.u32 %v421, %v419
  %v425 = vshll.u32 %v398, 16
  %v427 = vrot.slane %v425, 1
  %v428 = vsel %vm408, %v423, %v427
  %v429 = vshrl.u32 %v398, 16
  %v431 = vor.u32 %v429, %v427
  %v433 = vshll.u32 %v399, 16
  %v435 = vrot.slane %v433, 1
  %v436 = vsel %vm408, %v431, %v435
  %v437 = vshrl.u32 %v399, 16
  %v439 = vor.u32 %v437, %v435
  %v441 = vshll.u32 %v400, 16
  %v443 = vrot.slane %v441, 1
  %v444 = vsel %vm408, %v439, %v443
  %v445 = vshrl.u32 %v400, 16
  %v447 = vor.u32 %v445, %v443
  %v449 = vshll.u32 %v401, 16
  %v451 = vrot.slane %v449, 1
  %v452 = vsel %vm408, %v447, %v451
  %v453 = vshrl.u32 %v401, 16
  %v455 = vor.u32 %v453, %v451
  %v457 = vshll.u32 %v402, 16
  %v459 = vrot.slane %v457, 1
  %v460 = vsel %vm408, %v455, %v459
  %v461 = vshrl.u32 %v402, 16
  %v463 = vor.u32 %v461, %v459
  %v465 = vshll.u32 %v403, 16
  %v467 = vrot.slane %v465, 1
  %v468 = vsel %vm408, %v463, %v467
  %v469 = vshrl.u32 %v403, 16
  %v471 = vor.u32 %v469, %v467
  %v473 = vshll.u32 %v404, 16
  %v475 = vrot.slane %v473, 1
  %v476 = vsel %vm408, %v471, %v475
  %v477 = vshrl.u32 %v404, 16
  %v479 = vor.u32 %v477, %v475
  %v481 = vshll.u32 %v405, 16
  %v483 = vrot.slane %v481, 1
  %v484 = vsel %vm408, %v479, %v483
  %v485 = vshrl.u32 %v405, 16
  %v487 = vor.u32 %v485, %v483
  %v489 = vshll.u32 %v406, 16
  %v491 = vrot.slane %v489, 1
  %v492 = vsel %vm408, %v487, %v491
  %v493 = vshrl.u32 %v406, 16
  %v495 = vor.u32 %v493, %v491
  %v497 = vshll.u32 %v407, 16
  %v499 = vrot.slane %v497, 1
  %v500 = vsel %vm408, %v495, %v499
  %v528 = vunpack.c.l.b16 %v334
  %v529 = vunpack.c.l.b16 %v335
  %v530 = vunpack.c.l.b16 %v336
  %v531 = vunpack.c.l.b16 %v337
  %v532 = vunpack.c.l.b16 %v338
  %v533 = vunpack.c.l.b16 %v339
  %v534 = vunpack.c.l.b16 %v340
  %v535 = vunpack.c.l.b16 %v341
  %v536 = vunpack.c.l.b16 %v342
  %v537 = vunpack.c.l.b16 %v343
  %v538 = vunpack.c.l.b16 %v344
  %v539 = vunpack.c.l.b16 %v345
  %v540 = vunpack.c.l.b16 %v346
  %v541 = vunpack.c.l.b16 %v347
  %v542 = vunpack.c.l.b16 %v348
  %v543 = vunpack.c.l.b16 %v349
  %v544 = vpack.c.b16 %v529, %v528
  %v545 = vpack.c.b16 %v531, %v530
  %v546 = vpack.c.b16 %v533, %v532
  %v547 = vpack.c.b16 %v535, %v534
  %v548 = vpack.c.b16 %v537, %v536
  %v549 = vpack.c.b16 %v539, %v538
  %v550 = vpack.c.b16 %v541, %v540
  %v551 = vpack.c.b16 %v543, %v542
  %560 = vmatprep.subr.bf16.mxu0 0
  %561 = vmatpush1.bf16.msra.mxu0 %v551
  %562 = vmatprep.subr.bf16.mxu0 0
  %563 = vmatpush1.bf16.msra.mxu0 %v550
  %564 = vmatprep.subr.bf16.mxu0 0
  %565 = vmatpush1.bf16.msra.mxu0 %v549
  %566 = vmatprep.subr.bf16.mxu0 0
  %567 = vmatpush1.bf16.msra.mxu0 %v548
  %568 = vmatprep.subr.bf16.mxu0 0
  %569 = vmatpush1.bf16.msra.mxu0 %v547
  %570 = vmatprep.subr.bf16.mxu0 0
  %571 = vmatpush1.bf16.msra.mxu0 %v546
  %572 = vmatprep.subr.bf16.mxu0 0
  %573 = vmatpush1.bf16.msra.mxu0 %v545
  %574 = vmatprep.subr.bf16.mxu0 0
  %575 = vmatpush1.bf16.msra.mxu0 %v544
  %576 = vmatprep.subr.bf16.mxu0 0
  %577 = vmatpush2.bf16.msra.mxu0 0
  %578 = vmatprep.subr.bf16.mxu0 0
  %579 = vmatpush2.bf16.msra.mxu0 0
  %580 = vmatprep.subr.bf16.mxu0 0
  %581 = vmatpush2.bf16.msra.mxu0 0
  %582 = vmatprep.subr.bf16.mxu0 0
  %583 = vmatpush2.bf16.msra.mxu0 0
  %584 = vmatprep.subr.bf16.mxu0 0
  %585 = vmatpush2.bf16.msra.mxu0 0
  %586 = vmatprep.subr.bf16.mxu0 0
  %587 = vmatpush2.bf16.msra.mxu0 0
  %588 = vmatprep.subr.bf16.mxu0 0
  %589 = vmatpush2.bf16.msra.mxu0 0
  %590 = vmatprep.subr.bf16.mxu0 0
  %591 = vmatpush2.bf16.msra.mxu0 0
  %592 = vmatprep.mubr.bf16.mxu0 0
  %593 = vmatmul.mubr.bf16.gmra.mxu0 %v420
  %v594 = vpop.f32.mrf.mxu0
  %v595 = vadd.f32 0.0, %v594
  %v596 = vpop.f32.mrf.mxu0
  %v597 = vpop.f32.mrf.mxu0
  %v598 = vadd.f32 0.0, %v597
  %v599 = vpop.f32.mrf.mxu0
  %600 = vmatprep.mubr.bf16.mxu0 0
  %601 = vmatmul.mubr.bf16.gmra.mxu0 %v428
  %v602 = vpop.f32.mrf.mxu0
  %v603 = vadd.f32 0.0, %v602
  %v604 = vpop.f32.mrf.mxu0
  %v605 = vpop.f32.mrf.mxu0
  %v606 = vadd.f32 0.0, %v605
  %v607 = vpop.f32.mrf.mxu0
  %608 = vmatprep.mubr.bf16.mxu0 0
  %609 = vmatmul.mubr.bf16.gmra.mxu0 %v436
  %v610 = vpop.f32.mrf.mxu0
  %v611 = vadd.f32 0.0, %v610
  %v612 = vpop.f32.mrf.mxu0
  %v613 = vpop.f32.mrf.mxu0
  %v614 = vadd.f32 0.0, %v613
  %v615 = vpop.f32.mrf.mxu0
  %616 = vmatprep.mubr.bf16.mxu0 0
  %617 = vmatmul.mubr.bf16.gmra.mxu0 %v444
  %v618 = vpop.f32.mrf.mxu0
  %v619 = vadd.f32 0.0, %v618
  %v620 = vpop.f32.mrf.mxu0
  %v621 = vpop.f32.mrf.mxu0
  %v622 = vadd.f32 0.0, %v621
  %v623 = vpop.f32.mrf.mxu0
  %624 = vmatprep.mubr.bf16.mxu0 0
  %625 = vmatmul.mubr.bf16.gmra.mxu0 %v452
  %v626 = vpop.f32.mrf.mxu0
  %v627 = vadd.f32 0.0, %v626
  %v628 = vpop.f32.mrf.mxu0
  %v629 = vpop.f32.mrf.mxu0
  %v630 = vadd.f32 0.0, %v629
  %v631 = vpop.f32.mrf.mxu0
  %632 = vmatprep.mubr.bf16.mxu0 0
  %633 = vmatmul.mubr.bf16.gmra.mxu0 %v460
  %v634 = vpop.f32.mrf.mxu0
  %v635 = vadd.f32 0.0, %v634
  %v636 = vpop.f32.mrf.mxu0
  %v637 = vpop.f32.mrf.mxu0
  %v638 = vadd.f32 0.0, %v637
  %v639 = vpop.f32.mrf.mxu0
  %640 = vmatprep.mubr.bf16.mxu0 0
  %641 = vmatmul.mubr.bf16.gmra.mxu0 %v468
  %v642 = vpop.f32.mrf.mxu0
  %v643 = vadd.f32 0.0, %v642
  %v644 = vpop.f32.mrf.mxu0
  %v645 = vpop.f32.mrf.mxu0
  %v646 = vadd.f32 0.0, %v645
  %v647 = vpop.f32.mrf.mxu0
  %648 = vmatprep.mubr.bf16.mxu0 0
  %649 = vmatmul.mubr.bf16.gmra.mxu0 %v476
  %v650 = vpop.f32.mrf.mxu0
  %v651 = vadd.f32 0.0, %v650
  %v652 = vpop.f32.mrf.mxu0
  %v653 = vpop.f32.mrf.mxu0
  %v654 = vadd.f32 0.0, %v653
  %v655 = vpop.f32.mrf.mxu0
  %656 = vmatprep.mubr.bf16.mxu0 0
  %657 = vmatmul.mubr.bf16.gmra.mxu0 %v484
  %v658 = vpop.f32.mrf.mxu0
  %v659 = vadd.f32 0.0, %v658
  %v660 = vpop.f32.mrf.mxu0
  %v661 = vpop.f32.mrf.mxu0
  %v662 = vadd.f32 0.0, %v661
  %v663 = vpop.f32.mrf.mxu0
  %664 = vmatprep.mubr.bf16.mxu0 0
  %665 = vmatmul.mubr.bf16.gmra.mxu0 %v492
  %v666 = vpop.f32.mrf.mxu0
  %v667 = vadd.f32 0.0, %v666
  %v668 = vpop.f32.mrf.mxu0
  %v669 = vpop.f32.mrf.mxu0
  %v670 = vadd.f32 0.0, %v669
  %v671 = vpop.f32.mrf.mxu0
  %672 = vmatprep.mubr.bf16.mxu0 0
  %673 = vmatmul.mubr.bf16.gmra.mxu0 %v500
  %v674 = vpop.f32.mrf.mxu0
  %v675 = vadd.f32 0.0, %v674
  %v676 = vpop.f32.mrf.mxu0
  %v677 = vpop.f32.mrf.mxu0
  %v678 = vadd.f32 0.0, %v677
  %v679 = vpop.f32.mrf.mxu0
  %680 = vdwg.mxu0
  %v681 = vld [vmem:[#allocation2] sm:$0xff]
  %v682 = vld [vmem:[#allocation2 + $0x8] sm:$0xff]
  %v683 = vld [vmem:[#allocation2 + $0x10] sm:$0xff]
  %v684 = vld [vmem:[#allocation2 + $0x18] sm:$0xff]
  %v685 = vld [vmem:[#allocation2 + $0x20] sm:$0xff]
  %v686 = vld [vmem:[#allocation2 + $0x28] sm:$0xff]
  %v687 = vld [vmem:[#allocation2 + $0x30] sm:$0xff]
  %v688 = vld [vmem:[#allocation2 + $0x38] sm:$0xff]
  %v689 = vld [vmem:[#allocation2 + $0x40] sm:$0xff]
  %v690 = vld [vmem:[#allocation2 + $0x48] sm:$0xff]
  %v691 = vld [vmem:[#allocation2 + $0x50] sm:$0xff]
  %v692 = vld [vmem:[#allocation2 + $0x58] sm:$0xff]
  %v693 = vld [vmem:[#allocation2 + $0x60] sm:$0xff]
  %v694 = vld [vmem:[#allocation2 + $0x68] sm:$0xff]
  %v695 = vld [vmem:[#allocation2 + $0x70] sm:$0xff]
  %v696 = vld [vmem:[#allocation2 + $0x78] sm:$0xff]
  %v697 = vld [vmem:[#allocation2 + $0x80] sm:$0xff]
  %v698 = vld [vmem:[#allocation2 + $0x88] sm:$0xff]
  %v699 = vld [vmem:[#allocation2 + $0x90] sm:$0xff]
  %v700 = vld [vmem:[#allocation2 + $0x98] sm:$0xff]
  %v701 = vld [vmem:[#allocation2 + $0xa0] sm:$0xff]
  %v702 = vld [vmem:[#allocation2 + $0xa8] sm:$0xff]
  %v703 = vadd.f32 %v681, %v595
  %v704 = vadd.f32 %v682, %v598
  %v705 = vadd.f32 %v683, %v603
  %v706 = vadd.f32 %v684, %v606
  %v707 = vadd.f32 %v685, %v611
  %v708 = vadd.f32 %v686, %v614
  %v709 = vadd.f32 %v687, %v619
  %v710 = vadd.f32 %v688, %v622
  %v711 = vadd.f32 %v689, %v627
  %v712 = vadd.f32 %v690, %v630
  %v713 = vadd.f32 %v691, %v635
  %v714 = vadd.f32 %v692, %v638
  %v715 = vadd.f32 %v693, %v643
  %v716 = vadd.f32 %v694, %v646
  %v717 = vadd.f32 %v695, %v651
  %v718 = vadd.f32 %v696, %v654
  %v719 = vadd.f32 %v697, %v659
  %v720 = vadd.f32 %v698, %v662
  %v721 = vadd.f32 %v699, %v667
  %v722 = vadd.f32 %v700, %v670
  %v723 = vadd.f32 %v701, %v675
  %v724 = vadd.f32 %v702, %v678
  %725 = vst [vmem:[#allocation2] sm:$0xff] %v703
  %726 = vst [vmem:[#allocation2 + $0x8] sm:$0xff] %v704
  %727 = vst [vmem:[#allocation2 + $0x10] sm:$0xff] %v705
  %728 = vst [vmem:[#allocation2 + $0x18] sm:$0xff] %v706
  %729 = vst [vmem:[#allocation2 + $0x20] sm:$0xff] %v707
  %730 = vst [vmem:[#allocation2 + $0x28] sm:$0xff] %v708
  %731 = vst [vmem:[#allocation2 + $0x30] sm:$0xff] %v709
  %732 = vst [vmem:[#allocation2 + $0x38] sm:$0xff] %v710
  %733 = vst [vmem:[#allocation2 + $0x40] sm:$0xff] %v711
  %734 = vst [vmem:[#allocation2 + $0x48] sm:$0xff] %v712
  %735 = vst [vmem:[#allocation2 + $0x50] sm:$0xff] %v713
  %736 = vst [vmem:[#allocation2 + $0x58] sm:$0xff] %v714
  %737 = vst [vmem:[#allocation2 + $0x60] sm:$0xff] %v715
  %738 = vst [vmem:[#allocation2 + $0x68] sm:$0xff] %v716
  %739 = vst [vmem:[#allocation2 + $0x70] sm:$0xff] %v717
  %740 = vst [vmem:[#allocation2 + $0x78] sm:$0xff] %v718
  %741 = vst [vmem:[#allocation2 + $0x80] sm:$0xff] %v719
  %742 = vst [vmem:[#allocation2 + $0x88] sm:$0xff] %v720
  %743 = vst [vmem:[#allocation2 + $0x90] sm:$0xff] %v721
  %744 = vst [vmem:[#allocation2 + $0x98] sm:$0xff] %v722
  %745 = vst [vmem:[#allocation2 + $0xa0] sm:$0xff] %v723
  %746 = vst [vmem:[#allocation2 + $0xa8] sm:$0xff] %v724
  %v747 = vld [vmem:[%s0] sm:$0xe]
  %v748 = vld [vmem:[%s0 + $0x4] sm:$0xf]
  %v749 = vld [vmem:[%s0 + $0x8] sm:$0xf]
  %v750 = vld [vmem:[%s0 + $0xc] sm:$0xf]
  %v751 = vld [vmem:[%s0 + $0x10] sm:$0xf]
  %v752 = vld [vmem:[%s0 + $0x14] sm:$0xf]
  %v753 = vld [vmem:[%s0 + $0x18] sm:$0xf]
  %v754 = vld [vmem:[%s0 + $0x1c] sm:$0xf]
  %v755 = vld [vmem:[%s0 + $0x20] sm:$0xf]
  %v756 = vld [vmem:[%s0 + $0x24] sm:$0xf]
  %v757 = vld [vmem:[%s0 + $0x28] sm:$0xf]
  %v758 = vld [vmem:[%s0 + $0x2c] sm:$0xf]
  %v759 = vld [vmem:[%s0 + $0x30] sm:$0xf]
  %v760 = vld [vmem:[%s0 + $0x34] sm:$0xf]
  %v761 = vld [vmem:[%s0 + $0x38] sm:$0xf]
  %v762 = vld [vmem:[%s0 + $0x3c] sm:$0xf]
  %v763 = vld [vmem:[%s0 + $0x40] sm:$0xf]
  %v764 = vld [vmem:[%s0 + $0x44] sm:$0xf]
  %v765 = vld [vmem:[%s0 + $0x48] sm:$0xf]
  %v766 = vld [vmem:[%s0 + $0x4c] sm:$0xf]
  %v767 = vld [vmem:[%s0 + $0x50] sm:$0xf]
  %v768 = vld [vmem:[%s0 + $0x54] sm:$0xf]
  %v769 = vld [vmem:[%s0 + $0x58] sm:$0x1]
  %s770 = scalar_lea.vmem %s1, 128
  %v771 = vld [vmem:[%s770] sm:$0xf]
  %v772 = vld [vmem:[%s770 + $0x4] sm:$0xf]
  %v773 = vld [vmem:[%s770 + $0x8] sm:$0xf]
  %v774 = vld [vmem:[%s770 + $0xc] sm:$0xf]
  %v775 = vld [vmem:[%s770 + $0x10] sm:$0xf]
  %v776 = vld [vmem:[%s770 + $0x14] sm:$0xf]
  %v777 = vld [vmem:[%s770 + $0x18] sm:$0xf]
  %v778 = vld [vmem:[%s770 + $0x1c] sm:$0xf]
  %v779 = vld [vmem:[%s770 + $0x20] sm:$0xf]
  %v780 = vld [vmem:[%s770 + $0x24] sm:$0xf]
  %v781 = vld [vmem:[%s770 + $0x28] sm:$0xf]
  %v782 = vld [vmem:[%s770 + $0x2c] sm:$0xf]
  %v783 = vld [vmem:[%s770 + $0x30] sm:$0xf]
  %v784 = vld [vmem:[%s770 + $0x34] sm:$0xf]
  %v785 = vld [vmem:[%s770 + $0x38] sm:$0xf]
  %v786 = vld [vmem:[%s770 + $0x3c] sm:$0xf]
  %v810 = vunpack.c.l.b16 %v747
  %v811 = vunpack.c.l.b16 %v748
  %v812 = vunpack.c.l.b16 %v749
  %v813 = vunpack.c.l.b16 %v750
  %v814 = vunpack.c.l.b16 %v751
  %v815 = vunpack.c.l.b16 %v752
  %v816 = vunpack.c.l.b16 %v753
  %v817 = vunpack.c.l.b16 %v754
  %v818 = vunpack.c.l.b16 %v755
  %v819 = vunpack.c.l.b16 %v756
  %v820 = vunpack.c.l.b16 %v757
  %v821 = vunpack.c.l.b16 %v758
  %v822 = vunpack.c.l.b16 %v759
  %v823 = vunpack.c.l.b16 %v760
  %v824 = vunpack.c.l.b16 %v761
  %v825 = vunpack.c.l.b16 %v762
  %v826 = vunpack.c.l.b16 %v763
  %v827 = vunpack.c.l.b16 %v764
  %v828 = vunpack.c.l.b16 %v765
  %v829 = vunpack.c.l.b16 %v766
  %v830 = vunpack.c.l.b16 %v767
  %v831 = vunpack.c.l.b16 %v768
  %v832 = vunpack.c.l.b16 %v769
  %v833 = vpack.c.b16 %v811, %v810
  %v834 = vpack.c.b16 %v813, %v812
  %v835 = vpack.c.b16 %v815, %v814
  %v836 = vpack.c.b16 %v817, %v816
  %v837 = vpack.c.b16 %v819, %v818
  %v838 = vpack.c.b16 %v821, %v820
  %v839 = vpack.c.b16 %v823, %v822
  %v840 = vpack.c.b16 %v825, %v824
  %v841 = vpack.c.b16 %v827, %v826
  %v842 = vpack.c.b16 %v829, %v828
  %v843 = vpack.c.b16 %v831, %v830
  %v844 = vpack.c.b16 %v832, %v832
  %vm845 = vcmask 1046528
  %v846 = vrot.slane %v833, 1
  %v847 = vrot.slane %v834, 1
  %v848 = vsel %vm845, %v846, %v847
  %v849 = vrot.slane %v835, 1
  %v850 = vsel %vm845, %v847, %v849
  %v851 = vrot.slane %v836, 1
  %v852 = vsel %vm845, %v849, %v851
  %v853 = vrot.slane %v837, 1
  %v854 = vsel %vm845, %v851, %v853
  %v855 = vrot.slane %v838, 1
  %v856 = vsel %vm845, %v853, %v855
  %v857 = vrot.slane %v839, 1
  %v858 = vsel %vm845, %v855, %v857
  %v859 = vrot.slane %v840, 1
  %v860 = vsel %vm845, %v857, %v859
  %v861 = vrot.slane %v841, 1
  %v862 = vsel %vm845, %v859, %v861
  %v863 = vrot.slane %v842, 1
  %v864 = vsel %vm845, %v861, %v863
  %v865 = vrot.slane %v843, 1
  %v866 = vsel %vm845, %v863, %v865
  %v867 = vrot.slane %v844, 1
  %v868 = vsel %vm845, %v865, %v867
  %v896 = vunpack.c.l.b16 %v771
  %v897 = vunpack.c.l.b16 %v772
  %v898 = vunpack.c.l.b16 %v773
  %v899 = vunpack.c.l.b16 %v774
  %v900 = vunpack.c.l.b16 %v775
  %v901 = vunpack.c.l.b16 %v776
  %v902 = vunpack.c.l.b16 %v777
  %v903 = vunpack.c.l.b16 %v778
  %v904 = vunpack.c.l.b16 %v779
  %v905 = vunpack.c.l.b16 %v780
  %v906 = vunpack.c.l.b16 %v781
  %v907 = vunpack.c.l.b16 %v782
  %v908 = vunpack.c.l.b16 %v783
  %v909 = vunpack.c.l.b16 %v784
  %v910 = vunpack.c.l.b16 %v785
  %v911 = vunpack.c.l.b16 %v786
  %v912 = vpack.c.b16 %v897, %v896
  %v913 = vpack.c.b16 %v899, %v898
  %v914 = vpack.c.b16 %v901, %v900
  %v915 = vpack.c.b16 %v903, %v902
  %v916 = vpack.c.b16 %v905, %v904
  %v917 = vpack.c.b16 %v907, %v906
  %v918 = vpack.c.b16 %v909, %v908
  %v919 = vpack.c.b16 %v911, %v910
  %928 = vmatprep.subr.bf16.mxu0 0
  %929 = vmatpush1.bf16.msra.mxu0 %v919
  %930 = vmatprep.subr.bf16.mxu0 0
  %931 = vmatpush1.bf16.msra.mxu0 %v918
  %932 = vmatprep.subr.bf16.mxu0 0
  %933 = vmatpush1.bf16.msra.mxu0 %v917
  %934 = vmatprep.subr.bf16.mxu0 0
  %935 = vmatpush1.bf16.msra.mxu0 %v916
  %936 = vmatprep.subr.bf16.mxu0 0
  %937 = vmatpush1.bf16.msra.mxu0 %v915
  %938 = vmatprep.subr.bf16.mxu0 0
  %939 = vmatpush1.bf16.msra.mxu0 %v914
  %940 = vmatprep.subr.bf16.mxu0 0
  %941 = vmatpush1.bf16.msra.mxu0 %v913
  %942 = vmatprep.subr.bf16.mxu0 0
  %943 = vmatpush1.bf16.msra.mxu0 %v912
  %944 = vmatprep.subr.bf16.mxu0 0
  %945 = vmatpush2.bf16.msra.mxu0 0
  %946 = vmatprep.subr.bf16.mxu0 0
  %947 = vmatpush2.bf16.msra.mxu0 0
  %948 = vmatprep.subr.bf16.mxu0 0
  %949 = vmatpush2.bf16.msra.mxu0 0
  %950 = vmatprep.subr.bf16.mxu0 0
  %951 = vmatpush2.bf16.msra.mxu0 0
  %952 = vmatprep.subr.bf16.mxu0 0
  %953 = vmatpush2.bf16.msra.mxu0 0
  %954 = vmatprep.subr.bf16.mxu0 0
  %955 = vmatpush2.bf16.msra.mxu0 0
  %956 = vmatprep.subr.bf16.mxu0 0
  %957 = vmatpush2.bf16.msra.mxu0 0
  %958 = vmatprep.subr.bf16.mxu0 0
  %959 = vmatpush2.bf16.msra.mxu0 0
  %960 = vmatprep.mubr.bf16.mxu0 0
  %961 = vmatmul.mubr.bf16.gmra.mxu0 %v848
  %v962 = vpop.f32.mrf.mxu0
  %v963 = vadd.f32 0.0, %v962
  %v964 = vpop.f32.mrf.mxu0
  %v965 = vpop.f32.mrf.mxu0
  %v966 = vadd.f32 0.0, %v965
  %v967 = vpop.f32.mrf.mxu0
  %968 = vmatprep.mubr.bf16.mxu0 0
  %969 = vmatmul.mubr.bf16.gmra.mxu0 %v850
  %v970 = vpop.f32.mrf.mxu0
  %v971 = vadd.f32 0.0, %v970
  %v972 = vpop.f32.mrf.mxu0
  %v973 = vpop.f32.mrf.mxu0
  %v974 = vadd.f32 0.0, %v973
  %v975 = vpop.f32.mrf.mxu0
  %976 = vmatprep.mubr.bf16.mxu0 0
  %977 = vmatmul.mubr.bf16.gmra.mxu0 %v852
  %v978 = vpop.f32.mrf.mxu0
  %v979 = vadd.f32 0.0, %v978
  %v980 = vpop.f32.mrf.mxu0
  %v981 = vpop.f32.mrf.mxu0
  %v982 = vadd.f32 0.0, %v981
  %v983 = vpop.f32.mrf.mxu0
  %984 = vmatprep.mubr.bf16.mxu0 0
  %985 = vmatmul.mubr.bf16.gmra.mxu0 %v854
  %v986 = vpop.f32.mrf.mxu0
  %v987 = vadd.f32 0.0, %v986
  %v988 = vpop.f32.mrf.mxu0
  %v989 = vpop.f32.mrf.mxu0
  %v990 = vadd.f32 0.0, %v989
  %v991 = vpop.f32.mrf.mxu0
  %992 = vmatprep.mubr.bf16.mxu0 0
  %993 = vmatmul.mubr.bf16.gmra.mxu0 %v856
  %v994 = vpop.f32.mrf.mxu0
  %v995 = vadd.f32 0.0, %v994
  %v996 = vpop.f32.mrf.mxu0
  %v997 = vpop.f32.mrf.mxu0
  %v998 = vadd.f32 0.0, %v997
  %v999 = vpop.f32.mrf.mxu0
  %1000 = vmatprep.mubr.bf16.mxu0 0
  %1001 = vmatmul.mubr.bf16.gmra.mxu0 %v858
  %v1002 = vpop.f32.mrf.mxu0
  %v1003 = vadd.f32 0.0, %v1002
  %v1004 = vpop.f32.mrf.mxu0
  %v1005 = vpop.f32.mrf.mxu0
  %v1006 = vadd.f32 0.0, %v1005
  %v1007 = vpop.f32.mrf.mxu0
  %1008 = vmatprep.mubr.bf16.mxu0 0
  %1009 = vmatmul.mubr.bf16.gmra.mxu0 %v860
  %v1010 = vpop.f32.mrf.mxu0
  %v1011 = vadd.f32 0.0, %v1010
  %v1012 = vpop.f32.mrf.mxu0
  %v1013 = vpop.f32.mrf.mxu0
  %v1014 = vadd.f32 0.0, %v1013
  %v1015 = vpop.f32.mrf.mxu0
  %1016 = vmatprep.mubr.bf16.mxu0 0
  %1017 = vmatmul.mubr.bf16.gmra.mxu0 %v862
  %v1018 = vpop.f32.mrf.mxu0
  %v1019 = vadd.f32 0.0, %v1018
  %v1020 = vpop.f32.mrf.mxu0
  %v1021 = vpop.f32.mrf.mxu0
  %v1022 = vadd.f32 0.0, %v1021
  %v1023 = vpop.f32.mrf.mxu0
  %1024 = vmatprep.mubr.bf16.mxu0 0
  %1025 = vmatmul.mubr.bf16.gmra.mxu0 %v864
  %v1026 = vpop.f32.mrf.mxu0
  %v1027 = vadd.f32 0.0, %v1026
  %v1028 = vpop.f32.mrf.mxu0
  %v1029 = vpop.f32.mrf.mxu0
  %v1030 = vadd.f32 0.0, %v1029
  %v1031 = vpop.f32.mrf.mxu0
  %1032 = vmatprep.mubr.bf16.mxu0 0
  %1033 = vmatmul.mubr.bf16.gmra.mxu0 %v866
  %v1034 = vpop.f32.mrf.mxu0
  %v1035 = vadd.f32 0.0, %v1034
  %v1036 = vpop.f32.mrf.mxu0
  %v1037 = vpop.f32.mrf.mxu0
  %v1038 = vadd.f32 0.0, %v1037
  %v1039 = vpop.f32.mrf.mxu0
  %1040 = vmatprep.mubr.bf16.mxu0 0
  %1041 = vmatmul.mubr.bf16.gmra.mxu0 %v868
  %v1042 = vpop.f32.mrf.mxu0
  %v1043 = vadd.f32 0.0, %v1042
  %v1044 = vpop.f32.mrf.mxu0
  %v1045 = vpop.f32.mrf.mxu0
  %v1046 = vadd.f32 0.0, %v1045
  %v1047 = vpop.f32.mrf.mxu0
  %1048 = vdwg.mxu0
  %v1049 = vld [vmem:[#allocation2] sm:$0xff]
  %v1050 = vld [vmem:[#allocation2 + $0x8] sm:$0xff]
  %v1051 = vld [vmem:[#allocation2 + $0x10] sm:$0xff]
  %v1052 = vld [vmem:[#allocation2 + $0x18] sm:$0xff]
  %v1053 = vld [vmem:[#allocation2 + $0x20] sm:$0xff]
  %v1054 = vld [vmem:[#allocation2 + $0x28] sm:$0xff]
  %v1055 = vld [vmem:[#allocation2 + $0x30] sm:$0xff]
  %v1056 = vld [vmem:[#allocation2 + $0x38] sm:$0xff]
  %v1057 = vld [vmem:[#allocation2 + $0x40] sm:$0xff]
  %v1058 = vld [vmem:[#allocation2 + $0x48] sm:$0xff]
  %v1059 = vld [vmem:[#allocation2 + $0x50] sm:$0xff]
  %v1060 = vld [vmem:[#allocation2 + $0x58] sm:$0xff]
  %v1061 = vld [vmem:[#allocation2 + $0x60] sm:$0xff]
  %v1062 = vld [vmem:[#allocation2 + $0x68] sm:$0xff]
  %v1063 = vld [vmem:[#allocation2 + $0x70] sm:$0xff]
  %v1064 = vld [vmem:[#allocation2 + $0x78] sm:$0xff]
  %v1065 = vld [vmem:[#allocation2 + $0x80] sm:$0xff]
  %v1066 = vld [vmem:[#allocation2 + $0x88] sm:$0xff]
  %v1067 = vld [vmem:[#allocation2 + $0x90] sm:$0xff]
  %v1068 = vld [vmem:[#allocation2 + $0x98] sm:$0xff]
  %v1069 = vld [vmem:[#allocation2 + $0xa0] sm:$0xff]
  %v1070 = vld [vmem:[#allocation2 + $0xa8] sm:$0xff]
  %v1071 = vadd.f32 %v1049, %v963
  %v1072 = vadd.f32 %v1050, %v966
  %v1073 = vadd.f32 %v1051, %v971
  %v1074 = vadd.f32 %v1052, %v974
  %v1075 = vadd.f32 %v1053, %v979
  %v1076 = vadd.f32 %v1054, %v982
  %v1077 = vadd.f32 %v1055, %v987
  %v1078 = vadd.f32 %v1056, %v990
  %v1079 = vadd.f32 %v1057, %v995
  %v1080 = vadd.f32 %v1058, %v998
  %v1081 = vadd.f32 %v1059, %v1003
  %v1082 = vadd.f32 %v1060, %v1006
  %v1083 = vadd.f32 %v1061, %v1011
  %v1084 = vadd.f32 %v1062, %v1014
  %v1085 = vadd.f32 %v1063, %v1019
  %v1086 = vadd.f32 %v1064, %v1022
  %v1087 = vadd.f32 %v1065, %v1027
  %v1088 = vadd.f32 %v1066, %v1030
  %v1089 = vadd.f32 %v1067, %v1035
  %v1090 = vadd.f32 %v1068, %v1038
  %v1091 = vadd.f32 %v1069, %v1043
  %v1092 = vadd.f32 %v1070, %v1046
  %1093 = vst [vmem:[#allocation2] sm:$0xff] %v1071
  %1094 = vst [vmem:[#allocation2 + $0x8] sm:$0xff] %v1072
  %1095 = vst [vmem:[#allocation2 + $0x10] sm:$0xff] %v1073
  %1096 = vst [vmem:[#allocation2 + $0x18] sm:$0xff] %v1074
  %1097 = vst [vmem:[#allocation2 + $0x20] sm:$0xff] %v1075
  %1098 = vst [vmem:[#allocation2 + $0x28] sm:$0xff] %v1076
  %1099 = vst [vmem:[#allocation2 + $0x30] sm:$0xff] %v1077
  %1100 = vst [vmem:[#allocation2 + $0x38] sm:$0xff] %v1078
  %1101 = vst [vmem:[#allocation2 + $0x40] sm:$0xff] %v1079
  %1102 = vst [vmem:[#allocation2 + $0x48] sm:$0xff] %v1080
  %1103 = vst [vmem:[#allocation2 + $0x50] sm:$0xff] %v1081
  %1104 = vst [vmem:[#allocation2 + $0x58] sm:$0xff] %v1082
  %1105 = vst [vmem:[#allocation2 + $0x60] sm:$0xff] %v1083
  %1106 = vst [vmem:[#allocation2 + $0x68] sm:$0xff] %v1084
  %1107 = vst [vmem:[#allocation2 + $0x70] sm:$0xff] %v1085
  %1108 = vst [vmem:[#allocation2 + $0x78] sm:$0xff] %v1086
  %1109 = vst [vmem:[#allocation2 + $0x80] sm:$0xff] %v1087
  %1110 = vst [vmem:[#allocation2 + $0x88] sm:$0xff] %v1088
  %1111 = vst [vmem:[#allocation2 + $0x90] sm:$0xff] %v1089
  %1112 = vst [vmem:[#allocation2 + $0x98] sm:$0xff] %v1090
  %1113 = vst [vmem:[#allocation2 + $0xa0] sm:$0xff] %v1091
  %1114 = vst [vmem:[#allocation2 + $0xa8] sm:$0xff] %v1092
  %v1115 = vld [vmem:[%s0 + $0x8] sm:$0xf]
  %v1116 = vld [vmem:[%s0 + $0xc] sm:$0xf]
  %v1117 = vld [vmem:[%s0 + $0x10] sm:$0xf]
  %v1118 = vld [vmem:[%s0 + $0x14] sm:$0xf]
  %v1119 = vld [vmem:[%s0 + $0x18] sm:$0xf]
  %v1120 = vld [vmem:[%s0 + $0x1c] sm:$0xf]
  %v1121 = vld [vmem:[%s0 + $0x20] sm:$0xf]
  %v1122 = vld [vmem:[%s0 + $0x24] sm:$0xf]
  %v1123 = vld [vmem:[%s0 + $0x28] sm:$0xf]
  %v1124 = vld [vmem:[%s0 + $0x2c] sm:$0xf]
  %v1125 = vld [vmem:[%s0 + $0x30] sm:$0xf]
  %v1126 = vld [vmem:[%s0 + $0x34] sm:$0xf]
  %v1127 = vld [vmem:[%s0 + $0x38] sm:$0xf]
  %v1128 = vld [vmem:[%s0 + $0x3c] sm:$0xf]
  %v1129 = vld [vmem:[%s0 + $0x40] sm:$0xf]
  %v1130 = vld [vmem:[%s0 + $0x44] sm:$0xf]
  %v1131 = vld [vmem:[%s0 + $0x48] sm:$0xf]
  %v1132 = vld [vmem:[%s0 + $0x4c] sm:$0xf]
  %v1133 = vld [vmem:[%s0 + $0x50] sm:$0xf]
  %v1134 = vld [vmem:[%s0 + $0x54] sm:$0xf]
  %v1135 = vld [vmem:[%s0 + $0x58] sm:$0xf]
  %v1136 = vld [vmem:[%s0 + $0x5c] sm:$0xf]
  %s1137 = scalar_lea.vmem %s1, 192
  %v1138 = vld [vmem:[%s1137] sm:$0xf]
  %v1139 = vld [vmem:[%s1137 + $0x4] sm:$0xf]
  %v1140 = vld [vmem:[%s1137 + $0x8] sm:$0xf]
  %v1141 = vld [vmem:[%s1137 + $0xc] sm:$0xf]
  %v1142 = vld [vmem:[%s1137 + $0x10] sm:$0xf]
  %v1143 = vld [vmem:[%s1137 + $0x14] sm:$0xf]
  %v1144 = vld [vmem:[%s1137 + $0x18] sm:$0xf]
  %v1145 = vld [vmem:[%s1137 + $0x1c] sm:$0xf]
  %v1146 = vld [vmem:[%s1137 + $0x20] sm:$0xf]
  %v1147 = vld [vmem:[%s1137 + $0x24] sm:$0xf]
  %v1148 = vld [vmem:[%s1137 + $0x28] sm:$0xf]
  %v1149 = vld [vmem:[%s1137 + $0x2c] sm:$0xf]
  %v1150 = vld [vmem:[%s1137 + $0x30] sm:$0xf]
  %v1151 = vld [vmem:[%s1137 + $0x34] sm:$0xf]
  %v1152 = vld [vmem:[%s1137 + $0x38] sm:$0xf]
  %v1153 = vld [vmem:[%s1137 + $0x3c] sm:$0xf]
  %v1176 = vunpack.c.l.b16 %v1115
  %v1177 = vunpack.c.l.b16 %v1116
  %v1178 = vunpack.c.l.b16 %v1117
  %v1179 = vunpack.c.l.b16 %v1118
  %v1180 = vunpack.c.l.b16 %v1119
  %v1181 = vunpack.c.l.b16 %v1120
  %v1182 = vunpack.c.l.b16 %v1121
  %v1183 = vunpack.c.l.b16 %v1122
  %v1184 = vunpack.c.l.b16 %v1123
  %v1185 = vunpack.c.l.b16 %v1124
  %v1186 = vunpack.c.l.b16 %v1125
  %v1187 = vunpack.c.l.b16 %v1126
  %v1188 = vunpack.c.l.b16 %v1127
  %v1189 = vunpack.c.l.b16 %v1128
  %v1190 = vunpack.c.l.b16 %v1129
  %v1191 = vunpack.c.l.b16 %v1130
  %v1192 = vunpack.c.l.b16 %v1131
  %v1193 = vunpack.c.l.b16 %v1132
  %v1194 = vunpack.c.l.b16 %v1133
  %v1195 = vunpack.c.l.b16 %v1134
  %v1196 = vunpack.c.l.b16 %v1135
  %v1197 = vunpack.c.l.b16 %v1136
  %v1198 = vpack.c.b16 %v1177, %v1176
  %v1199 = vpack.c.b16 %v1179, %v1178
  %v1200 = vpack.c.b16 %v1181, %v1180
  %v1201 = vpack.c.b16 %v1183, %v1182
  %v1202 = vpack.c.b16 %v1185, %v1184
  %v1203 = vpack.c.b16 %v1187, %v1186
  %v1204 = vpack.c.b16 %v1189, %v1188
  %v1205 = vpack.c.b16 %v1191, %v1190
  %v1206 = vpack.c.b16 %v1193, %v1192
  %v1207 = vpack.c.b16 %v1195, %v1194
  %v1208 = vpack.c.b16 %v1197, %v1196
  %v1236 = vunpack.c.l.b16 %v1138
  %v1237 = vunpack.c.l.b16 %v1139
  %v1238 = vunpack.c.l.b16 %v1140
  %v1239 = vunpack.c.l.b16 %v1141
  %v1240 = vunpack.c.l.b16 %v1142
  %v1241 = vunpack.c.l.b16 %v1143
  %v1242 = vunpack.c.l.b16 %v1144
  %v1243 = vunpack.c.l.b16 %v1145
  %v1244 = vunpack.c.l.b16 %v1146
  %v1245 = vunpack.c.l.b16 %v1147
  %v1246 = vunpack.c.l.b16 %v1148
  %v1247 = vunpack.c.l.b16 %v1149
  %v1248 = vunpack.c.l.b16 %v1150
  %v1249 = vunpack.c.l.b16 %v1151
  %v1250 = vunpack.c.l.b16 %v1152
  %v1251 = vunpack.c.l.b16 %v1153
  %v1252 = vpack.c.b16 %v1237, %v1236
  %v1253 = vpack.c.b16 %v1239, %v1238
  %v1254 = vpack.c.b16 %v1241, %v1240
  %v1255 = vpack.c.b16 %v1243, %v1242
  %v1256 = vpack.c.b16 %v1245, %v1244
  %v1257 = vpack.c.b16 %v1247, %v1246
  %v1258 = vpack.c.b16 %v1249, %v1248
  %v1259 = vpack.c.b16 %v1251, %v1250
  %1268 = vmatprep.subr.bf16.mxu0 0
  %1269 = vmatpush1.bf16.msra.mxu0 %v1259
  %1270 = vmatprep.subr.bf16.mxu0 0
  %1271 = vmatpush1.bf16.msra.mxu0 %v1258
  %1272 = vmatprep.subr.bf16.mxu0 0
  %1273 = vmatpush1.bf16.msra.mxu0 %v1257
  %1274 = vmatprep.subr.bf16.mxu0 0
  %1275 = vmatpush1.bf16.msra.mxu0 %v1256
  %1276 = vmatprep.subr.bf16.mxu0 0
  %1277 = vmatpush1.bf16.msra.mxu0 %v1255
  %1278 = vmatprep.subr.bf16.mxu0 0
  %1279 = vmatpush1.bf16.msra.mxu0 %v1254
  %1280 = vmatprep.subr.bf16.mxu0 0
  %1281 = vmatpush1.bf16.msra.mxu0 %v1253
  %1282 = vmatprep.subr.bf16.mxu0 0
  %1283 = vmatpush1.bf16.msra.mxu0 %v1252
  %1284 = vmatprep.subr.bf16.mxu0 0
  %1285 = vmatpush2.bf16.msra.mxu0 0
  %1286 = vmatprep.subr.bf16.mxu0 0
  %1287 = vmatpush2.bf16.msra.mxu0 0
  %1288 = vmatprep.subr.bf16.mxu0 0
  %1289 = vmatpush2.bf16.msra.mxu0 0
  %1290 = vmatprep.subr.bf16.mxu0 0
  %1291 = vmatpush2.bf16.msra.mxu0 0
  %1292 = vmatprep.subr.bf16.mxu0 0
  %1293 = vmatpush2.bf16.msra.mxu0 0
  %1294 = vmatprep.subr.bf16.mxu0 0
  %1295 = vmatpush2.bf16.msra.mxu0 0
  %1296 = vmatprep.subr.bf16.mxu0 0
  %1297 = vmatpush2.bf16.msra.mxu0 0
  %1298 = vmatprep.subr.bf16.mxu0 0
  %1299 = vmatpush2.bf16.msra.mxu0 0
  %1300 = vmatprep.mubr.bf16.mxu0 0
  %1301 = vmatmul.mubr.bf16.gmra.mxu0 %v1198
  %v1302 = vpop.f32.mrf.mxu0
  %v1303 = vadd.f32 0.0, %v1302
  %v1304 = vpop.f32.mrf.mxu0
  %v1305 = vpop.f32.mrf.mxu0
  %v1306 = vadd.f32 0.0, %v1305
  %v1307 = vpop.f32.mrf.mxu0
  %1308 = vmatprep.mubr.bf16.mxu0 0
  %1309 = vmatmul.mubr.bf16.gmra.mxu0 %v1199
  %v1310 = vpop.f32.mrf.mxu0
  %v1311 = vadd.f32 0.0, %v1310
  %v1312 = vpop.f32.mrf.mxu0
  %v1313 = vpop.f32.mrf.mxu0
  %v1314 = vadd.f32 0.0, %v1313
  %v1315 = vpop.f32.mrf.mxu0
  %1316 = vmatprep.mubr.bf16.mxu0 0
  %1317 = vmatmul.mubr.bf16.gmra.mxu0 %v1200
  %v1318 = vpop.f32.mrf.mxu0
  %v1319 = vadd.f32 0.0, %v1318
  %v1320 = vpop.f32.mrf.mxu0
  %v1321 = vpop.f32.mrf.mxu0
  %v1322 = vadd.f32 0.0, %v1321
  %v1323 = vpop.f32.mrf.mxu0
  %1324 = vmatprep.mubr.bf16.mxu0 0
  %1325 = vmatmul.mubr.bf16.gmra.mxu0 %v1201
  %v1326 = vpop.f32.mrf.mxu0
  %v1327 = vadd.f32 0.0, %v1326
  %v1328 = vpop.f32.mrf.mxu0
  %v1329 = vpop.f32.mrf.mxu0
  %v1330 = vadd.f32 0.0, %v1329
  %v1331 = vpop.f32.mrf.mxu0
  %1332 = vmatprep.mubr.bf16.mxu0 0
  %1333 = vmatmul.mubr.bf16.gmra.mxu0 %v1202
  %v1334 = vpop.f32.mrf.mxu0
  %v1335 = vadd.f32 0.0, %v1334
  %v1336 = vpop.f32.mrf.mxu0
  %v1337 = vpop.f32.mrf.mxu0
  %v1338 = vadd.f32 0.0, %v1337
  %v1339 = vpop.f32.mrf.mxu0
  %1340 = vmatprep.mubr.bf16.mxu0 0
  %1341 = vmatmul.mubr.bf16.gmra.mxu0 %v1203
  %v1342 = vpop.f32.mrf.mxu0
  %v1343 = vadd.f32 0.0, %v1342
  %v1344 = vpop.f32.mrf.mxu0
  %v1345 = vpop.f32.mrf.mxu0
  %v1346 = vadd.f32 0.0, %v1345
  %v1347 = vpop.f32.mrf.mxu0
  %1348 = vmatprep.mubr.bf16.mxu0 0
  %1349 = vmatmul.mubr.bf16.gmra.mxu0 %v1204
  %v1350 = vpop.f32.mrf.mxu0
  %v1351 = vadd.f32 0.0, %v1350
  %v1352 = vpop.f32.mrf.mxu0
  %v1353 = vpop.f32.mrf.mxu0
  %v1354 = vadd.f32 0.0, %v1353
  %v1355 = vpop.f32.mrf.mxu0
  %1356 = vmatprep.mubr.bf16.mxu0 0
  %1357 = vmatmul.mubr.bf16.gmra.mxu0 %v1205
  %v1358 = vpop.f32.mrf.mxu0
  %v1359 = vadd.f32 0.0, %v1358
  %v1360 = vpop.f32.mrf.mxu0
  %v1361 = vpop.f32.mrf.mxu0
  %v1362 = vadd.f32 0.0, %v1361
  %v1363 = vpop.f32.mrf.mxu0
  %1364 = vmatprep.mubr.bf16.mxu0 0
  %1365 = vmatmul.mubr.bf16.gmra.mxu0 %v1206
  %v1366 = vpop.f32.mrf.mxu0
  %v1367 = vadd.f32 0.0, %v1366
  %v1368 = vpop.f32.mrf.mxu0
  %v1369 = vpop.f32.mrf.mxu0
  %v1370 = vadd.f32 0.0, %v1369
  %v1371 = vpop.f32.mrf.mxu0
  %1372 = vmatprep.mubr.bf16.mxu0 0
  %1373 = vmatmul.mubr.bf16.gmra.mxu0 %v1207
  %v1374 = vpop.f32.mrf.mxu0
  %v1375 = vadd.f32 0.0, %v1374
  %v1376 = vpop.f32.mrf.mxu0
  %v1377 = vpop.f32.mrf.mxu0
  %v1378 = vadd.f32 0.0, %v1377
  %v1379 = vpop.f32.mrf.mxu0
  %1380 = vmatprep.mubr.bf16.mxu0 0
  %1381 = vmatmul.mubr.bf16.gmra.mxu0 %v1208
  %v1382 = vpop.f32.mrf.mxu0
  %v1383 = vadd.f32 0.0, %v1382
  %v1384 = vpop.f32.mrf.mxu0
  %v1385 = vpop.f32.mrf.mxu0
  %v1386 = vadd.f32 0.0, %v1385
  %v1387 = vpop.f32.mrf.mxu0
  %1388 = vdwg.mxu0
  %v1389 = vld [vmem:[#allocation2] sm:$0xff]
  %v1390 = vld [vmem:[#allocation2 + $0x8] sm:$0xff]
  %v1391 = vld [vmem:[#allocation2 + $0x10] sm:$0xff]
  %v1392 = vld [vmem:[#allocation2 + $0x18] sm:$0xff]
  %v1393 = vld [vmem:[#allocation2 + $0x20] sm:$0xff]
  %v1394 = vld [vmem:[#allocation2 + $0x28] sm:$0xff]
  %v1395 = vld [vmem:[#allocation2 + $0x30] sm:$0xff]
  %v1396 = vld [vmem:[#allocation2 + $0x38] sm:$0xff]
  %v1397 = vld [vmem:[#allocation2 + $0x40] sm:$0xff]
  %v1398 = vld [vmem:[#allocation2 + $0x48] sm:$0xff]
  %v1399 = vld [vmem:[#allocation2 + $0x50] sm:$0xff]
  %v1400 = vld [vmem:[#allocation2 + $0x58] sm:$0xff]
  %v1401 = vld [vmem:[#allocation2 + $0x60] sm:$0xff]
  %v1402 = vld [vmem:[#allocation2 + $0x68] sm:$0xff]
  %v1403 = vld [vmem:[#allocation2 + $0x70] sm:$0xff]
  %v1404 = vld [vmem:[#allocation2 + $0x78] sm:$0xff]
  %v1405 = vld [vmem:[#allocation2 + $0x80] sm:$0xff]
  %v1406 = vld [vmem:[#allocation2 + $0x88] sm:$0xff]
  %v1407 = vld [vmem:[#allocation2 + $0x90] sm:$0xff]
  %v1408 = vld [vmem:[#allocation2 + $0x98] sm:$0xff]
  %v1409 = vld [vmem:[#allocation2 + $0xa0] sm:$0xff]
  %v1410 = vld [vmem:[#allocation2 + $0xa8] sm:$0xff]
  %v1411 = vadd.f32 %v1389, %v1303
  %v1412 = vadd.f32 %v1390, %v1306
  %v1413 = vadd.f32 %v1391, %v1311
  %v1414 = vadd.f32 %v1392, %v1314
  %v1415 = vadd.f32 %v1393, %v1319
  %v1416 = vadd.f32 %v1394, %v1322
  %v1417 = vadd.f32 %v1395, %v1327
  %v1418 = vadd.f32 %v1396, %v1330
  %v1419 = vadd.f32 %v1397, %v1335
  %v1420 = vadd.f32 %v1398, %v1338
  %v1421 = vadd.f32 %v1399, %v1343
  %v1422 = vadd.f32 %v1400, %v1346
  %v1423 = vadd.f32 %v1401, %v1351
  %v1424 = vadd.f32 %v1402, %v1354
  %v1425 = vadd.f32 %v1403, %v1359
  %v1426 = vadd.f32 %v1404, %v1362
  %v1427 = vadd.f32 %v1405, %v1367
  %v1428 = vadd.f32 %v1406, %v1370
  %v1429 = vadd.f32 %v1407, %v1375
  %v1430 = vadd.f32 %v1408, %v1378
  %v1431 = vadd.f32 %v1409, %v1383
  %v1432 = vadd.f32 %v1410, %v1386
  %1433 = vst [vmem:[#allocation2] sm:$0xff] %v1411
  %1434 = vst [vmem:[#allocation2 + $0x8] sm:$0xff] %v1412
  %1435 = vst [vmem:[#allocation2 + $0x10] sm:$0xff] %v1413
  %1436 = vst [vmem:[#allocation2 + $0x18] sm:$0xff] %v1414
  %1437 = vst [vmem:[#allocation2 + $0x20] sm:$0xff] %v1415
  %1438 = vst [vmem:[#allocation2 + $0x28] sm:$0xff] %v1416
  %1439 = vst [vmem:[#allocation2 + $0x30] sm:$0xff] %v1417
  %1440 = vst [vmem:[#allocation2 + $0x38] sm:$0xff] %v1418
  %1441 = vst [vmem:[#allocation2 + $0x40] sm:$0xff] %v1419
  %1442 = vst [vmem:[#allocation2 + $0x48] sm:$0xff] %v1420
  %1443 = vst [vmem:[#allocation2 + $0x50] sm:$0xff] %v1421
  %1444 = vst [vmem:[#allocation2 + $0x58] sm:$0xff] %v1422
  %1445 = vst [vmem:[#allocation2 + $0x60] sm:$0xff] %v1423
  %1446 = vst [vmem:[#allocation2 + $0x68] sm:$0xff] %v1424
  %1447 = vst [vmem:[#allocation2 + $0x70] sm:$0xff] %v1425
  %1448 = vst [vmem:[#allocation2 + $0x78] sm:$0xff] %v1426
  %1449 = vst [vmem:[#allocation2 + $0x80] sm:$0xff] %v1427
  %1450 = vst [vmem:[#allocation2 + $0x88] sm:$0xff] %v1428
  %1451 = vst [vmem:[#allocation2 + $0x90] sm:$0xff] %v1429
  %1452 = vst [vmem:[#allocation2 + $0x98] sm:$0xff] %v1430
  %1453 = vst [vmem:[#allocation2 + $0xa0] sm:$0xff] %v1431
  %1454 = vst [vmem:[#allocation2 + $0xa8] sm:$0xff] %v1432
  %v1455 = vld [vmem:[%s0 + $0x8] sm:$0xf]
  %v1456 = vld [vmem:[%s0 + $0xc] sm:$0xf]
  %v1457 = vld [vmem:[%s0 + $0x10] sm:$0xf]
  %v1458 = vld [vmem:[%s0 + $0x14] sm:$0xf]
  %v1459 = vld [vmem:[%s0 + $0x18] sm:$0xf]
  %v1460 = vld [vmem:[%s0 + $0x1c] sm:$0xf]
  %v1461 = vld [vmem:[%s0 + $0x20] sm:$0xf]
  %v1462 = vld [vmem:[%s0 + $0x24] sm:$0xf]
  %v1463 = vld [vmem:[%s0 + $0x28] sm:$0xf]
  %v1464 = vld [vmem:[%s0 + $0x2c] sm:$0xf]
  %v1465 = vld [vmem:[%s0 + $0x30] sm:$0xf]
  %v1466 = vld [vmem:[%s0 + $0x34] sm:$0xf]
  %v1467 = vld [vmem:[%s0 + $0x38] sm:$0xf]
  %v1468 = vld [vmem:[%s0 + $0x3c] sm:$0xf]
  %v1469 = vld [vmem:[%s0 + $0x40] sm:$0xf]
  %v1470 = vld [vmem:[%s0 + $0x44] sm:$0xf]
  %v1471 = vld [vmem:[%s0 + $0x48] sm:$0xf]
  %v1472 = vld [vmem:[%s0 + $0x4c] sm:$0xf]
  %v1473 = vld [vmem:[%s0 + $0x50] sm:$0xf]
  %v1474 = vld [vmem:[%s0 + $0x54] sm:$0xf]
  %v1475 = vld [vmem:[%s0 + $0x58] sm:$0xf]
  %v1476 = vld [vmem:[%s0 + $0x5c] sm:$0xf]
  %v1477 = vld [vmem:[%s0 + $0x60] sm:$0x1]
  %s1478 = scalar_lea.vmem %s1, 256
  %v1479 = vld [vmem:[%s1478] sm:$0xf]
  %v1480 = vld [vmem:[%s1478 + $0x4] sm:$0xf]
  %v1481 = vld [vmem:[%s1478 + $0x8] sm:$0xf]
  %v1482 = vld [vmem:[%s1478 + $0xc] sm:$0xf]
  %v1483 = vld [vmem:[%s1478 + $0x10] sm:$0xf]
  %v1484 = vld [vmem:[%s1478 + $0x14] sm:$0xf]
  %v1485 = vld [vmem:[%s1478 + $0x18] sm:$0xf]
  %v1486 = vld [vmem:[%s1478 + $0x1c] sm:$0xf]
  %v1487 = vld [vmem:[%s1478 + $0x20] sm:$0xf]
  %v1488 = vld [vmem:[%s1478 + $0x24] sm:$0xf]
  %v1489 = vld [vmem:[%s1478 + $0x28] sm:$0xf]
  %v1490 = vld [vmem:[%s1478 + $0x2c] sm:$0xf]
  %v1491 = vld [vmem:[%s1478 + $0x30] sm:$0xf]
  %v1492 = vld [vmem:[%s1478 + $0x34] sm:$0xf]
  %v1493 = vld [vmem:[%s1478 + $0x38] sm:$0xf]
  %v1494 = vld [vmem:[%s1478 + $0x3c] sm:$0xf]
  %v1518 = vunpack.c.l.b16 %v1455
  %v1519 = vunpack.c.l.b16 %v1456
  %v1520 = vunpack.c.l.b16 %v1457
  %v1521 = vunpack.c.l.b16 %v1458
  %v1522 = vunpack.c.l.b16 %v1459
  %v1523 = vunpack.c.l.b16 %v1460
  %v1524 = vunpack.c.l.b16 %v1461
  %v1525 = vunpack.c.l.b16 %v1462
  %v1526 = vunpack.c.l.b16 %v1463
  %v1527 = vunpack.c.l.b16 %v1464
  %v1528 = vunpack.c.l.b16 %v1465
  %v1529 = vunpack.c.l.b16 %v1466
  %v1530 = vunpack.c.l.b16 %v1467
  %v1531 = vunpack.c.l.b16 %v1468
  %v1532 = vunpack.c.l.b16 %v1469
  %v1533 = vunpack.c.l.b16 %v1470
  %v1534 = vunpack.c.l.b16 %v1471
  %v1535 = vunpack.c.l.b16 %v1472
  %v1536 = vunpack.c.l.b16 %v1473
  %v1537 = vunpack.c.l.b16 %v1474
  %v1538 = vunpack.c.l.b16 %v1475
  %v1539 = vunpack.c.l.b16 %v1476
  %v1540 = vunpack.c.l.b16 %v1477
  %v1541 = vpack.c.b16 %v1519, %v1518
  %v1542 = vpack.c.b16 %v1521, %v1520
  %v1543 = vpack.c.b16 %v1523, %v1522
  %v1544 = vpack.c.b16 %v1525, %v1524
  %v1545 = vpack.c.b16 %v1527, %v1526
  %v1546 = vpack.c.b16 %v1529, %v1528
  %v1547 = vpack.c.b16 %v1531, %v1530
  %v1548 = vpack.c.b16 %v1533, %v1532
  %v1549 = vpack.c.b16 %v1535, %v1534
  %v1550 = vpack.c.b16 %v1537, %v1536
  %v1551 = vpack.c.b16 %v1539, %v1538
  %v1552 = vpack.c.b16 %v1540, %v1540
  %v1554 = vshrl.u32 %v1541, 16
  %v1556 = vshll.u32 %v1541, 16
  %v1558 = vrot.slane %v1556, 1
  %v1559 = vor.u32 %v1554, %v1558
  %v1561 = vshll.u32 %v1542, 16
  %v1563 = vrot.slane %v1561, 1
  %v1564 = vsel %vm408, %v1559, %v1563
  %v1565 = vshrl.u32 %v1542, 16
  %v1567 = vor.u32 %v1565, %v1563
  %v1569 = vshll.u32 %v1543, 16
  %v1571 = vrot.slane %v1569, 1
  %v1572 = vsel %vm408, %v1567, %v1571
  %v1573 = vshrl.u32 %v1543, 16
  %v1575 = vor.u32 %v1573, %v1571
  %v1577 = vshll.u32 %v1544, 16
  %v1579 = vrot.slane %v1577, 1
  %v1580 = vsel %vm408, %v1575, %v1579
  %v1581 = vshrl.u32 %v1544, 16
  %v1583 = vor.u32 %v1581, %v1579
  %v1585 = vshll.u32 %v1545, 16
  %v1587 = vrot.slane %v1585, 1
  %v1588 = vsel %vm408, %v1583, %v1587
  %v1589 = vshrl.u32 %v1545, 16
  %v1591 = vor.u32 %v1589, %v1587
  %v1593 = vshll.u32 %v1546, 16
  %v1595 = vrot.slane %v1593, 1
  %v1596 = vsel %vm408, %v1591, %v1595
  %v1597 = vshrl.u32 %v1546, 16
  %v1599 = vor.u32 %v1597, %v1595
  %v1601 = vshll.u32 %v1547, 16
  %v1603 = vrot.slane %v1601, 1
  %v1604 = vsel %vm408, %v1599, %v1603
  %v1605 = vshrl.u32 %v1547, 16
  %v1607 = vor.u32 %v1605, %v1603
  %v1609 = vshll.u32 %v1548, 16
  %v1611 = vrot.slane %v1609, 1
  %v1612 = vsel %vm408, %v1607, %v1611
  %v1613 = vshrl.u32 %v1548, 16
  %v1615 = vor.u32 %v1613, %v1611
  %v1617 = vshll.u32 %v1549, 16
  %v1619 = vrot.slane %v1617, 1
  %v1620 = vsel %vm408, %v1615, %v1619
  %v1621 = vshrl.u32 %v1549, 16
  %v1623 = vor.u32 %v1621, %v1619
  %v1625 = vshll.u32 %v1550, 16
  %v1627 = vrot.slane %v1625, 1
  %v1628 = vsel %vm408, %v1623, %v1627
  %v1629 = vshrl.u32 %v1550, 16
  %v1631 = vor.u32 %v1629, %v1627
  %v1633 = vshll.u32 %v1551, 16
  %v1635 = vrot.slane %v1633, 1
  %v1636 = vsel %vm408, %v1631, %v1635
  %v1637 = vshrl.u32 %v1551, 16
  %v1639 = vor.u32 %v1637, %v1635
  %v1641 = vshll.u32 %v1552, 16
  %v1643 = vrot.slane %v1641, 1
  %v1644 = vsel %vm408, %v1639, %v1643
  %v1672 = vunpack.c.l.b16 %v1479
  %v1673 = vunpack.c.l.b16 %v1480
  %v1674 = vunpack.c.l.b16 %v1481
  %v1675 = vunpack.c.l.b16 %v1482
  %v1676 = vunpack.c.l.b16 %v1483
  %v1677 = vunpack.c.l.b16 %v1484
  %v1678 = vunpack.c.l.b16 %v1485
  %v1679 = vunpack.c.l.b16 %v1486
  %v1680 = vunpack.c.l.b16 %v1487
  %v1681 = vunpack.c.l.b16 %v1488
  %v1682 = vunpack.c.l.b16 %v1489
  %v1683 = vunpack.c.l.b16 %v1490
  %v1684 = vunpack.c.l.b16 %v1491
  %v1685 = vunpack.c.l.b16 %v1492
  %v1686 = vunpack.c.l.b16 %v1493
  %v1687 = vunpack.c.l.b16 %v1494
  %v1688 = vpack.c.b16 %v1673, %v1672
  %v1689 = vpack.c.b16 %v1675, %v1674
  %v1690 = vpack.c.b16 %v1677, %v1676
  %v1691 = vpack.c.b16 %v1679, %v1678
  %v1692 = vpack.c.b16 %v1681, %v1680
  %v1693 = vpack.c.b16 %v1683, %v1682
  %v1694 = vpack.c.b16 %v1685, %v1684
  %v1695 = vpack.c.b16 %v1687, %v1686
  %1704 = vmatprep.subr.bf16.mxu0 0
  %1705 = vmatpush1.bf16.msra.mxu0 %v1695
  %1706 = vmatprep.subr.bf16.mxu0 0
  %1707 = vmatpush1.bf16.msra.mxu0 %v1694
  %1708 = vmatprep.subr.bf16.mxu0 0
  %1709 = vmatpush1.bf16.msra.mxu0 %v1693
  %1710 = vmatprep.subr.bf16.mxu0 0
  %1711 = vmatpush1.bf16.msra.mxu0 %v1692
  %1712 = vmatprep.subr.bf16.mxu0 0
  %1713 = vmatpush1.bf16.msra.mxu0 %v1691
  %1714 = vmatprep.subr.bf16.mxu0 0
  %1715 = vmatpush1.bf16.msra.mxu0 %v1690
  %1716 = vmatprep.subr.bf16.mxu0 0
  %1717 = vmatpush1.bf16.msra.mxu0 %v1689
  %1718 = vmatprep.subr.bf16.mxu0 0
  %1719 = vmatpush1.bf16.msra.mxu0 %v1688
  %1720 = vmatprep.subr.bf16.mxu0 0
  %1721 = vmatpush2.bf16.msra.mxu0 0
  %1722 = vmatprep.subr.bf16.mxu0 0
  %1723 = vmatpush2.bf16.msra.mxu0 0
  %1724 = vmatprep.subr.bf16.mxu0 0
  %1725 = vmatpush2.bf16.msra.mxu0 0
  %1726 = vmatprep.subr.bf16.mxu0 0
  %1727 = vmatpush2.bf16.msra.mxu0 0
  %1728 = vmatprep.subr.bf16.mxu0 0
  %1729 = vmatpush2.bf16.msra.mxu0 0
  %1730 = vmatprep.subr.bf16.mxu0 0
  %1731 = vmatpush2.bf16.msra.mxu0 0
  %1732 = vmatprep.subr.bf16.mxu0 0
  %1733 = vmatpush2.bf16.msra.mxu0 0
  %1734 = vmatprep.subr.bf16.mxu0 0
  %1735 = vmatpush2.bf16.msra.mxu0 0
  %1736 = vmatprep.mubr.bf16.mxu0 0
  %1737 = vmatmul.mubr.bf16.gmra.mxu0 %v1564
  %v1738 = vpop.f32.mrf.mxu0
  %v1739 = vadd.f32 0.0, %v1738
  %v1740 = vpop.f32.mrf.mxu0
  %v1741 = vpop.f32.mrf.mxu0
  %v1742 = vadd.f32 0.0, %v1741
  %v1743 = vpop.f32.mrf.mxu0
  %1744 = vmatprep.mubr.bf16.mxu0 0
  %1745 = vmatmul.mubr.bf16.gmra.mxu0 %v1572
  %v1746 = vpop.f32.mrf.mxu0
  %v1747 = vadd.f32 0.0, %v1746
  %v1748 = vpop.f32.mrf.mxu0
  %v1749 = vpop.f32.mrf.mxu0
  %v1750 = vadd.f32 0.0, %v1749
  %v1751 = vpop.f32.mrf.mxu0
  %1752 = vmatprep.mubr.bf16.mxu0 0
  %1753 = vmatmul.mubr.bf16.gmra.mxu0 %v1580
  %v1754 = vpop.f32.mrf.mxu0
  %v1755 = vadd.f32 0.0, %v1754
  %v1756 = vpop.f32.mrf.mxu0
  %v1757 = vpop.f32.mrf.mxu0
  %v1758 = vadd.f32 0.0, %v1757
  %v1759 = vpop.f32.mrf.mxu0
  %1760 = vmatprep.mubr.bf16.mxu0 0
  %1761 = vmatmul.mubr.bf16.gmra.mxu0 %v1588
  %v1762 = vpop.f32.mrf.mxu0
  %v1763 = vadd.f32 0.0, %v1762
  %v1764 = vpop.f32.mrf.mxu0
  %v1765 = vpop.f32.mrf.mxu0
  %v1766 = vadd.f32 0.0, %v1765
  %v1767 = vpop.f32.mrf.mxu0
  %1768 = vmatprep.mubr.bf16.mxu0 0
  %1769 = vmatmul.mubr.bf16.gmra.mxu0 %v1596
  %v1770 = vpop.f32.mrf.mxu0
  %v1771 = vadd.f32 0.0, %v1770
  %v1772 = vpop.f32.mrf.mxu0
  %v1773 = vpop.f32.mrf.mxu0
  %v1774 = vadd.f32 0.0, %v1773
  %v1775 = vpop.f32.mrf.mxu0
  %1776 = vmatprep.mubr.bf16.mxu0 0
  %1777 = vmatmul.mubr.bf16.gmra.mxu0 %v1604
  %v1778 = vpop.f32.mrf.mxu0
  %v1779 = vadd.f32 0.0, %v1778
  %v1780 = vpop.f32.mrf.mxu0
  %v1781 = vpop.f32.mrf.mxu0
  %v1782 = vadd.f32 0.0, %v1781
  %v1783 = vpop.f32.mrf.mxu0
  %1784 = vmatprep.mubr.bf16.mxu0 0
  %1785 = vmatmul.mubr.bf16.gmra.mxu0 %v1612
  %v1786 = vpop.f32.mrf.mxu0
  %v1787 = vadd.f32 0.0, %v1786
  %v1788 = vpop.f32.mrf.mxu0
  %v1789 = vpop.f32.mrf.mxu0
  %v1790 = vadd.f32 0.0, %v1789
  %v1791 = vpop.f32.mrf.mxu0
  %1792 = vmatprep.mubr.bf16.mxu0 0
  %1793 = vmatmul.mubr.bf16.gmra.mxu0 %v1620
  %v1794 = vpop.f32.mrf.mxu0
  %v1795 = vadd.f32 0.0, %v1794
  %v1796 = vpop.f32.mrf.mxu0
  %v1797 = vpop.f32.mrf.mxu0
  %v1798 = vadd.f32 0.0, %v1797
  %v1799 = vpop.f32.mrf.mxu0
  %1800 = vmatprep.mubr.bf16.mxu0 0
  %1801 = vmatmul.mubr.bf16.gmra.mxu0 %v1628
  %v1802 = vpop.f32.mrf.mxu0
  %v1803 = vadd.f32 0.0, %v1802
  %v1804 = vpop.f32.mrf.mxu0
  %v1805 = vpop.f32.mrf.mxu0
  %v1806 = vadd.f32 0.0, %v1805
  %v1807 = vpop.f32.mrf.mxu0
  %1808 = vmatprep.mubr.bf16.mxu0 0
  %1809 = vmatmul.mubr.bf16.gmra.mxu0 %v1636
  %v1810 = vpop.f32.mrf.mxu0
  %v1811 = vadd.f32 0.0, %v1810
  %v1812 = vpop.f32.mrf.mxu0
  %v1813 = vpop.f32.mrf.mxu0
  %v1814 = vadd.f32 0.0, %v1813
  %v1815 = vpop.f32.mrf.mxu0
  %1816 = vmatprep.mubr.bf16.mxu0 0
  %1817 = vmatmul.mubr.bf16.gmra.mxu0 %v1644
  %v1818 = vpop.f32.mrf.mxu0
  %v1819 = vadd.f32 0.0, %v1818
  %v1820 = vpop.f32.mrf.mxu0
  %v1821 = vpop.f32.mrf.mxu0
  %v1822 = vadd.f32 0.0, %v1821
  %v1823 = vpop.f32.mrf.mxu0
  %1824 = vdwg.mxu0
  %v1825 = vld [vmem:[#allocation2] sm:$0xff]
  %v1826 = vld [vmem:[#allocation2 + $0x8] sm:$0xff]
  %v1827 = vld [vmem:[#allocation2 + $0x10] sm:$0xff]
  %v1828 = vld [vmem:[#allocation2 + $0x18] sm:$0xff]
  %v1829 = vld [vmem:[#allocation2 + $0x20] sm:$0xff]
  %v1830 = vld [vmem:[#allocation2 + $0x28] sm:$0xff]
  %v1831 = vld [vmem:[#allocation2 + $0x30] sm:$0xff]
  %v1832 = vld [vmem:[#allocation2 + $0x38] sm:$0xff]
  %v1833 = vld [vmem:[#allocation2 + $0x40] sm:$0xff]
  %v1834 = vld [vmem:[#allocation2 + $0x48] sm:$0xff]
  %v1835 = vld [vmem:[#allocation2 + $0x50] sm:$0xff]
  %v1836 = vld [vmem:[#allocation2 + $0x58] sm:$0xff]
  %v1837 = vld [vmem:[#allocation2 + $0x60] sm:$0xff]
  %v1838 = vld [vmem:[#allocation2 + $0x68] sm:$0xff]
  %v1839 = vld [vmem:[#allocation2 + $0x70] sm:$0xff]
  %v1840 = vld [vmem:[#allocation2 + $0x78] sm:$0xff]
  %v1841 = vld [vmem:[#allocation2 + $0x80] sm:$0xff]
  %v1842 = vld [vmem:[#allocation2 + $0x88] sm:$0xff]
  %v1843 = vld [vmem:[#allocation2 + $0x90] sm:$0xff]
  %v1844 = vld [vmem:[#allocation2 + $0x98] sm:$0xff]
  %v1845 = vld [vmem:[#allocation2 + $0xa0] sm:$0xff]
  %v1846 = vld [vmem:[#allocation2 + $0xa8] sm:$0xff]
  %v1847 = vadd.f32 %v1825, %v1739
  %v1848 = vadd.f32 %v1826, %v1742
  %v1849 = vadd.f32 %v1827, %v1747
  %v1850 = vadd.f32 %v1828, %v1750
  %v1851 = vadd.f32 %v1829, %v1755
  %v1852 = vadd.f32 %v1830, %v1758
  %v1853 = vadd.f32 %v1831, %v1763
  %v1854 = vadd.f32 %v1832, %v1766
  %v1855 = vadd.f32 %v1833, %v1771
  %v1856 = vadd.f32 %v1834, %v1774
  %v1857 = vadd.f32 %v1835, %v1779
  %v1858 = vadd.f32 %v1836, %v1782
  %v1859 = vadd.f32 %v1837, %v1787
  %v1860 = vadd.f32 %v1838, %v1790
  %v1861 = vadd.f32 %v1839, %v1795
  %v1862 = vadd.f32 %v1840, %v1798
  %v1863 = vadd.f32 %v1841, %v1803
  %v1864 = vadd.f32 %v1842, %v1806
  %v1865 = vadd.f32 %v1843, %v1811
  %v1866 = vadd.f32 %v1844, %v1814
  %v1867 = vadd.f32 %v1845, %v1819
  %v1868 = vadd.f32 %v1846, %v1822
  %1869 = vst [vmem:[#allocation2] sm:$0xff] %v1847
  %1870 = vst [vmem:[#allocation2 + $0x8] sm:$0xff] %v1848
  %1871 = vst [vmem:[#allocation2 + $0x10] sm:$0xff] %v1849
  %1872 = vst [vmem:[#allocation2 + $0x18] sm:$0xff] %v1850
  %1873 = vst [vmem:[#allocation2 + $0x20] sm:$0xff] %v1851
  %1874 = vst [vmem:[#allocation2 + $0x28] sm:$0xff] %v1852
  %1875 = vst [vmem:[#allocation2 + $0x30] sm:$0xff] %v1853
  %1876 = vst [vmem:[#allocation2 + $0x38] sm:$0xff] %v1854
  %1877 = vst [vmem:[#allocation2 + $0x40] sm:$0xff] %v1855
  %1878 = vst [vmem:[#allocation2 + $0x48] sm:$0xff] %v1856
  %1879 = vst [vmem:[#allocation2 + $0x50] sm:$0xff] %v1857
  %1880 = vst [vmem:[#allocation2 + $0x58] sm:$0xff] %v1858
  %1881 = vst [vmem:[#allocation2 + $0x60] sm:$0xff] %v1859
  %1882 = vst [vmem:[#allocation2 + $0x68] sm:$0xff] %v1860
  %1883 = vst [vmem:[#allocation2 + $0x70] sm:$0xff] %v1861
  %1884 = vst [vmem:[#allocation2 + $0x78] sm:$0xff] %v1862
  %1885 = vst [vmem:[#allocation2 + $0x80] sm:$0xff] %v1863
  %1886 = vst [vmem:[#allocation2 + $0x88] sm:$0xff] %v1864
  %1887 = vst [vmem:[#allocation2 + $0x90] sm:$0xff] %v1865
  %1888 = vst [vmem:[#allocation2 + $0x98] sm:$0xff] %v1866
  %1889 = vst [vmem:[#allocation2 + $0xa0] sm:$0xff] %v1867
  %1890 = vst [vmem:[#allocation2 + $0xa8] sm:$0xff] %v1868
  %v1891 = vld [vmem:[%s0 + $0x8] sm:$0xe]
  %v1892 = vld [vmem:[%s0 + $0xc] sm:$0xf]
  %v1893 = vld [vmem:[%s0 + $0x10] sm:$0xf]
  %v1894 = vld [vmem:[%s0 + $0x14] sm:$0xf]
  %v1895 = vld [vmem:[%s0 + $0x18] sm:$0xf]
  %v1896 = vld [vmem:[%s0 + $0x1c] sm:$0xf]
  %v1897 = vld [vmem:[%s0 + $0x20] sm:$0xf]
  %v1898 = vld [vmem:[%s0 + $0x24] sm:$0xf]
  %v1899 = vld [vmem:[%s0 + $0x28] sm:$0xf]
  %v1900 = vld [vmem:[%s0 + $0x2c] sm:$0xf]
  %v1901 = vld [vmem:[%s0 + $0x30] sm:$0xf]
  %v1902 = vld [vmem:[%s0 + $0x34] sm:$0xf]
  %v1903 = vld [vmem:[%s0 + $0x38] sm:$0xf]
  %v1904 = vld [vmem:[%s0 + $0x3c] sm:$0xf]
  %v1905 = vld [vmem:[%s0 + $0x40] sm:$0xf]
  %v1906 = vld [vmem:[%s0 + $0x44] sm:$0xf]
  %v1907 = vld [vmem:[%s0 + $0x48] sm:$0xf]
  %v1908 = vld [vmem:[%s0 + $0x4c] sm:$0xf]
  %v1909 = vld [vmem:[%s0 + $0x50] sm:$0xf]
  %v1910 = vld [vmem:[%s0 + $0x54] sm:$0xf]
  %v1911 = vld [vmem:[%s0 + $0x58] sm:$0xf]
  %v1912 = vld [vmem:[%s0 + $0x5c] sm:$0xf]
  %v1913 = vld [vmem:[%s0 + $0x60] sm:$0x1]
  %s1914 = scalar_lea.vmem %s1, 320
  %v1915 = vld [vmem:[%s1914] sm:$0xf]
  %v1916 = vld [vmem:[%s1914 + $0x4] sm:$0xf]
  %v1917 = vld [vmem:[%s1914 + $0x8] sm:$0xf]
  %v1918 = vld [vmem:[%s1914 + $0xc] sm:$0xf]
  %v1919 = vld [vmem:[%s1914 + $0x10] sm:$0xf]
  %v1920 = vld [vmem:[%s1914 + $0x14] sm:$0xf]
  %v1921 = vld [vmem:[%s1914 + $0x18] sm:$0xf]
  %v1922 = vld [vmem:[%s1914 + $0x1c] sm:$0xf]
  %v1923 = vld [vmem:[%s1914 + $0x20] sm:$0xf]
  %v1924 = vld [vmem:[%s1914 + $0x24] sm:$0xf]
  %v1925 = vld [vmem:[%s1914 + $0x28] sm:$0xf]
  %v1926 = vld [vmem:[%s1914 + $0x2c] sm:$0xf]
  %v1927 = vld [vmem:[%s1914 + $0x30] sm:$0xf]
  %v1928 = vld [vmem:[%s1914 + $0x34] sm:$0xf]
  %v1929 = vld [vmem:[%s1914 + $0x38] sm:$0xf]
  %v1930 = vld [vmem:[%s1914 + $0x3c] sm:$0xf]
  %v1954 = vunpack.c.l.b16 %v1891
  %v1955 = vunpack.c.l.b16 %v1892
  %v1956 = vunpack.c.l.b16 %v1893
  %v1957 = vunpack.c.l.b16 %v1894
  %v1958 = vunpack.c.l.b16 %v1895
  %v1959 = vunpack.c.l.b16 %v1896
  %v1960 = vunpack.c.l.b16 %v1897
  %v1961 = vunpack.c.l.b16 %v1898
  %v1962 = vunpack.c.l.b16 %v1899
  %v1963 = vunpack.c.l.b16 %v1900
  %v1964 = vunpack.c.l.b16 %v1901
  %v1965 = vunpack.c.l.b16 %v1902
  %v1966 = vunpack.c.l.b16 %v1903
  %v1967 = vunpack.c.l.b16 %v1904
  %v1968 = vunpack.c.l.b16 %v1905
  %v1969 = vunpack.c.l.b16 %v1906
  %v1970 = vunpack.c.l.b16 %v1907
  %v1971 = vunpack.c.l.b16 %v1908
  %v1972 = vunpack.c.l.b16 %v1909
  %v1973 = vunpack.c.l.b16 %v1910
  %v1974 = vunpack.c.l.b16 %v1911
  %v1975 = vunpack.c.l.b16 %v1912
  %v1976 = vunpack.c.l.b16 %v1913
  %v1977 = vpack.c.b16 %v1955, %v1954
  %v1978 = vpack.c.b16 %v1957, %v1956
  %v1979 = vpack.c.b16 %v1959, %v1958
  %v1980 = vpack.c.b16 %v1961, %v1960
  %v1981 = vpack.c.b16 %v1963, %v1962
  %v1982 = vpack.c.b16 %v1965, %v1964
  %v1983 = vpack.c.b16 %v1967, %v1966
  %v1984 = vpack.c.b16 %v1969, %v1968
  %v1985 = vpack.c.b16 %v1971, %v1970
  %v1986 = vpack.c.b16 %v1973, %v1972
  %v1987 = vpack.c.b16 %v1975, %v1974
  %v1988 = vpack.c.b16 %v1976, %v1976
  %v1989 = vrot.slane %v1977, 1
  %v1990 = vrot.slane %v1978, 1
  %v1991 = vsel %vm845, %v1989, %v1990
  %v1992 = vrot.slane %v1979, 1
  %v1993 = vsel %vm845, %v1990, %v1992
  %v1994 = vrot.slane %v1980, 1
  %v1995 = vsel %vm845, %v1992, %v1994
  %v1996 = vrot.slane %v1981, 1
  %v1997 = vsel %vm845, %v1994, %v1996
  %v1998 = vrot.slane %v1982, 1
  %v1999 = vsel %vm845, %v1996, %v1998
  %v2000 = vrot.slane %v1983, 1
  %v2001 = vsel %vm845, %v1998, %v2000
  %v2002 = vrot.slane %v1984, 1
  %v2003 = vsel %vm845, %v2000, %v2002
  %v2004 = vrot.slane %v1985, 1
  %v2005 = vsel %vm845, %v2002, %v2004
  %v2006 = vrot.slane %v1986, 1
  %v2007 = vsel %vm845, %v2004, %v2006
  %v2008 = vrot.slane %v1987, 1
  %v2009 = vsel %vm845, %v2006, %v2008
  %v2010 = vrot.slane %v1988, 1
  %v2011 = vsel %vm845, %v2008, %v2010
  %v2039 = vunpack.c.l.b16 %v1915
  %v2040 = vunpack.c.l.b16 %v1916
  %v2041 = vunpack.c.l.b16 %v1917
  %v2042 = vunpack.c.l.b16 %v1918
  %v2043 = vunpack.c.l.b16 %v1919
  %v2044 = vunpack.c.l.b16 %v1920
  %v2045 = vunpack.c.l.b16 %v1921
  %v2046 = vunpack.c.l.b16 %v1922
  %v2047 = vunpack.c.l.b16 %v1923
  %v2048 = vunpack.c.l.b16 %v1924
  %v2049 = vunpack.c.l.b16 %v1925
  %v2050 = vunpack.c.l.b16 %v1926
  %v2051 = vunpack.c.l.b16 %v1927
  %v2052 = vunpack.c.l.b16 %v1928
  %v2053 = vunpack.c.l.b16 %v1929
  %v2054 = vunpack.c.l.b16 %v1930
  %v2055 = vpack.c.b16 %v2040, %v2039
  %v2056 = vpack.c.b16 %v2042, %v2041
  %v2057 = vpack.c.b16 %v2044, %v2043
  %v2058 = vpack.c.b16 %v2046, %v2045
  %v2059 = vpack.c.b16 %v2048, %v2047
  %v2060 = vpack.c.b16 %v2050, %v2049
  %v2061 = vpack.c.b16 %v2052, %v2051
  %v2062 = vpack.c.b16 %v2054, %v2053
  %2071 = vmatprep.subr.bf16.mxu0 0
  %2072 = vmatpush1.bf16.msra.mxu0 %v2062
  %2073 = vmatprep.subr.bf16.mxu0 0
  %2074 = vmatpush1.bf16.msra.mxu0 %v2061
  %2075 = vmatprep.subr.bf16.mxu0 0
  %2076 = vmatpush1.bf16.msra.mxu0 %v2060
  %2077 = vmatprep.subr.bf16.mxu0 0
  %2078 = vmatpush1.bf16.msra.mxu0 %v2059
  %2079 = vmatprep.subr.bf16.mxu0 0
  %2080 = vmatpush1.bf16.msra.mxu0 %v2058
  %2081 = vmatprep.subr.bf16.mxu0 0
  %2082 = vmatpush1.bf16.msra.mxu0 %v2057
  %2083 = vmatprep.subr.bf16.mxu0 0
  %2084 = vmatpush1.bf16.msra.mxu0 %v2056
  %2085 = vmatprep.subr.bf16.mxu0 0
  %2086 = vmatpush1.bf16.msra.mxu0 %v2055
  %2087 = vmatprep.subr.bf16.mxu0 0
  %2088 = vmatpush2.bf16.msra.mxu0 0
  %2089 = vmatprep.subr.bf16.mxu0 0
  %2090 = vmatpush2.bf16.msra.mxu0 0
  %2091 = vmatprep.subr.bf16.mxu0 0
  %2092 = vmatpush2.bf16.msra.mxu0 0
  %2093 = vmatprep.subr.bf16.mxu0 0
  %2094 = vmatpush2.bf16.msra.mxu0 0
  %2095 = vmatprep.subr.bf16.mxu0 0
  %2096 = vmatpush2.bf16.msra.mxu0 0
  %2097 = vmatprep.subr.bf16.mxu0 0
  %2098 = vmatpush2.bf16.msra.mxu0 0
  %2099 = vmatprep.subr.bf16.mxu0 0
  %2100 = vmatpush2.bf16.msra.mxu0 0
  %2101 = vmatprep.subr.bf16.mxu0 0
  %2102 = vmatpush2.bf16.msra.mxu0 0
  %2103 = vmatprep.mubr.bf16.mxu0 0
  %2104 = vmatmul.mubr.bf16.gmra.mxu0 %v1991
  %v2105 = vpop.f32.mrf.mxu0
  %v2106 = vadd.f32 0.0, %v2105
  %v2107 = vpop.f32.mrf.mxu0
  %v2108 = vpop.f32.mrf.mxu0
  %v2109 = vadd.f32 0.0, %v2108
  %v2110 = vpop.f32.mrf.mxu0
  %2111 = vmatprep.mubr.bf16.mxu0 0
  %2112 = vmatmul.mubr.bf16.gmra.mxu0 %v1993
  %v2113 = vpop.f32.mrf.mxu0
  %v2114 = vadd.f32 0.0, %v2113
  %v2115 = vpop.f32.mrf.mxu0
  %v2116 = vpop.f32.mrf.mxu0
  %v2117 = vadd.f32 0.0, %v2116
  %v2118 = vpop.f32.mrf.mxu0
  %2119 = vmatprep.mubr.bf16.mxu0 0
  %2120 = vmatmul.mubr.bf16.gmra.mxu0 %v1995
  %v2121 = vpop.f32.mrf.mxu0
  %v2122 = vadd.f32 0.0, %v2121
  %v2123 = vpop.f32.mrf.mxu0
  %v2124 = vpop.f32.mrf.mxu0
  %v2125 = vadd.f32 0.0, %v2124
  %v2126 = vpop.f32.mrf.mxu0
  %2127 = vmatprep.mubr.bf16.mxu0 0
  %2128 = vmatmul.mubr.bf16.gmra.mxu0 %v1997
  %v2129 = vpop.f32.mrf.mxu0
  %v2130 = vadd.f32 0.0, %v2129
  %v2131 = vpop.f32.mrf.mxu0
  %v2132 = vpop.f32.mrf.mxu0
  %v2133 = vadd.f32 0.0, %v2132
  %v2134 = vpop.f32.mrf.mxu0
  %2135 = vmatprep.mubr.bf16.mxu0 0
  %2136 = vmatmul.mubr.bf16.gmra.mxu0 %v1999
  %v2137 = vpop.f32.mrf.mxu0
  %v2138 = vadd.f32 0.0, %v2137
  %v2139 = vpop.f32.mrf.mxu0
  %v2140 = vpop.f32.mrf.mxu0
  %v2141 = vadd.f32 0.0, %v2140
  %v2142 = vpop.f32.mrf.mxu0
  %2143 = vmatprep.mubr.bf16.mxu0 0
  %2144 = vmatmul.mubr.bf16.gmra.mxu0 %v2001
  %v2145 = vpop.f32.mrf.mxu0
  %v2146 = vadd.f32 0.0, %v2145
  %v2147 = vpop.f32.mrf.mxu0
  %v2148 = vpop.f32.mrf.mxu0
  %v2149 = vadd.f32 0.0, %v2148
  %v2150 = vpop.f32.mrf.mxu0
  %2151 = vmatprep.mubr.bf16.mxu0 0
  %2152 = vmatmul.mubr.bf16.gmra.mxu0 %v2003
  %v2153 = vpop.f32.mrf.mxu0
  %v2154 = vadd.f32 0.0, %v2153
  %v2155 = vpop.f32.mrf.mxu0
  %v2156 = vpop.f32.mrf.mxu0
  %v2157 = vadd.f32 0.0, %v2156
  %v2158 = vpop.f32.mrf.mxu0
  %2159 = vmatprep.mubr.bf16.mxu0 0
  %2160 = vmatmul.mubr.bf16.gmra.mxu0 %v2005
  %v2161 = vpop.f32.mrf.mxu0
  %v2162 = vadd.f32 0.0, %v2161
  %v2163 = vpop.f32.mrf.mxu0
  %v2164 = vpop.f32.mrf.mxu0
  %v2165 = vadd.f32 0.0, %v2164
  %v2166 = vpop.f32.mrf.mxu0
  %2167 = vmatprep.mubr.bf16.mxu0 0
  %2168 = vmatmul.mubr.bf16.gmra.mxu0 %v2007
  %v2169 = vpop.f32.mrf.mxu0
  %v2170 = vadd.f32 0.0, %v2169
  %v2171 = vpop.f32.mrf.mxu0
  %v2172 = vpop.f32.mrf.mxu0
  %v2173 = vadd.f32 0.0, %v2172
  %v2174 = vpop.f32.mrf.mxu0
  %2175 = vmatprep.mubr.bf16.mxu0 0
  %2176 = vmatmul.mubr.bf16.gmra.mxu0 %v2009
  %v2177 = vpop.f32.mrf.mxu0
  %v2178 = vadd.f32 0.0, %v2177
  %v2179 = vpop.f32.mrf.mxu0
  %v2180 = vpop.f32.mrf.mxu0
  %v2181 = vadd.f32 0.0, %v2180
  %v2182 = vpop.f32.mrf.mxu0
  %2183 = vmatprep.mubr.bf16.mxu0 0
  %2184 = vmatmul.mubr.bf16.gmra.mxu0 %v2011
  %v2185 = vpop.f32.mrf.mxu0
  %v2186 = vadd.f32 0.0, %v2185
  %v2187 = vpop.f32.mrf.mxu0
  %v2188 = vpop.f32.mrf.mxu0
  %v2189 = vadd.f32 0.0, %v2188
  %v2190 = vpop.f32.mrf.mxu0
  %2191 = vdwg.mxu0
  %v2192 = vld [vmem:[#allocation2] sm:$0xff]
  %v2193 = vld [vmem:[#allocation2 + $0x8] sm:$0xff]
  %v2194 = vld [vmem:[#allocation2 + $0x10] sm:$0xff]
  %v2195 = vld [vmem:[#allocation2 + $0x18] sm:$0xff]
  %v2196 = vld [vmem:[#allocation2 + $0x20] sm:$0xff]
  %v2197 = vld [vmem:[#allocation2 + $0x28] sm:$0xff]
  %v2198 = vld [vmem:[#allocation2 + $0x30] sm:$0xff]
  %v2199 = vld [vmem:[#allocation2 + $0x38] sm:$0xff]
  %v2200 = vld [vmem:[#allocation2 + $0x40] sm:$0xff]
  %v2201 = vld [vmem:[#allocation2 + $0x48] sm:$0xff]
  %v2202 = vld [vmem:[#allocation2 + $0x50] sm:$0xff]
  %v2203 = vld [vmem:[#allocation2 + $0x58] sm:$0xff]
  %v2204 = vld [vmem:[#allocation2 + $0x60] sm:$0xff]
  %v2205 = vld [vmem:[#allocation2 + $0x68] sm:$0xff]
  %v2206 = vld [vmem:[#allocation2 + $0x70] sm:$0xff]
  %v2207 = vld [vmem:[#allocation2 + $0x78] sm:$0xff]
  %v2208 = vld [vmem:[#allocation2 + $0x80] sm:$0xff]
  %v2209 = vld [vmem:[#allocation2 + $0x88] sm:$0xff]
  %v2210 = vld [vmem:[#allocation2 + $0x90] sm:$0xff]
  %v2211 = vld [vmem:[#allocation2 + $0x98] sm:$0xff]
  %v2212 = vld [vmem:[#allocation2 + $0xa0] sm:$0xff]
  %v2213 = vld [vmem:[#allocation2 + $0xa8] sm:$0xff]
  %v2214 = vadd.f32 %v2192, %v2106
  %v2215 = vadd.f32 %v2193, %v2109
  %v2216 = vadd.f32 %v2194, %v2114
  %v2217 = vadd.f32 %v2195, %v2117
  %v2218 = vadd.f32 %v2196, %v2122
  %v2219 = vadd.f32 %v2197, %v2125
  %v2220 = vadd.f32 %v2198, %v2130
  %v2221 = vadd.f32 %v2199, %v2133
  %v2222 = vadd.f32 %v2200, %v2138
  %v2223 = vadd.f32 %v2201, %v2141
  %v2224 = vadd.f32 %v2202, %v2146
  %v2225 = vadd.f32 %v2203, %v2149
  %v2226 = vadd.f32 %v2204, %v2154
  %v2227 = vadd.f32 %v2205, %v2157
  %v2228 = vadd.f32 %v2206, %v2162
  %v2229 = vadd.f32 %v2207, %v2165
  %v2230 = vadd.f32 %v2208, %v2170
  %v2231 = vadd.f32 %v2209, %v2173
  %v2232 = vadd.f32 %v2210, %v2178
  %v2233 = vadd.f32 %v2211, %v2181
  %v2234 = vadd.f32 %v2212, %v2186
  %v2235 = vadd.f32 %v2213, %v2189
  %2236 = vst [vmem:[#allocation2] sm:$0xff] %v2214
  %2237 = vst [vmem:[#allocation2 + $0x8] sm:$0xff] %v2215
  %2238 = vst [vmem:[#allocation2 + $0x10] sm:$0xff] %v2216
  %2239 = vst [vmem:[#allocation2 + $0x18] sm:$0xff] %v2217
  %2240 = vst [vmem:[#allocation2 + $0x20] sm:$0xff] %v2218
  %2241 = vst [vmem:[#allocation2 + $0x28] sm:$0xff] %v2219
  %2242 = vst [vmem:[#allocation2 + $0x30] sm:$0xff] %v2220
  %2243 = vst [vmem:[#allocation2 + $0x38] sm:$0xff] %v2221
  %2244 = vst [vmem:[#allocation2 + $0x40] sm:$0xff] %v2222
  %2245 = vst [vmem:[#allocation2 + $0x48] sm:$0xff] %v2223
  %2246 = vst [vmem:[#allocation2 + $0x50] sm:$0xff] %v2224
  %2247 = vst [vmem:[#allocation2 + $0x58] sm:$0xff] %v2225
  %2248 = vst [vmem:[#allocation2 + $0x60] sm:$0xff] %v2226
  %2249 = vst [vmem:[#allocation2 + $0x68] sm:$0xff] %v2227
  %2250 = vst [vmem:[#allocation2 + $0x70] sm:$0xff] %v2228
  %2251 = vst [vmem:[#allocation2 + $0x78] sm:$0xff] %v2229
  %2252 = vst [vmem:[#allocation2 + $0x80] sm:$0xff] %v2230
  %2253 = vst [vmem:[#allocation2 + $0x88] sm:$0xff] %v2231
  %2254 = vst [vmem:[#allocation2 + $0x90] sm:$0xff] %v2232
  %2255 = vst [vmem:[#allocation2 + $0x98] sm:$0xff] %v2233
  %2256 = vst [vmem:[#allocation2 + $0xa0] sm:$0xff] %v2234
  %2257 = vst [vmem:[#allocation2 + $0xa8] sm:$0xff] %v2235
  %v2258 = vld [vmem:[%s0 + $0x10] sm:$0xf]
  %v2259 = vld [vmem:[%s0 + $0x14] sm:$0xf]
  %v2260 = vld [vmem:[%s0 + $0x18] sm:$0xf]
  %v2261 = vld [vmem:[%s0 + $0x1c] sm:$0xf]
  %v2262 = vld [vmem:[%s0 + $0x20] sm:$0xf]
  %v2263 = vld [vmem:[%s0 + $0x24] sm:$0xf]
  %v2264 = vld [vmem:[%s0 + $0x28] sm:$0xf]
  %v2265 = vld [vmem:[%s0 + $0x2c] sm:$0xf]
  %v2266 = vld [vmem:[%s0 + $0x30] sm:$0xf]
  %v2267 = vld [vmem:[%s0 + $0x34] sm:$0xf]
  %v2268 = vld [vmem:[%s0 + $0x38] sm:$0xf]
  %v2269 = vld [vmem:[%s0 + $0x3c] sm:$0xf]
  %v2270 = vld [vmem:[%s0 + $0x40] sm:$0xf]
  %v2271 = vld [vmem:[%s0 + $0x44] sm:$0xf]
  %v2272 = vld [vmem:[%s0 + $0x48] sm:$0xf]
  %v2273 = vld [vmem:[%s0 + $0x4c] sm:$0xf]
  %v2274 = vld [vmem:[%s0 + $0x50] sm:$0xf]
  %v2275 = vld [vmem:[%s0 + $0x54] sm:$0xf]
  %v2276 = vld [vmem:[%s0 + $0x58] sm:$0xf]
  %v2277 = vld [vmem:[%s0 + $0x5c] sm:$0xf]
  %v2278 = vld [vmem:[%s0 + $0x60] sm:$0xf]
  %v2279 = vld [vmem:[%s0 + $0x64] sm:$0xf]
  %s2280 = scalar_lea.vmem %s1, 384
  %v2281 = vld [vmem:[%s2280] sm:$0xf]
  %v2282 = vld [vmem:[%s2280 + $0x4] sm:$0xf]
  %v2283 = vld [vmem:[%s2280 + $0x8] sm:$0xf]
  %v2284 = vld [vmem:[%s2280 + $0xc] sm:$0xf]
  %v2285 = vld [vmem:[%s2280 + $0x10] sm:$0xf]
  %v2286 = vld [vmem:[%s2280 + $0x14] sm:$0xf]
  %v2287 = vld [vmem:[%s2280 + $0x18] sm:$0xf]
  %v2288 = vld [vmem:[%s2280 + $0x1c] sm:$0xf]
  %v2289 = vld [vmem:[%s2280 + $0x20] sm:$0xf]
  %v2290 = vld [vmem:[%s2280 + $0x24] sm:$0xf]
  %v2291 = vld [vmem:[%s2280 + $0x28] sm:$0xf]
  %v2292 = vld [vmem:[%s2280 + $0x2c] sm:$0xf]
  %v2293 = vld [vmem:[%s2280 + $0x30] sm:$0xf]
  %v2294 = vld [vmem:[%s2280 + $0x34] sm:$0xf]
  %v2295 = vld [vmem:[%s2280 + $0x38] sm:$0xf]
  %v2296 = vld [vmem:[%s2280 + $0x3c] sm:$0xf]
  %v2319 = vunpack.c.l.b16 %v2258
  %v2320 = vunpack.c.l.b16 %v2259
  %v2321 = vunpack.c.l.b16 %v2260
  %v2322 = vunpack.c.l.b16 %v2261
  %v2323 = vunpack.c.l.b16 %v2262
  %v2324 = vunpack.c.l.b16 %v2263
  %v2325 = vunpack.c.l.b16 %v2264
  %v2326 = vunpack.c.l.b16 %v2265
  %v2327 = vunpack.c.l.b16 %v2266
  %v2328 = vunpack.c.l.b16 %v2267
  %v2329 = vunpack.c.l.b16 %v2268
  %v2330 = vunpack.c.l.b16 %v2269
  %v2331 = vunpack.c.l.b16 %v2270
  %v2332 = vunpack.c.l.b16 %v2271
  %v2333 = vunpack.c.l.b16 %v2272
  %v2334 = vunpack.c.l.b16 %v2273
  %v2335 = vunpack.c.l.b16 %v2274
  %v2336 = vunpack.c.l.b16 %v2275
  %v2337 = vunpack.c.l.b16 %v2276
  %v2338 = vunpack.c.l.b16 %v2277
  %v2339 = vunpack.c.l.b16 %v2278
  %v2340 = vunpack.c.l.b16 %v2279
  %v2341 = vpack.c.b16 %v2320, %v2319
  %v2342 = vpack.c.b16 %v2322, %v2321
  %v2343 = vpack.c.b16 %v2324, %v2323
  %v2344 = vpack.c.b16 %v2326, %v2325
  %v2345 = vpack.c.b16 %v2328, %v2327
  %v2346 = vpack.c.b16 %v2330, %v2329
  %v2347 = vpack.c.b16 %v2332, %v2331
  %v2348 = vpack.c.b16 %v2334, %v2333
  %v2349 = vpack.c.b16 %v2336, %v2335
  %v2350 = vpack.c.b16 %v2338, %v2337
  %v2351 = vpack.c.b16 %v2340, %v2339
  %v2379 = vunpack.c.l.b16 %v2281
  %v2380 = vunpack.c.l.b16 %v2282
  %v2381 = vunpack.c.l.b16 %v2283
  %v2382 = vunpack.c.l.b16 %v2284
  %v2383 = vunpack.c.l.b16 %v2285
  %v2384 = vunpack.c.l.b16 %v2286
  %v2385 = vunpack.c.l.b16 %v2287
  %v2386 = vunpack.c.l.b16 %v2288
  %v2387 = vunpack.c.l.b16 %v2289
  %v2388 = vunpack.c.l.b16 %v2290
  %v2389 = vunpack.c.l.b16 %v2291
  %v2390 = vunpack.c.l.b16 %v2292
  %v2391 = vunpack.c.l.b16 %v2293
  %v2392 = vunpack.c.l.b16 %v2294
  %v2393 = vunpack.c.l.b16 %v2295
  %v2394 = vunpack.c.l.b16 %v2296
  %v2395 = vpack.c.b16 %v2380, %v2379
  %v2396 = vpack.c.b16 %v2382, %v2381
  %v2397 = vpack.c.b16 %v2384, %v2383
  %v2398 = vpack.c.b16 %v2386, %v2385
  %v2399 = vpack.c.b16 %v2388, %v2387
  %v2400 = vpack.c.b16 %v2390, %v2389
  %v2401 = vpack.c.b16 %v2392, %v2391
  %v2402 = vpack.c.b16 %v2394, %v2393
  %2411 = vmatprep.subr.bf16.mxu0 0
  %2412 = vmatpush1.bf16.msra.mxu0 %v2402
  %2413 = vmatprep.subr.bf16.mxu0 0
  %2414 = vmatpush1.bf16.msra.mxu0 %v2401
  %2415 = vmatprep.subr.bf16.mxu0 0
  %2416 = vmatpush1.bf16.msra.mxu0 %v2400
  %2417 = vmatprep.subr.bf16.mxu0 0
  %2418 = vmatpush1.bf16.msra.mxu0 %v2399
  %2419 = vmatprep.subr.bf16.mxu0 0
  %2420 = vmatpush1.bf16.msra.mxu0 %v2398
  %2421 = vmatprep.subr.bf16.mxu0 0
  %2422 = vmatpush1.bf16.msra.mxu0 %v2397
  %2423 = vmatprep.subr.bf16.mxu0 0
  %2424 = vmatpush1.bf16.msra.mxu0 %v2396
  %2425 = vmatprep.subr.bf16.mxu0 0
  %2426 = vmatpush1.bf16.msra.mxu0 %v2395
  %2427 = vmatprep.subr.bf16.mxu0 0
  %2428 = vmatpush2.bf16.msra.mxu0 0
  %2429 = vmatprep.subr.bf16.mxu0 0
  %2430 = vmatpush2.bf16.msra.mxu0 0
  %2431 = vmatprep.subr.bf16.mxu0 0
  %2432 = vmatpush2.bf16.msra.mxu0 0
  %2433 = vmatprep.subr.bf16.mxu0 0
  %2434 = vmatpush2.bf16.msra.mxu0 0
  %2435 = vmatprep.subr.bf16.mxu0 0
  %2436 = vmatpush2.bf16.msra.mxu0 0
  %2437 = vmatprep.subr.bf16.mxu0 0
  %2438 = vmatpush2.bf16.msra.mxu0 0
  %2439 = vmatprep.subr.bf16.mxu0 0
  %2440 = vmatpush2.bf16.msra.mxu0 0
  %2441 = vmatprep.subr.bf16.mxu0 0
  %2442 = vmatpush2.bf16.msra.mxu0 0
  %2443 = vmatprep.mubr.bf16.mxu0 0
  %2444 = vmatmul.mubr.bf16.gmra.mxu0 %v2341
  %v2445 = vpop.f32.mrf.mxu0
  %v2446 = vadd.f32 0.0, %v2445
  %v2447 = vpop.f32.mrf.mxu0
  %v2448 = vpop.f32.mrf.mxu0
  %v2449 = vadd.f32 0.0, %v2448
  %v2450 = vpop.f32.mrf.mxu0
  %2451 = vmatprep.mubr.bf16.mxu0 0
  %2452 = vmatmul.mubr.bf16.gmra.mxu0 %v2342
  %v2453 = vpop.f32.mrf.mxu0
  %v2454 = vadd.f32 0.0, %v2453
  %v2455 = vpop.f32.mrf.mxu0
  %v2456 = vpop.f32.mrf.mxu0
  %v2457 = vadd.f32 0.0, %v2456
  %v2458 = vpop.f32.mrf.mxu0
  %2459 = vmatprep.mubr.bf16.mxu0 0
  %2460 = vmatmul.mubr.bf16.gmra.mxu0 %v2343
  %v2461 = vpop.f32.mrf.mxu0
  %v2462 = vadd.f32 0.0, %v2461
  %v2463 = vpop.f32.mrf.mxu0
  %v2464 = vpop.f32.mrf.mxu0
  %v2465 = vadd.f32 0.0, %v2464
  %v2466 = vpop.f32.mrf.mxu0
  %2467 = vmatprep.mubr.bf16.mxu0 0
  %2468 = vmatmul.mubr.bf16.gmra.mxu0 %v2344
  %v2469 = vpop.f32.mrf.mxu0
  %v2470 = vadd.f32 0.0, %v2469
  %v2471 = vpop.f32.mrf.mxu0
  %v2472 = vpop.f32.mrf.mxu0
  %v2473 = vadd.f32 0.0, %v2472
  %v2474 = vpop.f32.mrf.mxu0
  %2475 = vmatprep.mubr.bf16.mxu0 0
  %2476 = vmatmul.mubr.bf16.gmra.mxu0 %v2345
  %v2477 = vpop.f32.mrf.mxu0
  %v2478 = vadd.f32 0.0, %v2477
  %v2479 = vpop.f32.mrf.mxu0
  %v2480 = vpop.f32.mrf.mxu0
  %v2481 = vadd.f32 0.0, %v2480
  %v2482 = vpop.f32.mrf.mxu0
  %2483 = vmatprep.mubr.bf16.mxu0 0
  %2484 = vmatmul.mubr.bf16.gmra.mxu0 %v2346
  %v2485 = vpop.f32.mrf.mxu0
  %v2486 = vadd.f32 0.0, %v2485
  %v2487 = vpop.f32.mrf.mxu0
  %v2488 = vpop.f32.mrf.mxu0
  %v2489 = vadd.f32 0.0, %v2488
  %v2490 = vpop.f32.mrf.mxu0
  %2491 = vmatprep.mubr.bf16.mxu0 0
  %2492 = vmatmul.mubr.bf16.gmra.mxu0 %v2347
  %v2493 = vpop.f32.mrf.mxu0
  %v2494 = vadd.f32 0.0, %v2493
  %v2495 = vpop.f32.mrf.mxu0
  %v2496 = vpop.f32.mrf.mxu0
  %v2497 = vadd.f32 0.0, %v2496
  %v2498 = vpop.f32.mrf.mxu0
  %2499 = vmatprep.mubr.bf16.mxu0 0
  %2500 = vmatmul.mubr.bf16.gmra.mxu0 %v2348
  %v2501 = vpop.f32.mrf.mxu0
  %v2502 = vadd.f32 0.0, %v2501
  %v2503 = vpop.f32.mrf.mxu0
  %v2504 = vpop.f32.mrf.mxu0
  %v2505 = vadd.f32 0.0, %v2504
  %v2506 = vpop.f32.mrf.mxu0
  %2507 = vmatprep.mubr.bf16.mxu0 0
  %2508 = vmatmul.mubr.bf16.gmra.mxu0 %v2349
  %v2509 = vpop.f32.mrf.mxu0
  %v2510 = vadd.f32 0.0, %v2509
  %v2511 = vpop.f32.mrf.mxu0
  %v2512 = vpop.f32.mrf.mxu0
  %v2513 = vadd.f32 0.0, %v2512
  %v2514 = vpop.f32.mrf.mxu0
  %2515 = vmatprep.mubr.bf16.mxu0 0
  %2516 = vmatmul.mubr.bf16.gmra.mxu0 %v2350
  %v2517 = vpop.f32.mrf.mxu0
  %v2518 = vadd.f32 0.0, %v2517
  %v2519 = vpop.f32.mrf.mxu0
  %v2520 = vpop.f32.mrf.mxu0
  %v2521 = vadd.f32 0.0, %v2520
  %v2522 = vpop.f32.mrf.mxu0
  %2523 = vmatprep.mubr.bf16.mxu0 0
  %2524 = vmatmul.mubr.bf16.gmra.mxu0 %v2351
  %v2525 = vpop.f32.mrf.mxu0
  %v2526 = vadd.f32 0.0, %v2525
  %v2527 = vpop.f32.mrf.mxu0
  %v2528 = vpop.f32.mrf.mxu0
  %v2529 = vadd.f32 0.0, %v2528
  %v2530 = vpop.f32.mrf.mxu0
  %2531 = vdwg.mxu0
  %v2532 = vld [vmem:[#allocation2] sm:$0xff]
  %v2533 = vld [vmem:[#allocation2 + $0x8] sm:$0xff]
  %v2534 = vld [vmem:[#allocation2 + $0x10] sm:$0xff]
  %v2535 = vld [vmem:[#allocation2 + $0x18] sm:$0xff]
  %v2536 = vld [vmem:[#allocation2 + $0x20] sm:$0xff]
  %v2537 = vld [vmem:[#allocation2 + $0x28] sm:$0xff]
  %v2538 = vld [vmem:[#allocation2 + $0x30] sm:$0xff]
  %v2539 = vld [vmem:[#allocation2 + $0x38] sm:$0xff]
  %v2540 = vld [vmem:[#allocation2 + $0x40] sm:$0xff]
  %v2541 = vld [vmem:[#allocation2 + $0x48] sm:$0xff]
  %v2542 = vld [vmem:[#allocation2 + $0x50] sm:$0xff]
  %v2543 = vld [vmem:[#allocation2 + $0x58] sm:$0xff]
  %v2544 = vld [vmem:[#allocation2 + $0x60] sm:$0xff]
  %v2545 = vld [vmem:[#allocation2 + $0x68] sm:$0xff]
  %v2546 = vld [vmem:[#allocation2 + $0x70] sm:$0xff]
  %v2547 = vld [vmem:[#allocation2 + $0x78] sm:$0xff]
  %v2548 = vld [vmem:[#allocation2 + $0x80] sm:$0xff]
  %v2549 = vld [vmem:[#allocation2 + $0x88] sm:$0xff]
  %v2550 = vld [vmem:[#allocation2 + $0x90] sm:$0xff]
  %v2551 = vld [vmem:[#allocation2 + $0x98] sm:$0xff]
  %v2552 = vld [vmem:[#allocation2 + $0xa0] sm:$0xff]
  %v2553 = vld [vmem:[#allocation2 + $0xa8] sm:$0xff]
  %v2554 = vadd.f32 %v2532, %v2446
  %v2555 = vadd.f32 %v2533, %v2449
  %v2556 = vadd.f32 %v2534, %v2454
  %v2557 = vadd.f32 %v2535, %v2457
  %v2558 = vadd.f32 %v2536, %v2462
  %v2559 = vadd.f32 %v2537, %v2465
  %v2560 = vadd.f32 %v2538, %v2470
  %v2561 = vadd.f32 %v2539, %v2473
  %v2562 = vadd.f32 %v2540, %v2478
  %v2563 = vadd.f32 %v2541, %v2481
  %v2564 = vadd.f32 %v2542, %v2486
  %v2565 = vadd.f32 %v2543, %v2489
  %v2566 = vadd.f32 %v2544, %v2494
  %v2567 = vadd.f32 %v2545, %v2497
  %v2568 = vadd.f32 %v2546, %v2502
  %v2569 = vadd.f32 %v2547, %v2505
  %v2570 = vadd.f32 %v2548, %v2510
  %v2571 = vadd.f32 %v2549, %v2513
  %v2572 = vadd.f32 %v2550, %v2518
  %v2573 = vadd.f32 %v2551, %v2521
  %v2574 = vadd.f32 %v2552, %v2526
  %v2575 = vadd.f32 %v2553, %v2529
  %2576 = vst [vmem:[#allocation2] sm:$0xff] %v2554
  %2577 = vst [vmem:[#allocation2 + $0x8] sm:$0xff] %v2555
  %2578 = vst [vmem:[#allocation2 + $0x10] sm:$0xff] %v2556
  %2579 = vst [vmem:[#allocation2 + $0x18] sm:$0xff] %v2557
  %2580 = vst [vmem:[#allocation2 + $0x20] sm:$0xff] %v2558
  %2581 = vst [vmem:[#allocation2 + $0x28] sm:$0xff] %v2559
  %2582 = vst [vmem:[#allocation2 + $0x30] sm:$0xff] %v2560
  %2583 = vst [vmem:[#allocation2 + $0x38] sm:$0xff] %v2561
  %2584 = vst [vmem:[#allocation2 + $0x40] sm:$0xff] %v2562
  %2585 = vst [vmem:[#allocation2 + $0x48] sm:$0xff] %v2563
  %2586 = vst [vmem:[#allocation2 + $0x50] sm:$0xff] %v2564
  %2587 = vst [vmem:[#allocation2 + $0x58] sm:$0xff] %v2565
  %2588 = vst [vmem:[#allocation2 + $0x60] sm:$0xff] %v2566
  %2589 = vst [vmem:[#allocation2 + $0x68] sm:$0xff] %v2567
  %2590 = vst [vmem:[#allocation2 + $0x70] sm:$0xff] %v2568
  %2591 = vst [vmem:[#allocation2 + $0x78] sm:$0xff] %v2569
  %2592 = vst [vmem:[#allocation2 + $0x80] sm:$0xff] %v2570
  %2593 = vst [vmem:[#allocation2 + $0x88] sm:$0xff] %v2571
  %2594 = vst [vmem:[#allocation2 + $0x90] sm:$0xff] %v2572
  %2595 = vst [vmem:[#allocation2 + $0x98] sm:$0xff] %v2573
  %2596 = vst [vmem:[#allocation2 + $0xa0] sm:$0xff] %v2574
  %2597 = vst [vmem:[#allocation2 + $0xa8] sm:$0xff] %v2575
  %v2598 = vld [vmem:[%s0 + $0x10] sm:$0xf]
  %v2599 = vld [vmem:[%s0 + $0x14] sm:$0xf]
  %v2600 = vld [vmem:[%s0 + $0x18] sm:$0xf]
  %v2601 = vld [vmem:[%s0 + $0x1c] sm:$0xf]
  %v2602 = vld [vmem:[%s0 + $0x20] sm:$0xf]
  %v2603 = vld [vmem:[%s0 + $0x24] sm:$0xf]
  %v2604 = vld [vmem:[%s0 + $0x28] sm:$0xf]
  %v2605 = vld [vmem:[%s0 + $0x2c] sm:$0xf]
  %v2606 = vld [vmem:[%s0 + $0x30] sm:$0xf]
  %v2607 = vld [vmem:[%s0 + $0x34] sm:$0xf]
  %v2608 = vld [vmem:[%s0 + $0x38] sm:$0xf]
  %v2609 = vld [vmem:[%s0 + $0x3c] sm:$0xf]
  %v2610 = vld [vmem:[%s0 + $0x40] sm:$0xf]
  %v2611 = vld [vmem:[%s0 + $0x44] sm:$0xf]
  %v2612 = vld [vmem:[%s0 + $0x48] sm:$0xf]
  %v2613 = vld [vmem:[%s0 + $0x4c] sm:$0xf]
  %v2614 = vld [vmem:[%s0 + $0x50] sm:$0xf]
  %v2615 = vld [vmem:[%s0 + $0x54] sm:$0xf]
  %v2616 = vld [vmem:[%s0 + $0x58] sm:$0xf]
  %v2617 = vld [vmem:[%s0 + $0x5c] sm:$0xf]
  %v2618 = vld [vmem:[%s0 + $0x60] sm:$0xf]
  %v2619 = vld [vmem:[%s0 + $0x64] sm:$0xf]
  %v2620 = vld [vmem:[%s0 + $0x68] sm:$0x1]
  %s2621 = scalar_lea.vmem %s1, 448
  %v2622 = vld [vmem:[%s2621] sm:$0xf]
  %v2623 = vld [vmem:[%s2621 + $0x4] sm:$0xf]
  %v2624 = vld [vmem:[%s2621 + $0x8] sm:$0xf]
  %v2625 = vld [vmem:[%s2621 + $0xc] sm:$0xf]
  %v2626 = vld [vmem:[%s2621 + $0x10] sm:$0xf]
  %v2627 = vld [vmem:[%s2621 + $0x14] sm:$0xf]
  %v2628 = vld [vmem:[%s2621 + $0x18] sm:$0xf]
  %v2629 = vld [vmem:[%s2621 + $0x1c] sm:$0xf]
  %v2630 = vld [vmem:[%s2621 + $0x20] sm:$0xf]
  %v2631 = vld [vmem:[%s2621 + $0x24] sm:$0xf]
  %v2632 = vld [vmem:[%s2621 + $0x28] sm:$0xf]
  %v2633 = vld [vmem:[%s2621 + $0x2c] sm:$0xf]
  %v2634 = vld [vmem:[%s2621 + $0x30] sm:$0xf]
  %v2635 = vld [vmem:[%s2621 + $0x34] sm:$0xf]
  %v2636 = vld [vmem:[%s2621 + $0x38] sm:$0xf]
  %v2637 = vld [vmem:[%s2621 + $0x3c] sm:$0xf]
  %v2661 = vunpack.c.l.b16 %v2598
  %v2662 = vunpack.c.l.b16 %v2599
  %v2663 = vunpack.c.l.b16 %v2600
  %v2664 = vunpack.c.l.b16 %v2601
  %v2665 = vunpack.c.l.b16 %v2602
  %v2666 = vunpack.c.l.b16 %v2603
  %v2667 = vunpack.c.l.b16 %v2604
  %v2668 = vunpack.c.l.b16 %v2605
  %v2669 = vunpack.c.l.b16 %v2606
  %v2670 = vunpack.c.l.b16 %v2607
  %v2671 = vunpack.c.l.b16 %v2608
  %v2672 = vunpack.c.l.b16 %v2609
  %v2673 = vunpack.c.l.b16 %v2610
  %v2674 = vunpack.c.l.b16 %v2611
  %v2675 = vunpack.c.l.b16 %v2612
  %v2676 = vunpack.c.l.b16 %v2613
  %v2677 = vunpack.c.l.b16 %v2614
  %v2678 = vunpack.c.l.b16 %v2615
  %v2679 = vunpack.c.l.b16 %v2616
  %v2680 = vunpack.c.l.b16 %v2617
  %v2681 = vunpack.c.l.b16 %v2618
  %v2682 = vunpack.c.l.b16 %v2619
  %v2683 = vunpack.c.l.b16 %v2620
  %v2684 = vpack.c.b16 %v2662, %v2661
  %v2685 = vpack.c.b16 %v2664, %v2663
  %v2686 = vpack.c.b16 %v2666, %v2665
  %v2687 = vpack.c.b16 %v2668, %v2667
  %v2688 = vpack.c.b16 %v2670, %v2669
  %v2689 = vpack.c.b16 %v2672, %v2671
  %v2690 = vpack.c.b16 %v2674, %v2673
  %v2691 = vpack.c.b16 %v2676, %v2675
  %v2692 = vpack.c.b16 %v2678, %v2677
  %v2693 = vpack.c.b16 %v2680, %v2679
  %v2694 = vpack.c.b16 %v2682, %v2681
  %v2695 = vpack.c.b16 %v2683, %v2683
  %v2697 = vshrl.u32 %v2684, 16
  %v2699 = vshll.u32 %v2684, 16
  %v2701 = vrot.slane %v2699, 1
  %v2702 = vor.u32 %v2697, %v2701
  %v2704 = vshll.u32 %v2685, 16
  %v2706 = vrot.slane %v2704, 1
  %v2707 = vsel %vm408, %v2702, %v2706
  %v2708 = vshrl.u32 %v2685, 16
  %v2710 = vor.u32 %v2708, %v2706
  %v2712 = vshll.u32 %v2686, 16
  %v2714 = vrot.slane %v2712, 1
  %v2715 = vsel %vm408, %v2710, %v2714
  %v2716 = vshrl.u32 %v2686, 16
  %v2718 = vor.u32 %v2716, %v2714
  %v2720 = vshll.u32 %v2687, 16
  %v2722 = vrot.slane %v2720, 1
  %v2723 = vsel %vm408, %v2718, %v2722
  %v2724 = vshrl.u32 %v2687, 16
  %v2726 = vor.u32 %v2724, %v2722
  %v2728 = vshll.u32 %v2688, 16
  %v2730 = vrot.slane %v2728, 1
  %v2731 = vsel %vm408, %v2726, %v2730
  %v2732 = vshrl.u32 %v2688, 16
  %v2734 = vor.u32 %v2732, %v2730
  %v2736 = vshll.u32 %v2689, 16
  %v2738 = vrot.slane %v2736, 1
  %v2739 = vsel %vm408, %v2734, %v2738
  %v2740 = vshrl.u32 %v2689, 16
  %v2742 = vor.u32 %v2740, %v2738
  %v2744 = vshll.u32 %v2690, 16
  %v2746 = vrot.slane %v2744, 1
  %v2747 = vsel %vm408, %v2742, %v2746
  %v2748 = vshrl.u32 %v2690, 16
  %v2750 = vor.u32 %v2748, %v2746
  %v2752 = vshll.u32 %v2691, 16
  %v2754 = vrot.slane %v2752, 1
  %v2755 = vsel %vm408, %v2750, %v2754
  %v2756 = vshrl.u32 %v2691, 16
  %v2758 = vor.u32 %v2756, %v2754
  %v2760 = vshll.u32 %v2692, 16
  %v2762 = vrot.slane %v2760, 1
  %v2763 = vsel %vm408, %v2758, %v2762
  %v2764 = vshrl.u32 %v2692, 16
  %v2766 = vor.u32 %v2764, %v2762
  %v2768 = vshll.u32 %v2693, 16
  %v2770 = vrot.slane %v2768, 1
  %v2771 = vsel %vm408, %v2766, %v2770
  %v2772 = vshrl.u32 %v2693, 16
  %v2774 = vor.u32 %v2772, %v2770
  %v2776 = vshll.u32 %v2694, 16
  %v2778 = vrot.slane %v2776, 1
  %v2779 = vsel %vm408, %v2774, %v2778
  %v2780 = vshrl.u32 %v2694, 16
  %v2782 = vor.u32 %v2780, %v2778
  %v2784 = vshll.u32 %v2695, 16
  %v2786 = vrot.slane %v2784, 1
  %v2787 = vsel %vm408, %v2782, %v2786
  %v2815 = vunpack.c.l.b16 %v2622
  %v2816 = vunpack.c.l.b16 %v2623
  %v2817 = vunpack.c.l.b16 %v2624
  %v2818 = vunpack.c.l.b16 %v2625
  %v2819 = vunpack.c.l.b16 %v2626
  %v2820 = vunpack.c.l.b16 %v2627
  %v2821 = vunpack.c.l.b16 %v2628
  %v2822 = vunpack.c.l.b16 %v2629
  %v2823 = vunpack.c.l.b16 %v2630
  %v2824 = vunpack.c.l.b16 %v2631
  %v2825 = vunpack.c.l.b16 %v2632
  %v2826 = vunpack.c.l.b16 %v2633
  %v2827 = vunpack.c.l.b16 %v2634
  %v2828 = vunpack.c.l.b16 %v2635
  %v2829 = vunpack.c.l.b16 %v2636
  %v2830 = vunpack.c.l.b16 %v2637
  %v2831 = vpack.c.b16 %v2816, %v2815
  %v2832 = vpack.c.b16 %v2818, %v2817
  %v2833 = vpack.c.b16 %v2820, %v2819
  %v2834 = vpack.c.b16 %v2822, %v2821
  %v2835 = vpack.c.b16 %v2824, %v2823
  %v2836 = vpack.c.b16 %v2826, %v2825
  %v2837 = vpack.c.b16 %v2828, %v2827
  %v2838 = vpack.c.b16 %v2830, %v2829
  %2847 = vmatprep.subr.bf16.mxu0 0
  %2848 = vmatpush1.bf16.msra.mxu0 %v2838
  %2849 = vmatprep.subr.bf16.mxu0 0
  %2850 = vmatpush1.bf16.msra.mxu0 %v2837
  %2851 = vmatprep.subr.bf16.mxu0 0
  %2852 = vmatpush1.bf16.msra.mxu0 %v2836
  %2853 = vmatprep.subr.bf16.mxu0 0
  %2854 = vmatpush1.bf16.msra.mxu0 %v2835
  %2855 = vmatprep.subr.bf16.mxu0 0
  %2856 = vmatpush1.bf16.msra.mxu0 %v2834
  %2857 = vmatprep.subr.bf16.mxu0 0
  %2858 = vmatpush1.bf16.msra.mxu0 %v2833
  %2859 = vmatprep.subr.bf16.mxu0 0
  %2860 = vmatpush1.bf16.msra.mxu0 %v2832
  %2861 = vmatprep.subr.bf16.mxu0 0
  %2862 = vmatpush1.bf16.msra.mxu0 %v2831
  %2863 = vmatprep.subr.bf16.mxu0 0
  %2864 = vmatpush2.bf16.msra.mxu0 0
  %2865 = vmatprep.subr.bf16.mxu0 0
  %2866 = vmatpush2.bf16.msra.mxu0 0
  %2867 = vmatprep.subr.bf16.mxu0 0
  %2868 = vmatpush2.bf16.msra.mxu0 0
  %2869 = vmatprep.subr.bf16.mxu0 0
  %2870 = vmatpush2.bf16.msra.mxu0 0
  %2871 = vmatprep.subr.bf16.mxu0 0
  %2872 = vmatpush2.bf16.msra.mxu0 0
  %2873 = vmatprep.subr.bf16.mxu0 0
  %2874 = vmatpush2.bf16.msra.mxu0 0
  %2875 = vmatprep.subr.bf16.mxu0 0
  %2876 = vmatpush2.bf16.msra.mxu0 0
  %2877 = vmatprep.subr.bf16.mxu0 0
  %2878 = vmatpush2.bf16.msra.mxu0 0
  %2879 = vmatprep.mubr.bf16.mxu0 0
  %2880 = vmatmul.mubr.bf16.gmra.mxu0 %v2707
  %v2881 = vpop.f32.mrf.mxu0
  %v2882 = vadd.f32 0.0, %v2881
  %v2883 = vpop.f32.mrf.mxu0
  %v2884 = vpop.f32.mrf.mxu0
  %v2885 = vadd.f32 0.0, %v2884
  %v2886 = vpop.f32.mrf.mxu0
  %2887 = vmatprep.mubr.bf16.mxu0 0
  %2888 = vmatmul.mubr.bf16.gmra.mxu0 %v2715
  %v2889 = vpop.f32.mrf.mxu0
  %v2890 = vadd.f32 0.0, %v2889
  %v2891 = vpop.f32.mrf.mxu0
  %v2892 = vpop.f32.mrf.mxu0
  %v2893 = vadd.f32 0.0, %v2892
  %v2894 = vpop.f32.mrf.mxu0
  %2895 = vmatprep.mubr.bf16.mxu0 0
  %2896 = vmatmul.mubr.bf16.gmra.mxu0 %v2723
  %v2897 = vpop.f32.mrf.mxu0
  %v2898 = vadd.f32 0.0, %v2897
  %v2899 = vpop.f32.mrf.mxu0
  %v2900 = vpop.f32.mrf.mxu0
  %v2901 = vadd.f32 0.0, %v2900
  %v2902 = vpop.f32.mrf.mxu0
  %2903 = vmatprep.mubr.bf16.mxu0 0
  %2904 = vmatmul.mubr.bf16.gmra.mxu0 %v2731
  %v2905 = vpop.f32.mrf.mxu0
  %v2906 = vadd.f32 0.0, %v2905
  %v2907 = vpop.f32.mrf.mxu0
  %v2908 = vpop.f32.mrf.mxu0
  %v2909 = vadd.f32 0.0, %v2908
  %v2910 = vpop.f32.mrf.mxu0
  %2911 = vmatprep.mubr.bf16.mxu0 0
  %2912 = vmatmul.mubr.bf16.gmra.mxu0 %v2739
  %v2913 = vpop.f32.mrf.mxu0
  %v2914 = vadd.f32 0.0, %v2913
  %v2915 = vpop.f32.mrf.mxu0
  %v2916 = vpop.f32.mrf.mxu0
  %v2917 = vadd.f32 0.0, %v2916
  %v2918 = vpop.f32.mrf.mxu0
  %2919 = vmatprep.mubr.bf16.mxu0 0
  %2920 = vmatmul.mubr.bf16.gmra.mxu0 %v2747
  %v2921 = vpop.f32.mrf.mxu0
  %v2922 = vadd.f32 0.0, %v2921
  %v2923 = vpop.f32.mrf.mxu0
  %v2924 = vpop.f32.mrf.mxu0
  %v2925 = vadd.f32 0.0, %v2924
  %v2926 = vpop.f32.mrf.mxu0
  %2927 = vmatprep.mubr.bf16.mxu0 0
  %2928 = vmatmul.mubr.bf16.gmra.mxu0 %v2755
  %v2929 = vpop.f32.mrf.mxu0
  %v2930 = vadd.f32 0.0, %v2929
  %v2931 = vpop.f32.mrf.mxu0
  %v2932 = vpop.f32.mrf.mxu0
  %v2933 = vadd.f32 0.0, %v2932
  %v2934 = vpop.f32.mrf.mxu0
  %2935 = vmatprep.mubr.bf16.mxu0 0
  %2936 = vmatmul.mubr.bf16.gmra.mxu0 %v2763
  %v2937 = vpop.f32.mrf.mxu0
  %v2938 = vadd.f32 0.0, %v2937
  %v2939 = vpop.f32.mrf.mxu0
  %v2940 = vpop.f32.mrf.mxu0
  %v2941 = vadd.f32 0.0, %v2940
  %v2942 = vpop.f32.mrf.mxu0
  %2943 = vmatprep.mubr.bf16.mxu0 0
  %2944 = vmatmul.mubr.bf16.gmra.mxu0 %v2771
  %v2945 = vpop.f32.mrf.mxu0
  %v2946 = vadd.f32 0.0, %v2945
  %v2947 = vpop.f32.mrf.mxu0
  %v2948 = vpop.f32.mrf.mxu0
  %v2949 = vadd.f32 0.0, %v2948
  %v2950 = vpop.f32.mrf.mxu0
  %2951 = vmatprep.mubr.bf16.mxu0 0
  %2952 = vmatmul.mubr.bf16.gmra.mxu0 %v2779
  %v2953 = vpop.f32.mrf.mxu0
  %v2954 = vadd.f32 0.0, %v2953
  %v2955 = vpop.f32.mrf.mxu0
  %v2956 = vpop.f32.mrf.mxu0
  %v2957 = vadd.f32 0.0, %v2956
  %v2958 = vpop.f32.mrf.mxu0
  %2959 = vmatprep.mubr.bf16.mxu0 0
  %2960 = vmatmul.mubr.bf16.gmra.mxu0 %v2787
  %v2961 = vpop.f32.mrf.mxu0
  %v2962 = vadd.f32 0.0, %v2961
  %v2963 = vpop.f32.mrf.mxu0
  %v2964 = vpop.f32.mrf.mxu0
  %v2965 = vadd.f32 0.0, %v2964
  %v2966 = vpop.f32.mrf.mxu0
  %2967 = vdwg.mxu0
  %v2968 = vld [vmem:[#allocation2] sm:$0xff]
  %v2969 = vld [vmem:[#allocation2 + $0x8] sm:$0xff]
  %v2970 = vld [vmem:[#allocation2 + $0x10] sm:$0xff]
  %v2971 = vld [vmem:[#allocation2 + $0x18] sm:$0xff]
  %v2972 = vld [vmem:[#allocation2 + $0x20] sm:$0xff]
  %v2973 = vld [vmem:[#allocation2 + $0x28] sm:$0xff]
  %v2974 = vld [vmem:[#allocation2 + $0x30] sm:$0xff]
  %v2975 = vld [vmem:[#allocation2 + $0x38] sm:$0xff]
  %v2976 = vld [vmem:[#allocation2 + $0x40] sm:$0xff]
  %v2977 = vld [vmem:[#allocation2 + $0x48] sm:$0xff]
  %v2978 = vld [vmem:[#allocation2 + $0x50] sm:$0xff]
  %v2979 = vld [vmem:[#allocation2 + $0x58] sm:$0xff]
  %v2980 = vld [vmem:[#allocation2 + $0x60] sm:$0xff]
  %v2981 = vld [vmem:[#allocation2 + $0x68] sm:$0xff]
  %v2982 = vld [vmem:[#allocation2 + $0x70] sm:$0xff]
  %v2983 = vld [vmem:[#allocation2 + $0x78] sm:$0xff]
  %v2984 = vld [vmem:[#allocation2 + $0x80] sm:$0xff]
  %v2985 = vld [vmem:[#allocation2 + $0x88] sm:$0xff]
  %v2986 = vld [vmem:[#allocation2 + $0x90] sm:$0xff]
  %v2987 = vld [vmem:[#allocation2 + $0x98] sm:$0xff]
  %v2988 = vld [vmem:[#allocation2 + $0xa0] sm:$0xff]
  %v2989 = vld [vmem:[#allocation2 + $0xa8] sm:$0xff]
  %v2990 = vadd.f32 %v2968, %v2882
  %v2991 = vadd.f32 %v2969, %v2885
  %v2992 = vadd.f32 %v2970, %v2890
  %v2993 = vadd.f32 %v2971, %v2893
  %v2994 = vadd.f32 %v2972, %v2898
  %v2995 = vadd.f32 %v2973, %v2901
  %v2996 = vadd.f32 %v2974, %v2906
  %v2997 = vadd.f32 %v2975, %v2909
  %v2998 = vadd.f32 %v2976, %v2914
  %v2999 = vadd.f32 %v2977, %v2917
  %v3000 = vadd.f32 %v2978, %v2922
  %v3001 = vadd.f32 %v2979, %v2925
  %v3002 = vadd.f32 %v2980, %v2930
  %v3003 = vadd.f32 %v2981, %v2933
  %v3004 = vadd.f32 %v2982, %v2938
  %v3005 = vadd.f32 %v2983, %v2941
  %v3006 = vadd.f32 %v2984, %v2946
  %v3007 = vadd.f32 %v2985, %v2949
  %v3008 = vadd.f32 %v2986, %v2954
  %v3009 = vadd.f32 %v2987, %v2957
  %v3010 = vadd.f32 %v2988, %v2962
  %v3011 = vadd.f32 %v2989, %v2965
  %3012 = vst [vmem:[#allocation2] sm:$0xff] %v2990
  %3013 = vst [vmem:[#allocation2 + $0x8] sm:$0xff] %v2991
  %3014 = vst [vmem:[#allocation2 + $0x10] sm:$0xff] %v2992
  %3015 = vst [vmem:[#allocation2 + $0x18] sm:$0xff] %v2993
  %3016 = vst [vmem:[#allocation2 + $0x20] sm:$0xff] %v2994
  %3017 = vst [vmem:[#allocation2 + $0x28] sm:$0xff] %v2995
  %3018 = vst [vmem:[#allocation2 + $0x30] sm:$0xff] %v2996
  %3019 = vst [vmem:[#allocation2 + $0x38] sm:$0xff] %v2997
  %3020 = vst [vmem:[#allocation2 + $0x40] sm:$0xff] %v2998
  %3021 = vst [vmem:[#allocation2 + $0x48] sm:$0xff] %v2999
  %3022 = vst [vmem:[#allocation2 + $0x50] sm:$0xff] %v3000
  %3023 = vst [vmem:[#allocation2 + $0x58] sm:$0xff] %v3001
  %3024 = vst [vmem:[#allocation2 + $0x60] sm:$0xff] %v3002
  %3025 = vst [vmem:[#allocation2 + $0x68] sm:$0xff] %v3003
  %3026 = vst [vmem:[#allocation2 + $0x70] sm:$0xff] %v3004
  %3027 = vst [vmem:[#allocation2 + $0x78] sm:$0xff] %v3005
  %3028 = vst [vmem:[#allocation2 + $0x80] sm:$0xff] %v3006
  %3029 = vst [vmem:[#allocation2 + $0x88] sm:$0xff] %v3007
  %3030 = vst [vmem:[#allocation2 + $0x90] sm:$0xff] %v3008
  %3031 = vst [vmem:[#allocation2 + $0x98] sm:$0xff] %v3009
  %3032 = vst [vmem:[#allocation2 + $0xa0] sm:$0xff] %v3010
  %3033 = vst [vmem:[#allocation2 + $0xa8] sm:$0xff] %v3011
  %v3034 = vld [vmem:[%s0 + $0x10] sm:$0xe]
  %v3035 = vld [vmem:[%s0 + $0x14] sm:$0xf]
  %v3036 = vld [vmem:[%s0 + $0x18] sm:$0xf]
  %v3037 = vld [vmem:[%s0 + $0x1c] sm:$0xf]
  %v3038 = vld [vmem:[%s0 + $0x20] sm:$0xf]
  %v3039 = vld [vmem:[%s0 + $0x24] sm:$0xf]
  %v3040 = vld [vmem:[%s0 + $0x28] sm:$0xf]
  %v3041 = vld [vmem:[%s0 + $0x2c] sm:$0xf]
  %v3042 = vld [vmem:[%s0 + $0x30] sm:$0xf]
  %v3043 = vld [vmem:[%s0 + $0x34] sm:$0xf]
  %v3044 = vld [vmem:[%s0 + $0x38] sm:$0xf]
  %v3045 = vld [vmem:[%s0 + $0x3c] sm:$0xf]
  %v3046 = vld [vmem:[%s0 + $0x40] sm:$0xf]
  %v3047 = vld [vmem:[%s0 + $0x44] sm:$0xf]
  %v3048 = vld [vmem:[%s0 + $0x48] sm:$0xf]
  %v3049 = vld [vmem:[%s0 + $0x4c] sm:$0xf]
  %v3050 = vld [vmem:[%s0 + $0x50] sm:$0xf]
  %v3051 = vld [vmem:[%s0 + $0x54] sm:$0xf]
  %v3052 = vld [vmem:[%s0 + $0x58] sm:$0xf]
  %v3053 = vld [vmem:[%s0 + $0x5c] sm:$0xf]
  %v3054 = vld [vmem:[%s0 + $0x60] sm:$0xf]
  %v3055 = vld [vmem:[%s0 + $0x64] sm:$0xf]
  %v3056 = vld [vmem:[%s0 + $0x68] sm:$0x1]
  %s3057 = scalar_lea.vmem %s1, 512
  %v3058 = vld [vmem:[%s3057] sm:$0xf]
  %v3059 = vld [vmem:[%s3057 + $0x4] sm:$0xf]
  %v3060 = vld [vmem:[%s3057 + $0x8] sm:$0xf]
  %v3061 = vld [vmem:[%s3057 + $0xc] sm:$0xf]
  %v3062 = vld [vmem:[%s3057 + $0x10] sm:$0xf]
  %v3063 = vld [vmem:[%s3057 + $0x14] sm:$0xf]
  %v3064 = vld [vmem:[%s3057 + $0x18] sm:$0xf]
  %v3065 = vld [vmem:[%s3057 + $0x1c] sm:$0xf]
  %v3066 = vld [vmem:[%s3057 + $0x20] sm:$0xf]
  %v3067 = vld [vmem:[%s3057 + $0x24] sm:$0xf]
  %v3068 = vld [vmem:[%s3057 + $0x28] sm:$0xf]
  %v3069 = vld [vmem:[%s3057 + $0x2c] sm:$0xf]
  %v3070 = vld [vmem:[%s3057 + $0x30] sm:$0xf]
  %v3071 = vld [vmem:[%s3057 + $0x34] sm:$0xf]
  %v3072 = vld [vmem:[%s3057 + $0x38] sm:$0xf]
  %v3073 = vld [vmem:[%s3057 + $0x3c] sm:$0xf]
  %v3097 = vunpack.c.l.b16 %v3034
  %v3098 = vunpack.c.l.b16 %v3035
  %v3099 = vunpack.c.l.b16 %v3036
  %v3100 = vunpack.c.l.b16 %v3037
  %v3101 = vunpack.c.l.b16 %v3038
  %v3102 = vunpack.c.l.b16 %v3039
  %v3103 = vunpack.c.l.b16 %v3040
  %v3104 = vunpack.c.l.b16 %v3041
  %v3105 = vunpack.c.l.b16 %v3042
  %v3106 = vunpack.c.l.b16 %v3043
  %v3107 = vunpack.c.l.b16 %v3044
  %v3108 = vunpack.c.l.b16 %v3045
  %v3109 = vunpack.c.l.b16 %v3046
  %v3110 = vunpack.c.l.b16 %v3047
  %v3111 = vunpack.c.l.b16 %v3048
  %v3112 = vunpack.c.l.b16 %v3049
  %v3113 = vunpack.c.l.b16 %v3050
  %v3114 = vunpack.c.l.b16 %v3051
  %v3115 = vunpack.c.l.b16 %v3052
  %v3116 = vunpack.c.l.b16 %v3053
  %v3117 = vunpack.c.l.b16 %v3054
  %v3118 = vunpack.c.l.b16 %v3055
  %v3119 = vunpack.c.l.b16 %v3056
  %v3120 = vpack.c.b16 %v3098, %v3097
  %v3121 = vpack.c.b16 %v3100, %v3099
  %v3122 = vpack.c.b16 %v3102, %v3101
  %v3123 = vpack.c.b16 %v3104, %v3103
  %v3124 = vpack.c.b16 %v3106, %v3105
  %v3125 = vpack.c.b16 %v3108, %v3107
  %v3126 = vpack.c.b16 %v3110, %v3109
  %v3127 = vpack.c.b16 %v3112, %v3111
  %v3128 = vpack.c.b16 %v3114, %v3113
  %v3129 = vpack.c.b16 %v3116, %v3115
  %v3130 = vpack.c.b16 %v3118, %v3117
  %v3131 = vpack.c.b16 %v3119, %v3119
  %v3132 = vrot.slane %v3120, 1
  %v3133 = vrot.slane %v3121, 1
  %v3134 = vsel %vm845, %v3132, %v3133
  %v3135 = vrot.slane %v3122, 1
  %v3136 = vsel %vm845, %v3133, %v3135
  %v3137 = vrot.slane %v3123, 1
  %v3138 = vsel %vm845, %v3135, %v3137
  %v3139 = vrot.slane %v3124, 1
  %v3140 = vsel %vm845, %v3137, %v3139
  %v3141 = vrot.slane %v3125, 1
  %v3142 = vsel %vm845, %v3139, %v3141
  %v3143 = vrot.slane %v3126, 1
  %v3144 = vsel %vm845, %v3141, %v3143
  %v3145 = vrot.slane %v3127, 1
  %v3146 = vsel %vm845, %v3143, %v3145
  %v3147 = vrot.slane %v3128, 1
  %v3148 = vsel %vm845, %v3145, %v3147
  %v3149 = vrot.slane %v3129, 1
  %v3150 = vsel %vm845, %v3147, %v3149
  %v3151 = vrot.slane %v3130, 1
  %v3152 = vsel %vm845, %v3149, %v3151
  %v3153 = vrot.slane %v3131, 1
  %v3154 = vsel %vm845, %v3151, %v3153
  %v3182 = vunpack.c.l.b16 %v3058
  %v3183 = vunpack.c.l.b16 %v3059
  %v3184 = vunpack.c.l.b16 %v3060
  %v3185 = vunpack.c.l.b16 %v3061
  %v3186 = vunpack.c.l.b16 %v3062
  %v3187 = vunpack.c.l.b16 %v3063
  %v3188 = vunpack.c.l.b16 %v3064
  %v3189 = vunpack.c.l.b16 %v3065
  %v3190 = vunpack.c.l.b16 %v3066
  %v3191 = vunpack.c.l.b16 %v3067
  %v3192 = vunpack.c.l.b16 %v3068
  %v3193 = vunpack.c.l.b16 %v3069
  %v3194 = vunpack.c.l.b16 %v3070
  %v3195 = vunpack.c.l.b16 %v3071
  %v3196 = vunpack.c.l.b16 %v3072
  %v3197 = vunpack.c.l.b16 %v3073
  %v3198 = vpack.c.b16 %v3183, %v3182
  %v3199 = vpack.c.b16 %v3185, %v3184
  %v3200 = vpack.c.b16 %v3187, %v3186
  %v3201 = vpack.c.b16 %v3189, %v3188
  %v3202 = vpack.c.b16 %v3191, %v3190
  %v3203 = vpack.c.b16 %v3193, %v3192
  %v3204 = vpack.c.b16 %v3195, %v3194
  %v3205 = vpack.c.b16 %v3197, %v3196
  %3214 = vmatprep.subr.bf16.mxu0 0
  %3215 = vmatpush1.bf16.msra.mxu0 %v3205
  %3216 = vmatprep.subr.bf16.mxu0 0
  %3217 = vmatpush1.bf16.msra.mxu0 %v3204
  %3218 = vmatprep.subr.bf16.mxu0 0
  %3219 = vmatpush1.bf16.msra.mxu0 %v3203
  %3220 = vmatprep.subr.bf16.mxu0 0
  %3221 = vmatpush1.bf16.msra.mxu0 %v3202
  %3222 = vmatprep.subr.bf16.mxu0 0
  %3223 = vmatpush1.bf16.msra.mxu0 %v3201
  %3224 = vmatprep.subr.bf16.mxu0 0
  %3225 = vmatpush1.bf16.msra.mxu0 %v3200
  %3226 = vmatprep.subr.bf16.mxu0 0
  %3227 = vmatpush1.bf16.msra.mxu0 %v3199
  %3228 = vmatprep.subr.bf16.mxu0 0
  %3229 = vmatpush1.bf16.msra.mxu0 %v3198
  %3230 = vmatprep.subr.bf16.mxu0 0
  %3231 = vmatpush2.bf16.msra.mxu0 0
  %3232 = vmatprep.subr.bf16.mxu0 0
  %3233 = vmatpush2.bf16.msra.mxu0 0
  %3234 = vmatprep.subr.bf16.mxu0 0
  %3235 = vmatpush2.bf16.msra.mxu0 0
  %3236 = vmatprep.subr.bf16.mxu0 0
  %3237 = vmatpush2.bf16.msra.mxu0 0
  %3238 = vmatprep.subr.bf16.mxu0 0
  %3239 = vmatpush2.bf16.msra.mxu0 0
  %3240 = vmatprep.subr.bf16.mxu0 0
  %3241 = vmatpush2.bf16.msra.mxu0 0
  %3242 = vmatprep.subr.bf16.mxu0 0
  %3243 = vmatpush2.bf16.msra.mxu0 0
  %3244 = vmatprep.subr.bf16.mxu0 0
  %3245 = vmatpush2.bf16.msra.mxu0 0
  %3246 = vmatprep.mubr.bf16.mxu0 0
  %3247 = vmatmul.mubr.bf16.gmra.mxu0 %v3134
  %v3248 = vpop.f32.mrf.mxu0
  %v3249 = vadd.f32 0.0, %v3248
  %v3250 = vpop.f32.mrf.mxu0
  %v3251 = vpop.f32.mrf.mxu0
  %v3252 = vadd.f32 0.0, %v3251
  %v3253 = vpop.f32.mrf.mxu0
  %3254 = vmatprep.mubr.bf16.mxu0 0
  %3255 = vmatmul.mubr.bf16.gmra.mxu0 %v3136
  %v3256 = vpop.f32.mrf.mxu0
  %v3257 = vadd.f32 0.0, %v3256
  %v3258 = vpop.f32.mrf.mxu0
  %v3259 = vpop.f32.mrf.mxu0
  %v3260 = vadd.f32 0.0, %v3259
  %v3261 = vpop.f32.mrf.mxu0
  %3262 = vmatprep.mubr.bf16.mxu0 0
  %3263 = vmatmul.mubr.bf16.gmra.mxu0 %v3138
  %v3264 = vpop.f32.mrf.mxu0
  %v3265 = vadd.f32 0.0, %v3264
  %v3266 = vpop.f32.mrf.mxu0
  %v3267 = vpop.f32.mrf.mxu0
  %v3268 = vadd.f32 0.0, %v3267
  %v3269 = vpop.f32.mrf.mxu0
  %3270 = vmatprep.mubr.bf16.mxu0 0
  %3271 = vmatmul.mubr.bf16.gmra.mxu0 %v3140
  %v3272 = vpop.f32.mrf.mxu0
  %v3273 = vadd.f32 0.0, %v3272
  %v3274 = vpop.f32.mrf.mxu0
  %v3275 = vpop.f32.mrf.mxu0
  %v3276 = vadd.f32 0.0, %v3275
  %v3277 = vpop.f32.mrf.mxu0
  %3278 = vmatprep.mubr.bf16.mxu0 0
  %3279 = vmatmul.mubr.bf16.gmra.mxu0 %v3142
  %v3280 = vpop.f32.mrf.mxu0
  %v3281 = vadd.f32 0.0, %v3280
  %v3282 = vpop.f32.mrf.mxu0
  %v3283 = vpop.f32.mrf.mxu0
  %v3284 = vadd.f32 0.0, %v3283
  %v3285 = vpop.f32.mrf.mxu0
  %3286 = vmatprep.mubr.bf16.mxu0 0
  %3287 = vmatmul.mubr.bf16.gmra.mxu0 %v3144
  %v3288 = vpop.f32.mrf.mxu0
  %v3289 = vadd.f32 0.0, %v3288
  %v3290 = vpop.f32.mrf.mxu0
  %v3291 = vpop.f32.mrf.mxu0
  %v3292 = vadd.f32 0.0, %v3291
  %v3293 = vpop.f32.mrf.mxu0
  %3294 = vmatprep.mubr.bf16.mxu0 0
  %3295 = vmatmul.mubr.bf16.gmra.mxu0 %v3146
  %v3296 = vpop.f32.mrf.mxu0
  %v3297 = vadd.f32 0.0, %v3296
  %v3298 = vpop.f32.mrf.mxu0
  %v3299 = vpop.f32.mrf.mxu0
  %v3300 = vadd.f32 0.0, %v3299
  %v3301 = vpop.f32.mrf.mxu0
  %3302 = vmatprep.mubr.bf16.mxu0 0
  %3303 = vmatmul.mubr.bf16.gmra.mxu0 %v3148
  %v3304 = vpop.f32.mrf.mxu0
  %v3305 = vadd.f32 0.0, %v3304
  %v3306 = vpop.f32.mrf.mxu0
  %v3307 = vpop.f32.mrf.mxu0
  %v3308 = vadd.f32 0.0, %v3307
  %v3309 = vpop.f32.mrf.mxu0
  %3310 = vmatprep.mubr.bf16.mxu0 0
  %3311 = vmatmul.mubr.bf16.gmra.mxu0 %v3150
  %v3312 = vpop.f32.mrf.mxu0
  %v3313 = vadd.f32 0.0, %v3312
  %v3314 = vpop.f32.mrf.mxu0
  %v3315 = vpop.f32.mrf.mxu0
  %v3316 = vadd.f32 0.0, %v3315
  %v3317 = vpop.f32.mrf.mxu0
  %3318 = vmatprep.mubr.bf16.mxu0 0
  %3319 = vmatmul.mubr.bf16.gmra.mxu0 %v3152
  %v3320 = vpop.f32.mrf.mxu0
  %v3321 = vadd.f32 0.0, %v3320
  %v3322 = vpop.f32.mrf.mxu0
  %v3323 = vpop.f32.mrf.mxu0
  %v3324 = vadd.f32 0.0, %v3323
  %v3325 = vpop.f32.mrf.mxu0
  %3326 = vmatprep.mubr.bf16.mxu0 0
  %3327 = vmatmul.mubr.bf16.gmra.mxu0 %v3154
  %v3328 = vpop.f32.mrf.mxu0
  %v3329 = vadd.f32 0.0, %v3328
  %v3330 = vpop.f32.mrf.mxu0
  %v3331 = vpop.f32.mrf.mxu0
  %v3332 = vadd.f32 0.0, %v3331
  %v3333 = vpop.f32.mrf.mxu0
  %3334 = vdwg.mxu0
  %v3335 = vld [vmem:[#allocation2] sm:$0xff]
  %v3336 = vld [vmem:[#allocation2 + $0x8] sm:$0xff]
  %v3337 = vld [vmem:[#allocation2 + $0x10] sm:$0xff]
  %v3338 = vld [vmem:[#allocation2 + $0x18] sm:$0xff]
  %v3339 = vld [vmem:[#allocation2 + $0x20] sm:$0xff]
  %v3340 = vld [vmem:[#allocation2 + $0x28] sm:$0xff]
  %v3341 = vld [vmem:[#allocation2 + $0x30] sm:$0xff]
  %v3342 = vld [vmem:[#allocation2 + $0x38] sm:$0xff]
  %v3343 = vld [vmem:[#allocation2 + $0x40] sm:$0xff]
  %v3344 = vld [vmem:[#allocation2 + $0x48] sm:$0xff]
  %v3345 = vld [vmem:[#allocation2 + $0x50] sm:$0xff]
  %v3346 = vld [vmem:[#allocation2 + $0x58] sm:$0xff]
  %v3347 = vld [vmem:[#allocation2 + $0x60] sm:$0xff]
  %v3348 = vld [vmem:[#allocation2 + $0x68] sm:$0xff]
  %v3349 = vld [vmem:[#allocation2 + $0x70] sm:$0xff]
  %v3350 = vld [vmem:[#allocation2 + $0x78] sm:$0xff]
  %v3351 = vld [vmem:[#allocation2 + $0x80] sm:$0xff]
  %v3352 = vld [vmem:[#allocation2 + $0x88] sm:$0xff]
  %v3353 = vld [vmem:[#allocation2 + $0x90] sm:$0xff]
  %v3354 = vld [vmem:[#allocation2 + $0x98] sm:$0xff]
  %v3355 = vld [vmem:[#allocation2 + $0xa0] sm:$0xff]
  %v3356 = vld [vmem:[#allocation2 + $0xa8] sm:$0xff]
  %v3357 = vadd.f32 %v3335, %v3249
  %v3358 = vadd.f32 %v3336, %v3252
  %v3359 = vadd.f32 %v3337, %v3257
  %v3360 = vadd.f32 %v3338, %v3260
  %v3361 = vadd.f32 %v3339, %v3265
  %v3362 = vadd.f32 %v3340, %v3268
  %v3363 = vadd.f32 %v3341, %v3273
  %v3364 = vadd.f32 %v3342, %v3276
  %v3365 = vadd.f32 %v3343, %v3281
  %v3366 = vadd.f32 %v3344, %v3284
  %v3367 = vadd.f32 %v3345, %v3289
  %v3368 = vadd.f32 %v3346, %v3292
  %v3369 = vadd.f32 %v3347, %v3297
  %v3370 = vadd.f32 %v3348, %v3300
  %v3371 = vadd.f32 %v3349, %v3305
  %v3372 = vadd.f32 %v3350, %v3308
  %v3373 = vadd.f32 %v3351, %v3313
  %v3374 = vadd.f32 %v3352, %v3316
  %v3375 = vadd.f32 %v3353, %v3321
  %v3376 = vadd.f32 %v3354, %v3324
  %v3377 = vadd.f32 %v3355, %v3329
  %v3378 = vadd.f32 %v3356, %v3332
  %3379 = vst [vmem:[#allocation2] sm:$0xff] %v3357
  %3380 = vst [vmem:[#allocation2 + $0x8] sm:$0xff] %v3358
  %3381 = vst [vmem:[#allocation2 + $0x10] sm:$0xff] %v3359
  %3382 = vst [vmem:[#allocation2 + $0x18] sm:$0xff] %v3360
  %3383 = vst [vmem:[#allocation2 + $0x20] sm:$0xff] %v3361
  %3384 = vst [vmem:[#allocation2 + $0x28] sm:$0xff] %v3362
  %3385 = vst [vmem:[#allocation2 + $0x30] sm:$0xff] %v3363
  %3386 = vst [vmem:[#allocation2 + $0x38] sm:$0xff] %v3364
  %3387 = vst [vmem:[#allocation2 + $0x40] sm:$0xff] %v3365
  %3388 = vst [vmem:[#allocation2 + $0x48] sm:$0xff] %v3366
  %3389 = vst [vmem:[#allocation2 + $0x50] sm:$0xff] %v3367
  %3390 = vst [vmem:[#allocation2 + $0x58] sm:$0xff] %v3368
  %3391 = vst [vmem:[#allocation2 + $0x60] sm:$0xff] %v3369
  %3392 = vst [vmem:[#allocation2 + $0x68] sm:$0xff] %v3370
  %3393 = vst [vmem:[#allocation2 + $0x70] sm:$0xff] %v3371
  %3394 = vst [vmem:[#allocation2 + $0x78] sm:$0xff] %v3372
  %3395 = vst [vmem:[#allocation2 + $0x80] sm:$0xff] %v3373
  %3396 = vst [vmem:[#allocation2 + $0x88] sm:$0xff] %v3374
  %3397 = vst [vmem:[#allocation2 + $0x90] sm:$0xff] %v3375
  %3398 = vst [vmem:[#allocation2 + $0x98] sm:$0xff] %v3376
  %3399 = vst [vmem:[#allocation2 + $0xa0] sm:$0xff] %v3377
  %3400 = vst [vmem:[#allocation2 + $0xa8] sm:$0xff] %v3378
  %v3401 = vld [vmem:[#allocation2] sm:$0xff]
  %v3402 = vld [vmem:[#allocation2 + $0x8] sm:$0xff]
  %v3403 = vld [vmem:[#allocation2 + $0x10] sm:$0xff]
  %v3404 = vld [vmem:[#allocation2 + $0x18] sm:$0xff]
  %v3405 = vld [vmem:[#allocation2 + $0x20] sm:$0xff]
  %v3406 = vld [vmem:[#allocation2 + $0x28] sm:$0xff]
  %v3407 = vld [vmem:[#allocation2 + $0x30] sm:$0xff]
  %v3408 = vld [vmem:[#allocation2 + $0x38] sm:$0xff]
  %v3409 = vld [vmem:[#allocation2 + $0x40] sm:$0xff]
  %v3410 = vld [vmem:[#allocation2 + $0x48] sm:$0xff]
  %v3411 = vld [vmem:[#allocation2 + $0x50] sm:$0xff]
  %v3412 = vld [vmem:[#allocation2 + $0x58] sm:$0xff]
  %v3413 = vld [vmem:[#allocation2 + $0x60] sm:$0xff]
  %v3414 = vld [vmem:[#allocation2 + $0x68] sm:$0xff]
  %v3415 = vld [vmem:[#allocation2 + $0x70] sm:$0xff]
  %v3416 = vld [vmem:[#allocation2 + $0x78] sm:$0xff]
  %v3417 = vld [vmem:[#allocation2 + $0x80] sm:$0xff]
  %v3418 = vld [vmem:[#allocation2 + $0x88] sm:$0xff]
  %v3419 = vld [vmem:[#allocation2 + $0x90] sm:$0xff]
  %v3420 = vld [vmem:[#allocation2 + $0x98] sm:$0xff]
  %v3421 = vld [vmem:[#allocation2 + $0xa0] sm:$0xff]
  %v3422 = vld [vmem:[#allocation2 + $0xa8] sm:$0xff]
  %v3423 = vld [vmem:[%s2] sm:$0x1]
  %v3425 = vlaneseq
  %v3426 = vshrl.u32 %v3425, 7
  %v3427 = vsub.s32 0, %v3426
  %v3428 = vrot.slane %v3423, %v3427
  %v3430 = vadd.f32 %v3401, %v3428
  %v3431 = vadd.f32 %v3402, %v3428
  %v3432 = vadd.f32 %v3403, %v3428
  %v3433 = vadd.f32 %v3404, %v3428
  %v3434 = vadd.f32 %v3405, %v3428
  %v3435 = vadd.f32 %v3406, %v3428
  %v3436 = vadd.f32 %v3407, %v3428
  %v3437 = vadd.f32 %v3408, %v3428
  %v3438 = vadd.f32 %v3409, %v3428
  %v3439 = vadd.f32 %v3410, %v3428
  %v3440 = vadd.f32 %v3411, %v3428
  %v3441 = vadd.f32 %v3412, %v3428
  %v3442 = vadd.f32 %v3413, %v3428
  %v3443 = vadd.f32 %v3414, %v3428
  %v3444 = vadd.f32 %v3415, %v3428
  %v3445 = vadd.f32 %v3416, %v3428
  %v3446 = vadd.f32 %v3417, %v3428
  %v3447 = vadd.f32 %v3418, %v3428
  %v3448 = vadd.f32 %v3419, %v3428
  %v3449 = vadd.f32 %v3420, %v3428
  %v3450 = vadd.f32 %v3421, %v3428
  %v3451 = vadd.f32 %v3422, %v3428
  %v3452 = vmax.f32 %v3430, 0.0
  %v3453 = vmax.f32 %v3431, 0.0
  %v3454 = vmax.f32 %v3432, 0.0
  %v3455 = vmax.f32 %v3433, 0.0
  %v3456 = vmax.f32 %v3434, 0.0
  %v3457 = vmax.f32 %v3435, 0.0
  %v3458 = vmax.f32 %v3436, 0.0
  %v3459 = vmax.f32 %v3437, 0.0
  %v3460 = vmax.f32 %v3438, 0.0
  %v3461 = vmax.f32 %v3439, 0.0
  %v3462 = vmax.f32 %v3440, 0.0
  %v3463 = vmax.f32 %v3441, 0.0
  %v3464 = vmax.f32 %v3442, 0.0
  %v3465 = vmax.f32 %v3443, 0.0
  %v3466 = vmax.f32 %v3444, 0.0
  %v3467 = vmax.f32 %v3445, 0.0
  %v3468 = vmax.f32 %v3446, 0.0
  %v3469 = vmax.f32 %v3447, 0.0
  %v3470 = vmax.f32 %v3448, 0.0
  %v3471 = vmax.f32 %v3449, 0.0
  %v3472 = vmax.f32 %v3450, 0.0
  %v3473 = vmax.f32 %v3451, 0.0
  %3474 = vst [vmem:[#allocation2] sm:$0xff] %v3452
  %3475 = vst [vmem:[#allocation2 + $0x8] sm:$0xff] %v3453
  %3476 = vst [vmem:[#allocation2 + $0x10] sm:$0xff] %v3454
  %3477 = vst [vmem:[#allocation2 + $0x18] sm:$0xff] %v3455
  %3478 = vst [vmem:[#allocation2 + $0x20] sm:$0xff] %v3456
  %3479 = vst [vmem:[#allocation2 + $0x28] sm:$0xff] %v3457
  %3480 = vst [vmem:[#allocation2 + $0x30] sm:$0xff] %v3458
  %3481 = vst [vmem:[#allocation2 + $0x38] sm:$0xff] %v3459
  %3482 = vst [vmem:[#allocation2 + $0x40] sm:$0xff] %v3460
  %3483 = vst [vmem:[#allocation2 + $0x48] sm:$0xff] %v3461
  %3484 = vst [vmem:[#allocation2 + $0x50] sm:$0xff] %v3462
  %3485 = vst [vmem:[#allocation2 + $0x58] sm:$0xff] %v3463
  %3486 = vst [vmem:[#allocation2 + $0x60] sm:$0xff] %v3464
  %3487 = vst [vmem:[#allocation2 + $0x68] sm:$0xff] %v3465
  %3488 = vst [vmem:[#allocation2 + $0x70] sm:$0xff] %v3466
  %3489 = vst [vmem:[#allocation2 + $0x78] sm:$0xff] %v3467
  %3490 = vst [vmem:[#allocation2 + $0x80] sm:$0xff] %v3468
  %3491 = vst [vmem:[#allocation2 + $0x88] sm:$0xff] %v3469
  %3492 = vst [vmem:[#allocation2 + $0x90] sm:$0xff] %v3470
  %3493 = vst [vmem:[#allocation2 + $0x98] sm:$0xff] %v3471
  %3494 = vst [vmem:[#allocation2 + $0xa0] sm:$0xff] %v3472
  %3495 = vst [vmem:[#allocation2 + $0xa8] sm:$0xff] %v3473
  %v3496 = vld [vmem:[#allocation2] sm:$0xff]
  %v3497 = vld [vmem:[#allocation2 + $0x8] sm:$0xff]
  %s3498 = sadd.s32 0, 16
  %s3499 = scalar_lea.vmem [#allocation2], %s3498
  %v3500 = vld [vmem:[%s3499] sm:$0xff]
  %v3501 = vld [vmem:[%s3499 + $0x8] sm:$0xff]
  %v3502 = vmax.f32 %v3496, %v3500
  %v3503 = vmax.f32 %v3497, %v3501
  %3504 = vst [vmem:[#allocation3] sm:$0xff] %v3502
  %3505 = vst [vmem:[#allocation3 + $0x8] sm:$0xff] %v3503
  %v3506 = vld [vmem:[#allocation3] ss:$2 sm:$0x3f]
  %s3507 = scalar_lea.vmem [#allocation3], 1
  %v3508 = vld [vmem:[%s3507] ss:$2 sm:$0x1f]
  %v3509 = vmax.f32 %v3506, %v3508
  %vm3510 = vcmask 1044480
  %v3511 = vsel %vm3510, %v3509, %v3506
  %v3513 = vrot.slane %v3508, 7
  %v3515 = vmax.f32 %v3511, %v3513
  %vm3516 = vcmask 1040384
  %v3517 = vsel %vm3516, %v3511, %v3515
  %vm3518 = vcmask 1045504
  %v3519 = vsel %vm3518, %v3517, 0.0
  %v3520 = vpack.c.bf16 0.0, %v3519
  %v3522 = vunpack.c.l.b16 %v3520
  %v3523 = vunpack.c.h.b16 %v3520
  %v3524 = vpack.c.b16 %v3522, %v3522
  %v3525 = vpack.c.b16 %v3523, %v3523
  %3528 = vst [vmem:[%s3] sm:$0xf] %v3524
  %3529 = vst [vmem:[%s3 + $0x4] sm:$0xf] %v3525
  %v3530 = vld [vmem:[%s3499] sm:$0xff]
  %v3531 = vld [vmem:[%s3499 + $0x8] sm:$0xff]
  %s3532 = sadd.s32 0, 32
  %s3533 = scalar_lea.vmem [#allocation2], %s3532
  %v3534 = vld [vmem:[%s3533] sm:$0xff]
  %v3535 = vld [vmem:[%s3533 + $0x8] sm:$0xff]
  %v3536 = vmax.f32 %v3530, %v3534
  %v3537 = vmax.f32 %v3531, %v3535
  %s3538 = sadd.s32 0, 48
  %s3539 = scalar_lea.vmem [#allocation2], %s3538
  %v3540 = vld [vmem:[%s3539] sm:$0xff]
  %v3541 = vld [vmem:[%s3539 + $0x8] sm:$0xff]
  %v3542 = vmax.f32 %v3536, %v3540
  %v3543 = vmax.f32 %v3537, %v3541
  %3544 = vst [vmem:[#allocation3] sm:$0xff] %v3542
  %3545 = vst [vmem:[#allocation3 + $0x8] sm:$0xff] %v3543
  %v3546 = vld [vmem:[#allocation3] ss:$2 sm:$0x3f]
  %v3547 = vld [vmem:[%s3507] ss:$2 sm:$0x1f]
  %v3548 = vmax.f32 %v3546, %v3547
  %v3549 = vsel %vm3510, %v3548, %v3546
  %v3551 = vrot.slane %v3547, 7
  %v3553 = vmax.f32 %v3549, %v3551
  %v3554 = vsel %vm3516, %v3549, %v3553
  %v3555 = vsel %vm3518, %v3554, 0.0
  %v3556 = vpack.c.bf16 0.0, %v3555
  %v3558 = vunpack.c.l.b16 %v3556
  %v3559 = vunpack.c.h.b16 %v3556
  %v3560 = vpack.c.b16 %v3558, %v3558
  %v3561 = vpack.c.b16 %v3559, %v3559
  %s3564 = sshra.s32 %s3498, 3
  %s3565 = sand.u32 %s3498, 7
  %s3566 = smul.addr %s3564, 4
  %s3567 = scalar_lea.vmem %s3, %s3566
  %3568 = vst [vmem:[%s3567] sm:$0xf] %v3560
  %3569 = vst [vmem:[%s3567 + $0x4] sm:$0xf] %v3561
  %v3570 = vld [vmem:[%s3539] sm:$0xff]
  %v3571 = vld [vmem:[%s3539 + $0x8] sm:$0xff]
  %s3572 = sadd.s32 0, 64
  %s3573 = scalar_lea.vmem [#allocation2], %s3572
  %v3574 = vld [vmem:[%s3573] sm:$0xff]
  %v3575 = vld [vmem:[%s3573 + $0x8] sm:$0xff]
  %v3576 = vmax.f32 %v3570, %v3574
  %v3577 = vmax.f32 %v3571, %v3575
  %s3578 = sadd.s32 0, 80
  %s3579 = scalar_lea.vmem [#allocation2], %s3578
  %v3580 = vld [vmem:[%s3579] sm:$0xff]
  %v3581 = vld [vmem:[%s3579 + $0x8] sm:$0xff]
  %v3582 = vmax.f32 %v3576, %v3580
  %v3583 = vmax.f32 %v3577, %v3581
  %3584 = vst [vmem:[#allocation3] sm:$0xff] %v3582
  %3585 = vst [vmem:[#allocation3 + $0x8] sm:$0xff] %v3583
  %v3586 = vld [vmem:[#allocation3] ss:$2 sm:$0x3f]
  %v3587 = vld [vmem:[%s3507] ss:$2 sm:$0x1f]
  %v3588 = vmax.f32 %v3586, %v3587
  %v3589 = vsel %vm3510, %v3588, %v3586
  %v3591 = vrot.slane %v3587, 7
  %v3593 = vmax.f32 %v3589, %v3591
  %v3594 = vsel %vm3516, %v3589, %v3593
  %v3595 = vsel %vm3518, %v3594, 0.0
  %v3596 = vpack.c.bf16 0.0, %v3595
  %v3598 = vunpack.c.l.b16 %v3596
  %v3599 = vunpack.c.h.b16 %v3596
  %v3600 = vpack.c.b16 %v3598, %v3598
  %v3601 = vpack.c.b16 %v3599, %v3599
  %s3604 = sshra.s32 %s3532, 3
  %s3605 = sand.u32 %s3532, 7
  %s3606 = smul.addr %s3604, 4
  %s3607 = scalar_lea.vmem %s3, %s3606
  %3608 = vst [vmem:[%s3607] sm:$0xf] %v3600
  %3609 = vst [vmem:[%s3607 + $0x4] sm:$0xf] %v3601
  %v3610 = vld [vmem:[%s3579] sm:$0xff]
  %v3611 = vld [vmem:[%s3579 + $0x8] sm:$0xff]
  %s3612 = sadd.s32 0, 96
  %s3613 = scalar_lea.vmem [#allocation2], %s3612
  %v3614 = vld [vmem:[%s3613] sm:$0xff]
  %v3615 = vld [vmem:[%s3613 + $0x8] sm:$0xff]
  %v3616 = vmax.f32 %v3610, %v3614
  %v3617 = vmax.f32 %v3611, %v3615
  %s3618 = sadd.s32 0, 112
  %s3619 = scalar_lea.vmem [#allocation2], %s3618
  %v3620 = vld [vmem:[%s3619] sm:$0xff]
  %v3621 = vld [vmem:[%s3619 + $0x8] sm:$0xff]
  %v3622 = vmax.f32 %v3616, %v3620
  %v3623 = vmax.f32 %v3617, %v3621
  %3624 = vst [vmem:[#allocation3] sm:$0xff] %v3622
  %3625 = vst [vmem:[#allocation3 + $0x8] sm:$0xff] %v3623
  %v3626 = vld [vmem:[#allocation3] ss:$2 sm:$0x3f]
  %v3627 = vld [vmem:[%s3507] ss:$2 sm:$0x1f]
  %v3628 = vmax.f32 %v3626, %v3627
  %v3629 = vsel %vm3510, %v3628, %v3626
  %v3631 = vrot.slane %v3627, 7
  %v3633 = vmax.f32 %v3629, %v3631
  %v3634 = vsel %vm3516, %v3629, %v3633
  %v3635 = vsel %vm3518, %v3634, 0.0
  %v3636 = vpack.c.bf16 0.0, %v3635
  %v3638 = vunpack.c.l.b16 %v3636
  %v3639 = vunpack.c.h.b16 %v3636
  %v3640 = vpack.c.b16 %v3638, %v3638
  %v3641 = vpack.c.b16 %v3639, %v3639
  %s3644 = sshra.s32 %s3538, 3
  %s3645 = sand.u32 %s3538, 7
  %s3646 = smul.addr %s3644, 4
  %s3647 = scalar_lea.vmem %s3, %s3646
  %3648 = vst [vmem:[%s3647] sm:$0xf] %v3640
  %3649 = vst [vmem:[%s3647 + $0x4] sm:$0xf] %v3641
  %v3650 = vld [vmem:[%s3619] sm:$0xff]
  %v3651 = vld [vmem:[%s3619 + $0x8] sm:$0xff]
  %s3652 = sadd.s32 0, 128
  %s3653 = scalar_lea.vmem [#allocation2], %s3652
  %v3654 = vld [vmem:[%s3653] sm:$0xff]
  %v3655 = vld [vmem:[%s3653 + $0x8] sm:$0xff]
  %v3656 = vmax.f32 %v3650, %v3654
  %v3657 = vmax.f32 %v3651, %v3655
  %s3658 = sadd.s32 0, 144
  %s3659 = scalar_lea.vmem [#allocation2], %s3658
  %v3660 = vld [vmem:[%s3659] sm:$0xff]
  %v3661 = vld [vmem:[%s3659 + $0x8] sm:$0xff]
  %v3662 = vmax.f32 %v3656, %v3660
  %v3663 = vmax.f32 %v3657, %v3661
  %3664 = vst [vmem:[#allocation3] sm:$0xff] %v3662
  %3665 = vst [vmem:[#allocation3 + $0x8] sm:$0xff] %v3663
  %v3666 = vld [vmem:[#allocation3] ss:$2 sm:$0x3f]
  %v3667 = vld [vmem:[%s3507] ss:$2 sm:$0x1f]
  %v3668 = vmax.f32 %v3666, %v3667
  %v3669 = vsel %vm3510, %v3668, %v3666
  %v3671 = vrot.slane %v3667, 7
  %v3673 = vmax.f32 %v3669, %v3671
  %v3674 = vsel %vm3516, %v3669, %v3673
  %v3675 = vsel %vm3518, %v3674, 0.0
  %v3676 = vpack.c.bf16 0.0, %v3675
  %v3678 = vunpack.c.l.b16 %v3676
  %v3679 = vunpack.c.h.b16 %v3676
  %v3680 = vpack.c.b16 %v3678, %v3678
  %v3681 = vpack.c.b16 %v3679, %v3679
  %s3684 = sshra.s32 %s3572, 3
  %s3685 = sand.u32 %s3572, 7
  %s3686 = smul.addr %s3684, 4
  %s3687 = scalar_lea.vmem %s3, %s3686
  %3688 = vst [vmem:[%s3687] sm:$0xf] %v3680
  %3689 = vst [vmem:[%s3687 + $0x4] sm:$0xf] %v3681
  %v3690 = vld [vmem:[%s3659] sm:$0xff]
  %v3691 = vld [vmem:[%s3659 + $0x8] sm:$0xff]
  %s3692 = sadd.s32 0, 160
  %s3693 = scalar_lea.vmem [#allocation2], %s3692
  %v3694 = vld [vmem:[%s3693] sm:$0xff]
  %v3695 = vld [vmem:[%s3693 + $0x8] sm:$0xff]
  %v3696 = vmax.f32 %v3690, %v3694
  %v3697 = vmax.f32 %v3691, %v3695
  %3698 = vst [vmem:[#allocation3] sm:$0xff] %v3696
  %3699 = vst [vmem:[#allocation3 + $0x8] sm:$0xff] %v3697
  %v3700 = vld [vmem:[#allocation3] ss:$2 sm:$0x3f]
  %v3701 = vld [vmem:[%s3507] ss:$2 sm:$0x1f]
  %v3702 = vmax.f32 %v3700, %v3701
  %v3703 = vsel %vm3510, %v3702, %v3700
  %v3705 = vrot.slane %v3701, 7
  %v3707 = vmax.f32 %v3703, %v3705
  %v3708 = vsel %vm3516, %v3703, %v3707
  %v3709 = vsel %vm3518, %v3708, 0.0
  %v3710 = vpack.c.bf16 0.0, %v3709
  %v3712 = vunpack.c.l.b16 %v3710
  %v3713 = vunpack.c.h.b16 %v3710
  %v3714 = vpack.c.b16 %v3712, %v3712
  %v3715 = vpack.c.b16 %v3713, %v3713
  %s3718 = sshra.s32 %s3578, 3
  %s3719 = sand.u32 %s3578, 7
  %s3720 = smul.addr %s3718, 4
  %s3721 = scalar_lea.vmem %s3, %s3720
  %3722 = vst [vmem:[%s3721] sm:$0xf] %v3714
  %3723 = vst [vmem:[%s3721 + $0x4] sm:$0xf] %v3715
  // Predicated region
  $region14: #{conv_net_forward.4} parent=0 // pred_check
    _
  $region15: #{conv_net_forward.4} parent=0 // pred_check_branch
    %3725 = sbr.rel (0) target = $region17
  $region16: #{conv_net_forward.4} parent=0 // pred_region
    _
  $region17: #{conv_net_forward.4} parent=0 // pred_fallthru
    _
  // Predicated region
  $region18: #{conv_net_forward.4} parent=0 // pred_check
    _
  $region19: #{conv_net_forward.4} parent=0 // pred_check_branch
    %3727 = sbr.rel (0) target = $region21
  $region20: #{conv_net_forward.4} parent=0 // pred_region
    _
  $region21: #{conv_net_forward.4} parent=0 // pred_fallthru
    _

</llo_original>
